<compile_context>
chip_gen: v6e
topology: v6e:2x2x1
jax: 0.10.0
libtpu: 0.0.40
codegen_flags: <defaults>
</compile_context>

<pallas_src>
import jax
import jax.numpy as jnp
from jax import lax
from jax.experimental import pallas as pl
from jax.experimental.pallas import tpu as pltpu

VERY_SMALL_NUMBER = 1e-10

# -----------------------------------------------------------------------------
# Config (small synthetic sizes consistent with the module)
# -----------------------------------------------------------------------------
B = 2            # batch size
N = 3            # num answer candidates
L = 6            # bow sequence length
P = 3            # num relations per path
C = 2            # num ctx entities per candidate
LC = 5           # ctx entity sequence length
VOCAB = 20
E = 16           # vocab_embed_size
O_EMBED = 16     # o_embed_size
HIDDEN = 32      # hidden_size (bidirectional -> HH = 16 per direction)
HH = HIDDEN // 2
MARK_E = 8       # mark_emb_size
NUM_MARKS = 4
NUM_REL = 10

M = B * N                 # 6 candidate rows
M_PAD = 8                 # candidate rows padded to a sublane multiple
MT_PAD = 2 * M_PAD        # combined type+path LSTM rows (type 0:8, path 8:16)
MC_PAD = C * M_PAD        # ctx LSTM rows, c-major blocks of M_PAD rows
V_PAD = 24                # vocab rows padded to a sublane multiple
MARKS_PAD = 8             # mark rows padded to a sublane multiple
G = 4 * HH                # 64 gate columns per direction
TP_VOC = 4 * V_PAD        # 96: type-fwd | type-bwd | path-fwd | path-bwd blocks
CX_VOC = 2 * V_PAD + 2 * MARKS_PAD    # 64: word-fwd | word-bwd | mark-fwd | mark-bwd
NUM_REL_PAD = 16
FEAT2 = 3 * HIDDEN + NUM_REL_PAD      # 112 = type_h | path_h | ctx | rel-counts
OUT_W = 8 * HIDDEN        # 256 (lane-dense): [3 vals | pad | 3 keys | pad]


def _vmem():
    return pl.BlockSpec(memory_space=pltpu.MemorySpace.VMEM)


def _aligned(x, n):
    """multiple_of hint that tolerates already-concrete Python ints."""
    return x if isinstance(x, int) else pl.multiple_of(x, n)


# -----------------------------------------------------------------------------
# The single fused kernel
# -----------------------------------------------------------------------------
def fused_ans_encoder_kernel(ids_tp_ref, ids_ctx_ref, meta_ref,
                             table_tp_ref, table_ctx_ref, w_hh_ref, w_big_ref,
                             out_ref, gi_tp_ref, gi_ctx_ref):
    f32 = jnp.float32
    HIGH = lax.Precision.HIGHEST

    # --- 1. hoisted, bias-folded input projections: one multi-hot matmul per
    #        LSTM group.  Row block s of gi_* holds [fwd gate input at time s |
    #        bwd gate input at time T-1-s] in gate-major column order, so the
    #        recurrent loop never slices gi.
    ids_tp = ids_tp_ref[...]                                          # (96, 2)
    iota_tp = lax.broadcasted_iota(jnp.int32, (L * MT_PAD, TP_VOC), 1)
    oh_tp = ((ids_tp[:, 0:1] == iota_tp) | (ids_tp[:, 1:2] == iota_tp)).astype(f32)
    gi_tp_ref[...] = jnp.dot(oh_tp, table_tp_ref[...],
                             preferred_element_type=f32, precision=HIGH)

    ids_cx = ids_ctx_ref[...]                                         # (80, 4)
    iota_cx = lax.broadcasted_iota(jnp.int32, (LC * MC_PAD, CX_VOC), 1)
    oh_cx = ((ids_cx[:, 0:1] == iota_cx) | (ids_cx[:, 1:2] == iota_cx)
             | (ids_cx[:, 2:3] == iota_cx) | (ids_cx[:, 3:4] == iota_cx)).astype(f32)
    gi_ctx_ref[...] = jnp.dot(oh_cx, table_ctx_ref[...],
                              preferred_element_type=f32, precision=HIGH)

    # --- 2. loop-invariant constants (hoisted)
    lens_tp = meta_ref[:, 0:1]                        # (MT_PAD, 1) int32
    lens_cx = meta_ref[:, 1:2]                        # (MC_PAD, 1) int32
    row_is_type = lax.broadcasted_iota(jnp.int32, (MT_PAD, 1), 0) < M_PAD
    col_is_fwd = lax.broadcasted_iota(jnp.int32, (1, 2 * HH), 1) < HH
    w_type = w_hh_ref[0 * 2 * HH:1 * 2 * HH, :]       # (32, 128) block-diag fwd|bwd
    w_path = w_hh_ref[1 * 2 * HH:2 * 2 * HH, :]
    w_ctx = w_hh_ref[2 * 2 * HH:3 * 2 * HH, :]

    def lstm_update(h, c, gates, valid):
        # one wide sigmoid over all 128 gate lanes, one tanh over the g slab
        sg = jax.nn.sigmoid(gates)
        i = sg[:, 0 * 2 * HH:1 * 2 * HH]
        f = sg[:, 1 * 2 * HH:2 * 2 * HH]
        o = sg[:, 3 * 2 * HH:4 * 2 * HH]
        g = jnp.tanh(gates[:, 2 * 2 * HH:3 * 2 * HH])
        c_new = f * c + i * g
        h_new = o * jnp.tanh(c_new)
        return jnp.where(valid, h_new, h), jnp.where(valid, c_new, c)

    def step(s, carry):
        h_tp, c_tp, h_cx, c_cx = carry                # each (16, 32): [fwd | bwd]

        # -- type/path chain: two independent 128-lane matmuls, result select --
        gi = gi_tp_ref[pl.ds(_aligned(s * MT_PAD, MT_PAD), MT_PAD), :]
        gates = jnp.where(row_is_type,
                          jnp.dot(h_tp, w_type, preferred_element_type=f32),
                          jnp.dot(h_tp, w_path, preferred_element_type=f32)) + gi
        t = L - 1 - s
        valid = (col_is_fwd & (s < lens_tp)) | (~col_is_fwd & (t < lens_tp))
        h_tp, c_tp = lstm_update(h_tp, c_tp, gates, valid)

        # -- ctx chain: interleaved in the same loop; step >= LC fully masked --
        sc = jnp.minimum(s, LC - 1)
        gi_c = gi_ctx_ref[pl.ds(_aligned(sc * MC_PAD, MC_PAD), MC_PAD), :]
        gates_c = jnp.dot(h_cx, w_ctx, preferred_element_type=f32) + gi_c
        t_c = LC - 1 - s
        valid_c = ((col_is_fwd & (s < lens_cx))
                   | (~col_is_fwd & ((t_c >= 0) & (t_c < lens_cx))))
        h_cx, c_cx = lstm_update(h_cx, c_cx, gates_c, valid_c)
        return h_tp, c_tp, h_cx, c_cx

    z = jnp.zeros((MT_PAD, 2 * HH), f32)
    h_tp, _, h_cx, _ = lax.fori_loop(0, L, step, (z, z, z, z), unroll=True)

    # --- 3. relation histogram (the mean-of-relation-embeddings is folded into
    #        rows 96:112 of w_big, so only counts/P are needed here)
    rel_iota = lax.broadcasted_iota(jnp.int32, (M_PAD, NUM_REL_PAD), 1)
    counts = jnp.zeros((M_PAD, NUM_REL_PAD), f32)
    for j in range(P):
        counts = counts + (meta_ref[0:M_PAD, 3 + j:4 + j] == rel_iota).astype(f32)
    counts = counts * (1.0 / P)

    # --- 4. length-masked mean over ctx entities
    num_i = meta_ref[0:M_PAD, 2:3]                    # (8, 1) int32
    acc = jnp.zeros((M_PAD, 2 * HH), f32)
    for c in range(C):
        acc = acc + jnp.where(num_i > c, h_cx[c * M_PAD:(c + 1) * M_PAD, :], 0.0)
    ans_ctx = acc / jnp.maximum(num_i.astype(f32), VERY_SMALL_NUMBER)

    # --- 5. all six key/value projections (plus the ans_paths contribution)
    #        as ONE matmul with a fully lane-dense (8, 256) output store
    feats = jnp.concatenate([h_tp[0:M_PAD, :], h_tp[M_PAD:MT_PAD, :],
                             ans_ctx, counts], axis=1)          # (8, 112)
    out_ref[...] = jnp.dot(feats, w_big_ref[...],
                           preferred_element_type=f32, precision=HIGH)


# -----------------------------------------------------------------------------
# Parameter initialization (deterministic, synthetic) + kernel-layout packing
# -----------------------------------------------------------------------------
def _nrm(key, shape, scale=0.1):
    return scale * jax.random.normal(key, shape, dtype=jnp.float32)


def _init_lstm(key, in_size):
    ks = jax.random.split(key, 6)
    return {
        # stored pre-transposed: (in, 4*HH) / (HH, 4*HH), gate order [i f g o];
        # bias = b_ih + b_hh
        "w_ih_f": _nrm(ks[0], (in_size, G)), "w_hh_f": _nrm(ks[1], (HH, G)),
        "b_f": _nrm(ks[2], (1, G)),
        "w_ih_b": _nrm(ks[3], (in_size, G)), "w_hh_b": _nrm(ks[4], (HH, G)),
        "b_b": _nrm(ks[5], (1, G)),
    }


def init_params(key):
    ks = jax.random.split(key, 12)
    return {
        "embed": _nrm(ks[0], (VOCAB, E)).at[0].set(0.0),          # padding_idx=0
        "relation_embed": _nrm(ks[1], (NUM_REL, O_EMBED)).at[0].set(0.0),
        "mark_emb": _nrm(ks[2], (NUM_MARKS, MARK_E)),
        # bias-free linears stored as (in, out) == PyTorch W^T
        "w_type_bow_key": _nrm(ks[3], (HIDDEN, HIDDEN)),
        "w_type_bow_val": _nrm(ks[4], (HIDDEN, HIDDEN)),
        "w_paths_key": _nrm(ks[5], (HIDDEN + O_EMBED, HIDDEN)),
        "w_paths_val": _nrm(ks[6], (HIDDEN + O_EMBED, HIDDEN)),
        "w_ctx_key": _nrm(ks[7], (HIDDEN, HIDDEN)),
        "w_ctx_val": _nrm(ks[8], (HIDDEN, HIDDEN)),
        "lstm_type": _init_lstm(ks[9], E),
        "lstm_path": _init_lstm(ks[10], E),
        "lstm_ctx": _init_lstm(ks[11], E + MARK_E),
    }


def _scatter_dir(w, direction):
    """Map (rows, G) gate columns in [i f g o] order into the (rows, 2G)
    gate-major fwd|bwd layout [i_f i_b f_f f_b g_f g_b o_f o_b]."""
    rows = w.shape[0]
    out = jnp.zeros((rows, 2 * G), jnp.float32)
    off = 0 if direction == "f" else HH
    for gidx in range(4):
        out = out.at[:, gidx * 2 * HH + off: gidx * 2 * HH + off + HH].set(
            w[:, gidx * HH:(gidx + 1) * HH])
    return out


def pack_params(p):
    """Repack logical parameters into the fused-kernel layout (done once)."""
    HIGH = lax.Precision.HIGHEST
    dot = lambda a, b: jnp.dot(a, b, precision=HIGH)
    lt, lp, lc = p["lstm_type"], p["lstm_path"], p["lstm_ctx"]
    embed_pad = jnp.zeros((V_PAD, E), jnp.float32).at[:VOCAB].set(p["embed"])
    mark_pad = jnp.zeros((MARKS_PAD, MARK_E), jnp.float32).at[:NUM_MARKS].set(p["mark_emb"])

    def lut_block(emb, w_ih, direction, bias=None):
        blk = _scatter_dir(dot(emb, w_ih), direction)
        if bias is not None:
            blk = blk + _scatter_dir(bias, direction)
        return blk

    # 4 vocab blocks for the type/path LSTM (biases folded in once per direction)
    table_tp = jnp.concatenate([
        lut_block(embed_pad, lt["w_ih_f"], "f", lt["b_f"]),
        lut_block(embed_pad, lt["w_ih_b"], "b", lt["b_b"]),
        lut_block(embed_pad, lp["w_ih_f"], "f", lp["b_f"]),
        lut_block(embed_pad, lp["w_ih_b"], "b", lp["b_b"]),
    ], axis=0)                                            # (96, 128)

    # word + mark vocab blocks for the ctx LSTM (biases folded into word blocks)
    table_ctx = jnp.concatenate([
        lut_block(embed_pad, lc["w_ih_f"][0:E], "f", lc["b_f"]),
        lut_block(embed_pad, lc["w_ih_b"][0:E], "b", lc["b_b"]),
        lut_block(mark_pad, lc["w_ih_f"][E:], "f"),
        lut_block(mark_pad, lc["w_ih_b"][E:], "b"),
    ], axis=0)                                            # (64, 128)

    def hh_blockdiag(lstm):
        return jnp.concatenate([_scatter_dir(lstm["w_hh_f"], "f"),
                                _scatter_dir(lstm["w_hh_b"], "b")], axis=0)

    w_hh_all = jnp.concatenate(
        [hh_blockdiag(lt), hh_blockdiag(lp), hh_blockdiag(lc)], axis=0)  # (96, 128)

    # block-diagonal output projection (vals in lanes 0:96, keys in 128:224),
    # with the relation-mean folded in: rows 96:112 act on counts/P.
    H = HIDDEN
    rel_pad = jnp.zeros((NUM_REL_PAD, O_EMBED), jnp.float32).at[:NUM_REL].set(
        p["relation_embed"])
    w_big = jnp.zeros((FEAT2, OUT_W), jnp.float32)
    w_big = w_big.at[0:H, 0:H].set(p["w_type_bow_val"])
    w_big = w_big.at[0:H, 4 * H:5 * H].set(p["w_type_bow_key"])
    w_big = w_big.at[H:2 * H, H:2 * H].set(p["w_paths_val"][0:H])
    w_big = w_big.at[H:2 * H, 5 * H:6 * H].set(p["w_paths_key"][0:H])
    w_big = w_big.at[2 * H:3 * H, 2 * H:3 * H].set(p["w_ctx_val"])
    w_big = w_big.at[2 * H:3 * H, 6 * H:7 * H].set(p["w_ctx_key"])
    w_big = w_big.at[3 * H:3 * H + NUM_REL_PAD, H:2 * H].set(
        dot(rel_pad, p["w_paths_val"][H:H + O_EMBED]))
    w_big = w_big.at[3 * H:3 * H + NUM_REL_PAD, 5 * H:6 * H].set(
        dot(rel_pad, p["w_paths_key"][H:H + O_EMBED]))
    return {"table_tp": table_tp, "table_ctx": table_ctx,
            "w_hh_all": w_hh_all, "w_big": w_big}


# -----------------------------------------------------------------------------
# Forward wrapper: layout plumbing + one pallas_call (7 inputs)
# -----------------------------------------------------------------------------
@jax.jit
def ans_encoder_forward(kp,
                        x_type_bow, x_types, x_type_bow_len,
                        x_path_bow, x_paths, x_path_bow_len,
                        x_ctx_ents, x_ctx_ent_marks, x_ctx_ent_len,
                        x_ctx_ent_num):
    del x_types  # unused by the module (ans_types is never produced)
    b, n, l = x_type_bow.shape
    m = b * n
    i32 = jnp.int32

    def pad_rows(a, target):
        return jnp.pad(a, ((0, target - a.shape[0]),) + ((0, 0),) * (a.ndim - 1))

    # --- type/path ids: time-major blocks of MT_PAD rows; col 0 = fwd token at
    #     time s, col 1 = bwd token at time L-1-s, each offset into its vocab
    #     block of the packed projection table.
    type_ids = pad_rows(x_type_bow.reshape(m, l).astype(i32), M_PAD)     # (8, L)
    path_ids = pad_rows(x_path_bow.reshape(m, l).astype(i32), M_PAD)
    fwd = jnp.concatenate([type_ids + 0 * V_PAD, path_ids + 2 * V_PAD], axis=0)
    bwd = jnp.concatenate([type_ids[:, ::-1] + 1 * V_PAD,
                           path_ids[:, ::-1] + 3 * V_PAD], axis=0)       # (16, L)
    ids_tp = jnp.stack([fwd.T.reshape(L * MT_PAD),
                        bwd.T.reshape(L * MT_PAD)], axis=1)              # (96, 2)

    # --- ctx ids: c-major row blocks of M_PAD; 4 cols = word-fwd, word-bwd,
    #     mark-fwd, mark-bwd vocab-block offsets
    def ctx_mat(a):                                   # (B,N,C,LC) -> (MC_PAD, LC)
        a = a.reshape(m, C, LC).astype(i32)
        a = jnp.transpose(a, (1, 0, 2))               # (C, m, LC)
        a = jnp.pad(a, ((0, 0), (0, M_PAD - m), (0, 0)))
        return a.reshape(MC_PAD, LC)

    cw = ctx_mat(x_ctx_ents)
    cm = ctx_mat(x_ctx_ent_marks)
    off_wf, off_wb = 0, V_PAD
    off_mf, off_mb = 2 * V_PAD, 2 * V_PAD + MARKS_PAD
    ids_ctx = jnp.stack([
        (cw + off_wf).T.reshape(LC * MC_PAD),
        (cw[:, ::-1] + off_wb).T.reshape(LC * MC_PAD),
        (cm + off_mf).T.reshape(LC * MC_PAD),
        (cm[:, ::-1] + off_mb).T.reshape(LC * MC_PAD)], axis=1)          # (80, 4)

    # --- all small int tables packed into ONE (16, 8) int32 array
    lens_tp = jnp.concatenate(
        [pad_rows(x_type_bow_len.reshape(m).astype(i32), M_PAD),
         pad_rows(x_path_bow_len.reshape(m).astype(i32), M_PAD)])        # (16,)
    lens_ctx = jnp.pad(x_ctx_ent_len.reshape(m, C).astype(i32).T,
                       ((0, 0), (0, M_PAD - m))).reshape(MC_PAD)         # (16,)
    ctx_num = pad_rows(x_ctx_ent_num.reshape(m).astype(i32), M_PAD)      # (8,)
    paths_p = pad_rows(x_paths.reshape(m, P).astype(i32), M_PAD)         # (8, 3)
    meta = jnp.zeros((MT_PAD, 8), i32)
    meta = meta.at[:, 0].set(lens_tp)
    meta = meta.at[:, 1].set(lens_ctx)
    meta = meta.at[0:M_PAD, 2].set(ctx_num)
    meta = meta.at[0:M_PAD, 3:3 + P].set(paths_p)

    out = pl.pallas_call(
        fused_ans_encoder_kernel,
        out_shape=jax.ShapeDtypeStruct((M_PAD, OUT_W), jnp.float32),
        in_specs=[_vmem()] * 7,
        out_specs=_vmem(),
        scratch_shapes=[pltpu.VMEM((L * MT_PAD, 2 * G), jnp.float32),
                        pltpu.VMEM((LC * MC_PAD, 2 * G), jnp.float32)],
    )(ids_tp, ids_ctx, meta,
      kp["table_tp"], kp["table_ctx"], kp["w_hh_all"], kp["w_big"])

    out = out[:m]
    H = HIDDEN
    ans_val = [out[:, 0 * H:1 * H].reshape(b, n, H),
               out[:, 1 * H:2 * H].reshape(b, n, H),
               out[:, 2 * H:3 * H].reshape(b, n, H)]
    ans_key = [out[:, 4 * H:5 * H].reshape(b, n, H),
               out[:, 5 * H:6 * H].reshape(b, n, H),
               out[:, 6 * H:7 * H].reshape(b, n, H)]
    return ans_val, ans_key


# -----------------------------------------------------------------------------
# Pure-JAX reference (mirrors the PyTorch module) for correctness checking
# -----------------------------------------------------------------------------
def _dot(a, b):
    return jnp.dot(a, b, precision=lax.Precision.HIGHEST)


def _bilstm_ref(x, lens, lstm):
    mb, lseq, _ = x.shape

    def cell(h, c, xt, w_ih, w_hh, bias):
        gates = _dot(xt, w_ih) + _dot(h, w_hh) + bias
        i = jax.nn.sigmoid(gates[:, 0 * HH:1 * HH])
        f = jax.nn.sigmoid(gates[:, 1 * HH:2 * HH])
        g = jnp.tanh(gates[:, 2 * HH:3 * HH])
        o = jax.nn.sigmoid(gates[:, 3 * HH:4 * HH])
        c2 = f * c + i * g
        return o * jnp.tanh(c2), c2

    hf = jnp.zeros((mb, HH), jnp.float32)
    cf = jnp.zeros((mb, HH), jnp.float32)
    for t in range(lseq):
        h2, c2 = cell(hf, cf, x[:, t], lstm["w_ih_f"], lstm["w_hh_f"], lstm["b_f"])
        v = (t < lens)[:, None]
        hf = jnp.where(v, h2, hf)
        cf = jnp.where(v, c2, cf)
    hb = jnp.zeros((mb, HH), jnp.float32)
    cb = jnp.zeros((mb, HH), jnp.float32)
    for t in range(lseq - 1, -1, -1):
        h2, c2 = cell(hb, cb, x[:, t], lstm["w_ih_b"], lstm["w_hh_b"], lstm["b_b"])
        v = (t < lens)[:, None]
        hb = jnp.where(v, h2, hb)
        cb = jnp.where(v, c2, cb)
    return jnp.concatenate([hf, hb], axis=1)


def ans_encoder_forward_ref(p, x_type_bow, x_type_bow_len, x_path_bow, x_paths,
                            x_path_bow_len, x_ctx_ents, x_ctx_ent_marks,
                            x_ctx_ent_len, x_ctx_ent_num):
    b, n, l = x_type_bow.shape
    m = b * n
    ans_type_bow = _bilstm_ref(p["embed"][x_type_bow.reshape(m, l)],
                               x_type_bow_len.reshape(m), p["lstm_type"])
    ans_path_bow = _bilstm_ref(p["embed"][x_path_bow.reshape(m, l)],
                               x_path_bow_len.reshape(m), p["lstm_path"])
    ans_paths = jnp.mean(p["relation_embed"][x_paths.reshape(m, P)], axis=1)
    ctx_x = jnp.concatenate([p["embed"][x_ctx_ents.reshape(m * C, LC)],
                             p["mark_emb"][x_ctx_ent_marks.reshape(m * C, LC)]],
                            axis=-1)
    ctx_h = _bilstm_ref(ctx_x, x_ctx_ent_len.reshape(m * C),
                        p["lstm_ctx"]).reshape(m, C, HIDDEN)
    num = x_ctx_ent_num.reshape(m)
    mask = (jnp.arange(C)[None, :] < num[:, None]).astype(jnp.float32)
    ans_ctx = (mask[:, :, None] * ctx_h).sum(axis=1) / jnp.maximum(
        num.astype(jnp.float32)[:, None], VERY_SMALL_NUMBER)
    paths_cat = jnp.concatenate([ans_path_bow, ans_paths], axis=-1)
    ans_val = [_dot(ans_type_bow, p["w_type_bow_val"]).reshape(b, n, HIDDEN),
               _dot(paths_cat, p["w_paths_val"]).reshape(b, n, HIDDEN),
               _dot(ans_ctx, p["w_ctx_val"]).reshape(b, n, HIDDEN)]
    ans_key = [_dot(ans_type_bow, p["w_type_bow_key"]).reshape(b, n, HIDDEN),
               _dot(paths_cat, p["w_paths_key"]).reshape(b, n, HIDDEN),
               _dot(ans_ctx, p["w_ctx_key"]).reshape(b, n, HIDDEN)]
    return ans_val, ans_key


# -----------------------------------------------------------------------------
# Main
# -----------------------------------------------------------------------------
if __name__ == "__main__":
    root = jax.random.PRNGKey(0)
    pk, dk = jax.random.split(root)
    params = init_params(pk)
    kparams = pack_params(params)

    dks = jax.random.split(dk, 10)
    x_type_bow = jax.random.randint(dks[0], (B, N, L), 1, VOCAB, dtype=jnp.int32)
    x_type_bow_len = jax.random.randint(dks[1], (B, N), 1, L + 1, dtype=jnp.int32)
    x_types = jax.random.randint(dks[2], (B, N), 0, 7, dtype=jnp.int32)  # unused
    x_path_bow = jax.random.randint(dks[3], (B, N, L), 1, VOCAB, dtype=jnp.int32)
    x_path_bow_len = jax.random.randint(dks[4], (B, N), 1, L + 1, dtype=jnp.int32)
    x_paths = jax.random.randint(dks[5], (B, N, P), 1, NUM_REL, dtype=jnp.int32)
    x_ctx_ents = jax.random.randint(dks[6], (B, N, C, LC), 1, VOCAB, dtype=jnp.int32)
    x_ctx_ent_marks = jax.random.randint(dks[7], (B, N, C, LC), 0, NUM_MARKS,
                                         dtype=jnp.int32)
    x_ctx_ent_len = jax.random.randint(dks[8], (B, N, C), 1, LC + 1, dtype=jnp.int32)
    x_ctx_ent_num = jax.random.randint(dks[9], (B, N), 1, C + 1, dtype=jnp.int32)

    ans_val, ans_key = ans_encoder_forward(
        kparams, x_type_bow, x_types, x_type_bow_len,
        x_path_bow, x_paths, x_path_bow_len,
        x_ctx_ents, x_ctx_ent_marks, x_ctx_ent_len, x_ctx_ent_num)
    jax.block_until_ready(ans_val)
    jax.block_until_ready(ans_key)

    ref_val, ref_key = ans_encoder_forward_ref(
        params, x_type_bow, x_type_bow_len, x_path_bow, x_paths,
        x_path_bow_len, x_ctx_ents, x_ctx_ent_marks, x_ctx_ent_len,
        x_ctx_ent_num)

    for got, ref in zip(ans_val + ans_key, ref_val + ref_key):
        assert got.shape == (B, N, HIDDEN)
        assert bool(jnp.all(jnp.isfinite(got)))
        err = float(jnp.max(jnp.abs(got - ref)))
        assert err < 3e-3, f"mismatch vs pure-JAX reference: max abs err {err}"

    print("KERNEL_OK")
</pallas_src>

<mosaic_0001>
module attributes {stable_mosaic.version = 11 : i64} {
  func.func @fused_ans_encoder_kernel(%arg0: memref<96x2xi32, #tpu.memory_space<vmem>>, %arg1: memref<80x4xi32, #tpu.memory_space<vmem>>, %arg2: memref<16x8xi32, #tpu.memory_space<vmem>>, %arg3: memref<96x128xf32, #tpu.memory_space<vmem>>, %arg4: memref<64x128xf32, #tpu.memory_space<vmem>>, %arg5: memref<96x128xf32, #tpu.memory_space<vmem>>, %arg6: memref<112x256xf32, #tpu.memory_space<vmem>>, %arg7: memref<8x256xf32, #tpu.memory_space<vmem>>, %arg8: memref<96x128xf32, #tpu.memory_space<vmem>>, %arg9: memref<80x128xf32, #tpu.memory_space<vmem>>) attributes {dimension_semantics = [], scalar_prefetch = 0 : i64, scratch_operands = 2 : i64, tpu.core_type = #tpu.core_type<tc>} {
    %c0 = arith.constant 0 : index
    %c0_0 = arith.constant 0 : index
    %0 = vector.load %arg0[%c0, %c0_0] : memref<96x2xi32, #tpu.memory_space<vmem>>, vector<96x2xi32>
    %1 = tpu.iota {dimensions = array<i32: 1>} : vector<96x96xi32>
    %2 = vector.extract_strided_slice %0 {offsets = [0, 0], sizes = [96, 1], strides = [1, 1]} : vector<96x2xi32> to vector<96x1xi32>
    %3 = vector.broadcast %2 : vector<96x1xi32> to vector<96x96xi32>
    %4 = arith.cmpi eq, %3, %1 : vector<96x96xi32>
    %5 = vector.extract_strided_slice %0 {offsets = [0, 1], sizes = [96, 1], strides = [1, 1]} : vector<96x2xi32> to vector<96x1xi32>
    %6 = vector.broadcast %5 : vector<96x1xi32> to vector<96x96xi32>
    %7 = arith.cmpi eq, %6, %1 : vector<96x96xi32>
    %8 = arith.ori %4, %7 : vector<96x96xi1>
    %9 = arith.extui %8 : vector<96x96xi1> to vector<96x96xi32>
    %10 = arith.sitofp %9 : vector<96x96xi32> to vector<96x96xf32>
    %c0_1 = arith.constant 0 : index
    %c0_2 = arith.constant 0 : index
    %11 = vector.load %arg3[%c0_1, %c0_2] : memref<96x128xf32, #tpu.memory_space<vmem>>, vector<96x128xf32>
    %cst = arith.constant dense<0.000000e+00> : vector<96x128xf32>
    %12 = tpu.matmul %10, %11, %cst {dimension_numbers = #tpu.dot_dimension_numbers<[1], [0], [0], [1], [0, 0, 1, 1], [], []>, precision = #tpu.contract_precision<fp32>} : vector<96x96xf32>, vector<96x128xf32>, vector<96x128xf32> -> vector<96x128xf32>
    %c0_3 = arith.constant 0 : index
    %c0_4 = arith.constant 0 : index
    %13 = vector.load %arg8[%c0_3, %c0_4] : memref<96x128xf32, #tpu.memory_space<vmem>>, vector<96x128xf32>
    tpu.vector_store %arg8[%c0_3, %c0_4], %12 {strides = array<i32>} : memref<96x128xf32, #tpu.memory_space<vmem>>, vector<96x128xf32>,
    %c0_5 = arith.constant 0 : index
    %c0_6 = arith.constant 0 : index
    %14 = vector.load %arg1[%c0_5, %c0_6] : memref<80x4xi32, #tpu.memory_space<vmem>>, vector<80x4xi32>
    %15 = tpu.iota {dimensions = array<i32: 1>} : vector<80x64xi32>
    %16 = vector.extract_strided_slice %14 {offsets = [0, 0], sizes = [80, 1], strides = [1, 1]} : vector<80x4xi32> to vector<80x1xi32>
    %17 = vector.broadcast %16 : vector<80x1xi32> to vector<80x64xi32>
    %18 = arith.cmpi eq, %17, %15 : vector<80x64xi32>
    %19 = vector.extract_strided_slice %14 {offsets = [0, 1], sizes = [80, 1], strides = [1, 1]} : vector<80x4xi32> to vector<80x1xi32>
    %20 = vector.broadcast %19 : vector<80x1xi32> to vector<80x64xi32>
    %21 = arith.cmpi eq, %20, %15 : vector<80x64xi32>
    %22 = arith.ori %18, %21 : vector<80x64xi1>
    %23 = vector.extract_strided_slice %14 {offsets = [0, 2], sizes = [80, 1], strides = [1, 1]} : vector<80x4xi32> to vector<80x1xi32>
    %24 = vector.broadcast %23 : vector<80x1xi32> to vector<80x64xi32>
    %25 = arith.cmpi eq, %24, %15 : vector<80x64xi32>
    %26 = arith.ori %22, %25 : vector<80x64xi1>
    %27 = vector.extract_strided_slice %14 {offsets = [0, 3], sizes = [80, 1], strides = [1, 1]} : vector<80x4xi32> to vector<80x1xi32>
    %28 = vector.broadcast %27 : vector<80x1xi32> to vector<80x64xi32>
    %29 = arith.cmpi eq, %28, %15 : vector<80x64xi32>
    %30 = arith.ori %26, %29 : vector<80x64xi1>
    %31 = arith.extui %30 : vector<80x64xi1> to vector<80x64xi32>
    %32 = arith.sitofp %31 : vector<80x64xi32> to vector<80x64xf32>
    %c0_7 = arith.constant 0 : index
    %c0_8 = arith.constant 0 : index
    %33 = vector.load %arg4[%c0_7, %c0_8] : memref<64x128xf32, #tpu.memory_space<vmem>>, vector<64x128xf32>
    %cst_9 = arith.constant dense<0.000000e+00> : vector<80x128xf32>
    %34 = tpu.matmul %32, %33, %cst_9 {dimension_numbers = #tpu.dot_dimension_numbers<[1], [0], [0], [1], [0, 0, 1, 1], [], []>, precision = #tpu.contract_precision<fp32>} : vector<80x64xf32>, vector<64x128xf32>, vector<80x128xf32> -> vector<80x128xf32>
    %c0_10 = arith.constant 0 : index
    %c0_11 = arith.constant 0 : index
    %35 = vector.load %arg9[%c0_10, %c0_11] : memref<80x128xf32, #tpu.memory_space<vmem>>, vector<80x128xf32>
    tpu.vector_store %arg9[%c0_10, %c0_11], %34 {strides = array<i32>} : memref<80x128xf32, #tpu.memory_space<vmem>>, vector<80x128xf32>,
    %c0_12 = arith.constant 0 : index
    %c0_13 = arith.constant 0 : index
    %36 = vector.load %arg2[%c0_12, %c0_13] : memref<16x8xi32, #tpu.memory_space<vmem>>, vector<16x1xi32>
    %c0_14 = arith.constant 0 : index
    %c1 = arith.constant 1 : index
    %37 = vector.load %arg2[%c0_14, %c1] : memref<16x8xi32, #tpu.memory_space<vmem>>, vector<16x1xi32>
    %38 = tpu.iota {dimensions = array<i32: 0>} : vector<16x1xi32>
    %c8_i32 = arith.constant 8 : i32
    %39 = vector.broadcast %c8_i32 : i32 to vector<16x1xi32>
    %40 = arith.cmpi slt, %38, %39 : vector<16x1xi32>
    %41 = tpu.iota {dimensions = array<i32: 1>} : vector<1x32xi32>
    %c16_i32 = arith.constant 16 : i32
    %42 = vector.broadcast %c16_i32 : i32 to vector<1x32xi32>
    %43 = arith.cmpi slt, %41, %42 : vector<1x32xi32>
    %c0_15 = arith.constant 0 : index
    %c0_16 = arith.constant 0 : index
    %44 = vector.load %arg5[%c0_15, %c0_16] : memref<96x128xf32, #tpu.memory_space<vmem>>, vector<32x128xf32>
    %c32 = arith.constant 32 : index
    %c0_17 = arith.constant 0 : index
    %45 = vector.load %arg5[%c32, %c0_17] : memref<96x128xf32, #tpu.memory_space<vmem>>, vector<32x128xf32>
    %c64 = arith.constant 64 : index
    %c0_18 = arith.constant 0 : index
    %46 = vector.load %arg5[%c64, %c0_18] : memref<96x128xf32, #tpu.memory_space<vmem>>, vector<32x128xf32>
    %cst_19 = arith.constant 0.000000e+00 : f32
    %47 = vector.broadcast %cst_19 : f32 to vector<16x32xf32>
    %c0_i32 = arith.constant 0 : i32
    %c16_i32_20 = arith.constant 16 : i32
    %48 = arith.muli %c0_i32, %c16_i32_20 : i32
    %49 = tpu.assume_multiple %48, 16 : i32
    %50 = arith.index_cast %49 : i32 to index
    %c0_21 = arith.constant 0 : index
    %51 = vector.load %arg8[%50, %c0_21] : memref<96x128xf32, #tpu.memory_space<vmem>>, vector<16x128xf32>
    %cst_22 = arith.constant dense<0.000000e+00> : vector<16x128xf32>
    %52 = tpu.matmul %47, %44, %cst_22 {dimension_numbers = #tpu.dot_dimension_numbers<[1], [0], [0], [1], [0, 0, 1, 1], [], []>} : vector<16x32xf32>, vector<32x128xf32>, vector<16x128xf32> -> vector<16x128xf32>
    %cst_23 = arith.constant dense<0.000000e+00> : vector<16x128xf32>
    %53 = tpu.matmul %47, %45, %cst_23 {dimension_numbers = #tpu.dot_dimension_numbers<[1], [0], [0], [1], [0, 0, 1, 1], [], []>} : vector<16x32xf32>, vector<32x128xf32>, vector<16x128xf32> -> vector<16x128xf32>
    %54 = vector.shape_cast %40 : vector<16x1xi1> to vector<16x1xi1>
    %55 = vector.broadcast %54 : vector<16x1xi1> to vector<16x128xi1>
    %56 = arith.select %55, %52, %53 : vector<16x128xi1>, vector<16x128xf32>
    %57 = arith.addf %56, %51 : vector<16x128xf32>
    %c5_i32 = arith.constant 5 : i32
    %58 = arith.subi %c5_i32, %c0_i32 : i32
    %59 = vector.broadcast %c0_i32 : i32 to vector<16x1xi32>
    %60 = arith.cmpi slt, %59, %36 : vector<16x1xi32>
    %61 = vector.broadcast %43 : vector<1x32xi1> to vector<16x32xi1>
    %62 = vector.broadcast %60 : vector<16x1xi1> to vector<16x32xi1>
    %63 = arith.andi %61, %62 : vector<16x32xi1>
    %cst_24 = arith.constant dense<true> : vector<1x32xi1>
    %64 = arith.xori %43, %cst_24 : vector<1x32xi1>
    %65 = vector.broadcast %58 : i32 to vector<16x1xi32>
    %66 = arith.cmpi slt, %65, %36 : vector<16x1xi32>
    %67 = vector.broadcast %64 : vector<1x32xi1> to vector<16x32xi1>
    %68 = vector.broadcast %66 : vector<16x1xi1> to vector<16x32xi1>
    %69 = arith.andi %67, %68 : vector<16x32xi1>
    %70 = arith.ori %63, %69 : vector<16x32xi1>
    %71 = arith.negf %57 : vector<16x128xf32>
    %72 = math.exp %71 : vector<16x128xf32>
    %cst_25 = arith.constant 1.000000e+00 : f32
    %73 = vector.broadcast %cst_25 : f32 to vector<16x128xf32>
    %74 = arith.addf %73, %72 : vector<16x128xf32>
    %75 = arith.divf %73, %74 : vector<16x128xf32>
    %76 = vector.extract_strided_slice %75 {offsets = [0, 0], sizes = [16, 32], strides = [1, 1]} : vector<16x128xf32> to vector<16x32xf32>
    %77 = vector.extract_strided_slice %75 {offsets = [0, 32], sizes = [16, 32], strides = [1, 1]} : vector<16x128xf32> to vector<16x32xf32>
    %78 = vector.extract_strided_slice %75 {offsets = [0, 96], sizes = [16, 32], strides = [1, 1]} : vector<16x128xf32> to vector<16x32xf32>
    %79 = vector.extract_strided_slice %57 {offsets = [0, 64], sizes = [16, 32], strides = [1, 1]} : vector<16x128xf32> to vector<16x32xf32>
    %80 = math.tanh %79 : vector<16x32xf32>
    %81 = arith.mulf %77, %47 : vector<16x32xf32>
    %82 = arith.mulf %76, %80 : vector<16x32xf32>
    %83 = arith.addf %81, %82 : vector<16x32xf32>
    %84 = math.tanh %83 : vector<16x32xf32>
    %85 = arith.mulf %78, %84 : vector<16x32xf32>
    %86 = arith.select %70, %85, %47 : vector<16x32xi1>, vector<16x32xf32>
    %87 = arith.select %70, %83, %47 : vector<16x32xi1>, vector<16x32xf32>
    %c4_i32 = arith.constant 4 : i32
    %88 = arith.minsi %c0_i32, %c4_i32 : i32
    %c16_i32_26 = arith.constant 16 : i32
    %89 = arith.muli %88, %c16_i32_26 : i32
    %90 = tpu.assume_multiple %89, 16 : i32
    %91 = arith.index_cast %90 : i32 to index
    %c0_27 = arith.constant 0 : index
    %92 = vector.load %arg9[%91, %c0_27] : memref<80x128xf32, #tpu.memory_space<vmem>>, vector<16x128xf32>
    %cst_28 = arith.constant dense<0.000000e+00> : vector<16x128xf32>
    %93 = tpu.matmul %47, %46, %cst_28 {dimension_numbers = #tpu.dot_dimension_numbers<[1], [0], [0], [1], [0, 0, 1, 1], [], []>} : vector<16x32xf32>, vector<32x128xf32>, vector<16x128xf32> -> vector<16x128xf32>
    %94 = arith.addf %93, %92 : vector<16x128xf32>
    %c4_i32_29 = arith.constant 4 : i32
    %95 = arith.subi %c4_i32_29, %c0_i32 : i32
    %96 = vector.broadcast %c0_i32 : i32 to vector<16x1xi32>
    %97 = arith.cmpi slt, %96, %37 : vector<16x1xi32>
    %98 = vector.broadcast %43 : vector<1x32xi1> to vector<16x32xi1>
    %99 = vector.broadcast %97 : vector<16x1xi1> to vector<16x32xi1>
    %100 = arith.andi %98, %99 : vector<16x32xi1>
    %cst_30 = arith.constant dense<true> : vector<1x32xi1>
    %101 = arith.xori %43, %cst_30 : vector<1x32xi1>
    %c0_i32_31 = arith.constant 0 : i32
    %102 = arith.cmpi sge, %95, %c0_i32_31 : i32
    %103 = vector.broadcast %95 : i32 to vector<16x1xi32>
    %104 = arith.cmpi slt, %103, %37 : vector<16x1xi32>
    %105 = vector.broadcast %102 : i1 to vector<16x1xi1>
    %106 = arith.andi %105, %104 : vector<16x1xi1>
    %107 = vector.broadcast %101 : vector<1x32xi1> to vector<16x32xi1>
    %108 = vector.broadcast %106 : vector<16x1xi1> to vector<16x32xi1>
    %109 = arith.andi %107, %108 : vector<16x32xi1>
    %110 = arith.ori %100, %109 : vector<16x32xi1>
    %111 = arith.negf %94 : vector<16x128xf32>
    %112 = math.exp %111 : vector<16x128xf32>
    %cst_32 = arith.constant 1.000000e+00 : f32
    %113 = vector.broadcast %cst_32 : f32 to vector<16x128xf32>
    %114 = arith.addf %113, %112 : vector<16x128xf32>
    %115 = arith.divf %113, %114 : vector<16x128xf32>
    %116 = vector.extract_strided_slice %115 {offsets = [0, 0], sizes = [16, 32], strides = [1, 1]} : vector<16x128xf32> to vector<16x32xf32>
    %117 = vector.extract_strided_slice %115 {offsets = [0, 32], sizes = [16, 32], strides = [1, 1]} : vector<16x128xf32> to vector<16x32xf32>
    %118 = vector.extract_strided_slice %115 {offsets = [0, 96], sizes = [16, 32], strides = [1, 1]} : vector<16x128xf32> to vector<16x32xf32>
    %119 = vector.extract_strided_slice %94 {offsets = [0, 64], sizes = [16, 32], strides = [1, 1]} : vector<16x128xf32> to vector<16x32xf32>
    %120 = math.tanh %119 : vector<16x32xf32>
    %121 = arith.mulf %117, %47 : vector<16x32xf32>
    %122 = arith.mulf %116, %120 : vector<16x32xf32>
    %123 = arith.addf %121, %122 : vector<16x32xf32>
    %124 = math.tanh %123 : vector<16x32xf32>
    %125 = arith.mulf %118, %124 : vector<16x32xf32>
    %126 = arith.select %110, %125, %47 : vector<16x32xi1>, vector<16x32xf32>
    %127 = arith.select %110, %123, %47 : vector<16x32xi1>, vector<16x32xf32>
    %c1_i32 = arith.constant 1 : i32
    %c16_i32_33 = arith.constant 16 : i32
    %128 = arith.muli %c1_i32, %c16_i32_33 : i32
    %129 = tpu.assume_multiple %128, 16 : i32
    %130 = arith.index_cast %129 : i32 to index
    %c0_34 = arith.constant 0 : index
    %131 = vector.load %arg8[%130, %c0_34] : memref<96x128xf32, #tpu.memory_space<vmem>>, vector<16x128xf32>
    %cst_35 = arith.constant dense<0.000000e+00> : vector<16x128xf32>
    %132 = tpu.matmul %86, %44, %cst_35 {dimension_numbers = #tpu.dot_dimension_numbers<[1], [0], [0], [1], [0, 0, 1, 1], [], []>} : vector<16x32xf32>, vector<32x128xf32>, vector<16x128xf32> -> vector<16x128xf32>
    %cst_36 = arith.constant dense<0.000000e+00> : vector<16x128xf32>
    %133 = tpu.matmul %86, %45, %cst_36 {dimension_numbers = #tpu.dot_dimension_numbers<[1], [0], [0], [1], [0, 0, 1, 1], [], []>} : vector<16x32xf32>, vector<32x128xf32>, vector<16x128xf32> -> vector<16x128xf32>
    %134 = vector.shape_cast %40 : vector<16x1xi1> to vector<16x1xi1>
    %135 = vector.broadcast %134 : vector<16x1xi1> to vector<16x128xi1>
    %136 = arith.select %135, %132, %133 : vector<16x128xi1>, vector<16x128xf32>
    %137 = arith.addf %136, %131 : vector<16x128xf32>
    %c5_i32_37 = arith.constant 5 : i32
    %138 = arith.subi %c5_i32_37, %c1_i32 : i32
    %139 = vector.broadcast %c1_i32 : i32 to vector<16x1xi32>
    %140 = arith.cmpi slt, %139, %36 : vector<16x1xi32>
    %141 = vector.broadcast %43 : vector<1x32xi1> to vector<16x32xi1>
    %142 = vector.broadcast %140 : vector<16x1xi1> to vector<16x32xi1>
    %143 = arith.andi %141, %142 : vector<16x32xi1>
    %cst_38 = arith.constant dense<true> : vector<1x32xi1>
    %144 = arith.xori %43, %cst_38 : vector<1x32xi1>
    %145 = vector.broadcast %138 : i32 to vector<16x1xi32>
    %146 = arith.cmpi slt, %145, %36 : vector<16x1xi32>
    %147 = vector.broadcast %144 : vector<1x32xi1> to vector<16x32xi1>
    %148 = vector.broadcast %146 : vector<16x1xi1> to vector<16x32xi1>
    %149 = arith.andi %147, %148 : vector<16x32xi1>
    %150 = arith.ori %143, %149 : vector<16x32xi1>
    %151 = arith.negf %137 : vector<16x128xf32>
    %152 = math.exp %151 : vector<16x128xf32>
    %cst_39 = arith.constant 1.000000e+00 : f32
    %153 = vector.broadcast %cst_39 : f32 to vector<16x128xf32>
    %154 = arith.addf %153, %152 : vector<16x128xf32>
    %155 = arith.divf %153, %154 : vector<16x128xf32>
    %156 = vector.extract_strided_slice %155 {offsets = [0, 0], sizes = [16, 32], strides = [1, 1]} : vector<16x128xf32> to vector<16x32xf32>
    %157 = vector.extract_strided_slice %155 {offsets = [0, 32], sizes = [16, 32], strides = [1, 1]} : vector<16x128xf32> to vector<16x32xf32>
    %158 = vector.extract_strided_slice %155 {offsets = [0, 96], sizes = [16, 32], strides = [1, 1]} : vector<16x128xf32> to vector<16x32xf32>
    %159 = vector.extract_strided_slice %137 {offsets = [0, 64], sizes = [16, 32], strides = [1, 1]} : vector<16x128xf32> to vector<16x32xf32>
    %160 = math.tanh %159 : vector<16x32xf32>
    %161 = arith.mulf %157, %87 : vector<16x32xf32>
    %162 = arith.mulf %156, %160 : vector<16x32xf32>
    %163 = arith.addf %161, %162 : vector<16x32xf32>
    %164 = math.tanh %163 : vector<16x32xf32>
    %165 = arith.mulf %158, %164 : vector<16x32xf32>
    %166 = arith.select %150, %165, %86 : vector<16x32xi1>, vector<16x32xf32>
    %167 = arith.select %150, %163, %87 : vector<16x32xi1>, vector<16x32xf32>
    %c4_i32_40 = arith.constant 4 : i32
    %168 = arith.minsi %c1_i32, %c4_i32_40 : i32
    %c16_i32_41 = arith.constant 16 : i32
    %169 = arith.muli %168, %c16_i32_41 : i32
    %170 = tpu.assume_multiple %169, 16 : i32
    %171 = arith.index_cast %170 : i32 to index
    %c0_42 = arith.constant 0 : index
    %172 = vector.load %arg9[%171, %c0_42] : memref<80x128xf32, #tpu.memory_space<vmem>>, vector<16x128xf32>
    %cst_43 = arith.constant dense<0.000000e+00> : vector<16x128xf32>
    %173 = tpu.matmul %126, %46, %cst_43 {dimension_numbers = #tpu.dot_dimension_numbers<[1], [0], [0], [1], [0, 0, 1, 1], [], []>} : vector<16x32xf32>, vector<32x128xf32>, vector<16x128xf32> -> vector<16x128xf32>
    %174 = arith.addf %173, %172 : vector<16x128xf32>
    %c4_i32_44 = arith.constant 4 : i32
    %175 = arith.subi %c4_i32_44, %c1_i32 : i32
    %176 = vector.broadcast %c1_i32 : i32 to vector<16x1xi32>
    %177 = arith.cmpi slt, %176, %37 : vector<16x1xi32>
    %178 = vector.broadcast %43 : vector<1x32xi1> to vector<16x32xi1>
    %179 = vector.broadcast %177 : vector<16x1xi1> to vector<16x32xi1>
    %180 = arith.andi %178, %179 : vector<16x32xi1>
    %cst_45 = arith.constant dense<true> : vector<1x32xi1>
    %181 = arith.xori %43, %cst_45 : vector<1x32xi1>
    %c0_i32_46 = arith.constant 0 : i32
    %182 = arith.cmpi sge, %175, %c0_i32_46 : i32
    %183 = vector.broadcast %175 : i32 to vector<16x1xi32>
    %184 = arith.cmpi slt, %183, %37 : vector<16x1xi32>
    %185 = vector.broadcast %182 : i1 to vector<16x1xi1>
    %186 = arith.andi %185, %184 : vector<16x1xi1>
    %187 = vector.broadcast %181 : vector<1x32xi1> to vector<16x32xi1>
    %188 = vector.broadcast %186 : vector<16x1xi1> to vector<16x32xi1>
    %189 = arith.andi %187, %188 : vector<16x32xi1>
    %190 = arith.ori %180, %189 : vector<16x32xi1>
    %191 = arith.negf %174 : vector<16x128xf32>
    %192 = math.exp %191 : vector<16x128xf32>
    %cst_47 = arith.constant 1.000000e+00 : f32
    %193 = vector.broadcast %cst_47 : f32 to vector<16x128xf32>
    %194 = arith.addf %193, %192 : vector<16x128xf32>
    %195 = arith.divf %193, %194 : vector<16x128xf32>
    %196 = vector.extract_strided_slice %195 {offsets = [0, 0], sizes = [16, 32], strides = [1, 1]} : vector<16x128xf32> to vector<16x32xf32>
    %197 = vector.extract_strided_slice %195 {offsets = [0, 32], sizes = [16, 32], strides = [1, 1]} : vector<16x128xf32> to vector<16x32xf32>
    %198 = vector.extract_strided_slice %195 {offsets = [0, 96], sizes = [16, 32], strides = [1, 1]} : vector<16x128xf32> to vector<16x32xf32>
    %199 = vector.extract_strided_slice %174 {offsets = [0, 64], sizes = [16, 32], strides = [1, 1]} : vector<16x128xf32> to vector<16x32xf32>
    %200 = math.tanh %199 : vector<16x32xf32>
    %201 = arith.mulf %197, %127 : vector<16x32xf32>
    %202 = arith.mulf %196, %200 : vector<16x32xf32>
    %203 = arith.addf %201, %202 : vector<16x32xf32>
    %204 = math.tanh %203 : vector<16x32xf32>
    %205 = arith.mulf %198, %204 : vector<16x32xf32>
    %206 = arith.select %190, %205, %126 : vector<16x32xi1>, vector<16x32xf32>
    %207 = arith.select %190, %203, %127 : vector<16x32xi1>, vector<16x32xf32>
    %c2_i32 = arith.constant 2 : i32
    %c16_i32_48 = arith.constant 16 : i32
    %208 = arith.muli %c2_i32, %c16_i32_48 : i32
    %209 = tpu.assume_multiple %208, 16 : i32
    %210 = arith.index_cast %209 : i32 to index
    %c0_49 = arith.constant 0 : index
    %211 = vector.load %arg8[%210, %c0_49] : memref<96x128xf32, #tpu.memory_space<vmem>>, vector<16x128xf32>
    %cst_50 = arith.constant dense<0.000000e+00> : vector<16x128xf32>
    %212 = tpu.matmul %166, %44, %cst_50 {dimension_numbers = #tpu.dot_dimension_numbers<[1], [0], [0], [1], [0, 0, 1, 1], [], []>} : vector<16x32xf32>, vector<32x128xf32>, vector<16x128xf32> -> vector<16x128xf32>
    %cst_51 = arith.constant dense<0.000000e+00> : vector<16x128xf32>
    %213 = tpu.matmul %166, %45, %cst_51 {dimension_numbers = #tpu.dot_dimension_numbers<[1], [0], [0], [1], [0, 0, 1, 1], [], []>} : vector<16x32xf32>, vector<32x128xf32>, vector<16x128xf32> -> vector<16x128xf32>
    %214 = vector.shape_cast %40 : vector<16x1xi1> to vector<16x1xi1>
    %215 = vector.broadcast %214 : vector<16x1xi1> to vector<16x128xi1>
    %216 = arith.select %215, %212, %213 : vector<16x128xi1>, vector<16x128xf32>
    %217 = arith.addf %216, %211 : vector<16x128xf32>
    %c5_i32_52 = arith.constant 5 : i32
    %218 = arith.subi %c5_i32_52, %c2_i32 : i32
    %219 = vector.broadcast %c2_i32 : i32 to vector<16x1xi32>
    %220 = arith.cmpi slt, %219, %36 : vector<16x1xi32>
    %221 = vector.broadcast %43 : vector<1x32xi1> to vector<16x32xi1>
    %222 = vector.broadcast %220 : vector<16x1xi1> to vector<16x32xi1>
    %223 = arith.andi %221, %222 : vector<16x32xi1>
    %cst_53 = arith.constant dense<true> : vector<1x32xi1>
    %224 = arith.xori %43, %cst_53 : vector<1x32xi1>
    %225 = vector.broadcast %218 : i32 to vector<16x1xi32>
    %226 = arith.cmpi slt, %225, %36 : vector<16x1xi32>
    %227 = vector.broadcast %224 : vector<1x32xi1> to vector<16x32xi1>
    %228 = vector.broadcast %226 : vector<16x1xi1> to vector<16x32xi1>
    %229 = arith.andi %227, %228 : vector<16x32xi1>
    %230 = arith.ori %223, %229 : vector<16x32xi1>
    %231 = arith.negf %217 : vector<16x128xf32>
    %232 = math.exp %231 : vector<16x128xf32>
    %cst_54 = arith.constant 1.000000e+00 : f32
    %233 = vector.broadcast %cst_54 : f32 to vector<16x128xf32>
    %234 = arith.addf %233, %232 : vector<16x128xf32>
    %235 = arith.divf %233, %234 : vector<16x128xf32>
    %236 = vector.extract_strided_slice %235 {offsets = [0, 0], sizes = [16, 32], strides = [1, 1]} : vector<16x128xf32> to vector<16x32xf32>
    %237 = vector.extract_strided_slice %235 {offsets = [0, 32], sizes = [16, 32], strides = [1, 1]} : vector<16x128xf32> to vector<16x32xf32>
    %238 = vector.extract_strided_slice %235 {offsets = [0, 96], sizes = [16, 32], strides = [1, 1]} : vector<16x128xf32> to vector<16x32xf32>
    %239 = vector.extract_strided_slice %217 {offsets = [0, 64], sizes = [16, 32], strides = [1, 1]} : vector<16x128xf32> to vector<16x32xf32>
    %240 = math.tanh %239 : vector<16x32xf32>
    %241 = arith.mulf %237, %167 : vector<16x32xf32>
    %242 = arith.mulf %236, %240 : vector<16x32xf32>
    %243 = arith.addf %241, %242 : vector<16x32xf32>
    %244 = math.tanh %243 : vector<16x32xf32>
    %245 = arith.mulf %238, %244 : vector<16x32xf32>
    %246 = arith.select %230, %245, %166 : vector<16x32xi1>, vector<16x32xf32>
    %247 = arith.select %230, %243, %167 : vector<16x32xi1>, vector<16x32xf32>
    %c4_i32_55 = arith.constant 4 : i32
    %248 = arith.minsi %c2_i32, %c4_i32_55 : i32
    %c16_i32_56 = arith.constant 16 : i32
    %249 = arith.muli %248, %c16_i32_56 : i32
    %250 = tpu.assume_multiple %249, 16 : i32
    %251 = arith.index_cast %250 : i32 to index
    %c0_57 = arith.constant 0 : index
    %252 = vector.load %arg9[%251, %c0_57] : memref<80x128xf32, #tpu.memory_space<vmem>>, vector<16x128xf32>
    %cst_58 = arith.constant dense<0.000000e+00> : vector<16x128xf32>
    %253 = tpu.matmul %206, %46, %cst_58 {dimension_numbers = #tpu.dot_dimension_numbers<[1], [0], [0], [1], [0, 0, 1, 1], [], []>} : vector<16x32xf32>, vector<32x128xf32>, vector<16x128xf32> -> vector<16x128xf32>
    %254 = arith.addf %253, %252 : vector<16x128xf32>
    %c4_i32_59 = arith.constant 4 : i32
    %255 = arith.subi %c4_i32_59, %c2_i32 : i32
    %256 = vector.broadcast %c2_i32 : i32 to vector<16x1xi32>
    %257 = arith.cmpi slt, %256, %37 : vector<16x1xi32>
    %258 = vector.broadcast %43 : vector<1x32xi1> to vector<16x32xi1>
    %259 = vector.broadcast %257 : vector<16x1xi1> to vector<16x32xi1>
    %260 = arith.andi %258, %259 : vector<16x32xi1>
    %cst_60 = arith.constant dense<true> : vector<1x32xi1>
    %261 = arith.xori %43, %cst_60 : vector<1x32xi1>
    %c0_i32_61 = arith.constant 0 : i32
    %262 = arith.cmpi sge, %255, %c0_i32_61 : i32
    %263 = vector.broadcast %255 : i32 to vector<16x1xi32>
    %264 = arith.cmpi slt, %263, %37 : vector<16x1xi32>
    %265 = vector.broadcast %262 : i1 to vector<16x1xi1>
    %266 = arith.andi %265, %264 : vector<16x1xi1>
    %267 = vector.broadcast %261 : vector<1x32xi1> to vector<16x32xi1>
    %268 = vector.broadcast %266 : vector<16x1xi1> to vector<16x32xi1>
    %269 = arith.andi %267, %268 : vector<16x32xi1>
    %270 = arith.ori %260, %269 : vector<16x32xi1>
    %271 = arith.negf %254 : vector<16x128xf32>
    %272 = math.exp %271 : vector<16x128xf32>
    %cst_62 = arith.constant 1.000000e+00 : f32
    %273 = vector.broadcast %cst_62 : f32 to vector<16x128xf32>
    %274 = arith.addf %273, %272 : vector<16x128xf32>
    %275 = arith.divf %273, %274 : vector<16x128xf32>
    %276 = vector.extract_strided_slice %275 {offsets = [0, 0], sizes = [16, 32], strides = [1, 1]} : vector<16x128xf32> to vector<16x32xf32>
    %277 = vector.extract_strided_slice %275 {offsets = [0, 32], sizes = [16, 32], strides = [1, 1]} : vector<16x128xf32> to vector<16x32xf32>
    %278 = vector.extract_strided_slice %275 {offsets = [0, 96], sizes = [16, 32], strides = [1, 1]} : vector<16x128xf32> to vector<16x32xf32>
    %279 = vector.extract_strided_slice %254 {offsets = [0, 64], sizes = [16, 32], strides = [1, 1]} : vector<16x128xf32> to vector<16x32xf32>
    %280 = math.tanh %279 : vector<16x32xf32>
    %281 = arith.mulf %277, %207 : vector<16x32xf32>
    %282 = arith.mulf %276, %280 : vector<16x32xf32>
    %283 = arith.addf %281, %282 : vector<16x32xf32>
    %284 = math.tanh %283 : vector<16x32xf32>
    %285 = arith.mulf %278, %284 : vector<16x32xf32>
    %286 = arith.select %270, %285, %206 : vector<16x32xi1>, vector<16x32xf32>
    %287 = arith.select %270, %283, %207 : vector<16x32xi1>, vector<16x32xf32>
    %c3_i32 = arith.constant 3 : i32
    %c16_i32_63 = arith.constant 16 : i32
    %288 = arith.muli %c3_i32, %c16_i32_63 : i32
    %289 = tpu.assume_multiple %288, 16 : i32
    %290 = arith.index_cast %289 : i32 to index
    %c0_64 = arith.constant 0 : index
    %291 = vector.load %arg8[%290, %c0_64] : memref<96x128xf32, #tpu.memory_space<vmem>>, vector<16x128xf32>
    %cst_65 = arith.constant dense<0.000000e+00> : vector<16x128xf32>
    %292 = tpu.matmul %246, %44, %cst_65 {dimension_numbers = #tpu.dot_dimension_numbers<[1], [0], [0], [1], [0, 0, 1, 1], [], []>} : vector<16x32xf32>, vector<32x128xf32>, vector<16x128xf32> -> vector<16x128xf32>
    %cst_66 = arith.constant dense<0.000000e+00> : vector<16x128xf32>
    %293 = tpu.matmul %246, %45, %cst_66 {dimension_numbers = #tpu.dot_dimension_numbers<[1], [0], [0], [1], [0, 0, 1, 1], [], []>} : vector<16x32xf32>, vector<32x128xf32>, vector<16x128xf32> -> vector<16x128xf32>
    %294 = vector.shape_cast %40 : vector<16x1xi1> to vector<16x1xi1>
    %295 = vector.broadcast %294 : vector<16x1xi1> to vector<16x128xi1>
    %296 = arith.select %295, %292, %293 : vector<16x128xi1>, vector<16x128xf32>
    %297 = arith.addf %296, %291 : vector<16x128xf32>
    %c5_i32_67 = arith.constant 5 : i32
    %298 = arith.subi %c5_i32_67, %c3_i32 : i32
    %299 = vector.broadcast %c3_i32 : i32 to vector<16x1xi32>
    %300 = arith.cmpi slt, %299, %36 : vector<16x1xi32>
    %301 = vector.broadcast %43 : vector<1x32xi1> to vector<16x32xi1>
    %302 = vector.broadcast %300 : vector<16x1xi1> to vector<16x32xi1>
    %303 = arith.andi %301, %302 : vector<16x32xi1>
    %cst_68 = arith.constant dense<true> : vector<1x32xi1>
    %304 = arith.xori %43, %cst_68 : vector<1x32xi1>
    %305 = vector.broadcast %298 : i32 to vector<16x1xi32>
    %306 = arith.cmpi slt, %305, %36 : vector<16x1xi32>
    %307 = vector.broadcast %304 : vector<1x32xi1> to vector<16x32xi1>
    %308 = vector.broadcast %306 : vector<16x1xi1> to vector<16x32xi1>
    %309 = arith.andi %307, %308 : vector<16x32xi1>
    %310 = arith.ori %303, %309 : vector<16x32xi1>
    %311 = arith.negf %297 : vector<16x128xf32>
    %312 = math.exp %311 : vector<16x128xf32>
    %cst_69 = arith.constant 1.000000e+00 : f32
    %313 = vector.broadcast %cst_69 : f32 to vector<16x128xf32>
    %314 = arith.addf %313, %312 : vector<16x128xf32>
    %315 = arith.divf %313, %314 : vector<16x128xf32>
    %316 = vector.extract_strided_slice %315 {offsets = [0, 0], sizes = [16, 32], strides = [1, 1]} : vector<16x128xf32> to vector<16x32xf32>
    %317 = vector.extract_strided_slice %315 {offsets = [0, 32], sizes = [16, 32], strides = [1, 1]} : vector<16x128xf32> to vector<16x32xf32>
    %318 = vector.extract_strided_slice %315 {offsets = [0, 96], sizes = [16, 32], strides = [1, 1]} : vector<16x128xf32> to vector<16x32xf32>
    %319 = vector.extract_strided_slice %297 {offsets = [0, 64], sizes = [16, 32], strides = [1, 1]} : vector<16x128xf32> to vector<16x32xf32>
    %320 = math.tanh %319 : vector<16x32xf32>
    %321 = arith.mulf %317, %247 : vector<16x32xf32>
    %322 = arith.mulf %316, %320 : vector<16x32xf32>
    %323 = arith.addf %321, %322 : vector<16x32xf32>
    %324 = math.tanh %323 : vector<16x32xf32>
    %325 = arith.mulf %318, %324 : vector<16x32xf32>
    %326 = arith.select %310, %325, %246 : vector<16x32xi1>, vector<16x32xf32>
    %327 = arith.select %310, %323, %247 : vector<16x32xi1>, vector<16x32xf32>
    %c4_i32_70 = arith.constant 4 : i32
    %328 = arith.minsi %c3_i32, %c4_i32_70 : i32
    %c16_i32_71 = arith.constant 16 : i32
    %329 = arith.muli %328, %c16_i32_71 : i32
    %330 = tpu.assume_multiple %329, 16 : i32
    %331 = arith.index_cast %330 : i32 to index
    %c0_72 = arith.constant 0 : index
    %332 = vector.load %arg9[%331, %c0_72] : memref<80x128xf32, #tpu.memory_space<vmem>>, vector<16x128xf32>
    %cst_73 = arith.constant dense<0.000000e+00> : vector<16x128xf32>
    %333 = tpu.matmul %286, %46, %cst_73 {dimension_numbers = #tpu.dot_dimension_numbers<[1], [0], [0], [1], [0, 0, 1, 1], [], []>} : vector<16x32xf32>, vector<32x128xf32>, vector<16x128xf32> -> vector<16x128xf32>
    %334 = arith.addf %333, %332 : vector<16x128xf32>
    %c4_i32_74 = arith.constant 4 : i32
    %335 = arith.subi %c4_i32_74, %c3_i32 : i32
    %336 = vector.broadcast %c3_i32 : i32 to vector<16x1xi32>
    %337 = arith.cmpi slt, %336, %37 : vector<16x1xi32>
    %338 = vector.broadcast %43 : vector<1x32xi1> to vector<16x32xi1>
    %339 = vector.broadcast %337 : vector<16x1xi1> to vector<16x32xi1>
    %340 = arith.andi %338, %339 : vector<16x32xi1>
    %cst_75 = arith.constant dense<true> : vector<1x32xi1>
    %341 = arith.xori %43, %cst_75 : vector<1x32xi1>
    %c0_i32_76 = arith.constant 0 : i32
    %342 = arith.cmpi sge, %335, %c0_i32_76 : i32
    %343 = vector.broadcast %335 : i32 to vector<16x1xi32>
    %344 = arith.cmpi slt, %343, %37 : vector<16x1xi32>
    %345 = vector.broadcast %342 : i1 to vector<16x1xi1>
    %346 = arith.andi %345, %344 : vector<16x1xi1>
    %347 = vector.broadcast %341 : vector<1x32xi1> to vector<16x32xi1>
    %348 = vector.broadcast %346 : vector<16x1xi1> to vector<16x32xi1>
    %349 = arith.andi %347, %348 : vector<16x32xi1>
    %350 = arith.ori %340, %349 : vector<16x32xi1>
    %351 = arith.negf %334 : vector<16x128xf32>
    %352 = math.exp %351 : vector<16x128xf32>
    %cst_77 = arith.constant 1.000000e+00 : f32
    %353 = vector.broadcast %cst_77 : f32 to vector<16x128xf32>
    %354 = arith.addf %353, %352 : vector<16x128xf32>
    %355 = arith.divf %353, %354 : vector<16x128xf32>
    %356 = vector.extract_strided_slice %355 {offsets = [0, 0], sizes = [16, 32], strides = [1, 1]} : vector<16x128xf32> to vector<16x32xf32>
    %357 = vector.extract_strided_slice %355 {offsets = [0, 32], sizes = [16, 32], strides = [1, 1]} : vector<16x128xf32> to vector<16x32xf32>
    %358 = vector.extract_strided_slice %355 {offsets = [0, 96], sizes = [16, 32], strides = [1, 1]} : vector<16x128xf32> to vector<16x32xf32>
    %359 = vector.extract_strided_slice %334 {offsets = [0, 64], sizes = [16, 32], strides = [1, 1]} : vector<16x128xf32> to vector<16x32xf32>
    %360 = math.tanh %359 : vector<16x32xf32>
    %361 = arith.mulf %357, %287 : vector<16x32xf32>
    %362 = arith.mulf %356, %360 : vector<16x32xf32>
    %363 = arith.addf %361, %362 : vector<16x32xf32>
    %364 = math.tanh %363 : vector<16x32xf32>
    %365 = arith.mulf %358, %364 : vector<16x32xf32>
    %366 = arith.select %350, %365, %286 : vector<16x32xi1>, vector<16x32xf32>
    %367 = arith.select %350, %363, %287 : vector<16x32xi1>, vector<16x32xf32>
    %c4_i32_78 = arith.constant 4 : i32
    %c16_i32_79 = arith.constant 16 : i32
    %368 = arith.muli %c4_i32_78, %c16_i32_79 : i32
    %369 = tpu.assume_multiple %368, 16 : i32
    %370 = arith.index_cast %369 : i32 to index
    %c0_80 = arith.constant 0 : index
    %371 = vector.load %arg8[%370, %c0_80] : memref<96x128xf32, #tpu.memory_space<vmem>>, vector<16x128xf32>
    %cst_81 = arith.constant dense<0.000000e+00> : vector<16x128xf32>
    %372 = tpu.matmul %326, %44, %cst_81 {dimension_numbers = #tpu.dot_dimension_numbers<[1], [0], [0], [1], [0, 0, 1, 1], [], []>} : vector<16x32xf32>, vector<32x128xf32>, vector<16x128xf32> -> vector<16x128xf32>
    %cst_82 = arith.constant dense<0.000000e+00> : vector<16x128xf32>
    %373 = tpu.matmul %326, %45, %cst_82 {dimension_numbers = #tpu.dot_dimension_numbers<[1], [0], [0], [1], [0, 0, 1, 1], [], []>} : vector<16x32xf32>, vector<32x128xf32>, vector<16x128xf32> -> vector<16x128xf32>
    %374 = vector.shape_cast %40 : vector<16x1xi1> to vector<16x1xi1>
    %375 = vector.broadcast %374 : vector<16x1xi1> to vector<16x128xi1>
    %376 = arith.select %375, %372, %373 : vector<16x128xi1>, vector<16x128xf32>
    %377 = arith.addf %376, %371 : vector<16x128xf32>
    %c5_i32_83 = arith.constant 5 : i32
    %378 = arith.subi %c5_i32_83, %c4_i32_78 : i32
    %379 = vector.broadcast %c4_i32_78 : i32 to vector<16x1xi32>
    %380 = arith.cmpi slt, %379, %36 : vector<16x1xi32>
    %381 = vector.broadcast %43 : vector<1x32xi1> to vector<16x32xi1>
    %382 = vector.broadcast %380 : vector<16x1xi1> to vector<16x32xi1>
    %383 = arith.andi %381, %382 : vector<16x32xi1>
    %cst_84 = arith.constant dense<true> : vector<1x32xi1>
    %384 = arith.xori %43, %cst_84 : vector<1x32xi1>
    %385 = vector.broadcast %378 : i32 to vector<16x1xi32>
    %386 = arith.cmpi slt, %385, %36 : vector<16x1xi32>
    %387 = vector.broadcast %384 : vector<1x32xi1> to vector<16x32xi1>
    %388 = vector.broadcast %386 : vector<16x1xi1> to vector<16x32xi1>
    %389 = arith.andi %387, %388 : vector<16x32xi1>
    %390 = arith.ori %383, %389 : vector<16x32xi1>
    %391 = arith.negf %377 : vector<16x128xf32>
    %392 = math.exp %391 : vector<16x128xf32>
    %cst_85 = arith.constant 1.000000e+00 : f32
    %393 = vector.broadcast %cst_85 : f32 to vector<16x128xf32>
    %394 = arith.addf %393, %392 : vector<16x128xf32>
    %395 = arith.divf %393, %394 : vector<16x128xf32>
    %396 = vector.extract_strided_slice %395 {offsets = [0, 0], sizes = [16, 32], strides = [1, 1]} : vector<16x128xf32> to vector<16x32xf32>
    %397 = vector.extract_strided_slice %395 {offsets = [0, 32], sizes = [16, 32], strides = [1, 1]} : vector<16x128xf32> to vector<16x32xf32>
    %398 = vector.extract_strided_slice %395 {offsets = [0, 96], sizes = [16, 32], strides = [1, 1]} : vector<16x128xf32> to vector<16x32xf32>
    %399 = vector.extract_strided_slice %377 {offsets = [0, 64], sizes = [16, 32], strides = [1, 1]} : vector<16x128xf32> to vector<16x32xf32>
    %400 = math.tanh %399 : vector<16x32xf32>
    %401 = arith.mulf %397, %327 : vector<16x32xf32>
    %402 = arith.mulf %396, %400 : vector<16x32xf32>
    %403 = arith.addf %401, %402 : vector<16x32xf32>
    %404 = math.tanh %403 : vector<16x32xf32>
    %405 = arith.mulf %398, %404 : vector<16x32xf32>
    %406 = arith.select %390, %405, %326 : vector<16x32xi1>, vector<16x32xf32>
    %407 = arith.select %390, %403, %327 : vector<16x32xi1>, vector<16x32xf32>
    %c4_i32_86 = arith.constant 4 : i32
    %408 = arith.minsi %c4_i32_78, %c4_i32_86 : i32
    %c16_i32_87 = arith.constant 16 : i32
    %409 = arith.muli %408, %c16_i32_87 : i32
    %410 = tpu.assume_multiple %409, 16 : i32
    %411 = arith.index_cast %410 : i32 to index
    %c0_88 = arith.constant 0 : index
    %412 = vector.load %arg9[%411, %c0_88] : memref<80x128xf32, #tpu.memory_space<vmem>>, vector<16x128xf32>
    %cst_89 = arith.constant dense<0.000000e+00> : vector<16x128xf32>
    %413 = tpu.matmul %366, %46, %cst_89 {dimension_numbers = #tpu.dot_dimension_numbers<[1], [0], [0], [1], [0, 0, 1, 1], [], []>} : vector<16x32xf32>, vector<32x128xf32>, vector<16x128xf32> -> vector<16x128xf32>
    %414 = arith.addf %413, %412 : vector<16x128xf32>
    %c4_i32_90 = arith.constant 4 : i32
    %415 = arith.subi %c4_i32_90, %c4_i32_78 : i32
    %416 = vector.broadcast %c4_i32_78 : i32 to vector<16x1xi32>
    %417 = arith.cmpi slt, %416, %37 : vector<16x1xi32>
    %418 = vector.broadcast %43 : vector<1x32xi1> to vector<16x32xi1>
    %419 = vector.broadcast %417 : vector<16x1xi1> to vector<16x32xi1>
    %420 = arith.andi %418, %419 : vector<16x32xi1>
    %cst_91 = arith.constant dense<true> : vector<1x32xi1>
    %421 = arith.xori %43, %cst_91 : vector<1x32xi1>
    %c0_i32_92 = arith.constant 0 : i32
    %422 = arith.cmpi sge, %415, %c0_i32_92 : i32
    %423 = vector.broadcast %415 : i32 to vector<16x1xi32>
    %424 = arith.cmpi slt, %423, %37 : vector<16x1xi32>
    %425 = vector.broadcast %422 : i1 to vector<16x1xi1>
    %426 = arith.andi %425, %424 : vector<16x1xi1>
    %427 = vector.broadcast %421 : vector<1x32xi1> to vector<16x32xi1>
    %428 = vector.broadcast %426 : vector<16x1xi1> to vector<16x32xi1>
    %429 = arith.andi %427, %428 : vector<16x32xi1>
    %430 = arith.ori %420, %429 : vector<16x32xi1>
    %431 = arith.negf %414 : vector<16x128xf32>
    %432 = math.exp %431 : vector<16x128xf32>
    %cst_93 = arith.constant 1.000000e+00 : f32
    %433 = vector.broadcast %cst_93 : f32 to vector<16x128xf32>
    %434 = arith.addf %433, %432 : vector<16x128xf32>
    %435 = arith.divf %433, %434 : vector<16x128xf32>
    %436 = vector.extract_strided_slice %435 {offsets = [0, 0], sizes = [16, 32], strides = [1, 1]} : vector<16x128xf32> to vector<16x32xf32>
    %437 = vector.extract_strided_slice %435 {offsets = [0, 32], sizes = [16, 32], strides = [1, 1]} : vector<16x128xf32> to vector<16x32xf32>
    %438 = vector.extract_strided_slice %435 {offsets = [0, 96], sizes = [16, 32], strides = [1, 1]} : vector<16x128xf32> to vector<16x32xf32>
    %439 = vector.extract_strided_slice %414 {offsets = [0, 64], sizes = [16, 32], strides = [1, 1]} : vector<16x128xf32> to vector<16x32xf32>
    %440 = math.tanh %439 : vector<16x32xf32>
    %441 = arith.mulf %437, %367 : vector<16x32xf32>
    %442 = arith.mulf %436, %440 : vector<16x32xf32>
    %443 = arith.addf %441, %442 : vector<16x32xf32>
    %444 = math.tanh %443 : vector<16x32xf32>
    %445 = arith.mulf %438, %444 : vector<16x32xf32>
    %446 = arith.select %430, %445, %366 : vector<16x32xi1>, vector<16x32xf32>
    %447 = arith.select %430, %443, %367 : vector<16x32xi1>, vector<16x32xf32>
    %c5_i32_94 = arith.constant 5 : i32
    %c16_i32_95 = arith.constant 16 : i32
    %448 = arith.muli %c5_i32_94, %c16_i32_95 : i32
    %449 = tpu.assume_multiple %448, 16 : i32
    %450 = arith.index_cast %449 : i32 to index
    %c0_96 = arith.constant 0 : index
    %451 = vector.load %arg8[%450, %c0_96] : memref<96x128xf32, #tpu.memory_space<vmem>>, vector<16x128xf32>
    %cst_97 = arith.constant dense<0.000000e+00> : vector<16x128xf32>
    %452 = tpu.matmul %406, %44, %cst_97 {dimension_numbers = #tpu.dot_dimension_numbers<[1], [0], [0], [1], [0, 0, 1, 1], [], []>} : vector<16x32xf32>, vector<32x128xf32>, vector<16x128xf32> -> vector<16x128xf32>
    %cst_98 = arith.constant dense<0.000000e+00> : vector<16x128xf32>
    %453 = tpu.matmul %406, %45, %cst_98 {dimension_numbers = #tpu.dot_dimension_numbers<[1], [0], [0], [1], [0, 0, 1, 1], [], []>} : vector<16x32xf32>, vector<32x128xf32>, vector<16x128xf32> -> vector<16x128xf32>
    %454 = vector.shape_cast %40 : vector<16x1xi1> to vector<16x1xi1>
    %455 = vector.broadcast %454 : vector<16x1xi1> to vector<16x128xi1>
    %456 = arith.select %455, %452, %453 : vector<16x128xi1>, vector<16x128xf32>
    %457 = arith.addf %456, %451 : vector<16x128xf32>
    %c5_i32_99 = arith.constant 5 : i32
    %458 = arith.subi %c5_i32_99, %c5_i32_94 : i32
    %459 = vector.broadcast %c5_i32_94 : i32 to vector<16x1xi32>
    %460 = arith.cmpi slt, %459, %36 : vector<16x1xi32>
    %461 = vector.broadcast %43 : vector<1x32xi1> to vector<16x32xi1>
    %462 = vector.broadcast %460 : vector<16x1xi1> to vector<16x32xi1>
    %463 = arith.andi %461, %462 : vector<16x32xi1>
    %cst_100 = arith.constant dense<true> : vector<1x32xi1>
    %464 = arith.xori %43, %cst_100 : vector<1x32xi1>
    %465 = vector.broadcast %458 : i32 to vector<16x1xi32>
    %466 = arith.cmpi slt, %465, %36 : vector<16x1xi32>
    %467 = vector.broadcast %464 : vector<1x32xi1> to vector<16x32xi1>
    %468 = vector.broadcast %466 : vector<16x1xi1> to vector<16x32xi1>
    %469 = arith.andi %467, %468 : vector<16x32xi1>
    %470 = arith.ori %463, %469 : vector<16x32xi1>
    %471 = arith.negf %457 : vector<16x128xf32>
    %472 = math.exp %471 : vector<16x128xf32>
    %cst_101 = arith.constant 1.000000e+00 : f32
    %473 = vector.broadcast %cst_101 : f32 to vector<16x128xf32>
    %474 = arith.addf %473, %472 : vector<16x128xf32>
    %475 = arith.divf %473, %474 : vector<16x128xf32>
    %476 = vector.extract_strided_slice %475 {offsets = [0, 0], sizes = [16, 32], strides = [1, 1]} : vector<16x128xf32> to vector<16x32xf32>
    %477 = vector.extract_strided_slice %475 {offsets = [0, 32], sizes = [16, 32], strides = [1, 1]} : vector<16x128xf32> to vector<16x32xf32>
    %478 = vector.extract_strided_slice %475 {offsets = [0, 96], sizes = [16, 32], strides = [1, 1]} : vector<16x128xf32> to vector<16x32xf32>
    %479 = vector.extract_strided_slice %457 {offsets = [0, 64], sizes = [16, 32], strides = [1, 1]} : vector<16x128xf32> to vector<16x32xf32>
    %480 = math.tanh %479 : vector<16x32xf32>
    %481 = arith.mulf %477, %407 : vector<16x32xf32>
    %482 = arith.mulf %476, %480 : vector<16x32xf32>
    %483 = arith.addf %481, %482 : vector<16x32xf32>
    %484 = math.tanh %483 : vector<16x32xf32>
    %485 = arith.mulf %478, %484 : vector<16x32xf32>
    %486 = arith.select %470, %485, %406 : vector<16x32xi1>, vector<16x32xf32>
    %487 = arith.select %470, %483, %407 : vector<16x32xi1>, vector<16x32xf32>
    %c4_i32_102 = arith.constant 4 : i32
    %488 = arith.minsi %c5_i32_94, %c4_i32_102 : i32
    %c16_i32_103 = arith.constant 16 : i32
    %489 = arith.muli %488, %c16_i32_103 : i32
    %490 = tpu.assume_multiple %489, 16 : i32
    %491 = arith.index_cast %490 : i32 to index
    %c0_104 = arith.constant 0 : index
    %492 = vector.load %arg9[%491, %c0_104] : memref<80x128xf32, #tpu.memory_space<vmem>>, vector<16x128xf32>
    %cst_105 = arith.constant dense<0.000000e+00> : vector<16x128xf32>
    %493 = tpu.matmul %446, %46, %cst_105 {dimension_numbers = #tpu.dot_dimension_numbers<[1], [0], [0], [1], [0, 0, 1, 1], [], []>} : vector<16x32xf32>, vector<32x128xf32>, vector<16x128xf32> -> vector<16x128xf32>
    %494 = arith.addf %493, %492 : vector<16x128xf32>
    %c4_i32_106 = arith.constant 4 : i32
    %495 = arith.subi %c4_i32_106, %c5_i32_94 : i32
    %496 = vector.broadcast %c5_i32_94 : i32 to vector<16x1xi32>
    %497 = arith.cmpi slt, %496, %37 : vector<16x1xi32>
    %498 = vector.broadcast %43 : vector<1x32xi1> to vector<16x32xi1>
    %499 = vector.broadcast %497 : vector<16x1xi1> to vector<16x32xi1>
    %500 = arith.andi %498, %499 : vector<16x32xi1>
    %cst_107 = arith.constant dense<true> : vector<1x32xi1>
    %501 = arith.xori %43, %cst_107 : vector<1x32xi1>
    %c0_i32_108 = arith.constant 0 : i32
    %502 = arith.cmpi sge, %495, %c0_i32_108 : i32
    %503 = vector.broadcast %495 : i32 to vector<16x1xi32>
    %504 = arith.cmpi slt, %503, %37 : vector<16x1xi32>
    %505 = vector.broadcast %502 : i1 to vector<16x1xi1>
    %506 = arith.andi %505, %504 : vector<16x1xi1>
    %507 = vector.broadcast %501 : vector<1x32xi1> to vector<16x32xi1>
    %508 = vector.broadcast %506 : vector<16x1xi1> to vector<16x32xi1>
    %509 = arith.andi %507, %508 : vector<16x32xi1>
    %510 = arith.ori %500, %509 : vector<16x32xi1>
    %511 = arith.negf %494 : vector<16x128xf32>
    %512 = math.exp %511 : vector<16x128xf32>
    %cst_109 = arith.constant 1.000000e+00 : f32
    %513 = vector.broadcast %cst_109 : f32 to vector<16x128xf32>
    %514 = arith.addf %513, %512 : vector<16x128xf32>
    %515 = arith.divf %513, %514 : vector<16x128xf32>
    %516 = vector.extract_strided_slice %515 {offsets = [0, 0], sizes = [16, 32], strides = [1, 1]} : vector<16x128xf32> to vector<16x32xf32>
    %517 = vector.extract_strided_slice %515 {offsets = [0, 32], sizes = [16, 32], strides = [1, 1]} : vector<16x128xf32> to vector<16x32xf32>
    %518 = vector.extract_strided_slice %515 {offsets = [0, 96], sizes = [16, 32], strides = [1, 1]} : vector<16x128xf32> to vector<16x32xf32>
    %519 = vector.extract_strided_slice %494 {offsets = [0, 64], sizes = [16, 32], strides = [1, 1]} : vector<16x128xf32> to vector<16x32xf32>
    %520 = math.tanh %519 : vector<16x32xf32>
    %521 = arith.mulf %517, %447 : vector<16x32xf32>
    %522 = arith.mulf %516, %520 : vector<16x32xf32>
    %523 = arith.addf %521, %522 : vector<16x32xf32>
    %524 = math.tanh %523 : vector<16x32xf32>
    %525 = arith.mulf %518, %524 : vector<16x32xf32>
    %526 = arith.select %510, %525, %446 : vector<16x32xi1>, vector<16x32xf32>
    %527 = arith.select %510, %523, %447 : vector<16x32xi1>, vector<16x32xf32>
    %c6_i32 = arith.constant 6 : i32
    %528 = tpu.iota {dimensions = array<i32: 1>} : vector<8x16xi32>
    %cst_110 = arith.constant 0.000000e+00 : f32
    %529 = vector.broadcast %cst_110 : f32 to vector<8x16xf32>
    %c0_111 = arith.constant 0 : index
    %c3 = arith.constant 3 : index
    %530 = vector.load %arg2[%c0_111, %c3] : memref<16x8xi32, #tpu.memory_space<vmem>>, vector<8x1xi32>
    %531 = vector.broadcast %530 : vector<8x1xi32> to vector<8x16xi32>
    %532 = arith.cmpi eq, %531, %528 : vector<8x16xi32>
    %533 = arith.extui %532 : vector<8x16xi1> to vector<8x16xi32>
    %534 = arith.sitofp %533 : vector<8x16xi32> to vector<8x16xf32>
    %535 = arith.addf %529, %534 : vector<8x16xf32>
    %c0_112 = arith.constant 0 : index
    %c4 = arith.constant 4 : index
    %536 = vector.load %arg2[%c0_112, %c4] : memref<16x8xi32, #tpu.memory_space<vmem>>, vector<8x1xi32>
    %537 = vector.broadcast %536 : vector<8x1xi32> to vector<8x16xi32>
    %538 = arith.cmpi eq, %537, %528 : vector<8x16xi32>
    %539 = arith.extui %538 : vector<8x16xi1> to vector<8x16xi32>
    %540 = arith.sitofp %539 : vector<8x16xi32> to vector<8x16xf32>
    %541 = arith.addf %535, %540 : vector<8x16xf32>
    %c0_113 = arith.constant 0 : index
    %c5 = arith.constant 5 : index
    %542 = vector.load %arg2[%c0_113, %c5] : memref<16x8xi32, #tpu.memory_space<vmem>>, vector<8x1xi32>
    %543 = vector.broadcast %542 : vector<8x1xi32> to vector<8x16xi32>
    %544 = arith.cmpi eq, %543, %528 : vector<8x16xi32>
    %545 = arith.extui %544 : vector<8x16xi1> to vector<8x16xi32>
    %546 = arith.sitofp %545 : vector<8x16xi32> to vector<8x16xf32>
    %547 = arith.addf %541, %546 : vector<8x16xf32>
    %cst_114 = arith.constant 0.333333343 : f32
    %548 = vector.broadcast %cst_114 : f32 to vector<8x16xf32>
    %549 = arith.mulf %547, %548 : vector<8x16xf32>
    %c0_115 = arith.constant 0 : index
    %c2 = arith.constant 2 : index
    %550 = vector.load %arg2[%c0_115, %c2] : memref<16x8xi32, #tpu.memory_space<vmem>>, vector<8x1xi32>
    %cst_116 = arith.constant 0.000000e+00 : f32
    %551 = vector.broadcast %cst_116 : f32 to vector<8x32xf32>
    %c0_i32_117 = arith.constant 0 : i32
    %552 = vector.broadcast %c0_i32_117 : i32 to vector<8x1xi32>
    %553 = arith.cmpi sgt, %550, %552 : vector<8x1xi32>
    %554 = vector.extract_strided_slice %526 {offsets = [0, 0], sizes = [8, 32], strides = [1, 1]} : vector<16x32xf32> to vector<8x32xf32>
    %cst_118 = arith.constant 0.000000e+00 : f32
    %555 = vector.shape_cast %553 : vector<8x1xi1> to vector<8x1xi1>
    %556 = vector.broadcast %555 : vector<8x1xi1> to vector<8x32xi1>
    %557 = vector.broadcast %cst_118 : f32 to vector<8x32xf32>
    %558 = arith.select %556, %554, %557 : vector<8x32xi1>, vector<8x32xf32>
    %559 = arith.addf %551, %558 : vector<8x32xf32>
    %c1_i32_119 = arith.constant 1 : i32
    %560 = vector.broadcast %c1_i32_119 : i32 to vector<8x1xi32>
    %561 = arith.cmpi sgt, %550, %560 : vector<8x1xi32>
    %562 = vector.extract_strided_slice %526 {offsets = [8, 0], sizes = [8, 32], strides = [1, 1]} : vector<16x32xf32> to vector<8x32xf32>
    %cst_120 = arith.constant 0.000000e+00 : f32
    %563 = vector.shape_cast %561 : vector<8x1xi1> to vector<8x1xi1>
    %564 = vector.broadcast %563 : vector<8x1xi1> to vector<8x32xi1>
    %565 = vector.broadcast %cst_120 : f32 to vector<8x32xf32>
    %566 = arith.select %564, %562, %565 : vector<8x32xi1>, vector<8x32xf32>
    %567 = arith.addf %559, %566 : vector<8x32xf32>
    %568 = arith.sitofp %550 : vector<8x1xi32> to vector<8x1xf32>
    %cst_121 = arith.constant 1.000000e-10 : f32
    %569 = vector.broadcast %cst_121 : f32 to vector<8x1xf32>
    %570 = arith.maximumf %568, %569 : vector<8x1xf32>
    %571 = vector.broadcast %570 : vector<8x1xf32> to vector<8x32xf32>
    %572 = arith.divf %567, %571 : vector<8x32xf32>
    %573 = vector.extract_strided_slice %486 {offsets = [0, 0], sizes = [8, 32], strides = [1, 1]} : vector<16x32xf32> to vector<8x32xf32>
    %574 = vector.extract_strided_slice %486 {offsets = [8, 0], sizes = [8, 32], strides = [1, 1]} : vector<16x32xf32> to vector<8x32xf32>
    %575 = tpu.concatenate %573, %574, %572, %549 in 1 : vector<8x32xf32>, vector<8x32xf32>, vector<8x32xf32>, vector<8x16xf32> -> vector<8x112xf32>
    %c0_122 = arith.constant 0 : index
    %c0_123 = arith.constant 0 : index
    %576 = vector.load %arg6[%c0_122, %c0_123] : memref<112x256xf32, #tpu.memory_space<vmem>>, vector<112x256xf32>
    %cst_124 = arith.constant dense<0.000000e+00> : vector<8x256xf32>
    %577 = tpu.matmul %575, %576, %cst_124 {dimension_numbers = #tpu.dot_dimension_numbers<[1], [0], [0], [1], [0, 0, 1, 1], [], []>, precision = #tpu.contract_precision<fp32>} : vector<8x112xf32>, vector<112x256xf32>, vector<8x256xf32> -> vector<8x256xf32>
    %c0_125 = arith.constant 0 : index
    %c0_126 = arith.constant 0 : index
    %578 = vector.load %arg7[%c0_125, %c0_126] : memref<8x256xf32, #tpu.memory_space<vmem>>, vector<8x256xf32>
    tpu.vector_store %arg7[%c0_125, %c0_126], %577 {strides = array<i32>} : memref<8x256xf32, #tpu.memory_space<vmem>>, vector<8x256xf32>,
    return
  }
}

</mosaic_0001>

<llo_original>
// kernel: ans_encoder_forward.1
$region0: #{ans_encoder_forward.1}
  #allocation0 [shape = 'u32[]', space=smem, size = 0x4, offset = 0x4, fixed_abs, tag = 'smem constant byte address 0x4 - core index']
  #allocation1 [shape = 'u32[144,128]{1,0:T(1,128)}', space=vmem, size = 0x12000, scoped, tag = 'internal scratch']
  #allocation2 [shape = 'f32[96,128]{1,0:T(8,128)}', space=vmem, size = 0xc000, scoped, tag = 'scratch operand']
  #allocation3 [shape = 'f32[80,128]{1,0:T(8,128)}', space=vmem, size = 0xa000, scoped, tag = 'scratch operand']
  %s0 = inlined_call_operand.vmem [shape: s32[96,2], index: 0, kind: input, shape index: {}]
  %s1 = inlined_call_operand.vmem [shape: s32[80,4], index: 1, kind: input, shape index: {}]
  %s2 = inlined_call_operand.vmem [shape: s32[16,8], index: 2, kind: input, shape index: {}]
  %s3 = inlined_call_operand.vmem [shape: f32[96,128], index: 3, kind: input, shape index: {}]
  %s4 = inlined_call_operand.vmem [shape: f32[64,128], index: 4, kind: input, shape index: {}]
  %s5 = inlined_call_operand.vmem [shape: f32[96,128], index: 5, kind: input, shape index: {}]
  %s6 = inlined_call_operand.vmem [shape: f32[112,256], index: 6, kind: input, shape index: {}]
  %s7 = inlined_call_operand.vmem [shape: f32[8,256], index: 7, kind: output, shape index: {}]
  %s8 = sld [smem:[#allocation0]]
  $region38: #{ans_encoder_forward.1} parent=0
    _
  %s10 = ssub.s32 1, %s8
  %s11 = scalar_select 0, %s10, %s8
  // Predicated region
  $region2: #{ans_encoder_forward.1} parent=0 // pred_check
    _
  $region3: #{ans_encoder_forward.1} parent=0 // pred_check_branch
    %13 = sbr.rel (0) target = $region5
  $region4: #{ans_encoder_forward.1} parent=0 // pred_region
    _
  $region5: #{ans_encoder_forward.1} parent=0 // pred_fallthru
    _
  // Predicated region
  $region6: #{ans_encoder_forward.1} parent=0 // pred_check
    _
  $region7: #{ans_encoder_forward.1} parent=0 // pred_check_branch
    %15 = sbr.rel (0) target = $region9
  $region8: #{ans_encoder_forward.1} parent=0 // pred_region
    _
  $region9: #{ans_encoder_forward.1} parent=0 // pred_fallthru
    _
  // Predicated region
  $region10: #{ans_encoder_forward.1} parent=0 // pred_check
    _
  $region11: #{ans_encoder_forward.1} parent=0 // pred_check_branch
    %17 = sbr.rel (0) target = $region13
  $region12: #{ans_encoder_forward.1} parent=0 // pred_region
    _
  $region13: #{ans_encoder_forward.1} parent=0 // pred_fallthru
    _
  // Predicated region
  $region14: #{ans_encoder_forward.1} parent=0 // pred_check
    _
  $region15: #{ans_encoder_forward.1} parent=0 // pred_check_branch
    %19 = sbr.rel (0) target = $region17
  $region16: #{ans_encoder_forward.1} parent=0 // pred_region
    _
  $region17: #{ans_encoder_forward.1} parent=0 // pred_fallthru
    _
  // Predicated region
  $region18: #{ans_encoder_forward.1} parent=0 // pred_check
    _
  $region19: #{ans_encoder_forward.1} parent=0 // pred_check_branch
    %21 = sbr.rel (0) target = $region21
  $region20: #{ans_encoder_forward.1} parent=0 // pred_region
    _
  $region21: #{ans_encoder_forward.1} parent=0 // pred_fallthru
    _
  // Predicated region
  $region22: #{ans_encoder_forward.1} parent=0 // pred_check
    _
  $region23: #{ans_encoder_forward.1} parent=0 // pred_check_branch
    %23 = sbr.rel (0) target = $region25
  $region24: #{ans_encoder_forward.1} parent=0 // pred_region
    _
  $region25: #{ans_encoder_forward.1} parent=0 // pred_fallthru
    _
  // Predicated region
  $region26: #{ans_encoder_forward.1} parent=0 // pred_check
    _
  $region27: #{ans_encoder_forward.1} parent=0 // pred_check_branch
    %25 = sbr.rel (0) target = $region29
  $region28: #{ans_encoder_forward.1} parent=0 // pred_region
    _
  $region29: #{ans_encoder_forward.1} parent=0 // pred_fallthru
    _
  %v26 = vld [vmem:[%s0] sm:$0xff]
  %v27 = vld [vmem:[%s0 + $0x8] sm:$0xff]
  %v28 = vld [vmem:[%s0 + $0x10] sm:$0xff]
  %v29 = vld [vmem:[%s0 + $0x18] sm:$0xff]
  %v30 = vld [vmem:[%s0 + $0x20] sm:$0xff]
  %v31 = vld [vmem:[%s0 + $0x28] sm:$0xff]
  %v32 = vld [vmem:[%s0 + $0x30] sm:$0xff]
  %v33 = vld [vmem:[%s0 + $0x38] sm:$0xff]
  %v34 = vld [vmem:[%s0 + $0x40] sm:$0xff]
  %v35 = vld [vmem:[%s0 + $0x48] sm:$0xff]
  %v36 = vld [vmem:[%s0 + $0x50] sm:$0xff]
  %v37 = vld [vmem:[%s0 + $0x58] sm:$0xff]
  %v38 = vlaneseq
  %v39 = vand.u32 %v38, 127
  %40 = vset.pattern.permute.xlu0 0
  %41 = vperm.xlu0 %40, %v26
  %v42 = vpop.permute.xlu0 %41
  %43 = vset.pattern.permute.xlu0 0
  %44 = vperm.xlu0 %43, %v27
  %v45 = vpop.permute.xlu0 %44
  %46 = vset.pattern.permute.xlu0 0
  %47 = vperm.xlu0 %46, %v28
  %v48 = vpop.permute.xlu0 %47
  %49 = vset.pattern.permute.xlu0 0
  %50 = vperm.xlu0 %49, %v29
  %v51 = vpop.permute.xlu0 %50
  %52 = vset.pattern.permute.xlu0 0
  %53 = vperm.xlu0 %52, %v30
  %v54 = vpop.permute.xlu0 %53
  %55 = vset.pattern.permute.xlu0 0
  %56 = vperm.xlu0 %55, %v31
  %v57 = vpop.permute.xlu0 %56
  %58 = vset.pattern.permute.xlu0 0
  %59 = vperm.xlu0 %58, %v32
  %v60 = vpop.permute.xlu0 %59
  %61 = vset.pattern.permute.xlu0 0
  %62 = vperm.xlu0 %61, %v33
  %v63 = vpop.permute.xlu0 %62
  %64 = vset.pattern.permute.xlu0 0
  %65 = vperm.xlu0 %64, %v34
  %v66 = vpop.permute.xlu0 %65
  %67 = vset.pattern.permute.xlu0 0
  %68 = vperm.xlu0 %67, %v35
  %v69 = vpop.permute.xlu0 %68
  %70 = vset.pattern.permute.xlu0 0
  %71 = vperm.xlu0 %70, %v36
  %v72 = vpop.permute.xlu0 %71
  %73 = vset.pattern.permute.xlu0 0
  %74 = vperm.xlu0 %73, %v37
  %v75 = vpop.permute.xlu0 %74
  %vm76 = vcmp.eq.s32.totalorder %v42, %v39
  %vm77 = vcmp.eq.s32.totalorder %v45, %v39
  %vm78 = vcmp.eq.s32.totalorder %v48, %v39
  %vm79 = vcmp.eq.s32.totalorder %v51, %v39
  %vm80 = vcmp.eq.s32.totalorder %v54, %v39
  %vm81 = vcmp.eq.s32.totalorder %v57, %v39
  %vm82 = vcmp.eq.s32.totalorder %v60, %v39
  %vm83 = vcmp.eq.s32.totalorder %v63, %v39
  %vm84 = vcmp.eq.s32.totalorder %v66, %v39
  %vm85 = vcmp.eq.s32.totalorder %v69, %v39
  %vm86 = vcmp.eq.s32.totalorder %v72, %v39
  %vm87 = vcmp.eq.s32.totalorder %v75, %v39
  %88 = vset.pattern.permute.xlu0 1
  %89 = vperm.xlu0 %88, %v26
  %v90 = vpop.permute.xlu0 %89
  %91 = vset.pattern.permute.xlu0 1
  %92 = vperm.xlu0 %91, %v27
  %v93 = vpop.permute.xlu0 %92
  %94 = vset.pattern.permute.xlu0 1
  %95 = vperm.xlu0 %94, %v28
  %v96 = vpop.permute.xlu0 %95
  %97 = vset.pattern.permute.xlu0 1
  %98 = vperm.xlu0 %97, %v29
  %v99 = vpop.permute.xlu0 %98
  %100 = vset.pattern.permute.xlu0 1
  %101 = vperm.xlu0 %100, %v30
  %v102 = vpop.permute.xlu0 %101
  %103 = vset.pattern.permute.xlu0 1
  %104 = vperm.xlu0 %103, %v31
  %v105 = vpop.permute.xlu0 %104
  %106 = vset.pattern.permute.xlu0 1
  %107 = vperm.xlu0 %106, %v32
  %v108 = vpop.permute.xlu0 %107
  %109 = vset.pattern.permute.xlu0 1
  %110 = vperm.xlu0 %109, %v33
  %v111 = vpop.permute.xlu0 %110
  %112 = vset.pattern.permute.xlu0 1
  %113 = vperm.xlu0 %112, %v34
  %v114 = vpop.permute.xlu0 %113
  %115 = vset.pattern.permute.xlu0 1
  %116 = vperm.xlu0 %115, %v35
  %v117 = vpop.permute.xlu0 %116
  %118 = vset.pattern.permute.xlu0 1
  %119 = vperm.xlu0 %118, %v36
  %v120 = vpop.permute.xlu0 %119
  %121 = vset.pattern.permute.xlu0 1
  %122 = vperm.xlu0 %121, %v37
  %v123 = vpop.permute.xlu0 %122
  %vm124 = vcmp.eq.s32.totalorder %v90, %v39
  %vm125 = vcmp.eq.s32.totalorder %v93, %v39
  %vm126 = vcmp.eq.s32.totalorder %v96, %v39
  %vm127 = vcmp.eq.s32.totalorder %v99, %v39
  %vm128 = vcmp.eq.s32.totalorder %v102, %v39
  %vm129 = vcmp.eq.s32.totalorder %v105, %v39
  %vm130 = vcmp.eq.s32.totalorder %v108, %v39
  %vm131 = vcmp.eq.s32.totalorder %v111, %v39
  %vm132 = vcmp.eq.s32.totalorder %v114, %v39
  %vm133 = vcmp.eq.s32.totalorder %v117, %v39
  %vm134 = vcmp.eq.s32.totalorder %v120, %v39
  %vm135 = vcmp.eq.s32.totalorder %v123, %v39
  %vm136 = vmor %vm76, %vm124
  %vm137 = vmor %vm77, %vm125
  %vm138 = vmor %vm78, %vm126
  %vm139 = vmor %vm79, %vm127
  %vm140 = vmor %vm80, %vm128
  %vm141 = vmor %vm81, %vm129
  %vm142 = vmor %vm82, %vm130
  %vm143 = vmor %vm83, %vm131
  %vm144 = vmor %vm84, %vm132
  %vm145 = vmor %vm85, %vm133
  %vm146 = vmor %vm86, %vm134
  %vm147 = vmor %vm87, %vm135
  %v148 = vsel %vm136, 1, 0
  %v149 = vsel %vm137, 1, 0
  %v150 = vsel %vm138, 1, 0
  %v151 = vsel %vm139, 1, 0
  %v152 = vsel %vm140, 1, 0
  %v153 = vsel %vm141, 1, 0
  %v154 = vsel %vm142, 1, 0
  %v155 = vsel %vm143, 1, 0
  %v156 = vsel %vm144, 1, 0
  %v157 = vsel %vm145, 1, 0
  %v158 = vsel %vm146, 1, 0
  %v159 = vsel %vm147, 1, 0
  %v160 = vcvt.s32.f32 %v148
  %v161 = vcvt.s32.f32 %v149
  %v162 = vcvt.s32.f32 %v150
  %v163 = vcvt.s32.f32 %v151
  %v164 = vcvt.s32.f32 %v152
  %v165 = vcvt.s32.f32 %v153
  %v166 = vcvt.s32.f32 %v154
  %v167 = vcvt.s32.f32 %v155
  %v168 = vcvt.s32.f32 %v156
  %v169 = vcvt.s32.f32 %v157
  %v170 = vcvt.s32.f32 %v158
  %v171 = vcvt.s32.f32 %v159
  %v172 = vld [vmem:[%s3] sm:$0xff]
  %v173 = vld [vmem:[%s3 + $0x8] sm:$0xff]
  %v174 = vld [vmem:[%s3 + $0x10] sm:$0xff]
  %v175 = vld [vmem:[%s3 + $0x18] sm:$0xff]
  %v176 = vld [vmem:[%s3 + $0x20] sm:$0xff]
  %v177 = vld [vmem:[%s3 + $0x28] sm:$0xff]
  %v178 = vld [vmem:[%s3 + $0x30] sm:$0xff]
  %v179 = vld [vmem:[%s3 + $0x38] sm:$0xff]
  %v180 = vld [vmem:[%s3 + $0x40] sm:$0xff]
  %v181 = vld [vmem:[%s3 + $0x48] sm:$0xff]
  %v182 = vld [vmem:[%s3 + $0x50] sm:$0xff]
  %v183 = vld [vmem:[%s3 + $0x58] sm:$0xff]
  %vm184 = vcmask 785408
  %v186 = vsel %vm184, %v160, 0
  %v189 = vsel %vm184, %v161, 0
  %v192 = vsel %vm184, %v162, 0
  %v195 = vsel %vm184, %v163, 0
  %v198 = vsel %vm184, %v164, 0
  %v201 = vsel %vm184, %v165, 0
  %v204 = vsel %vm184, %v166, 0
  %v207 = vsel %vm184, %v167, 0
  %v210 = vsel %vm184, %v168, 0
  %v213 = vsel %vm184, %v169, 0
  %v216 = vsel %vm184, %v170, 0
  %v219 = vsel %vm184, %v171, 0
  %221 = vmatprep.subr.mxu0 0.0
  %222 = vmatpush1.msra.mxu0 0.0
  %223 = vmatprep.subr.mxu0 0.0
  %224 = vmatpush1.msra.mxu0 0.0
  %225 = vmatprep.subr.mxu0 0.0
  %226 = vmatpush1.msra.mxu0 0.0
  %227 = vmatprep.subr.mxu0 0.0
  %228 = vmatpush1.msra.mxu0 0.0
  %229 = vmatprep.subr.mxu0 0.0
  %v230 = vand.u32 %v183, 4294901760
  %231 = vmatpush1.msra.mxu0 %v230
  %232 = vmatprep.subr.mxu0 0.0
  %v233 = vand.u32 %v182, 4294901760
  %234 = vmatpush1.msra.mxu0 %v233
  %235 = vmatprep.subr.mxu0 0.0
  %v236 = vand.u32 %v181, 4294901760
  %237 = vmatpush1.msra.mxu0 %v236
  %238 = vmatprep.subr.mxu0 0.0
  %v239 = vand.u32 %v180, 4294901760
  %240 = vmatpush1.msra.mxu0 %v239
  %241 = vmatprep.subr.mxu0 0.0
  %v242 = vand.u32 %v179, 4294901760
  %243 = vmatpush1.msra.mxu0 %v242
  %244 = vmatprep.subr.mxu0 0.0
  %v245 = vand.u32 %v178, 4294901760
  %246 = vmatpush1.msra.mxu0 %v245
  %247 = vmatprep.subr.mxu0 0.0
  %v248 = vand.u32 %v177, 4294901760
  %249 = vmatpush1.msra.mxu0 %v248
  %250 = vmatprep.subr.mxu0 0.0
  %v251 = vand.u32 %v176, 4294901760
  %252 = vmatpush1.msra.mxu0 %v251
  %253 = vmatprep.subr.mxu0 0.0
  %v254 = vand.u32 %v175, 4294901760
  %255 = vmatpush1.msra.mxu0 %v254
  %256 = vmatprep.subr.mxu0 0.0
  %v257 = vand.u32 %v174, 4294901760
  %258 = vmatpush1.msra.mxu0 %v257
  %259 = vmatprep.subr.mxu0 0.0
  %v260 = vand.u32 %v173, 4294901760
  %261 = vmatpush1.msra.mxu0 %v260
  %262 = vmatprep.subr.mxu0 0.0
  %v263 = vand.u32 %v172, 4294901760
  %264 = vmatpush1.msra.mxu0 %v263
  %265 = vmatprep.subr.mxu0 0.0
  %266 = vmatpush2.msra.mxu0 0.0
  %267 = vmatprep.subr.mxu0 0.0
  %268 = vmatpush2.msra.mxu0 0.0
  %269 = vmatprep.subr.mxu0 0.0
  %270 = vmatpush2.msra.mxu0 0.0
  %271 = vmatprep.subr.mxu0 0.0
  %272 = vmatpush2.msra.mxu0 0.0
  %273 = vmatprep.subr.mxu0 0.0
  %274 = vmatpush2.msra.mxu0 0.0
  %275 = vmatprep.subr.mxu0 0.0
  %276 = vmatpush2.msra.mxu0 0.0
  %277 = vmatprep.subr.mxu0 0.0
  %278 = vmatpush2.msra.mxu0 0.0
  %279 = vmatprep.subr.mxu0 0.0
  %280 = vmatpush2.msra.mxu0 0.0
  %281 = vmatprep.subr.mxu0 0.0
  %282 = vmatpush2.msra.mxu0 0.0
  %283 = vmatprep.subr.mxu0 0.0
  %284 = vmatpush2.msra.mxu0 0.0
  %285 = vmatprep.subr.mxu0 0.0
  %286 = vmatpush2.msra.mxu0 0.0
  %287 = vmatprep.subr.mxu0 0.0
  %288 = vmatpush2.msra.mxu0 0.0
  %289 = vmatprep.subr.mxu0 0.0
  %290 = vmatpush2.msra.mxu0 0.0
  %291 = vmatprep.subr.mxu0 0.0
  %292 = vmatpush2.msra.mxu0 0.0
  %293 = vmatprep.subr.mxu0 0.0
  %294 = vmatpush2.msra.mxu0 0.0
  %295 = vmatprep.subr.mxu0 0.0
  %296 = vmatpush2.msra.mxu0 0.0
  %297 = vmatprep.mubr.f32.mxu0 0.0
  %v298 = vand.u32 %v186, 4294901760
  %v299 = vsub.f32 %v186, %v298
  %v300 = vand.u32 %v299, 4294901760
  %v301 = vsub.f32 %v299, %v300
  %v302 = vand.u32 %v301, 4294901760
  %303 = vmatmul.mubr.f32.gmra.mxu0 %v302
  %v304 = vpop.f32.mrf.mxu0
  %v305 = vadd.f32 0.0, %v304
  %v306 = vpop.f32.mrf.mxu0
  %307 = vmatprep.mubr.f32.mxu0 0.0
  %v308 = vand.u32 %v189, 4294901760
  %v309 = vsub.f32 %v189, %v308
  %v310 = vand.u32 %v309, 4294901760
  %v311 = vsub.f32 %v309, %v310
  %v312 = vand.u32 %v311, 4294901760
  %313 = vmatmul.mubr.f32.gmra.mxu0 %v312
  %v314 = vpop.f32.mrf.mxu0
  %v315 = vadd.f32 0.0, %v314
  %v316 = vpop.f32.mrf.mxu0
  %317 = vmatprep.mubr.f32.mxu0 0.0
  %v318 = vand.u32 %v192, 4294901760
  %v319 = vsub.f32 %v192, %v318
  %v320 = vand.u32 %v319, 4294901760
  %v321 = vsub.f32 %v319, %v320
  %v322 = vand.u32 %v321, 4294901760
  %323 = vmatmul.mubr.f32.gmra.mxu0 %v322
  %v324 = vpop.f32.mrf.mxu0
  %v325 = vadd.f32 0.0, %v324
  %v326 = vpop.f32.mrf.mxu0
  %327 = vmatprep.mubr.f32.mxu0 0.0
  %v328 = vand.u32 %v195, 4294901760
  %v329 = vsub.f32 %v195, %v328
  %v330 = vand.u32 %v329, 4294901760
  %v331 = vsub.f32 %v329, %v330
  %v332 = vand.u32 %v331, 4294901760
  %333 = vmatmul.mubr.f32.gmra.mxu0 %v332
  %v334 = vpop.f32.mrf.mxu0
  %v335 = vadd.f32 0.0, %v334
  %v336 = vpop.f32.mrf.mxu0
  %337 = vmatprep.mubr.f32.mxu0 0.0
  %v338 = vand.u32 %v198, 4294901760
  %v339 = vsub.f32 %v198, %v338
  %v340 = vand.u32 %v339, 4294901760
  %v341 = vsub.f32 %v339, %v340
  %v342 = vand.u32 %v341, 4294901760
  %343 = vmatmul.mubr.f32.gmra.mxu0 %v342
  %v344 = vpop.f32.mrf.mxu0
  %v345 = vadd.f32 0.0, %v344
  %v346 = vpop.f32.mrf.mxu0
  %347 = vmatprep.mubr.f32.mxu0 0.0
  %v348 = vand.u32 %v201, 4294901760
  %v349 = vsub.f32 %v201, %v348
  %v350 = vand.u32 %v349, 4294901760
  %v351 = vsub.f32 %v349, %v350
  %v352 = vand.u32 %v351, 4294901760
  %353 = vmatmul.mubr.f32.gmra.mxu0 %v352
  %v354 = vpop.f32.mrf.mxu0
  %v355 = vadd.f32 0.0, %v354
  %v356 = vpop.f32.mrf.mxu0
  %357 = vmatprep.mubr.f32.mxu0 0.0
  %v358 = vand.u32 %v204, 4294901760
  %v359 = vsub.f32 %v204, %v358
  %v360 = vand.u32 %v359, 4294901760
  %v361 = vsub.f32 %v359, %v360
  %v362 = vand.u32 %v361, 4294901760
  %363 = vmatmul.mubr.f32.gmra.mxu0 %v362
  %v364 = vpop.f32.mrf.mxu0
  %v365 = vadd.f32 0.0, %v364
  %v366 = vpop.f32.mrf.mxu0
  %367 = vmatprep.mubr.f32.mxu0 0.0
  %v368 = vand.u32 %v207, 4294901760
  %v369 = vsub.f32 %v207, %v368
  %v370 = vand.u32 %v369, 4294901760
  %v371 = vsub.f32 %v369, %v370
  %v372 = vand.u32 %v371, 4294901760
  %373 = vmatmul.mubr.f32.gmra.mxu0 %v372
  %v374 = vpop.f32.mrf.mxu0
  %v375 = vadd.f32 0.0, %v374
  %v376 = vpop.f32.mrf.mxu0
  %377 = vmatprep.mubr.f32.mxu0 0.0
  %v378 = vand.u32 %v210, 4294901760
  %v379 = vsub.f32 %v210, %v378
  %v380 = vand.u32 %v379, 4294901760
  %v381 = vsub.f32 %v379, %v380
  %v382 = vand.u32 %v381, 4294901760
  %383 = vmatmul.mubr.f32.gmra.mxu0 %v382
  %v384 = vpop.f32.mrf.mxu0
  %v385 = vadd.f32 0.0, %v384
  %v386 = vpop.f32.mrf.mxu0
  %387 = vmatprep.mubr.f32.mxu0 0.0
  %v388 = vand.u32 %v213, 4294901760
  %v389 = vsub.f32 %v213, %v388
  %v390 = vand.u32 %v389, 4294901760
  %v391 = vsub.f32 %v389, %v390
  %v392 = vand.u32 %v391, 4294901760
  %393 = vmatmul.mubr.f32.gmra.mxu0 %v392
  %v394 = vpop.f32.mrf.mxu0
  %v395 = vadd.f32 0.0, %v394
  %v396 = vpop.f32.mrf.mxu0
  %397 = vmatprep.mubr.f32.mxu0 0.0
  %v398 = vand.u32 %v216, 4294901760
  %v399 = vsub.f32 %v216, %v398
  %v400 = vand.u32 %v399, 4294901760
  %v401 = vsub.f32 %v399, %v400
  %v402 = vand.u32 %v401, 4294901760
  %403 = vmatmul.mubr.f32.gmra.mxu0 %v402
  %v404 = vpop.f32.mrf.mxu0
  %v405 = vadd.f32 0.0, %v404
  %v406 = vpop.f32.mrf.mxu0
  %407 = vmatprep.mubr.f32.mxu0 0.0
  %v408 = vand.u32 %v219, 4294901760
  %v409 = vsub.f32 %v219, %v408
  %v410 = vand.u32 %v409, 4294901760
  %v411 = vsub.f32 %v409, %v410
  %v412 = vand.u32 %v411, 4294901760
  %413 = vmatmul.mubr.f32.gmra.mxu0 %v412
  %v414 = vpop.f32.mrf.mxu0
  %v415 = vadd.f32 0.0, %v414
  %v416 = vpop.f32.mrf.mxu0
  %417 = vdwg.mxu0
  %418 = vmatprep.subr.mxu0 0.0
  %419 = vmatpush1.msra.mxu0 0.0
  %420 = vmatprep.subr.mxu0 0.0
  %421 = vmatpush1.msra.mxu0 0.0
  %422 = vmatprep.subr.mxu0 0.0
  %423 = vmatpush1.msra.mxu0 0.0
  %424 = vmatprep.subr.mxu0 0.0
  %425 = vmatpush1.msra.mxu0 0.0
  %426 = vmatprep.subr.mxu0 0.0
  %v427 = vand.u32 %v183, 4294901760
  %v428 = vsub.f32 %v183, %v427
  %v429 = vand.u32 %v428, 4294901760
  %v430 = vsub.f32 %v428, %v429
  %v431 = vand.u32 %v430, 4294901760
  %432 = vmatpush1.msra.mxu0 %v431
  %433 = vmatprep.subr.mxu0 0.0
  %v434 = vand.u32 %v182, 4294901760
  %v435 = vsub.f32 %v182, %v434
  %v436 = vand.u32 %v435, 4294901760
  %v437 = vsub.f32 %v435, %v436
  %v438 = vand.u32 %v437, 4294901760
  %439 = vmatpush1.msra.mxu0 %v438
  %440 = vmatprep.subr.mxu0 0.0
  %v441 = vand.u32 %v181, 4294901760
  %v442 = vsub.f32 %v181, %v441
  %v443 = vand.u32 %v442, 4294901760
  %v444 = vsub.f32 %v442, %v443
  %v445 = vand.u32 %v444, 4294901760
  %446 = vmatpush1.msra.mxu0 %v445
  %447 = vmatprep.subr.mxu0 0.0
  %v448 = vand.u32 %v180, 4294901760
  %v449 = vsub.f32 %v180, %v448
  %v450 = vand.u32 %v449, 4294901760
  %v451 = vsub.f32 %v449, %v450
  %v452 = vand.u32 %v451, 4294901760
  %453 = vmatpush1.msra.mxu0 %v452
  %454 = vmatprep.subr.mxu0 0.0
  %v455 = vand.u32 %v179, 4294901760
  %v456 = vsub.f32 %v179, %v455
  %v457 = vand.u32 %v456, 4294901760
  %v458 = vsub.f32 %v456, %v457
  %v459 = vand.u32 %v458, 4294901760
  %460 = vmatpush1.msra.mxu0 %v459
  %461 = vmatprep.subr.mxu0 0.0
  %v462 = vand.u32 %v178, 4294901760
  %v463 = vsub.f32 %v178, %v462
  %v464 = vand.u32 %v463, 4294901760
  %v465 = vsub.f32 %v463, %v464
  %v466 = vand.u32 %v465, 4294901760
  %467 = vmatpush1.msra.mxu0 %v466
  %468 = vmatprep.subr.mxu0 0.0
  %v469 = vand.u32 %v177, 4294901760
  %v470 = vsub.f32 %v177, %v469
  %v471 = vand.u32 %v470, 4294901760
  %v472 = vsub.f32 %v470, %v471
  %v473 = vand.u32 %v472, 4294901760
  %474 = vmatpush1.msra.mxu0 %v473
  %475 = vmatprep.subr.mxu0 0.0
  %v476 = vand.u32 %v176, 4294901760
  %v477 = vsub.f32 %v176, %v476
  %v478 = vand.u32 %v477, 4294901760
  %v479 = vsub.f32 %v477, %v478
  %v480 = vand.u32 %v479, 4294901760
  %481 = vmatpush1.msra.mxu0 %v480
  %482 = vmatprep.subr.mxu0 0.0
  %v483 = vand.u32 %v175, 4294901760
  %v484 = vsub.f32 %v175, %v483
  %v485 = vand.u32 %v484, 4294901760
  %v486 = vsub.f32 %v484, %v485
  %v487 = vand.u32 %v486, 4294901760
  %488 = vmatpush1.msra.mxu0 %v487
  %489 = vmatprep.subr.mxu0 0.0
  %v490 = vand.u32 %v174, 4294901760
  %v491 = vsub.f32 %v174, %v490
  %v492 = vand.u32 %v491, 4294901760
  %v493 = vsub.f32 %v491, %v492
  %v494 = vand.u32 %v493, 4294901760
  %495 = vmatpush1.msra.mxu0 %v494
  %496 = vmatprep.subr.mxu0 0.0
  %v497 = vand.u32 %v173, 4294901760
  %v498 = vsub.f32 %v173, %v497
  %v499 = vand.u32 %v498, 4294901760
  %v500 = vsub.f32 %v498, %v499
  %v501 = vand.u32 %v500, 4294901760
  %502 = vmatpush1.msra.mxu0 %v501
  %503 = vmatprep.subr.mxu0 0.0
  %v504 = vand.u32 %v172, 4294901760
  %v505 = vsub.f32 %v172, %v504
  %v506 = vand.u32 %v505, 4294901760
  %v507 = vsub.f32 %v505, %v506
  %v508 = vand.u32 %v507, 4294901760
  %509 = vmatpush1.msra.mxu0 %v508
  %510 = vmatprep.subr.mxu0 0.0
  %511 = vmatpush2.msra.mxu0 0.0
  %512 = vmatprep.subr.mxu0 0.0
  %513 = vmatpush2.msra.mxu0 0.0
  %514 = vmatprep.subr.mxu0 0.0
  %515 = vmatpush2.msra.mxu0 0.0
  %516 = vmatprep.subr.mxu0 0.0
  %517 = vmatpush2.msra.mxu0 0.0
  %518 = vmatprep.subr.mxu0 0.0
  %519 = vmatpush2.msra.mxu0 0.0
  %520 = vmatprep.subr.mxu0 0.0
  %521 = vmatpush2.msra.mxu0 0.0
  %522 = vmatprep.subr.mxu0 0.0
  %523 = vmatpush2.msra.mxu0 0.0
  %524 = vmatprep.subr.mxu0 0.0
  %525 = vmatpush2.msra.mxu0 0.0
  %526 = vmatprep.subr.mxu0 0.0
  %527 = vmatpush2.msra.mxu0 0.0
  %528 = vmatprep.subr.mxu0 0.0
  %529 = vmatpush2.msra.mxu0 0.0
  %530 = vmatprep.subr.mxu0 0.0
  %531 = vmatpush2.msra.mxu0 0.0
  %532 = vmatprep.subr.mxu0 0.0
  %533 = vmatpush2.msra.mxu0 0.0
  %534 = vmatprep.subr.mxu0 0.0
  %535 = vmatpush2.msra.mxu0 0.0
  %536 = vmatprep.subr.mxu0 0.0
  %537 = vmatpush2.msra.mxu0 0.0
  %538 = vmatprep.subr.mxu0 0.0
  %539 = vmatpush2.msra.mxu0 0.0
  %540 = vmatprep.subr.mxu0 0.0
  %541 = vmatpush2.msra.mxu0 0.0
  %542 = vmatprep.mubr.f32.mxu0 0.0
  %v543 = vand.u32 %v186, 4294901760
  %544 = vmatmul.mubr.f32.gmra.mxu0 %v543
  %v545 = vpop.f32.mrf.mxu0
  %v546 = vadd.f32 %v305, %v545
  %v547 = vpop.f32.mrf.mxu0
  %548 = vmatprep.mubr.f32.mxu0 0.0
  %v549 = vand.u32 %v189, 4294901760
  %550 = vmatmul.mubr.f32.gmra.mxu0 %v549
  %v551 = vpop.f32.mrf.mxu0
  %v552 = vadd.f32 %v315, %v551
  %v553 = vpop.f32.mrf.mxu0
  %554 = vmatprep.mubr.f32.mxu0 0.0
  %v555 = vand.u32 %v192, 4294901760
  %556 = vmatmul.mubr.f32.gmra.mxu0 %v555
  %v557 = vpop.f32.mrf.mxu0
  %v558 = vadd.f32 %v325, %v557
  %v559 = vpop.f32.mrf.mxu0
  %560 = vmatprep.mubr.f32.mxu0 0.0
  %v561 = vand.u32 %v195, 4294901760
  %562 = vmatmul.mubr.f32.gmra.mxu0 %v561
  %v563 = vpop.f32.mrf.mxu0
  %v564 = vadd.f32 %v335, %v563
  %v565 = vpop.f32.mrf.mxu0
  %566 = vmatprep.mubr.f32.mxu0 0.0
  %v567 = vand.u32 %v198, 4294901760
  %568 = vmatmul.mubr.f32.gmra.mxu0 %v567
  %v569 = vpop.f32.mrf.mxu0
  %v570 = vadd.f32 %v345, %v569
  %v571 = vpop.f32.mrf.mxu0
  %572 = vmatprep.mubr.f32.mxu0 0.0
  %v573 = vand.u32 %v201, 4294901760
  %574 = vmatmul.mubr.f32.gmra.mxu0 %v573
  %v575 = vpop.f32.mrf.mxu0
  %v576 = vadd.f32 %v355, %v575
  %v577 = vpop.f32.mrf.mxu0
  %578 = vmatprep.mubr.f32.mxu0 0.0
  %v579 = vand.u32 %v204, 4294901760
  %580 = vmatmul.mubr.f32.gmra.mxu0 %v579
  %v581 = vpop.f32.mrf.mxu0
  %v582 = vadd.f32 %v365, %v581
  %v583 = vpop.f32.mrf.mxu0
  %584 = vmatprep.mubr.f32.mxu0 0.0
  %v585 = vand.u32 %v207, 4294901760
  %586 = vmatmul.mubr.f32.gmra.mxu0 %v585
  %v587 = vpop.f32.mrf.mxu0
  %v588 = vadd.f32 %v375, %v587
  %v589 = vpop.f32.mrf.mxu0
  %590 = vmatprep.mubr.f32.mxu0 0.0
  %v591 = vand.u32 %v210, 4294901760
  %592 = vmatmul.mubr.f32.gmra.mxu0 %v591
  %v593 = vpop.f32.mrf.mxu0
  %v594 = vadd.f32 %v385, %v593
  %v595 = vpop.f32.mrf.mxu0
  %596 = vmatprep.mubr.f32.mxu0 0.0
  %v597 = vand.u32 %v213, 4294901760
  %598 = vmatmul.mubr.f32.gmra.mxu0 %v597
  %v599 = vpop.f32.mrf.mxu0
  %v600 = vadd.f32 %v395, %v599
  %v601 = vpop.f32.mrf.mxu0
  %602 = vmatprep.mubr.f32.mxu0 0.0
  %v603 = vand.u32 %v216, 4294901760
  %604 = vmatmul.mubr.f32.gmra.mxu0 %v603
  %v605 = vpop.f32.mrf.mxu0
  %v606 = vadd.f32 %v405, %v605
  %v607 = vpop.f32.mrf.mxu0
  %608 = vmatprep.mubr.f32.mxu0 0.0
  %v609 = vand.u32 %v219, 4294901760
  %610 = vmatmul.mubr.f32.gmra.mxu0 %v609
  %v611 = vpop.f32.mrf.mxu0
  %v612 = vadd.f32 %v415, %v611
  %v613 = vpop.f32.mrf.mxu0
  %614 = vdwg.mxu0
  %615 = vmatprep.subr.mxu0 0.0
  %616 = vmatpush1.msra.mxu0 0.0
  %617 = vmatprep.subr.mxu0 0.0
  %618 = vmatpush1.msra.mxu0 0.0
  %619 = vmatprep.subr.mxu0 0.0
  %620 = vmatpush1.msra.mxu0 0.0
  %621 = vmatprep.subr.mxu0 0.0
  %622 = vmatpush1.msra.mxu0 0.0
  %623 = vmatprep.subr.mxu0 0.0
  %v624 = vand.u32 %v183, 4294901760
  %v625 = vsub.f32 %v183, %v624
  %626 = vmatpush1.msra.mxu0 %v625
  %627 = vmatprep.subr.mxu0 0.0
  %v628 = vand.u32 %v182, 4294901760
  %v629 = vsub.f32 %v182, %v628
  %630 = vmatpush1.msra.mxu0 %v629
  %631 = vmatprep.subr.mxu0 0.0
  %v632 = vand.u32 %v181, 4294901760
  %v633 = vsub.f32 %v181, %v632
  %634 = vmatpush1.msra.mxu0 %v633
  %635 = vmatprep.subr.mxu0 0.0
  %v636 = vand.u32 %v180, 4294901760
  %v637 = vsub.f32 %v180, %v636
  %638 = vmatpush1.msra.mxu0 %v637
  %639 = vmatprep.subr.mxu0 0.0
  %v640 = vand.u32 %v179, 4294901760
  %v641 = vsub.f32 %v179, %v640
  %642 = vmatpush1.msra.mxu0 %v641
  %643 = vmatprep.subr.mxu0 0.0
  %v644 = vand.u32 %v178, 4294901760
  %v645 = vsub.f32 %v178, %v644
  %646 = vmatpush1.msra.mxu0 %v645
  %647 = vmatprep.subr.mxu0 0.0
  %v648 = vand.u32 %v177, 4294901760
  %v649 = vsub.f32 %v177, %v648
  %650 = vmatpush1.msra.mxu0 %v649
  %651 = vmatprep.subr.mxu0 0.0
  %v652 = vand.u32 %v176, 4294901760
  %v653 = vsub.f32 %v176, %v652
  %654 = vmatpush1.msra.mxu0 %v653
  %655 = vmatprep.subr.mxu0 0.0
  %v656 = vand.u32 %v175, 4294901760
  %v657 = vsub.f32 %v175, %v656
  %658 = vmatpush1.msra.mxu0 %v657
  %659 = vmatprep.subr.mxu0 0.0
  %v660 = vand.u32 %v174, 4294901760
  %v661 = vsub.f32 %v174, %v660
  %662 = vmatpush1.msra.mxu0 %v661
  %663 = vmatprep.subr.mxu0 0.0
  %v664 = vand.u32 %v173, 4294901760
  %v665 = vsub.f32 %v173, %v664
  %666 = vmatpush1.msra.mxu0 %v665
  %667 = vmatprep.subr.mxu0 0.0
  %v668 = vand.u32 %v172, 4294901760
  %v669 = vsub.f32 %v172, %v668
  %670 = vmatpush1.msra.mxu0 %v669
  %671 = vmatprep.subr.mxu0 0.0
  %672 = vmatpush2.msra.mxu0 0.0
  %673 = vmatprep.subr.mxu0 0.0
  %674 = vmatpush2.msra.mxu0 0.0
  %675 = vmatprep.subr.mxu0 0.0
  %676 = vmatpush2.msra.mxu0 0.0
  %677 = vmatprep.subr.mxu0 0.0
  %678 = vmatpush2.msra.mxu0 0.0
  %679 = vmatprep.subr.mxu0 0.0
  %680 = vmatpush2.msra.mxu0 0.0
  %681 = vmatprep.subr.mxu0 0.0
  %682 = vmatpush2.msra.mxu0 0.0
  %683 = vmatprep.subr.mxu0 0.0
  %684 = vmatpush2.msra.mxu0 0.0
  %685 = vmatprep.subr.mxu0 0.0
  %686 = vmatpush2.msra.mxu0 0.0
  %687 = vmatprep.subr.mxu0 0.0
  %688 = vmatpush2.msra.mxu0 0.0
  %689 = vmatprep.subr.mxu0 0.0
  %690 = vmatpush2.msra.mxu0 0.0
  %691 = vmatprep.subr.mxu0 0.0
  %692 = vmatpush2.msra.mxu0 0.0
  %693 = vmatprep.subr.mxu0 0.0
  %694 = vmatpush2.msra.mxu0 0.0
  %695 = vmatprep.subr.mxu0 0.0
  %696 = vmatpush2.msra.mxu0 0.0
  %697 = vmatprep.subr.mxu0 0.0
  %698 = vmatpush2.msra.mxu0 0.0
  %699 = vmatprep.subr.mxu0 0.0
  %700 = vmatpush2.msra.mxu0 0.0
  %701 = vmatprep.subr.mxu0 0.0
  %702 = vmatpush2.msra.mxu0 0.0
  %703 = vmatprep.mubr.f32.mxu0 0.0
  %v704 = vand.u32 %v186, 4294901760
  %v705 = vsub.f32 %v186, %v704
  %706 = vmatmul.mubr.f32.gmra.mxu0 %v705
  %v707 = vpop.f32.mrf.mxu0
  %v708 = vadd.f32 %v546, %v707
  %v709 = vpop.f32.mrf.mxu0
  %710 = vmatprep.mubr.f32.mxu0 0.0
  %v711 = vand.u32 %v189, 4294901760
  %v712 = vsub.f32 %v189, %v711
  %713 = vmatmul.mubr.f32.gmra.mxu0 %v712
  %v714 = vpop.f32.mrf.mxu0
  %v715 = vadd.f32 %v552, %v714
  %v716 = vpop.f32.mrf.mxu0
  %717 = vmatprep.mubr.f32.mxu0 0.0
  %v718 = vand.u32 %v192, 4294901760
  %v719 = vsub.f32 %v192, %v718
  %720 = vmatmul.mubr.f32.gmra.mxu0 %v719
  %v721 = vpop.f32.mrf.mxu0
  %v722 = vadd.f32 %v558, %v721
  %v723 = vpop.f32.mrf.mxu0
  %724 = vmatprep.mubr.f32.mxu0 0.0
  %v725 = vand.u32 %v195, 4294901760
  %v726 = vsub.f32 %v195, %v725
  %727 = vmatmul.mubr.f32.gmra.mxu0 %v726
  %v728 = vpop.f32.mrf.mxu0
  %v729 = vadd.f32 %v564, %v728
  %v730 = vpop.f32.mrf.mxu0
  %731 = vmatprep.mubr.f32.mxu0 0.0
  %v732 = vand.u32 %v198, 4294901760
  %v733 = vsub.f32 %v198, %v732
  %734 = vmatmul.mubr.f32.gmra.mxu0 %v733
  %v735 = vpop.f32.mrf.mxu0
  %v736 = vadd.f32 %v570, %v735
  %v737 = vpop.f32.mrf.mxu0
  %738 = vmatprep.mubr.f32.mxu0 0.0
  %v739 = vand.u32 %v201, 4294901760
  %v740 = vsub.f32 %v201, %v739
  %741 = vmatmul.mubr.f32.gmra.mxu0 %v740
  %v742 = vpop.f32.mrf.mxu0
  %v743 = vadd.f32 %v576, %v742
  %v744 = vpop.f32.mrf.mxu0
  %745 = vmatprep.mubr.f32.mxu0 0.0
  %v746 = vand.u32 %v204, 4294901760
  %v747 = vsub.f32 %v204, %v746
  %748 = vmatmul.mubr.f32.gmra.mxu0 %v747
  %v749 = vpop.f32.mrf.mxu0
  %v750 = vadd.f32 %v582, %v749
  %v751 = vpop.f32.mrf.mxu0
  %752 = vmatprep.mubr.f32.mxu0 0.0
  %v753 = vand.u32 %v207, 4294901760
  %v754 = vsub.f32 %v207, %v753
  %755 = vmatmul.mubr.f32.gmra.mxu0 %v754
  %v756 = vpop.f32.mrf.mxu0
  %v757 = vadd.f32 %v588, %v756
  %v758 = vpop.f32.mrf.mxu0
  %759 = vmatprep.mubr.f32.mxu0 0.0
  %v760 = vand.u32 %v210, 4294901760
  %v761 = vsub.f32 %v210, %v760
  %762 = vmatmul.mubr.f32.gmra.mxu0 %v761
  %v763 = vpop.f32.mrf.mxu0
  %v764 = vadd.f32 %v594, %v763
  %v765 = vpop.f32.mrf.mxu0
  %766 = vmatprep.mubr.f32.mxu0 0.0
  %v767 = vand.u32 %v213, 4294901760
  %v768 = vsub.f32 %v213, %v767
  %769 = vmatmul.mubr.f32.gmra.mxu0 %v768
  %v770 = vpop.f32.mrf.mxu0
  %v771 = vadd.f32 %v600, %v770
  %v772 = vpop.f32.mrf.mxu0
  %773 = vmatprep.mubr.f32.mxu0 0.0
  %v774 = vand.u32 %v216, 4294901760
  %v775 = vsub.f32 %v216, %v774
  %776 = vmatmul.mubr.f32.gmra.mxu0 %v775
  %v777 = vpop.f32.mrf.mxu0
  %v778 = vadd.f32 %v606, %v777
  %v779 = vpop.f32.mrf.mxu0
  %780 = vmatprep.mubr.f32.mxu0 0.0
  %v781 = vand.u32 %v219, 4294901760
  %v782 = vsub.f32 %v219, %v781
  %783 = vmatmul.mubr.f32.gmra.mxu0 %v782
  %v784 = vpop.f32.mrf.mxu0
  %v785 = vadd.f32 %v612, %v784
  %v786 = vpop.f32.mrf.mxu0
  %787 = vdwg.mxu0
  %788 = vmatprep.subr.mxu0 0.0
  %789 = vmatpush1.msra.mxu0 0.0
  %790 = vmatprep.subr.mxu0 0.0
  %791 = vmatpush1.msra.mxu0 0.0
  %792 = vmatprep.subr.mxu0 0.0
  %793 = vmatpush1.msra.mxu0 0.0
  %794 = vmatprep.subr.mxu0 0.0
  %795 = vmatpush1.msra.mxu0 0.0
  %796 = vmatprep.subr.mxu0 0.0
  %v797 = vand.u32 %v183, 4294901760
  %798 = vmatpush1.msra.mxu0 %v797
  %799 = vmatprep.subr.mxu0 0.0
  %v800 = vand.u32 %v182, 4294901760
  %801 = vmatpush1.msra.mxu0 %v800
  %802 = vmatprep.subr.mxu0 0.0
  %v803 = vand.u32 %v181, 4294901760
  %804 = vmatpush1.msra.mxu0 %v803
  %805 = vmatprep.subr.mxu0 0.0
  %v806 = vand.u32 %v180, 4294901760
  %807 = vmatpush1.msra.mxu0 %v806
  %808 = vmatprep.subr.mxu0 0.0
  %v809 = vand.u32 %v179, 4294901760
  %810 = vmatpush1.msra.mxu0 %v809
  %811 = vmatprep.subr.mxu0 0.0
  %v812 = vand.u32 %v178, 4294901760
  %813 = vmatpush1.msra.mxu0 %v812
  %814 = vmatprep.subr.mxu0 0.0
  %v815 = vand.u32 %v177, 4294901760
  %816 = vmatpush1.msra.mxu0 %v815
  %817 = vmatprep.subr.mxu0 0.0
  %v818 = vand.u32 %v176, 4294901760
  %819 = vmatpush1.msra.mxu0 %v818
  %820 = vmatprep.subr.mxu0 0.0
  %v821 = vand.u32 %v175, 4294901760
  %822 = vmatpush1.msra.mxu0 %v821
  %823 = vmatprep.subr.mxu0 0.0
  %v824 = vand.u32 %v174, 4294901760
  %825 = vmatpush1.msra.mxu0 %v824
  %826 = vmatprep.subr.mxu0 0.0
  %v827 = vand.u32 %v173, 4294901760
  %828 = vmatpush1.msra.mxu0 %v827
  %829 = vmatprep.subr.mxu0 0.0
  %v830 = vand.u32 %v172, 4294901760
  %831 = vmatpush1.msra.mxu0 %v830
  %832 = vmatprep.subr.mxu0 0.0
  %833 = vmatpush2.msra.mxu0 0.0
  %834 = vmatprep.subr.mxu0 0.0
  %835 = vmatpush2.msra.mxu0 0.0
  %836 = vmatprep.subr.mxu0 0.0
  %837 = vmatpush2.msra.mxu0 0.0
  %838 = vmatprep.subr.mxu0 0.0
  %839 = vmatpush2.msra.mxu0 0.0
  %840 = vmatprep.subr.mxu0 0.0
  %841 = vmatpush2.msra.mxu0 0.0
  %842 = vmatprep.subr.mxu0 0.0
  %843 = vmatpush2.msra.mxu0 0.0
  %844 = vmatprep.subr.mxu0 0.0
  %845 = vmatpush2.msra.mxu0 0.0
  %846 = vmatprep.subr.mxu0 0.0
  %847 = vmatpush2.msra.mxu0 0.0
  %848 = vmatprep.subr.mxu0 0.0
  %849 = vmatpush2.msra.mxu0 0.0
  %850 = vmatprep.subr.mxu0 0.0
  %851 = vmatpush2.msra.mxu0 0.0
  %852 = vmatprep.subr.mxu0 0.0
  %853 = vmatpush2.msra.mxu0 0.0
  %854 = vmatprep.subr.mxu0 0.0
  %855 = vmatpush2.msra.mxu0 0.0
  %856 = vmatprep.subr.mxu0 0.0
  %857 = vmatpush2.msra.mxu0 0.0
  %858 = vmatprep.subr.mxu0 0.0
  %859 = vmatpush2.msra.mxu0 0.0
  %860 = vmatprep.subr.mxu0 0.0
  %861 = vmatpush2.msra.mxu0 0.0
  %862 = vmatprep.subr.mxu0 0.0
  %863 = vmatpush2.msra.mxu0 0.0
  %864 = vmatprep.mubr.f32.mxu0 0.0
  %v865 = vand.u32 %v186, 4294901760
  %v866 = vsub.f32 %v186, %v865
  %v867 = vand.u32 %v866, 4294901760
  %868 = vmatmul.mubr.f32.gmra.mxu0 %v867
  %v869 = vpop.f32.mrf.mxu0
  %v870 = vadd.f32 %v708, %v869
  %v871 = vpop.f32.mrf.mxu0
  %872 = vmatprep.mubr.f32.mxu0 0.0
  %v873 = vand.u32 %v189, 4294901760
  %v874 = vsub.f32 %v189, %v873
  %v875 = vand.u32 %v874, 4294901760
  %876 = vmatmul.mubr.f32.gmra.mxu0 %v875
  %v877 = vpop.f32.mrf.mxu0
  %v878 = vadd.f32 %v715, %v877
  %v879 = vpop.f32.mrf.mxu0
  %880 = vmatprep.mubr.f32.mxu0 0.0
  %v881 = vand.u32 %v192, 4294901760
  %v882 = vsub.f32 %v192, %v881
  %v883 = vand.u32 %v882, 4294901760
  %884 = vmatmul.mubr.f32.gmra.mxu0 %v883
  %v885 = vpop.f32.mrf.mxu0
  %v886 = vadd.f32 %v722, %v885
  %v887 = vpop.f32.mrf.mxu0
  %888 = vmatprep.mubr.f32.mxu0 0.0
  %v889 = vand.u32 %v195, 4294901760
  %v890 = vsub.f32 %v195, %v889
  %v891 = vand.u32 %v890, 4294901760
  %892 = vmatmul.mubr.f32.gmra.mxu0 %v891
  %v893 = vpop.f32.mrf.mxu0
  %v894 = vadd.f32 %v729, %v893
  %v895 = vpop.f32.mrf.mxu0
  %896 = vmatprep.mubr.f32.mxu0 0.0
  %v897 = vand.u32 %v198, 4294901760
  %v898 = vsub.f32 %v198, %v897
  %v899 = vand.u32 %v898, 4294901760
  %900 = vmatmul.mubr.f32.gmra.mxu0 %v899
  %v901 = vpop.f32.mrf.mxu0
  %v902 = vadd.f32 %v736, %v901
  %v903 = vpop.f32.mrf.mxu0
  %904 = vmatprep.mubr.f32.mxu0 0.0
  %v905 = vand.u32 %v201, 4294901760
  %v906 = vsub.f32 %v201, %v905
  %v907 = vand.u32 %v906, 4294901760
  %908 = vmatmul.mubr.f32.gmra.mxu0 %v907
  %v909 = vpop.f32.mrf.mxu0
  %v910 = vadd.f32 %v743, %v909
  %v911 = vpop.f32.mrf.mxu0
  %912 = vmatprep.mubr.f32.mxu0 0.0
  %v913 = vand.u32 %v204, 4294901760
  %v914 = vsub.f32 %v204, %v913
  %v915 = vand.u32 %v914, 4294901760
  %916 = vmatmul.mubr.f32.gmra.mxu0 %v915
  %v917 = vpop.f32.mrf.mxu0
  %v918 = vadd.f32 %v750, %v917
  %v919 = vpop.f32.mrf.mxu0
  %920 = vmatprep.mubr.f32.mxu0 0.0
  %v921 = vand.u32 %v207, 4294901760
  %v922 = vsub.f32 %v207, %v921
  %v923 = vand.u32 %v922, 4294901760
  %924 = vmatmul.mubr.f32.gmra.mxu0 %v923
  %v925 = vpop.f32.mrf.mxu0
  %v926 = vadd.f32 %v757, %v925
  %v927 = vpop.f32.mrf.mxu0
  %928 = vmatprep.mubr.f32.mxu0 0.0
  %v929 = vand.u32 %v210, 4294901760
  %v930 = vsub.f32 %v210, %v929
  %v931 = vand.u32 %v930, 4294901760
  %932 = vmatmul.mubr.f32.gmra.mxu0 %v931
  %v933 = vpop.f32.mrf.mxu0
  %v934 = vadd.f32 %v764, %v933
  %v935 = vpop.f32.mrf.mxu0
  %936 = vmatprep.mubr.f32.mxu0 0.0
  %v937 = vand.u32 %v213, 4294901760
  %v938 = vsub.f32 %v213, %v937
  %v939 = vand.u32 %v938, 4294901760
  %940 = vmatmul.mubr.f32.gmra.mxu0 %v939
  %v941 = vpop.f32.mrf.mxu0
  %v942 = vadd.f32 %v771, %v941
  %v943 = vpop.f32.mrf.mxu0
  %944 = vmatprep.mubr.f32.mxu0 0.0
  %v945 = vand.u32 %v216, 4294901760
  %v946 = vsub.f32 %v216, %v945
  %v947 = vand.u32 %v946, 4294901760
  %948 = vmatmul.mubr.f32.gmra.mxu0 %v947
  %v949 = vpop.f32.mrf.mxu0
  %v950 = vadd.f32 %v778, %v949
  %v951 = vpop.f32.mrf.mxu0
  %952 = vmatprep.mubr.f32.mxu0 0.0
  %v953 = vand.u32 %v219, 4294901760
  %v954 = vsub.f32 %v219, %v953
  %v955 = vand.u32 %v954, 4294901760
  %956 = vmatmul.mubr.f32.gmra.mxu0 %v955
  %v957 = vpop.f32.mrf.mxu0
  %v958 = vadd.f32 %v785, %v957
  %v959 = vpop.f32.mrf.mxu0
  %960 = vdwg.mxu0
  %961 = vmatprep.subr.mxu0 0.0
  %962 = vmatpush1.msra.mxu0 0.0
  %963 = vmatprep.subr.mxu0 0.0
  %964 = vmatpush1.msra.mxu0 0.0
  %965 = vmatprep.subr.mxu0 0.0
  %966 = vmatpush1.msra.mxu0 0.0
  %967 = vmatprep.subr.mxu0 0.0
  %968 = vmatpush1.msra.mxu0 0.0
  %969 = vmatprep.subr.mxu0 0.0
  %v970 = vand.u32 %v183, 4294901760
  %v971 = vsub.f32 %v183, %v970
  %v972 = vand.u32 %v971, 4294901760
  %973 = vmatpush1.msra.mxu0 %v972
  %974 = vmatprep.subr.mxu0 0.0
  %v975 = vand.u32 %v182, 4294901760
  %v976 = vsub.f32 %v182, %v975
  %v977 = vand.u32 %v976, 4294901760
  %978 = vmatpush1.msra.mxu0 %v977
  %979 = vmatprep.subr.mxu0 0.0
  %v980 = vand.u32 %v181, 4294901760
  %v981 = vsub.f32 %v181, %v980
  %v982 = vand.u32 %v981, 4294901760
  %983 = vmatpush1.msra.mxu0 %v982
  %984 = vmatprep.subr.mxu0 0.0
  %v985 = vand.u32 %v180, 4294901760
  %v986 = vsub.f32 %v180, %v985
  %v987 = vand.u32 %v986, 4294901760
  %988 = vmatpush1.msra.mxu0 %v987
  %989 = vmatprep.subr.mxu0 0.0
  %v990 = vand.u32 %v179, 4294901760
  %v991 = vsub.f32 %v179, %v990
  %v992 = vand.u32 %v991, 4294901760
  %993 = vmatpush1.msra.mxu0 %v992
  %994 = vmatprep.subr.mxu0 0.0
  %v995 = vand.u32 %v178, 4294901760
  %v996 = vsub.f32 %v178, %v995
  %v997 = vand.u32 %v996, 4294901760
  %998 = vmatpush1.msra.mxu0 %v997
  %999 = vmatprep.subr.mxu0 0.0
  %v1000 = vand.u32 %v177, 4294901760
  %v1001 = vsub.f32 %v177, %v1000
  %v1002 = vand.u32 %v1001, 4294901760
  %1003 = vmatpush1.msra.mxu0 %v1002
  %1004 = vmatprep.subr.mxu0 0.0
  %v1005 = vand.u32 %v176, 4294901760
  %v1006 = vsub.f32 %v176, %v1005
  %v1007 = vand.u32 %v1006, 4294901760
  %1008 = vmatpush1.msra.mxu0 %v1007
  %1009 = vmatprep.subr.mxu0 0.0
  %v1010 = vand.u32 %v175, 4294901760
  %v1011 = vsub.f32 %v175, %v1010
  %v1012 = vand.u32 %v1011, 4294901760
  %1013 = vmatpush1.msra.mxu0 %v1012
  %1014 = vmatprep.subr.mxu0 0.0
  %v1015 = vand.u32 %v174, 4294901760
  %v1016 = vsub.f32 %v174, %v1015
  %v1017 = vand.u32 %v1016, 4294901760
  %1018 = vmatpush1.msra.mxu0 %v1017
  %1019 = vmatprep.subr.mxu0 0.0
  %v1020 = vand.u32 %v173, 4294901760
  %v1021 = vsub.f32 %v173, %v1020
  %v1022 = vand.u32 %v1021, 4294901760
  %1023 = vmatpush1.msra.mxu0 %v1022
  %1024 = vmatprep.subr.mxu0 0.0
  %v1025 = vand.u32 %v172, 4294901760
  %v1026 = vsub.f32 %v172, %v1025
  %v1027 = vand.u32 %v1026, 4294901760
  %1028 = vmatpush1.msra.mxu0 %v1027
  %1029 = vmatprep.subr.mxu0 0.0
  %1030 = vmatpush2.msra.mxu0 0.0
  %1031 = vmatprep.subr.mxu0 0.0
  %1032 = vmatpush2.msra.mxu0 0.0
  %1033 = vmatprep.subr.mxu0 0.0
  %1034 = vmatpush2.msra.mxu0 0.0
  %1035 = vmatprep.subr.mxu0 0.0
  %1036 = vmatpush2.msra.mxu0 0.0
  %1037 = vmatprep.subr.mxu0 0.0
  %1038 = vmatpush2.msra.mxu0 0.0
  %1039 = vmatprep.subr.mxu0 0.0
  %1040 = vmatpush2.msra.mxu0 0.0
  %1041 = vmatprep.subr.mxu0 0.0
  %1042 = vmatpush2.msra.mxu0 0.0
  %1043 = vmatprep.subr.mxu0 0.0
  %1044 = vmatpush2.msra.mxu0 0.0
  %1045 = vmatprep.subr.mxu0 0.0
  %1046 = vmatpush2.msra.mxu0 0.0
  %1047 = vmatprep.subr.mxu0 0.0
  %1048 = vmatpush2.msra.mxu0 0.0
  %1049 = vmatprep.subr.mxu0 0.0
  %1050 = vmatpush2.msra.mxu0 0.0
  %1051 = vmatprep.subr.mxu0 0.0
  %1052 = vmatpush2.msra.mxu0 0.0
  %1053 = vmatprep.subr.mxu0 0.0
  %1054 = vmatpush2.msra.mxu0 0.0
  %1055 = vmatprep.subr.mxu0 0.0
  %1056 = vmatpush2.msra.mxu0 0.0
  %1057 = vmatprep.subr.mxu0 0.0
  %1058 = vmatpush2.msra.mxu0 0.0
  %1059 = vmatprep.subr.mxu0 0.0
  %1060 = vmatpush2.msra.mxu0 0.0
  %1061 = vmatprep.mubr.f32.mxu0 0.0
  %v1062 = vand.u32 %v186, 4294901760
  %1063 = vmatmul.mubr.f32.gmra.mxu0 %v1062
  %v1064 = vpop.f32.mrf.mxu0
  %v1065 = vadd.f32 %v870, %v1064
  %v1066 = vpop.f32.mrf.mxu0
  %1067 = vmatprep.mubr.f32.mxu0 0.0
  %v1068 = vand.u32 %v189, 4294901760
  %1069 = vmatmul.mubr.f32.gmra.mxu0 %v1068
  %v1070 = vpop.f32.mrf.mxu0
  %v1071 = vadd.f32 %v878, %v1070
  %v1072 = vpop.f32.mrf.mxu0
  %1073 = vmatprep.mubr.f32.mxu0 0.0
  %v1074 = vand.u32 %v192, 4294901760
  %1075 = vmatmul.mubr.f32.gmra.mxu0 %v1074
  %v1076 = vpop.f32.mrf.mxu0
  %v1077 = vadd.f32 %v886, %v1076
  %v1078 = vpop.f32.mrf.mxu0
  %1079 = vmatprep.mubr.f32.mxu0 0.0
  %v1080 = vand.u32 %v195, 4294901760
  %1081 = vmatmul.mubr.f32.gmra.mxu0 %v1080
  %v1082 = vpop.f32.mrf.mxu0
  %v1083 = vadd.f32 %v894, %v1082
  %v1084 = vpop.f32.mrf.mxu0
  %1085 = vmatprep.mubr.f32.mxu0 0.0
  %v1086 = vand.u32 %v198, 4294901760
  %1087 = vmatmul.mubr.f32.gmra.mxu0 %v1086
  %v1088 = vpop.f32.mrf.mxu0
  %v1089 = vadd.f32 %v902, %v1088
  %v1090 = vpop.f32.mrf.mxu0
  %1091 = vmatprep.mubr.f32.mxu0 0.0
  %v1092 = vand.u32 %v201, 4294901760
  %1093 = vmatmul.mubr.f32.gmra.mxu0 %v1092
  %v1094 = vpop.f32.mrf.mxu0
  %v1095 = vadd.f32 %v910, %v1094
  %v1096 = vpop.f32.mrf.mxu0
  %1097 = vmatprep.mubr.f32.mxu0 0.0
  %v1098 = vand.u32 %v204, 4294901760
  %1099 = vmatmul.mubr.f32.gmra.mxu0 %v1098
  %v1100 = vpop.f32.mrf.mxu0
  %v1101 = vadd.f32 %v918, %v1100
  %v1102 = vpop.f32.mrf.mxu0
  %1103 = vmatprep.mubr.f32.mxu0 0.0
  %v1104 = vand.u32 %v207, 4294901760
  %1105 = vmatmul.mubr.f32.gmra.mxu0 %v1104
  %v1106 = vpop.f32.mrf.mxu0
  %v1107 = vadd.f32 %v926, %v1106
  %v1108 = vpop.f32.mrf.mxu0
  %1109 = vmatprep.mubr.f32.mxu0 0.0
  %v1110 = vand.u32 %v210, 4294901760
  %1111 = vmatmul.mubr.f32.gmra.mxu0 %v1110
  %v1112 = vpop.f32.mrf.mxu0
  %v1113 = vadd.f32 %v934, %v1112
  %v1114 = vpop.f32.mrf.mxu0
  %1115 = vmatprep.mubr.f32.mxu0 0.0
  %v1116 = vand.u32 %v213, 4294901760
  %1117 = vmatmul.mubr.f32.gmra.mxu0 %v1116
  %v1118 = vpop.f32.mrf.mxu0
  %v1119 = vadd.f32 %v942, %v1118
  %v1120 = vpop.f32.mrf.mxu0
  %1121 = vmatprep.mubr.f32.mxu0 0.0
  %v1122 = vand.u32 %v216, 4294901760
  %1123 = vmatmul.mubr.f32.gmra.mxu0 %v1122
  %v1124 = vpop.f32.mrf.mxu0
  %v1125 = vadd.f32 %v950, %v1124
  %v1126 = vpop.f32.mrf.mxu0
  %1127 = vmatprep.mubr.f32.mxu0 0.0
  %v1128 = vand.u32 %v219, 4294901760
  %1129 = vmatmul.mubr.f32.gmra.mxu0 %v1128
  %v1130 = vpop.f32.mrf.mxu0
  %v1131 = vadd.f32 %v958, %v1130
  %v1132 = vpop.f32.mrf.mxu0
  %1133 = vdwg.mxu0
  %1134 = vmatprep.subr.mxu0 0.0
  %1135 = vmatpush1.msra.mxu0 0.0
  %1136 = vmatprep.subr.mxu0 0.0
  %1137 = vmatpush1.msra.mxu0 0.0
  %1138 = vmatprep.subr.mxu0 0.0
  %1139 = vmatpush1.msra.mxu0 0.0
  %1140 = vmatprep.subr.mxu0 0.0
  %1141 = vmatpush1.msra.mxu0 0.0
  %1142 = vmatprep.subr.mxu0 0.0
  %v1143 = vand.u32 %v183, 4294901760
  %1144 = vmatpush1.msra.mxu0 %v1143
  %1145 = vmatprep.subr.mxu0 0.0
  %v1146 = vand.u32 %v182, 4294901760
  %1147 = vmatpush1.msra.mxu0 %v1146
  %1148 = vmatprep.subr.mxu0 0.0
  %v1149 = vand.u32 %v181, 4294901760
  %1150 = vmatpush1.msra.mxu0 %v1149
  %1151 = vmatprep.subr.mxu0 0.0
  %v1152 = vand.u32 %v180, 4294901760
  %1153 = vmatpush1.msra.mxu0 %v1152
  %1154 = vmatprep.subr.mxu0 0.0
  %v1155 = vand.u32 %v179, 4294901760
  %1156 = vmatpush1.msra.mxu0 %v1155
  %1157 = vmatprep.subr.mxu0 0.0
  %v1158 = vand.u32 %v178, 4294901760
  %1159 = vmatpush1.msra.mxu0 %v1158
  %1160 = vmatprep.subr.mxu0 0.0
  %v1161 = vand.u32 %v177, 4294901760
  %1162 = vmatpush1.msra.mxu0 %v1161
  %1163 = vmatprep.subr.mxu0 0.0
  %v1164 = vand.u32 %v176, 4294901760
  %1165 = vmatpush1.msra.mxu0 %v1164
  %1166 = vmatprep.subr.mxu0 0.0
  %v1167 = vand.u32 %v175, 4294901760
  %1168 = vmatpush1.msra.mxu0 %v1167
  %1169 = vmatprep.subr.mxu0 0.0
  %v1170 = vand.u32 %v174, 4294901760
  %1171 = vmatpush1.msra.mxu0 %v1170
  %1172 = vmatprep.subr.mxu0 0.0
  %v1173 = vand.u32 %v173, 4294901760
  %1174 = vmatpush1.msra.mxu0 %v1173
  %1175 = vmatprep.subr.mxu0 0.0
  %v1176 = vand.u32 %v172, 4294901760
  %1177 = vmatpush1.msra.mxu0 %v1176
  %1178 = vmatprep.subr.mxu0 0.0
  %1179 = vmatpush2.msra.mxu0 0.0
  %1180 = vmatprep.subr.mxu0 0.0
  %1181 = vmatpush2.msra.mxu0 0.0
  %1182 = vmatprep.subr.mxu0 0.0
  %1183 = vmatpush2.msra.mxu0 0.0
  %1184 = vmatprep.subr.mxu0 0.0
  %1185 = vmatpush2.msra.mxu0 0.0
  %1186 = vmatprep.subr.mxu0 0.0
  %1187 = vmatpush2.msra.mxu0 0.0
  %1188 = vmatprep.subr.mxu0 0.0
  %1189 = vmatpush2.msra.mxu0 0.0
  %1190 = vmatprep.subr.mxu0 0.0
  %1191 = vmatpush2.msra.mxu0 0.0
  %1192 = vmatprep.subr.mxu0 0.0
  %1193 = vmatpush2.msra.mxu0 0.0
  %1194 = vmatprep.subr.mxu0 0.0
  %1195 = vmatpush2.msra.mxu0 0.0
  %1196 = vmatprep.subr.mxu0 0.0
  %1197 = vmatpush2.msra.mxu0 0.0
  %1198 = vmatprep.subr.mxu0 0.0
  %1199 = vmatpush2.msra.mxu0 0.0
  %1200 = vmatprep.subr.mxu0 0.0
  %1201 = vmatpush2.msra.mxu0 0.0
  %1202 = vmatprep.subr.mxu0 0.0
  %1203 = vmatpush2.msra.mxu0 0.0
  %1204 = vmatprep.subr.mxu0 0.0
  %1205 = vmatpush2.msra.mxu0 0.0
  %1206 = vmatprep.subr.mxu0 0.0
  %1207 = vmatpush2.msra.mxu0 0.0
  %1208 = vmatprep.subr.mxu0 0.0
  %1209 = vmatpush2.msra.mxu0 0.0
  %1210 = vmatprep.mubr.f32.mxu0 0.0
  %v1211 = vand.u32 %v186, 4294901760
  %1212 = vmatmul.mubr.f32.gmra.mxu0 %v1211
  %v1213 = vpop.f32.mrf.mxu0
  %v1214 = vadd.f32 %v1065, %v1213
  %v1215 = vpop.f32.mrf.mxu0
  %1216 = vmatprep.mubr.f32.mxu0 0.0
  %v1217 = vand.u32 %v189, 4294901760
  %1218 = vmatmul.mubr.f32.gmra.mxu0 %v1217
  %v1219 = vpop.f32.mrf.mxu0
  %v1220 = vadd.f32 %v1071, %v1219
  %v1221 = vpop.f32.mrf.mxu0
  %1222 = vmatprep.mubr.f32.mxu0 0.0
  %v1223 = vand.u32 %v192, 4294901760
  %1224 = vmatmul.mubr.f32.gmra.mxu0 %v1223
  %v1225 = vpop.f32.mrf.mxu0
  %v1226 = vadd.f32 %v1077, %v1225
  %v1227 = vpop.f32.mrf.mxu0
  %1228 = vmatprep.mubr.f32.mxu0 0.0
  %v1229 = vand.u32 %v195, 4294901760
  %1230 = vmatmul.mubr.f32.gmra.mxu0 %v1229
  %v1231 = vpop.f32.mrf.mxu0
  %v1232 = vadd.f32 %v1083, %v1231
  %v1233 = vpop.f32.mrf.mxu0
  %1234 = vmatprep.mubr.f32.mxu0 0.0
  %v1235 = vand.u32 %v198, 4294901760
  %1236 = vmatmul.mubr.f32.gmra.mxu0 %v1235
  %v1237 = vpop.f32.mrf.mxu0
  %v1238 = vadd.f32 %v1089, %v1237
  %v1239 = vpop.f32.mrf.mxu0
  %1240 = vmatprep.mubr.f32.mxu0 0.0
  %v1241 = vand.u32 %v201, 4294901760
  %1242 = vmatmul.mubr.f32.gmra.mxu0 %v1241
  %v1243 = vpop.f32.mrf.mxu0
  %v1244 = vadd.f32 %v1095, %v1243
  %v1245 = vpop.f32.mrf.mxu0
  %1246 = vmatprep.mubr.f32.mxu0 0.0
  %v1247 = vand.u32 %v204, 4294901760
  %1248 = vmatmul.mubr.f32.gmra.mxu0 %v1247
  %v1249 = vpop.f32.mrf.mxu0
  %v1250 = vadd.f32 %v1101, %v1249
  %v1251 = vpop.f32.mrf.mxu0
  %1252 = vmatprep.mubr.f32.mxu0 0.0
  %v1253 = vand.u32 %v207, 4294901760
  %1254 = vmatmul.mubr.f32.gmra.mxu0 %v1253
  %v1255 = vpop.f32.mrf.mxu0
  %v1256 = vadd.f32 %v1107, %v1255
  %v1257 = vpop.f32.mrf.mxu0
  %1258 = vmatprep.mubr.f32.mxu0 0.0
  %v1259 = vand.u32 %v210, 4294901760
  %1260 = vmatmul.mubr.f32.gmra.mxu0 %v1259
  %v1261 = vpop.f32.mrf.mxu0
  %v1262 = vadd.f32 %v1113, %v1261
  %v1263 = vpop.f32.mrf.mxu0
  %1264 = vmatprep.mubr.f32.mxu0 0.0
  %v1265 = vand.u32 %v213, 4294901760
  %1266 = vmatmul.mubr.f32.gmra.mxu0 %v1265
  %v1267 = vpop.f32.mrf.mxu0
  %v1268 = vadd.f32 %v1119, %v1267
  %v1269 = vpop.f32.mrf.mxu0
  %1270 = vmatprep.mubr.f32.mxu0 0.0
  %v1271 = vand.u32 %v216, 4294901760
  %1272 = vmatmul.mubr.f32.gmra.mxu0 %v1271
  %v1273 = vpop.f32.mrf.mxu0
  %v1274 = vadd.f32 %v1125, %v1273
  %v1275 = vpop.f32.mrf.mxu0
  %1276 = vmatprep.mubr.f32.mxu0 0.0
  %v1277 = vand.u32 %v219, 4294901760
  %1278 = vmatmul.mubr.f32.gmra.mxu0 %v1277
  %v1279 = vpop.f32.mrf.mxu0
  %v1280 = vadd.f32 %v1131, %v1279
  %v1281 = vpop.f32.mrf.mxu0
  %1282 = vdwg.mxu0
  %1283 = vst [vmem:[#allocation2] sm:$0xff] %v1214
  %1284 = vst [vmem:[#allocation2 + $0x8] sm:$0xff] %v1220
  %1285 = vst [vmem:[#allocation2 + $0x10] sm:$0xff] %v1226
  %1286 = vst [vmem:[#allocation2 + $0x18] sm:$0xff] %v1232
  %1287 = vst [vmem:[#allocation2 + $0x20] sm:$0xff] %v1238
  %1288 = vst [vmem:[#allocation2 + $0x28] sm:$0xff] %v1244
  %1289 = vst [vmem:[#allocation2 + $0x30] sm:$0xff] %v1250
  %1290 = vst [vmem:[#allocation2 + $0x38] sm:$0xff] %v1256
  %1291 = vst [vmem:[#allocation2 + $0x40] sm:$0xff] %v1262
  %1292 = vst [vmem:[#allocation2 + $0x48] sm:$0xff] %v1268
  %1293 = vst [vmem:[#allocation2 + $0x50] sm:$0xff] %v1274
  %1294 = vst [vmem:[#allocation2 + $0x58] sm:$0xff] %v1280
  %v1295 = vld [vmem:[%s1] sm:$0xff]
  %v1296 = vld [vmem:[%s1 + $0x8] sm:$0xff]
  %v1297 = vld [vmem:[%s1 + $0x10] sm:$0xff]
  %v1298 = vld [vmem:[%s1 + $0x18] sm:$0xff]
  %v1299 = vld [vmem:[%s1 + $0x20] sm:$0xff]
  %v1300 = vld [vmem:[%s1 + $0x28] sm:$0xff]
  %v1301 = vld [vmem:[%s1 + $0x30] sm:$0xff]
  %v1302 = vld [vmem:[%s1 + $0x38] sm:$0xff]
  %v1303 = vld [vmem:[%s1 + $0x40] sm:$0xff]
  %v1304 = vld [vmem:[%s1 + $0x48] sm:$0xff]
  %1305 = vset.pattern.permute.xlu0 0
  %1306 = vperm.xlu0 %1305, %v1295
  %v1307 = vpop.permute.xlu0 %1306
  %1308 = vset.pattern.permute.xlu0 0
  %1309 = vperm.xlu0 %1308, %v1296
  %v1310 = vpop.permute.xlu0 %1309
  %1311 = vset.pattern.permute.xlu0 0
  %1312 = vperm.xlu0 %1311, %v1297
  %v1313 = vpop.permute.xlu0 %1312
  %1314 = vset.pattern.permute.xlu0 0
  %1315 = vperm.xlu0 %1314, %v1298
  %v1316 = vpop.permute.xlu0 %1315
  %1317 = vset.pattern.permute.xlu0 0
  %1318 = vperm.xlu0 %1317, %v1299
  %v1319 = vpop.permute.xlu0 %1318
  %1320 = vset.pattern.permute.xlu0 0
  %1321 = vperm.xlu0 %1320, %v1300
  %v1322 = vpop.permute.xlu0 %1321
  %1323 = vset.pattern.permute.xlu0 0
  %1324 = vperm.xlu0 %1323, %v1301
  %v1325 = vpop.permute.xlu0 %1324
  %1326 = vset.pattern.permute.xlu0 0
  %1327 = vperm.xlu0 %1326, %v1302
  %v1328 = vpop.permute.xlu0 %1327
  %1329 = vset.pattern.permute.xlu0 0
  %1330 = vperm.xlu0 %1329, %v1303
  %v1331 = vpop.permute.xlu0 %1330
  %1332 = vset.pattern.permute.xlu0 0
  %1333 = vperm.xlu0 %1332, %v1304
  %v1334 = vpop.permute.xlu0 %1333
  %vm1335 = vcmp.eq.s32.totalorder %v1307, %v39
  %vm1336 = vcmp.eq.s32.totalorder %v1310, %v39
  %vm1337 = vcmp.eq.s32.totalorder %v1313, %v39
  %vm1338 = vcmp.eq.s32.totalorder %v1316, %v39
  %vm1339 = vcmp.eq.s32.totalorder %v1319, %v39
  %vm1340 = vcmp.eq.s32.totalorder %v1322, %v39
  %vm1341 = vcmp.eq.s32.totalorder %v1325, %v39
  %vm1342 = vcmp.eq.s32.totalorder %v1328, %v39
  %vm1343 = vcmp.eq.s32.totalorder %v1331, %v39
  %vm1344 = vcmp.eq.s32.totalorder %v1334, %v39
  %1345 = vset.pattern.permute.xlu0 1
  %1346 = vperm.xlu0 %1345, %v1295
  %v1347 = vpop.permute.xlu0 %1346
  %1348 = vset.pattern.permute.xlu0 1
  %1349 = vperm.xlu0 %1348, %v1296
  %v1350 = vpop.permute.xlu0 %1349
  %1351 = vset.pattern.permute.xlu0 1
  %1352 = vperm.xlu0 %1351, %v1297
  %v1353 = vpop.permute.xlu0 %1352
  %1354 = vset.pattern.permute.xlu0 1
  %1355 = vperm.xlu0 %1354, %v1298
  %v1356 = vpop.permute.xlu0 %1355
  %1357 = vset.pattern.permute.xlu0 1
  %1358 = vperm.xlu0 %1357, %v1299
  %v1359 = vpop.permute.xlu0 %1358
  %1360 = vset.pattern.permute.xlu0 1
  %1361 = vperm.xlu0 %1360, %v1300
  %v1362 = vpop.permute.xlu0 %1361
  %1363 = vset.pattern.permute.xlu0 1
  %1364 = vperm.xlu0 %1363, %v1301
  %v1365 = vpop.permute.xlu0 %1364
  %1366 = vset.pattern.permute.xlu0 1
  %1367 = vperm.xlu0 %1366, %v1302
  %v1368 = vpop.permute.xlu0 %1367
  %1369 = vset.pattern.permute.xlu0 1
  %1370 = vperm.xlu0 %1369, %v1303
  %v1371 = vpop.permute.xlu0 %1370
  %1372 = vset.pattern.permute.xlu0 1
  %1373 = vperm.xlu0 %1372, %v1304
  %v1374 = vpop.permute.xlu0 %1373
  %vm1375 = vcmp.eq.s32.totalorder %v1347, %v39
  %vm1376 = vcmp.eq.s32.totalorder %v1350, %v39
  %vm1377 = vcmp.eq.s32.totalorder %v1353, %v39
  %vm1378 = vcmp.eq.s32.totalorder %v1356, %v39
  %vm1379 = vcmp.eq.s32.totalorder %v1359, %v39
  %vm1380 = vcmp.eq.s32.totalorder %v1362, %v39
  %vm1381 = vcmp.eq.s32.totalorder %v1365, %v39
  %vm1382 = vcmp.eq.s32.totalorder %v1368, %v39
  %vm1383 = vcmp.eq.s32.totalorder %v1371, %v39
  %vm1384 = vcmp.eq.s32.totalorder %v1374, %v39
  %vm1385 = vmor %vm1335, %vm1375
  %vm1386 = vmor %vm1336, %vm1376
  %vm1387 = vmor %vm1337, %vm1377
  %vm1388 = vmor %vm1338, %vm1378
  %vm1389 = vmor %vm1339, %vm1379
  %vm1390 = vmor %vm1340, %vm1380
  %vm1391 = vmor %vm1341, %vm1381
  %vm1392 = vmor %vm1342, %vm1382
  %vm1393 = vmor %vm1343, %vm1383
  %vm1394 = vmor %vm1344, %vm1384
  %1395 = vset.pattern.permute.xlu0 2
  %1396 = vperm.xlu0 %1395, %v1295
  %v1397 = vpop.permute.xlu0 %1396
  %1398 = vset.pattern.permute.xlu0 2
  %1399 = vperm.xlu0 %1398, %v1296
  %v1400 = vpop.permute.xlu0 %1399
  %1401 = vset.pattern.permute.xlu0 2
  %1402 = vperm.xlu0 %1401, %v1297
  %v1403 = vpop.permute.xlu0 %1402
  %1404 = vset.pattern.permute.xlu0 2
  %1405 = vperm.xlu0 %1404, %v1298
  %v1406 = vpop.permute.xlu0 %1405
  %1407 = vset.pattern.permute.xlu0 2
  %1408 = vperm.xlu0 %1407, %v1299
  %v1409 = vpop.permute.xlu0 %1408
  %1410 = vset.pattern.permute.xlu0 2
  %1411 = vperm.xlu0 %1410, %v1300
  %v1412 = vpop.permute.xlu0 %1411
  %1413 = vset.pattern.permute.xlu0 2
  %1414 = vperm.xlu0 %1413, %v1301
  %v1415 = vpop.permute.xlu0 %1414
  %1416 = vset.pattern.permute.xlu0 2
  %1417 = vperm.xlu0 %1416, %v1302
  %v1418 = vpop.permute.xlu0 %1417
  %1419 = vset.pattern.permute.xlu0 2
  %1420 = vperm.xlu0 %1419, %v1303
  %v1421 = vpop.permute.xlu0 %1420
  %1422 = vset.pattern.permute.xlu0 2
  %1423 = vperm.xlu0 %1422, %v1304
  %v1424 = vpop.permute.xlu0 %1423
  %vm1425 = vcmp.eq.s32.totalorder %v1397, %v39
  %vm1426 = vcmp.eq.s32.totalorder %v1400, %v39
  %vm1427 = vcmp.eq.s32.totalorder %v1403, %v39
  %vm1428 = vcmp.eq.s32.totalorder %v1406, %v39
  %vm1429 = vcmp.eq.s32.totalorder %v1409, %v39
  %vm1430 = vcmp.eq.s32.totalorder %v1412, %v39
  %vm1431 = vcmp.eq.s32.totalorder %v1415, %v39
  %vm1432 = vcmp.eq.s32.totalorder %v1418, %v39
  %vm1433 = vcmp.eq.s32.totalorder %v1421, %v39
  %vm1434 = vcmp.eq.s32.totalorder %v1424, %v39
  %vm1435 = vmor %vm1385, %vm1425
  %vm1436 = vmor %vm1386, %vm1426
  %vm1437 = vmor %vm1387, %vm1427
  %vm1438 = vmor %vm1388, %vm1428
  %vm1439 = vmor %vm1389, %vm1429
  %vm1440 = vmor %vm1390, %vm1430
  %vm1441 = vmor %vm1391, %vm1431
  %vm1442 = vmor %vm1392, %vm1432
  %vm1443 = vmor %vm1393, %vm1433
  %vm1444 = vmor %vm1394, %vm1434
  %1445 = vset.pattern.permute.xlu0 3
  %1446 = vperm.xlu0 %1445, %v1295
  %v1447 = vpop.permute.xlu0 %1446
  %1448 = vset.pattern.permute.xlu0 3
  %1449 = vperm.xlu0 %1448, %v1296
  %v1450 = vpop.permute.xlu0 %1449
  %1451 = vset.pattern.permute.xlu0 3
  %1452 = vperm.xlu0 %1451, %v1297
  %v1453 = vpop.permute.xlu0 %1452
  %1454 = vset.pattern.permute.xlu0 3
  %1455 = vperm.xlu0 %1454, %v1298
  %v1456 = vpop.permute.xlu0 %1455
  %1457 = vset.pattern.permute.xlu0 3
  %1458 = vperm.xlu0 %1457, %v1299
  %v1459 = vpop.permute.xlu0 %1458
  %1460 = vset.pattern.permute.xlu0 3
  %1461 = vperm.xlu0 %1460, %v1300
  %v1462 = vpop.permute.xlu0 %1461
  %1463 = vset.pattern.permute.xlu0 3
  %1464 = vperm.xlu0 %1463, %v1301
  %v1465 = vpop.permute.xlu0 %1464
  %1466 = vset.pattern.permute.xlu0 3
  %1467 = vperm.xlu0 %1466, %v1302
  %v1468 = vpop.permute.xlu0 %1467
  %1469 = vset.pattern.permute.xlu0 3
  %1470 = vperm.xlu0 %1469, %v1303
  %v1471 = vpop.permute.xlu0 %1470
  %1472 = vset.pattern.permute.xlu0 3
  %1473 = vperm.xlu0 %1472, %v1304
  %v1474 = vpop.permute.xlu0 %1473
  %vm1475 = vcmp.eq.s32.totalorder %v1447, %v39
  %vm1476 = vcmp.eq.s32.totalorder %v1450, %v39
  %vm1477 = vcmp.eq.s32.totalorder %v1453, %v39
  %vm1478 = vcmp.eq.s32.totalorder %v1456, %v39
  %vm1479 = vcmp.eq.s32.totalorder %v1459, %v39
  %vm1480 = vcmp.eq.s32.totalorder %v1462, %v39
  %vm1481 = vcmp.eq.s32.totalorder %v1465, %v39
  %vm1482 = vcmp.eq.s32.totalorder %v1468, %v39
  %vm1483 = vcmp.eq.s32.totalorder %v1471, %v39
  %vm1484 = vcmp.eq.s32.totalorder %v1474, %v39
  %vm1485 = vmor %vm1435, %vm1475
  %vm1486 = vmor %vm1436, %vm1476
  %vm1487 = vmor %vm1437, %vm1477
  %vm1488 = vmor %vm1438, %vm1478
  %vm1489 = vmor %vm1439, %vm1479
  %vm1490 = vmor %vm1440, %vm1480
  %vm1491 = vmor %vm1441, %vm1481
  %vm1492 = vmor %vm1442, %vm1482
  %vm1493 = vmor %vm1443, %vm1483
  %vm1494 = vmor %vm1444, %vm1484
  %v1495 = vsel %vm1485, 1, 0
  %v1496 = vsel %vm1486, 1, 0
  %v1497 = vsel %vm1487, 1, 0
  %v1498 = vsel %vm1488, 1, 0
  %v1499 = vsel %vm1489, 1, 0
  %v1500 = vsel %vm1490, 1, 0
  %v1501 = vsel %vm1491, 1, 0
  %v1502 = vsel %vm1492, 1, 0
  %v1503 = vsel %vm1493, 1, 0
  %v1504 = vsel %vm1494, 1, 0
  %v1505 = vcvt.s32.f32 %v1495
  %v1506 = vcvt.s32.f32 %v1496
  %v1507 = vcvt.s32.f32 %v1497
  %v1508 = vcvt.s32.f32 %v1498
  %v1509 = vcvt.s32.f32 %v1499
  %v1510 = vcvt.s32.f32 %v1500
  %v1511 = vcvt.s32.f32 %v1501
  %v1512 = vcvt.s32.f32 %v1502
  %v1513 = vcvt.s32.f32 %v1503
  %v1514 = vcvt.s32.f32 %v1504
  %v1515 = vld [vmem:[%s4] sm:$0xff]
  %v1516 = vld [vmem:[%s4 + $0x8] sm:$0xff]
  %v1517 = vld [vmem:[%s4 + $0x10] sm:$0xff]
  %v1518 = vld [vmem:[%s4 + $0x18] sm:$0xff]
  %v1519 = vld [vmem:[%s4 + $0x20] sm:$0xff]
  %v1520 = vld [vmem:[%s4 + $0x28] sm:$0xff]
  %v1521 = vld [vmem:[%s4 + $0x30] sm:$0xff]
  %v1522 = vld [vmem:[%s4 + $0x38] sm:$0xff]
  %vm1523 = vcmask 523264
  %v1525 = vsel %vm1523, %v1505, 0
  %v1528 = vsel %vm1523, %v1506, 0
  %v1531 = vsel %vm1523, %v1507, 0
  %v1534 = vsel %vm1523, %v1508, 0
  %v1537 = vsel %vm1523, %v1509, 0
  %v1540 = vsel %vm1523, %v1510, 0
  %v1543 = vsel %vm1523, %v1511, 0
  %v1546 = vsel %vm1523, %v1512, 0
  %v1549 = vsel %vm1523, %v1513, 0
  %v1552 = vsel %vm1523, %v1514, 0
  %1554 = vmatprep.subr.mxu0 0.0
  %1555 = vmatpush1.msra.mxu0 0.0
  %1556 = vmatprep.subr.mxu0 0.0
  %1557 = vmatpush1.msra.mxu0 0.0
  %1558 = vmatprep.subr.mxu0 0.0
  %1559 = vmatpush1.msra.mxu0 0.0
  %1560 = vmatprep.subr.mxu0 0.0
  %1561 = vmatpush1.msra.mxu0 0.0
  %1562 = vmatprep.subr.mxu0 0.0
  %1563 = vmatpush1.msra.mxu0 0.0
  %1564 = vmatprep.subr.mxu0 0.0
  %1565 = vmatpush1.msra.mxu0 0.0
  %1566 = vmatprep.subr.mxu0 0.0
  %1567 = vmatpush1.msra.mxu0 0.0
  %1568 = vmatprep.subr.mxu0 0.0
  %1569 = vmatpush1.msra.mxu0 0.0
  %1570 = vmatprep.subr.mxu0 0.0
  %v1571 = vand.u32 %v1522, 4294901760
  %1572 = vmatpush1.msra.mxu0 %v1571
  %1573 = vmatprep.subr.mxu0 0.0
  %v1574 = vand.u32 %v1521, 4294901760
  %1575 = vmatpush1.msra.mxu0 %v1574
  %1576 = vmatprep.subr.mxu0 0.0
  %v1577 = vand.u32 %v1520, 4294901760
  %1578 = vmatpush1.msra.mxu0 %v1577
  %1579 = vmatprep.subr.mxu0 0.0
  %v1580 = vand.u32 %v1519, 4294901760
  %1581 = vmatpush1.msra.mxu0 %v1580
  %1582 = vmatprep.subr.mxu0 0.0
  %v1583 = vand.u32 %v1518, 4294901760
  %1584 = vmatpush1.msra.mxu0 %v1583
  %1585 = vmatprep.subr.mxu0 0.0
  %v1586 = vand.u32 %v1517, 4294901760
  %1587 = vmatpush1.msra.mxu0 %v1586
  %1588 = vmatprep.subr.mxu0 0.0
  %v1589 = vand.u32 %v1516, 4294901760
  %1590 = vmatpush1.msra.mxu0 %v1589
  %1591 = vmatprep.subr.mxu0 0.0
  %v1592 = vand.u32 %v1515, 4294901760
  %1593 = vmatpush1.msra.mxu0 %v1592
  %1594 = vmatprep.subr.mxu0 0.0
  %1595 = vmatpush2.msra.mxu0 0.0
  %1596 = vmatprep.subr.mxu0 0.0
  %1597 = vmatpush2.msra.mxu0 0.0
  %1598 = vmatprep.subr.mxu0 0.0
  %1599 = vmatpush2.msra.mxu0 0.0
  %1600 = vmatprep.subr.mxu0 0.0
  %1601 = vmatpush2.msra.mxu0 0.0
  %1602 = vmatprep.subr.mxu0 0.0
  %1603 = vmatpush2.msra.mxu0 0.0
  %1604 = vmatprep.subr.mxu0 0.0
  %1605 = vmatpush2.msra.mxu0 0.0
  %1606 = vmatprep.subr.mxu0 0.0
  %1607 = vmatpush2.msra.mxu0 0.0
  %1608 = vmatprep.subr.mxu0 0.0
  %1609 = vmatpush2.msra.mxu0 0.0
  %1610 = vmatprep.subr.mxu0 0.0
  %1611 = vmatpush2.msra.mxu0 0.0
  %1612 = vmatprep.subr.mxu0 0.0
  %1613 = vmatpush2.msra.mxu0 0.0
  %1614 = vmatprep.subr.mxu0 0.0
  %1615 = vmatpush2.msra.mxu0 0.0
  %1616 = vmatprep.subr.mxu0 0.0
  %1617 = vmatpush2.msra.mxu0 0.0
  %1618 = vmatprep.subr.mxu0 0.0
  %1619 = vmatpush2.msra.mxu0 0.0
  %1620 = vmatprep.subr.mxu0 0.0
  %1621 = vmatpush2.msra.mxu0 0.0
  %1622 = vmatprep.subr.mxu0 0.0
  %1623 = vmatpush2.msra.mxu0 0.0
  %1624 = vmatprep.subr.mxu0 0.0
  %1625 = vmatpush2.msra.mxu0 0.0
  %1626 = vmatprep.mubr.f32.mxu0 0.0
  %v1627 = vand.u32 %v1525, 4294901760
  %v1628 = vsub.f32 %v1525, %v1627
  %v1629 = vand.u32 %v1628, 4294901760
  %v1630 = vsub.f32 %v1628, %v1629
  %v1631 = vand.u32 %v1630, 4294901760
  %1632 = vmatmul.mubr.f32.gmra.mxu0 %v1631
  %v1633 = vpop.f32.mrf.mxu0
  %v1634 = vadd.f32 0.0, %v1633
  %v1635 = vpop.f32.mrf.mxu0
  %1636 = vmatprep.mubr.f32.mxu0 0.0
  %v1637 = vand.u32 %v1528, 4294901760
  %v1638 = vsub.f32 %v1528, %v1637
  %v1639 = vand.u32 %v1638, 4294901760
  %v1640 = vsub.f32 %v1638, %v1639
  %v1641 = vand.u32 %v1640, 4294901760
  %1642 = vmatmul.mubr.f32.gmra.mxu0 %v1641
  %v1643 = vpop.f32.mrf.mxu0
  %v1644 = vadd.f32 0.0, %v1643
  %v1645 = vpop.f32.mrf.mxu0
  %1646 = vmatprep.mubr.f32.mxu0 0.0
  %v1647 = vand.u32 %v1531, 4294901760
  %v1648 = vsub.f32 %v1531, %v1647
  %v1649 = vand.u32 %v1648, 4294901760
  %v1650 = vsub.f32 %v1648, %v1649
  %v1651 = vand.u32 %v1650, 4294901760
  %1652 = vmatmul.mubr.f32.gmra.mxu0 %v1651
  %v1653 = vpop.f32.mrf.mxu0
  %v1654 = vadd.f32 0.0, %v1653
  %v1655 = vpop.f32.mrf.mxu0
  %1656 = vmatprep.mubr.f32.mxu0 0.0
  %v1657 = vand.u32 %v1534, 4294901760
  %v1658 = vsub.f32 %v1534, %v1657
  %v1659 = vand.u32 %v1658, 4294901760
  %v1660 = vsub.f32 %v1658, %v1659
  %v1661 = vand.u32 %v1660, 4294901760
  %1662 = vmatmul.mubr.f32.gmra.mxu0 %v1661
  %v1663 = vpop.f32.mrf.mxu0
  %v1664 = vadd.f32 0.0, %v1663
  %v1665 = vpop.f32.mrf.mxu0
  %1666 = vmatprep.mubr.f32.mxu0 0.0
  %v1667 = vand.u32 %v1537, 4294901760
  %v1668 = vsub.f32 %v1537, %v1667
  %v1669 = vand.u32 %v1668, 4294901760
  %v1670 = vsub.f32 %v1668, %v1669
  %v1671 = vand.u32 %v1670, 4294901760
  %1672 = vmatmul.mubr.f32.gmra.mxu0 %v1671
  %v1673 = vpop.f32.mrf.mxu0
  %v1674 = vadd.f32 0.0, %v1673
  %v1675 = vpop.f32.mrf.mxu0
  %1676 = vmatprep.mubr.f32.mxu0 0.0
  %v1677 = vand.u32 %v1540, 4294901760
  %v1678 = vsub.f32 %v1540, %v1677
  %v1679 = vand.u32 %v1678, 4294901760
  %v1680 = vsub.f32 %v1678, %v1679
  %v1681 = vand.u32 %v1680, 4294901760
  %1682 = vmatmul.mubr.f32.gmra.mxu0 %v1681
  %v1683 = vpop.f32.mrf.mxu0
  %v1684 = vadd.f32 0.0, %v1683
  %v1685 = vpop.f32.mrf.mxu0
  %1686 = vmatprep.mubr.f32.mxu0 0.0
  %v1687 = vand.u32 %v1543, 4294901760
  %v1688 = vsub.f32 %v1543, %v1687
  %v1689 = vand.u32 %v1688, 4294901760
  %v1690 = vsub.f32 %v1688, %v1689
  %v1691 = vand.u32 %v1690, 4294901760
  %1692 = vmatmul.mubr.f32.gmra.mxu0 %v1691
  %v1693 = vpop.f32.mrf.mxu0
  %v1694 = vadd.f32 0.0, %v1693
  %v1695 = vpop.f32.mrf.mxu0
  %1696 = vmatprep.mubr.f32.mxu0 0.0
  %v1697 = vand.u32 %v1546, 4294901760
  %v1698 = vsub.f32 %v1546, %v1697
  %v1699 = vand.u32 %v1698, 4294901760
  %v1700 = vsub.f32 %v1698, %v1699
  %v1701 = vand.u32 %v1700, 4294901760
  %1702 = vmatmul.mubr.f32.gmra.mxu0 %v1701
  %v1703 = vpop.f32.mrf.mxu0
  %v1704 = vadd.f32 0.0, %v1703
  %v1705 = vpop.f32.mrf.mxu0
  %1706 = vmatprep.mubr.f32.mxu0 0.0
  %v1707 = vand.u32 %v1549, 4294901760
  %v1708 = vsub.f32 %v1549, %v1707
  %v1709 = vand.u32 %v1708, 4294901760
  %v1710 = vsub.f32 %v1708, %v1709
  %v1711 = vand.u32 %v1710, 4294901760
  %1712 = vmatmul.mubr.f32.gmra.mxu0 %v1711
  %v1713 = vpop.f32.mrf.mxu0
  %v1714 = vadd.f32 0.0, %v1713
  %v1715 = vpop.f32.mrf.mxu0
  %1716 = vmatprep.mubr.f32.mxu0 0.0
  %v1717 = vand.u32 %v1552, 4294901760
  %v1718 = vsub.f32 %v1552, %v1717
  %v1719 = vand.u32 %v1718, 4294901760
  %v1720 = vsub.f32 %v1718, %v1719
  %v1721 = vand.u32 %v1720, 4294901760
  %1722 = vmatmul.mubr.f32.gmra.mxu0 %v1721
  %v1723 = vpop.f32.mrf.mxu0
  %v1724 = vadd.f32 0.0, %v1723
  %v1725 = vpop.f32.mrf.mxu0
  %1726 = vdwg.mxu0
  %1727 = vmatprep.subr.mxu0 0.0
  %1728 = vmatpush1.msra.mxu0 0.0
  %1729 = vmatprep.subr.mxu0 0.0
  %1730 = vmatpush1.msra.mxu0 0.0
  %1731 = vmatprep.subr.mxu0 0.0
  %1732 = vmatpush1.msra.mxu0 0.0
  %1733 = vmatprep.subr.mxu0 0.0
  %1734 = vmatpush1.msra.mxu0 0.0
  %1735 = vmatprep.subr.mxu0 0.0
  %1736 = vmatpush1.msra.mxu0 0.0
  %1737 = vmatprep.subr.mxu0 0.0
  %1738 = vmatpush1.msra.mxu0 0.0
  %1739 = vmatprep.subr.mxu0 0.0
  %1740 = vmatpush1.msra.mxu0 0.0
  %1741 = vmatprep.subr.mxu0 0.0
  %1742 = vmatpush1.msra.mxu0 0.0
  %1743 = vmatprep.subr.mxu0 0.0
  %v1744 = vand.u32 %v1522, 4294901760
  %v1745 = vsub.f32 %v1522, %v1744
  %v1746 = vand.u32 %v1745, 4294901760
  %v1747 = vsub.f32 %v1745, %v1746
  %v1748 = vand.u32 %v1747, 4294901760
  %1749 = vmatpush1.msra.mxu0 %v1748
  %1750 = vmatprep.subr.mxu0 0.0
  %v1751 = vand.u32 %v1521, 4294901760
  %v1752 = vsub.f32 %v1521, %v1751
  %v1753 = vand.u32 %v1752, 4294901760
  %v1754 = vsub.f32 %v1752, %v1753
  %v1755 = vand.u32 %v1754, 4294901760
  %1756 = vmatpush1.msra.mxu0 %v1755
  %1757 = vmatprep.subr.mxu0 0.0
  %v1758 = vand.u32 %v1520, 4294901760
  %v1759 = vsub.f32 %v1520, %v1758
  %v1760 = vand.u32 %v1759, 4294901760
  %v1761 = vsub.f32 %v1759, %v1760
  %v1762 = vand.u32 %v1761, 4294901760
  %1763 = vmatpush1.msra.mxu0 %v1762
  %1764 = vmatprep.subr.mxu0 0.0
  %v1765 = vand.u32 %v1519, 4294901760
  %v1766 = vsub.f32 %v1519, %v1765
  %v1767 = vand.u32 %v1766, 4294901760
  %v1768 = vsub.f32 %v1766, %v1767
  %v1769 = vand.u32 %v1768, 4294901760
  %1770 = vmatpush1.msra.mxu0 %v1769
  %1771 = vmatprep.subr.mxu0 0.0
  %v1772 = vand.u32 %v1518, 4294901760
  %v1773 = vsub.f32 %v1518, %v1772
  %v1774 = vand.u32 %v1773, 4294901760
  %v1775 = vsub.f32 %v1773, %v1774
  %v1776 = vand.u32 %v1775, 4294901760
  %1777 = vmatpush1.msra.mxu0 %v1776
  %1778 = vmatprep.subr.mxu0 0.0
  %v1779 = vand.u32 %v1517, 4294901760
  %v1780 = vsub.f32 %v1517, %v1779
  %v1781 = vand.u32 %v1780, 4294901760
  %v1782 = vsub.f32 %v1780, %v1781
  %v1783 = vand.u32 %v1782, 4294901760
  %1784 = vmatpush1.msra.mxu0 %v1783
  %1785 = vmatprep.subr.mxu0 0.0
  %v1786 = vand.u32 %v1516, 4294901760
  %v1787 = vsub.f32 %v1516, %v1786
  %v1788 = vand.u32 %v1787, 4294901760
  %v1789 = vsub.f32 %v1787, %v1788
  %v1790 = vand.u32 %v1789, 4294901760
  %1791 = vmatpush1.msra.mxu0 %v1790
  %1792 = vmatprep.subr.mxu0 0.0
  %v1793 = vand.u32 %v1515, 4294901760
  %v1794 = vsub.f32 %v1515, %v1793
  %v1795 = vand.u32 %v1794, 4294901760
  %v1796 = vsub.f32 %v1794, %v1795
  %v1797 = vand.u32 %v1796, 4294901760
  %1798 = vmatpush1.msra.mxu0 %v1797
  %1799 = vmatprep.subr.mxu0 0.0
  %1800 = vmatpush2.msra.mxu0 0.0
  %1801 = vmatprep.subr.mxu0 0.0
  %1802 = vmatpush2.msra.mxu0 0.0
  %1803 = vmatprep.subr.mxu0 0.0
  %1804 = vmatpush2.msra.mxu0 0.0
  %1805 = vmatprep.subr.mxu0 0.0
  %1806 = vmatpush2.msra.mxu0 0.0
  %1807 = vmatprep.subr.mxu0 0.0
  %1808 = vmatpush2.msra.mxu0 0.0
  %1809 = vmatprep.subr.mxu0 0.0
  %1810 = vmatpush2.msra.mxu0 0.0
  %1811 = vmatprep.subr.mxu0 0.0
  %1812 = vmatpush2.msra.mxu0 0.0
  %1813 = vmatprep.subr.mxu0 0.0
  %1814 = vmatpush2.msra.mxu0 0.0
  %1815 = vmatprep.subr.mxu0 0.0
  %1816 = vmatpush2.msra.mxu0 0.0
  %1817 = vmatprep.subr.mxu0 0.0
  %1818 = vmatpush2.msra.mxu0 0.0
  %1819 = vmatprep.subr.mxu0 0.0
  %1820 = vmatpush2.msra.mxu0 0.0
  %1821 = vmatprep.subr.mxu0 0.0
  %1822 = vmatpush2.msra.mxu0 0.0
  %1823 = vmatprep.subr.mxu0 0.0
  %1824 = vmatpush2.msra.mxu0 0.0
  %1825 = vmatprep.subr.mxu0 0.0
  %1826 = vmatpush2.msra.mxu0 0.0
  %1827 = vmatprep.subr.mxu0 0.0
  %1828 = vmatpush2.msra.mxu0 0.0
  %1829 = vmatprep.subr.mxu0 0.0
  %1830 = vmatpush2.msra.mxu0 0.0
  %1831 = vmatprep.mubr.f32.mxu0 0.0
  %v1832 = vand.u32 %v1525, 4294901760
  %1833 = vmatmul.mubr.f32.gmra.mxu0 %v1832
  %v1834 = vpop.f32.mrf.mxu0
  %v1835 = vadd.f32 %v1634, %v1834
  %v1836 = vpop.f32.mrf.mxu0
  %1837 = vmatprep.mubr.f32.mxu0 0.0
  %v1838 = vand.u32 %v1528, 4294901760
  %1839 = vmatmul.mubr.f32.gmra.mxu0 %v1838
  %v1840 = vpop.f32.mrf.mxu0
  %v1841 = vadd.f32 %v1644, %v1840
  %v1842 = vpop.f32.mrf.mxu0
  %1843 = vmatprep.mubr.f32.mxu0 0.0
  %v1844 = vand.u32 %v1531, 4294901760
  %1845 = vmatmul.mubr.f32.gmra.mxu0 %v1844
  %v1846 = vpop.f32.mrf.mxu0
  %v1847 = vadd.f32 %v1654, %v1846
  %v1848 = vpop.f32.mrf.mxu0
  %1849 = vmatprep.mubr.f32.mxu0 0.0
  %v1850 = vand.u32 %v1534, 4294901760
  %1851 = vmatmul.mubr.f32.gmra.mxu0 %v1850
  %v1852 = vpop.f32.mrf.mxu0
  %v1853 = vadd.f32 %v1664, %v1852
  %v1854 = vpop.f32.mrf.mxu0
  %1855 = vmatprep.mubr.f32.mxu0 0.0
  %v1856 = vand.u32 %v1537, 4294901760
  %1857 = vmatmul.mubr.f32.gmra.mxu0 %v1856
  %v1858 = vpop.f32.mrf.mxu0
  %v1859 = vadd.f32 %v1674, %v1858
  %v1860 = vpop.f32.mrf.mxu0
  %1861 = vmatprep.mubr.f32.mxu0 0.0
  %v1862 = vand.u32 %v1540, 4294901760
  %1863 = vmatmul.mubr.f32.gmra.mxu0 %v1862
  %v1864 = vpop.f32.mrf.mxu0
  %v1865 = vadd.f32 %v1684, %v1864
  %v1866 = vpop.f32.mrf.mxu0
  %1867 = vmatprep.mubr.f32.mxu0 0.0
  %v1868 = vand.u32 %v1543, 4294901760
  %1869 = vmatmul.mubr.f32.gmra.mxu0 %v1868
  %v1870 = vpop.f32.mrf.mxu0
  %v1871 = vadd.f32 %v1694, %v1870
  %v1872 = vpop.f32.mrf.mxu0
  %1873 = vmatprep.mubr.f32.mxu0 0.0
  %v1874 = vand.u32 %v1546, 4294901760
  %1875 = vmatmul.mubr.f32.gmra.mxu0 %v1874
  %v1876 = vpop.f32.mrf.mxu0
  %v1877 = vadd.f32 %v1704, %v1876
  %v1878 = vpop.f32.mrf.mxu0
  %1879 = vmatprep.mubr.f32.mxu0 0.0
  %v1880 = vand.u32 %v1549, 4294901760
  %1881 = vmatmul.mubr.f32.gmra.mxu0 %v1880
  %v1882 = vpop.f32.mrf.mxu0
  %v1883 = vadd.f32 %v1714, %v1882
  %v1884 = vpop.f32.mrf.mxu0
  %1885 = vmatprep.mubr.f32.mxu0 0.0
  %v1886 = vand.u32 %v1552, 4294901760
  %1887 = vmatmul.mubr.f32.gmra.mxu0 %v1886
  %v1888 = vpop.f32.mrf.mxu0
  %v1889 = vadd.f32 %v1724, %v1888
  %v1890 = vpop.f32.mrf.mxu0
  %1891 = vdwg.mxu0
  %1892 = vmatprep.subr.mxu0 0.0
  %1893 = vmatpush1.msra.mxu0 0.0
  %1894 = vmatprep.subr.mxu0 0.0
  %1895 = vmatpush1.msra.mxu0 0.0
  %1896 = vmatprep.subr.mxu0 0.0
  %1897 = vmatpush1.msra.mxu0 0.0
  %1898 = vmatprep.subr.mxu0 0.0
  %1899 = vmatpush1.msra.mxu0 0.0
  %1900 = vmatprep.subr.mxu0 0.0
  %1901 = vmatpush1.msra.mxu0 0.0
  %1902 = vmatprep.subr.mxu0 0.0
  %1903 = vmatpush1.msra.mxu0 0.0
  %1904 = vmatprep.subr.mxu0 0.0
  %1905 = vmatpush1.msra.mxu0 0.0
  %1906 = vmatprep.subr.mxu0 0.0
  %1907 = vmatpush1.msra.mxu0 0.0
  %1908 = vmatprep.subr.mxu0 0.0
  %v1909 = vand.u32 %v1522, 4294901760
  %v1910 = vsub.f32 %v1522, %v1909
  %1911 = vmatpush1.msra.mxu0 %v1910
  %1912 = vmatprep.subr.mxu0 0.0
  %v1913 = vand.u32 %v1521, 4294901760
  %v1914 = vsub.f32 %v1521, %v1913
  %1915 = vmatpush1.msra.mxu0 %v1914
  %1916 = vmatprep.subr.mxu0 0.0
  %v1917 = vand.u32 %v1520, 4294901760
  %v1918 = vsub.f32 %v1520, %v1917
  %1919 = vmatpush1.msra.mxu0 %v1918
  %1920 = vmatprep.subr.mxu0 0.0
  %v1921 = vand.u32 %v1519, 4294901760
  %v1922 = vsub.f32 %v1519, %v1921
  %1923 = vmatpush1.msra.mxu0 %v1922
  %1924 = vmatprep.subr.mxu0 0.0
  %v1925 = vand.u32 %v1518, 4294901760
  %v1926 = vsub.f32 %v1518, %v1925
  %1927 = vmatpush1.msra.mxu0 %v1926
  %1928 = vmatprep.subr.mxu0 0.0
  %v1929 = vand.u32 %v1517, 4294901760
  %v1930 = vsub.f32 %v1517, %v1929
  %1931 = vmatpush1.msra.mxu0 %v1930
  %1932 = vmatprep.subr.mxu0 0.0
  %v1933 = vand.u32 %v1516, 4294901760
  %v1934 = vsub.f32 %v1516, %v1933
  %1935 = vmatpush1.msra.mxu0 %v1934
  %1936 = vmatprep.subr.mxu0 0.0
  %v1937 = vand.u32 %v1515, 4294901760
  %v1938 = vsub.f32 %v1515, %v1937
  %1939 = vmatpush1.msra.mxu0 %v1938
  %1940 = vmatprep.subr.mxu0 0.0
  %1941 = vmatpush2.msra.mxu0 0.0
  %1942 = vmatprep.subr.mxu0 0.0
  %1943 = vmatpush2.msra.mxu0 0.0
  %1944 = vmatprep.subr.mxu0 0.0
  %1945 = vmatpush2.msra.mxu0 0.0
  %1946 = vmatprep.subr.mxu0 0.0
  %1947 = vmatpush2.msra.mxu0 0.0
  %1948 = vmatprep.subr.mxu0 0.0
  %1949 = vmatpush2.msra.mxu0 0.0
  %1950 = vmatprep.subr.mxu0 0.0
  %1951 = vmatpush2.msra.mxu0 0.0
  %1952 = vmatprep.subr.mxu0 0.0
  %1953 = vmatpush2.msra.mxu0 0.0
  %1954 = vmatprep.subr.mxu0 0.0
  %1955 = vmatpush2.msra.mxu0 0.0
  %1956 = vmatprep.subr.mxu0 0.0
  %1957 = vmatpush2.msra.mxu0 0.0
  %1958 = vmatprep.subr.mxu0 0.0
  %1959 = vmatpush2.msra.mxu0 0.0
  %1960 = vmatprep.subr.mxu0 0.0
  %1961 = vmatpush2.msra.mxu0 0.0
  %1962 = vmatprep.subr.mxu0 0.0
  %1963 = vmatpush2.msra.mxu0 0.0
  %1964 = vmatprep.subr.mxu0 0.0
  %1965 = vmatpush2.msra.mxu0 0.0
  %1966 = vmatprep.subr.mxu0 0.0
  %1967 = vmatpush2.msra.mxu0 0.0
  %1968 = vmatprep.subr.mxu0 0.0
  %1969 = vmatpush2.msra.mxu0 0.0
  %1970 = vmatprep.subr.mxu0 0.0
  %1971 = vmatpush2.msra.mxu0 0.0
  %1972 = vmatprep.mubr.f32.mxu0 0.0
  %v1973 = vand.u32 %v1525, 4294901760
  %v1974 = vsub.f32 %v1525, %v1973
  %1975 = vmatmul.mubr.f32.gmra.mxu0 %v1974
  %v1976 = vpop.f32.mrf.mxu0
  %v1977 = vadd.f32 %v1835, %v1976
  %v1978 = vpop.f32.mrf.mxu0
  %1979 = vmatprep.mubr.f32.mxu0 0.0
  %v1980 = vand.u32 %v1528, 4294901760
  %v1981 = vsub.f32 %v1528, %v1980
  %1982 = vmatmul.mubr.f32.gmra.mxu0 %v1981
  %v1983 = vpop.f32.mrf.mxu0
  %v1984 = vadd.f32 %v1841, %v1983
  %v1985 = vpop.f32.mrf.mxu0
  %1986 = vmatprep.mubr.f32.mxu0 0.0
  %v1987 = vand.u32 %v1531, 4294901760
  %v1988 = vsub.f32 %v1531, %v1987
  %1989 = vmatmul.mubr.f32.gmra.mxu0 %v1988
  %v1990 = vpop.f32.mrf.mxu0
  %v1991 = vadd.f32 %v1847, %v1990
  %v1992 = vpop.f32.mrf.mxu0
  %1993 = vmatprep.mubr.f32.mxu0 0.0
  %v1994 = vand.u32 %v1534, 4294901760
  %v1995 = vsub.f32 %v1534, %v1994
  %1996 = vmatmul.mubr.f32.gmra.mxu0 %v1995
  %v1997 = vpop.f32.mrf.mxu0
  %v1998 = vadd.f32 %v1853, %v1997
  %v1999 = vpop.f32.mrf.mxu0
  %2000 = vmatprep.mubr.f32.mxu0 0.0
  %v2001 = vand.u32 %v1537, 4294901760
  %v2002 = vsub.f32 %v1537, %v2001
  %2003 = vmatmul.mubr.f32.gmra.mxu0 %v2002
  %v2004 = vpop.f32.mrf.mxu0
  %v2005 = vadd.f32 %v1859, %v2004
  %v2006 = vpop.f32.mrf.mxu0
  %2007 = vmatprep.mubr.f32.mxu0 0.0
  %v2008 = vand.u32 %v1540, 4294901760
  %v2009 = vsub.f32 %v1540, %v2008
  %2010 = vmatmul.mubr.f32.gmra.mxu0 %v2009
  %v2011 = vpop.f32.mrf.mxu0
  %v2012 = vadd.f32 %v1865, %v2011
  %v2013 = vpop.f32.mrf.mxu0
  %2014 = vmatprep.mubr.f32.mxu0 0.0
  %v2015 = vand.u32 %v1543, 4294901760
  %v2016 = vsub.f32 %v1543, %v2015
  %2017 = vmatmul.mubr.f32.gmra.mxu0 %v2016
  %v2018 = vpop.f32.mrf.mxu0
  %v2019 = vadd.f32 %v1871, %v2018
  %v2020 = vpop.f32.mrf.mxu0
  %2021 = vmatprep.mubr.f32.mxu0 0.0
  %v2022 = vand.u32 %v1546, 4294901760
  %v2023 = vsub.f32 %v1546, %v2022
  %2024 = vmatmul.mubr.f32.gmra.mxu0 %v2023
  %v2025 = vpop.f32.mrf.mxu0
  %v2026 = vadd.f32 %v1877, %v2025
  %v2027 = vpop.f32.mrf.mxu0
  %2028 = vmatprep.mubr.f32.mxu0 0.0
  %v2029 = vand.u32 %v1549, 4294901760
  %v2030 = vsub.f32 %v1549, %v2029
  %2031 = vmatmul.mubr.f32.gmra.mxu0 %v2030
  %v2032 = vpop.f32.mrf.mxu0
  %v2033 = vadd.f32 %v1883, %v2032
  %v2034 = vpop.f32.mrf.mxu0
  %2035 = vmatprep.mubr.f32.mxu0 0.0
  %v2036 = vand.u32 %v1552, 4294901760
  %v2037 = vsub.f32 %v1552, %v2036
  %2038 = vmatmul.mubr.f32.gmra.mxu0 %v2037
  %v2039 = vpop.f32.mrf.mxu0
  %v2040 = vadd.f32 %v1889, %v2039
  %v2041 = vpop.f32.mrf.mxu0
  %2042 = vdwg.mxu0
  %2043 = vmatprep.subr.mxu0 0.0
  %2044 = vmatpush1.msra.mxu0 0.0
  %2045 = vmatprep.subr.mxu0 0.0
  %2046 = vmatpush1.msra.mxu0 0.0
  %2047 = vmatprep.subr.mxu0 0.0
  %2048 = vmatpush1.msra.mxu0 0.0
  %2049 = vmatprep.subr.mxu0 0.0
  %2050 = vmatpush1.msra.mxu0 0.0
  %2051 = vmatprep.subr.mxu0 0.0
  %2052 = vmatpush1.msra.mxu0 0.0
  %2053 = vmatprep.subr.mxu0 0.0
  %2054 = vmatpush1.msra.mxu0 0.0
  %2055 = vmatprep.subr.mxu0 0.0
  %2056 = vmatpush1.msra.mxu0 0.0
  %2057 = vmatprep.subr.mxu0 0.0
  %2058 = vmatpush1.msra.mxu0 0.0
  %2059 = vmatprep.subr.mxu0 0.0
  %v2060 = vand.u32 %v1522, 4294901760
  %2061 = vmatpush1.msra.mxu0 %v2060
  %2062 = vmatprep.subr.mxu0 0.0
  %v2063 = vand.u32 %v1521, 4294901760
  %2064 = vmatpush1.msra.mxu0 %v2063
  %2065 = vmatprep.subr.mxu0 0.0
  %v2066 = vand.u32 %v1520, 4294901760
  %2067 = vmatpush1.msra.mxu0 %v2066
  %2068 = vmatprep.subr.mxu0 0.0
  %v2069 = vand.u32 %v1519, 4294901760
  %2070 = vmatpush1.msra.mxu0 %v2069
  %2071 = vmatprep.subr.mxu0 0.0
  %v2072 = vand.u32 %v1518, 4294901760
  %2073 = vmatpush1.msra.mxu0 %v2072
  %2074 = vmatprep.subr.mxu0 0.0
  %v2075 = vand.u32 %v1517, 4294901760
  %2076 = vmatpush1.msra.mxu0 %v2075
  %2077 = vmatprep.subr.mxu0 0.0
  %v2078 = vand.u32 %v1516, 4294901760
  %2079 = vmatpush1.msra.mxu0 %v2078
  %2080 = vmatprep.subr.mxu0 0.0
  %v2081 = vand.u32 %v1515, 4294901760
  %2082 = vmatpush1.msra.mxu0 %v2081
  %2083 = vmatprep.subr.mxu0 0.0
  %2084 = vmatpush2.msra.mxu0 0.0
  %2085 = vmatprep.subr.mxu0 0.0
  %2086 = vmatpush2.msra.mxu0 0.0
  %2087 = vmatprep.subr.mxu0 0.0
  %2088 = vmatpush2.msra.mxu0 0.0
  %2089 = vmatprep.subr.mxu0 0.0
  %2090 = vmatpush2.msra.mxu0 0.0
  %2091 = vmatprep.subr.mxu0 0.0
  %2092 = vmatpush2.msra.mxu0 0.0
  %2093 = vmatprep.subr.mxu0 0.0
  %2094 = vmatpush2.msra.mxu0 0.0
  %2095 = vmatprep.subr.mxu0 0.0
  %2096 = vmatpush2.msra.mxu0 0.0
  %2097 = vmatprep.subr.mxu0 0.0
  %2098 = vmatpush2.msra.mxu0 0.0
  %2099 = vmatprep.subr.mxu0 0.0
  %2100 = vmatpush2.msra.mxu0 0.0
  %2101 = vmatprep.subr.mxu0 0.0
  %2102 = vmatpush2.msra.mxu0 0.0
  %2103 = vmatprep.subr.mxu0 0.0
  %2104 = vmatpush2.msra.mxu0 0.0
  %2105 = vmatprep.subr.mxu0 0.0
  %2106 = vmatpush2.msra.mxu0 0.0
  %2107 = vmatprep.subr.mxu0 0.0
  %2108 = vmatpush2.msra.mxu0 0.0
  %2109 = vmatprep.subr.mxu0 0.0
  %2110 = vmatpush2.msra.mxu0 0.0
  %2111 = vmatprep.subr.mxu0 0.0
  %2112 = vmatpush2.msra.mxu0 0.0
  %2113 = vmatprep.subr.mxu0 0.0
  %2114 = vmatpush2.msra.mxu0 0.0
  %2115 = vmatprep.mubr.f32.mxu0 0.0
  %v2116 = vand.u32 %v1525, 4294901760
  %v2117 = vsub.f32 %v1525, %v2116
  %v2118 = vand.u32 %v2117, 4294901760
  %2119 = vmatmul.mubr.f32.gmra.mxu0 %v2118
  %v2120 = vpop.f32.mrf.mxu0
  %v2121 = vadd.f32 %v1977, %v2120
  %v2122 = vpop.f32.mrf.mxu0
  %2123 = vmatprep.mubr.f32.mxu0 0.0
  %v2124 = vand.u32 %v1528, 4294901760
  %v2125 = vsub.f32 %v1528, %v2124
  %v2126 = vand.u32 %v2125, 4294901760
  %2127 = vmatmul.mubr.f32.gmra.mxu0 %v2126
  %v2128 = vpop.f32.mrf.mxu0
  %v2129 = vadd.f32 %v1984, %v2128
  %v2130 = vpop.f32.mrf.mxu0
  %2131 = vmatprep.mubr.f32.mxu0 0.0
  %v2132 = vand.u32 %v1531, 4294901760
  %v2133 = vsub.f32 %v1531, %v2132
  %v2134 = vand.u32 %v2133, 4294901760
  %2135 = vmatmul.mubr.f32.gmra.mxu0 %v2134
  %v2136 = vpop.f32.mrf.mxu0
  %v2137 = vadd.f32 %v1991, %v2136
  %v2138 = vpop.f32.mrf.mxu0
  %2139 = vmatprep.mubr.f32.mxu0 0.0
  %v2140 = vand.u32 %v1534, 4294901760
  %v2141 = vsub.f32 %v1534, %v2140
  %v2142 = vand.u32 %v2141, 4294901760
  %2143 = vmatmul.mubr.f32.gmra.mxu0 %v2142
  %v2144 = vpop.f32.mrf.mxu0
  %v2145 = vadd.f32 %v1998, %v2144
  %v2146 = vpop.f32.mrf.mxu0
  %2147 = vmatprep.mubr.f32.mxu0 0.0
  %v2148 = vand.u32 %v1537, 4294901760
  %v2149 = vsub.f32 %v1537, %v2148
  %v2150 = vand.u32 %v2149, 4294901760
  %2151 = vmatmul.mubr.f32.gmra.mxu0 %v2150
  %v2152 = vpop.f32.mrf.mxu0
  %v2153 = vadd.f32 %v2005, %v2152
  %v2154 = vpop.f32.mrf.mxu0
  %2155 = vmatprep.mubr.f32.mxu0 0.0
  %v2156 = vand.u32 %v1540, 4294901760
  %v2157 = vsub.f32 %v1540, %v2156
  %v2158 = vand.u32 %v2157, 4294901760
  %2159 = vmatmul.mubr.f32.gmra.mxu0 %v2158
  %v2160 = vpop.f32.mrf.mxu0
  %v2161 = vadd.f32 %v2012, %v2160
  %v2162 = vpop.f32.mrf.mxu0
  %2163 = vmatprep.mubr.f32.mxu0 0.0
  %v2164 = vand.u32 %v1543, 4294901760
  %v2165 = vsub.f32 %v1543, %v2164
  %v2166 = vand.u32 %v2165, 4294901760
  %2167 = vmatmul.mubr.f32.gmra.mxu0 %v2166
  %v2168 = vpop.f32.mrf.mxu0
  %v2169 = vadd.f32 %v2019, %v2168
  %v2170 = vpop.f32.mrf.mxu0
  %2171 = vmatprep.mubr.f32.mxu0 0.0
  %v2172 = vand.u32 %v1546, 4294901760
  %v2173 = vsub.f32 %v1546, %v2172
  %v2174 = vand.u32 %v2173, 4294901760
  %2175 = vmatmul.mubr.f32.gmra.mxu0 %v2174
  %v2176 = vpop.f32.mrf.mxu0
  %v2177 = vadd.f32 %v2026, %v2176
  %v2178 = vpop.f32.mrf.mxu0
  %2179 = vmatprep.mubr.f32.mxu0 0.0
  %v2180 = vand.u32 %v1549, 4294901760
  %v2181 = vsub.f32 %v1549, %v2180
  %v2182 = vand.u32 %v2181, 4294901760
  %2183 = vmatmul.mubr.f32.gmra.mxu0 %v2182
  %v2184 = vpop.f32.mrf.mxu0
  %v2185 = vadd.f32 %v2033, %v2184
  %v2186 = vpop.f32.mrf.mxu0
  %2187 = vmatprep.mubr.f32.mxu0 0.0
  %v2188 = vand.u32 %v1552, 4294901760
  %v2189 = vsub.f32 %v1552, %v2188
  %v2190 = vand.u32 %v2189, 4294901760
  %2191 = vmatmul.mubr.f32.gmra.mxu0 %v2190
  %v2192 = vpop.f32.mrf.mxu0
  %v2193 = vadd.f32 %v2040, %v2192
  %v2194 = vpop.f32.mrf.mxu0
  %2195 = vdwg.mxu0
  %2196 = vmatprep.subr.mxu0 0.0
  %2197 = vmatpush1.msra.mxu0 0.0
  %2198 = vmatprep.subr.mxu0 0.0
  %2199 = vmatpush1.msra.mxu0 0.0
  %2200 = vmatprep.subr.mxu0 0.0
  %2201 = vmatpush1.msra.mxu0 0.0
  %2202 = vmatprep.subr.mxu0 0.0
  %2203 = vmatpush1.msra.mxu0 0.0
  %2204 = vmatprep.subr.mxu0 0.0
  %2205 = vmatpush1.msra.mxu0 0.0
  %2206 = vmatprep.subr.mxu0 0.0
  %2207 = vmatpush1.msra.mxu0 0.0
  %2208 = vmatprep.subr.mxu0 0.0
  %2209 = vmatpush1.msra.mxu0 0.0
  %2210 = vmatprep.subr.mxu0 0.0
  %2211 = vmatpush1.msra.mxu0 0.0
  %2212 = vmatprep.subr.mxu0 0.0
  %v2213 = vand.u32 %v1522, 4294901760
  %v2214 = vsub.f32 %v1522, %v2213
  %v2215 = vand.u32 %v2214, 4294901760
  %2216 = vmatpush1.msra.mxu0 %v2215
  %2217 = vmatprep.subr.mxu0 0.0
  %v2218 = vand.u32 %v1521, 4294901760
  %v2219 = vsub.f32 %v1521, %v2218
  %v2220 = vand.u32 %v2219, 4294901760
  %2221 = vmatpush1.msra.mxu0 %v2220
  %2222 = vmatprep.subr.mxu0 0.0
  %v2223 = vand.u32 %v1520, 4294901760
  %v2224 = vsub.f32 %v1520, %v2223
  %v2225 = vand.u32 %v2224, 4294901760
  %2226 = vmatpush1.msra.mxu0 %v2225
  %2227 = vmatprep.subr.mxu0 0.0
  %v2228 = vand.u32 %v1519, 4294901760
  %v2229 = vsub.f32 %v1519, %v2228
  %v2230 = vand.u32 %v2229, 4294901760
  %2231 = vmatpush1.msra.mxu0 %v2230
  %2232 = vmatprep.subr.mxu0 0.0
  %v2233 = vand.u32 %v1518, 4294901760
  %v2234 = vsub.f32 %v1518, %v2233
  %v2235 = vand.u32 %v2234, 4294901760
  %2236 = vmatpush1.msra.mxu0 %v2235
  %2237 = vmatprep.subr.mxu0 0.0
  %v2238 = vand.u32 %v1517, 4294901760
  %v2239 = vsub.f32 %v1517, %v2238
  %v2240 = vand.u32 %v2239, 4294901760
  %2241 = vmatpush1.msra.mxu0 %v2240
  %2242 = vmatprep.subr.mxu0 0.0
  %v2243 = vand.u32 %v1516, 4294901760
  %v2244 = vsub.f32 %v1516, %v2243
  %v2245 = vand.u32 %v2244, 4294901760
  %2246 = vmatpush1.msra.mxu0 %v2245
  %2247 = vmatprep.subr.mxu0 0.0
  %v2248 = vand.u32 %v1515, 4294901760
  %v2249 = vsub.f32 %v1515, %v2248
  %v2250 = vand.u32 %v2249, 4294901760
  %2251 = vmatpush1.msra.mxu0 %v2250
  %2252 = vmatprep.subr.mxu0 0.0
  %2253 = vmatpush2.msra.mxu0 0.0
  %2254 = vmatprep.subr.mxu0 0.0
  %2255 = vmatpush2.msra.mxu0 0.0
  %2256 = vmatprep.subr.mxu0 0.0
  %2257 = vmatpush2.msra.mxu0 0.0
  %2258 = vmatprep.subr.mxu0 0.0
  %2259 = vmatpush2.msra.mxu0 0.0
  %2260 = vmatprep.subr.mxu0 0.0
  %2261 = vmatpush2.msra.mxu0 0.0
  %2262 = vmatprep.subr.mxu0 0.0
  %2263 = vmatpush2.msra.mxu0 0.0
  %2264 = vmatprep.subr.mxu0 0.0
  %2265 = vmatpush2.msra.mxu0 0.0
  %2266 = vmatprep.subr.mxu0 0.0
  %2267 = vmatpush2.msra.mxu0 0.0
  %2268 = vmatprep.subr.mxu0 0.0
  %2269 = vmatpush2.msra.mxu0 0.0
  %2270 = vmatprep.subr.mxu0 0.0
  %2271 = vmatpush2.msra.mxu0 0.0
  %2272 = vmatprep.subr.mxu0 0.0
  %2273 = vmatpush2.msra.mxu0 0.0
  %2274 = vmatprep.subr.mxu0 0.0
  %2275 = vmatpush2.msra.mxu0 0.0
  %2276 = vmatprep.subr.mxu0 0.0
  %2277 = vmatpush2.msra.mxu0 0.0
  %2278 = vmatprep.subr.mxu0 0.0
  %2279 = vmatpush2.msra.mxu0 0.0
  %2280 = vmatprep.subr.mxu0 0.0
  %2281 = vmatpush2.msra.mxu0 0.0
  %2282 = vmatprep.subr.mxu0 0.0
  %2283 = vmatpush2.msra.mxu0 0.0
  %2284 = vmatprep.mubr.f32.mxu0 0.0
  %v2285 = vand.u32 %v1525, 4294901760
  %2286 = vmatmul.mubr.f32.gmra.mxu0 %v2285
  %v2287 = vpop.f32.mrf.mxu0
  %v2288 = vadd.f32 %v2121, %v2287
  %v2289 = vpop.f32.mrf.mxu0
  %2290 = vmatprep.mubr.f32.mxu0 0.0
  %v2291 = vand.u32 %v1528, 4294901760
  %2292 = vmatmul.mubr.f32.gmra.mxu0 %v2291
  %v2293 = vpop.f32.mrf.mxu0
  %v2294 = vadd.f32 %v2129, %v2293
  %v2295 = vpop.f32.mrf.mxu0
  %2296 = vmatprep.mubr.f32.mxu0 0.0
  %v2297 = vand.u32 %v1531, 4294901760
  %2298 = vmatmul.mubr.f32.gmra.mxu0 %v2297
  %v2299 = vpop.f32.mrf.mxu0
  %v2300 = vadd.f32 %v2137, %v2299
  %v2301 = vpop.f32.mrf.mxu0
  %2302 = vmatprep.mubr.f32.mxu0 0.0
  %v2303 = vand.u32 %v1534, 4294901760
  %2304 = vmatmul.mubr.f32.gmra.mxu0 %v2303
  %v2305 = vpop.f32.mrf.mxu0
  %v2306 = vadd.f32 %v2145, %v2305
  %v2307 = vpop.f32.mrf.mxu0
  %2308 = vmatprep.mubr.f32.mxu0 0.0
  %v2309 = vand.u32 %v1537, 4294901760
  %2310 = vmatmul.mubr.f32.gmra.mxu0 %v2309
  %v2311 = vpop.f32.mrf.mxu0
  %v2312 = vadd.f32 %v2153, %v2311
  %v2313 = vpop.f32.mrf.mxu0
  %2314 = vmatprep.mubr.f32.mxu0 0.0
  %v2315 = vand.u32 %v1540, 4294901760
  %2316 = vmatmul.mubr.f32.gmra.mxu0 %v2315
  %v2317 = vpop.f32.mrf.mxu0
  %v2318 = vadd.f32 %v2161, %v2317
  %v2319 = vpop.f32.mrf.mxu0
  %2320 = vmatprep.mubr.f32.mxu0 0.0
  %v2321 = vand.u32 %v1543, 4294901760
  %2322 = vmatmul.mubr.f32.gmra.mxu0 %v2321
  %v2323 = vpop.f32.mrf.mxu0
  %v2324 = vadd.f32 %v2169, %v2323
  %v2325 = vpop.f32.mrf.mxu0
  %2326 = vmatprep.mubr.f32.mxu0 0.0
  %v2327 = vand.u32 %v1546, 4294901760
  %2328 = vmatmul.mubr.f32.gmra.mxu0 %v2327
  %v2329 = vpop.f32.mrf.mxu0
  %v2330 = vadd.f32 %v2177, %v2329
  %v2331 = vpop.f32.mrf.mxu0
  %2332 = vmatprep.mubr.f32.mxu0 0.0
  %v2333 = vand.u32 %v1549, 4294901760
  %2334 = vmatmul.mubr.f32.gmra.mxu0 %v2333
  %v2335 = vpop.f32.mrf.mxu0
  %v2336 = vadd.f32 %v2185, %v2335
  %v2337 = vpop.f32.mrf.mxu0
  %2338 = vmatprep.mubr.f32.mxu0 0.0
  %v2339 = vand.u32 %v1552, 4294901760
  %2340 = vmatmul.mubr.f32.gmra.mxu0 %v2339
  %v2341 = vpop.f32.mrf.mxu0
  %v2342 = vadd.f32 %v2193, %v2341
  %v2343 = vpop.f32.mrf.mxu0
  %2344 = vdwg.mxu0
  %2345 = vmatprep.subr.mxu0 0.0
  %2346 = vmatpush1.msra.mxu0 0.0
  %2347 = vmatprep.subr.mxu0 0.0
  %2348 = vmatpush1.msra.mxu0 0.0
  %2349 = vmatprep.subr.mxu0 0.0
  %2350 = vmatpush1.msra.mxu0 0.0
  %2351 = vmatprep.subr.mxu0 0.0
  %2352 = vmatpush1.msra.mxu0 0.0
  %2353 = vmatprep.subr.mxu0 0.0
  %2354 = vmatpush1.msra.mxu0 0.0
  %2355 = vmatprep.subr.mxu0 0.0
  %2356 = vmatpush1.msra.mxu0 0.0
  %2357 = vmatprep.subr.mxu0 0.0
  %2358 = vmatpush1.msra.mxu0 0.0
  %2359 = vmatprep.subr.mxu0 0.0
  %2360 = vmatpush1.msra.mxu0 0.0
  %2361 = vmatprep.subr.mxu0 0.0
  %v2362 = vand.u32 %v1522, 4294901760
  %2363 = vmatpush1.msra.mxu0 %v2362
  %2364 = vmatprep.subr.mxu0 0.0
  %v2365 = vand.u32 %v1521, 4294901760
  %2366 = vmatpush1.msra.mxu0 %v2365
  %2367 = vmatprep.subr.mxu0 0.0
  %v2368 = vand.u32 %v1520, 4294901760
  %2369 = vmatpush1.msra.mxu0 %v2368
  %2370 = vmatprep.subr.mxu0 0.0
  %v2371 = vand.u32 %v1519, 4294901760
  %2372 = vmatpush1.msra.mxu0 %v2371
  %2373 = vmatprep.subr.mxu0 0.0
  %v2374 = vand.u32 %v1518, 4294901760
  %2375 = vmatpush1.msra.mxu0 %v2374
  %2376 = vmatprep.subr.mxu0 0.0
  %v2377 = vand.u32 %v1517, 4294901760
  %2378 = vmatpush1.msra.mxu0 %v2377
  %2379 = vmatprep.subr.mxu0 0.0
  %v2380 = vand.u32 %v1516, 4294901760
  %2381 = vmatpush1.msra.mxu0 %v2380
  %2382 = vmatprep.subr.mxu0 0.0
  %v2383 = vand.u32 %v1515, 4294901760
  %2384 = vmatpush1.msra.mxu0 %v2383
  %2385 = vmatprep.subr.mxu0 0.0
  %2386 = vmatpush2.msra.mxu0 0.0
  %2387 = vmatprep.subr.mxu0 0.0
  %2388 = vmatpush2.msra.mxu0 0.0
  %2389 = vmatprep.subr.mxu0 0.0
  %2390 = vmatpush2.msra.mxu0 0.0
  %2391 = vmatprep.subr.mxu0 0.0
  %2392 = vmatpush2.msra.mxu0 0.0
  %2393 = vmatprep.subr.mxu0 0.0
  %2394 = vmatpush2.msra.mxu0 0.0
  %2395 = vmatprep.subr.mxu0 0.0
  %2396 = vmatpush2.msra.mxu0 0.0
  %2397 = vmatprep.subr.mxu0 0.0
  %2398 = vmatpush2.msra.mxu0 0.0
  %2399 = vmatprep.subr.mxu0 0.0
  %2400 = vmatpush2.msra.mxu0 0.0
  %2401 = vmatprep.subr.mxu0 0.0
  %2402 = vmatpush2.msra.mxu0 0.0
  %2403 = vmatprep.subr.mxu0 0.0
  %2404 = vmatpush2.msra.mxu0 0.0
  %2405 = vmatprep.subr.mxu0 0.0
  %2406 = vmatpush2.msra.mxu0 0.0
  %2407 = vmatprep.subr.mxu0 0.0
  %2408 = vmatpush2.msra.mxu0 0.0
  %2409 = vmatprep.subr.mxu0 0.0
  %2410 = vmatpush2.msra.mxu0 0.0
  %2411 = vmatprep.subr.mxu0 0.0
  %2412 = vmatpush2.msra.mxu0 0.0
  %2413 = vmatprep.subr.mxu0 0.0
  %2414 = vmatpush2.msra.mxu0 0.0
  %2415 = vmatprep.subr.mxu0 0.0
  %2416 = vmatpush2.msra.mxu0 0.0
  %2417 = vmatprep.mubr.f32.mxu0 0.0
  %v2418 = vand.u32 %v1525, 4294901760
  %2419 = vmatmul.mubr.f32.gmra.mxu0 %v2418
  %v2420 = vpop.f32.mrf.mxu0
  %v2421 = vadd.f32 %v2288, %v2420
  %v2422 = vpop.f32.mrf.mxu0
  %2423 = vmatprep.mubr.f32.mxu0 0.0
  %v2424 = vand.u32 %v1528, 4294901760
  %2425 = vmatmul.mubr.f32.gmra.mxu0 %v2424
  %v2426 = vpop.f32.mrf.mxu0
  %v2427 = vadd.f32 %v2294, %v2426
  %v2428 = vpop.f32.mrf.mxu0
  %2429 = vmatprep.mubr.f32.mxu0 0.0
  %v2430 = vand.u32 %v1531, 4294901760
  %2431 = vmatmul.mubr.f32.gmra.mxu0 %v2430
  %v2432 = vpop.f32.mrf.mxu0
  %v2433 = vadd.f32 %v2300, %v2432
  %v2434 = vpop.f32.mrf.mxu0
  %2435 = vmatprep.mubr.f32.mxu0 0.0
  %v2436 = vand.u32 %v1534, 4294901760
  %2437 = vmatmul.mubr.f32.gmra.mxu0 %v2436
  %v2438 = vpop.f32.mrf.mxu0
  %v2439 = vadd.f32 %v2306, %v2438
  %v2440 = vpop.f32.mrf.mxu0
  %2441 = vmatprep.mubr.f32.mxu0 0.0
  %v2442 = vand.u32 %v1537, 4294901760
  %2443 = vmatmul.mubr.f32.gmra.mxu0 %v2442
  %v2444 = vpop.f32.mrf.mxu0
  %v2445 = vadd.f32 %v2312, %v2444
  %v2446 = vpop.f32.mrf.mxu0
  %2447 = vmatprep.mubr.f32.mxu0 0.0
  %v2448 = vand.u32 %v1540, 4294901760
  %2449 = vmatmul.mubr.f32.gmra.mxu0 %v2448
  %v2450 = vpop.f32.mrf.mxu0
  %v2451 = vadd.f32 %v2318, %v2450
  %v2452 = vpop.f32.mrf.mxu0
  %2453 = vmatprep.mubr.f32.mxu0 0.0
  %v2454 = vand.u32 %v1543, 4294901760
  %2455 = vmatmul.mubr.f32.gmra.mxu0 %v2454
  %v2456 = vpop.f32.mrf.mxu0
  %v2457 = vadd.f32 %v2324, %v2456
  %v2458 = vpop.f32.mrf.mxu0
  %2459 = vmatprep.mubr.f32.mxu0 0.0
  %v2460 = vand.u32 %v1546, 4294901760
  %2461 = vmatmul.mubr.f32.gmra.mxu0 %v2460
  %v2462 = vpop.f32.mrf.mxu0
  %v2463 = vadd.f32 %v2330, %v2462
  %v2464 = vpop.f32.mrf.mxu0
  %2465 = vmatprep.mubr.f32.mxu0 0.0
  %v2466 = vand.u32 %v1549, 4294901760
  %2467 = vmatmul.mubr.f32.gmra.mxu0 %v2466
  %v2468 = vpop.f32.mrf.mxu0
  %v2469 = vadd.f32 %v2336, %v2468
  %v2470 = vpop.f32.mrf.mxu0
  %2471 = vmatprep.mubr.f32.mxu0 0.0
  %v2472 = vand.u32 %v1552, 4294901760
  %2473 = vmatmul.mubr.f32.gmra.mxu0 %v2472
  %v2474 = vpop.f32.mrf.mxu0
  %v2475 = vadd.f32 %v2342, %v2474
  %v2476 = vpop.f32.mrf.mxu0
  %2477 = vdwg.mxu0
  %2478 = vst [vmem:[#allocation3] sm:$0xff] %v2421
  %2479 = vst [vmem:[#allocation3 + $0x8] sm:$0xff] %v2427
  %2480 = vst [vmem:[#allocation3 + $0x10] sm:$0xff] %v2433
  %2481 = vst [vmem:[#allocation3 + $0x18] sm:$0xff] %v2439
  %2482 = vst [vmem:[#allocation3 + $0x20] sm:$0xff] %v2445
  %2483 = vst [vmem:[#allocation3 + $0x28] sm:$0xff] %v2451
  %2484 = vst [vmem:[#allocation3 + $0x30] sm:$0xff] %v2457
  %2485 = vst [vmem:[#allocation3 + $0x38] sm:$0xff] %v2463
  %2486 = vst [vmem:[#allocation3 + $0x40] sm:$0xff] %v2469
  %2487 = vst [vmem:[#allocation3 + $0x48] sm:$0xff] %v2475
  %v2488 = vld [vmem:[%s2] sm:$0xff]
  %v2489 = vld [vmem:[%s2 + $0x8] sm:$0xff]
  %v2490 = vlaneseq
  %v2491 = vshrl.u32 %v2490, 7
  %v2492 = vadd.s32 %v2491, 8
  %vm2493 = vcmp.lt.s32.totalorder %v2491, 8
  %vm2494 = vcmp.lt.s32.totalorder %v2492, 8
  %vm2495 = vcmp.lt.s32.totalorder %v39, 16
  %v2496 = vld [vmem:[%s5] sm:$0xff]
  %v2497 = vld [vmem:[%s5 + $0x8] sm:$0xff]
  %v2498 = vld [vmem:[%s5 + $0x10] sm:$0xff]
  %v2499 = vld [vmem:[%s5 + $0x18] sm:$0xff]
  %v2500 = vld [vmem:[%s5 + $0x20] sm:$0xff]
  %v2501 = vld [vmem:[%s5 + $0x28] sm:$0xff]
  %v2502 = vld [vmem:[%s5 + $0x30] sm:$0xff]
  %v2503 = vld [vmem:[%s5 + $0x38] sm:$0xff]
  %v2504 = vld [vmem:[%s5 + $0x40] sm:$0xff]
  %v2505 = vld [vmem:[%s5 + $0x48] sm:$0xff]
  %v2506 = vld [vmem:[%s5 + $0x50] sm:$0xff]
  %v2507 = vld [vmem:[%s5 + $0x58] sm:$0xff]
  %v2508 = vld [vmem:[#allocation2] sm:$0xff]
  %v2509 = vld [vmem:[#allocation2 + $0x8] sm:$0xff]
  %vm2510 = vcmask 261120
  %v2512 = vsel %vm2510, 0.0, 0
  %2514 = vmatprep.subr.mxu0 0.0
  %2515 = vmatpush1.msra.mxu0 0.0
  %2516 = vmatprep.subr.mxu0 0.0
  %2517 = vmatpush1.msra.mxu0 0.0
  %2518 = vmatprep.subr.mxu0 0.0
  %2519 = vmatpush1.msra.mxu0 0.0
  %2520 = vmatprep.subr.mxu0 0.0
  %2521 = vmatpush1.msra.mxu0 0.0
  %2522 = vmatprep.subr.mxu0 0.0
  %2523 = vmatpush1.msra.mxu0 0.0
  %2524 = vmatprep.subr.mxu0 0.0
  %2525 = vmatpush1.msra.mxu0 0.0
  %2526 = vmatprep.subr.mxu0 0.0
  %2527 = vmatpush1.msra.mxu0 0.0
  %2528 = vmatprep.subr.mxu0 0.0
  %2529 = vmatpush1.msra.mxu0 0.0
  %2530 = vmatprep.subr.mxu0 0.0
  %2531 = vmatpush1.msra.mxu0 0.0
  %2532 = vmatprep.subr.mxu0 0.0
  %2533 = vmatpush1.msra.mxu0 0.0
  %2534 = vmatprep.subr.mxu0 0.0
  %2535 = vmatpush1.msra.mxu0 0.0
  %2536 = vmatprep.subr.mxu0 0.0
  %2537 = vmatpush1.msra.mxu0 0.0
  %2538 = vmatprep.subr.mxu0 0.0
  %2539 = vmatpush1.msra.mxu0 %v2499
  %2540 = vmatprep.subr.mxu0 0.0
  %2541 = vmatpush1.msra.mxu0 %v2498
  %2542 = vmatprep.subr.mxu0 0.0
  %2543 = vmatpush1.msra.mxu0 %v2497
  %2544 = vmatprep.subr.mxu0 0.0
  %2545 = vmatpush1.msra.mxu0 %v2496
  %2546 = vmatprep.subr.mxu0 0.0
  %2547 = vmatpush2.msra.mxu0 0.0
  %2548 = vmatprep.subr.mxu0 0.0
  %2549 = vmatpush2.msra.mxu0 0.0
  %2550 = vmatprep.subr.mxu0 0.0
  %2551 = vmatpush2.msra.mxu0 0.0
  %2552 = vmatprep.subr.mxu0 0.0
  %2553 = vmatpush2.msra.mxu0 0.0
  %2554 = vmatprep.subr.mxu0 0.0
  %2555 = vmatpush2.msra.mxu0 0.0
  %2556 = vmatprep.subr.mxu0 0.0
  %2557 = vmatpush2.msra.mxu0 0.0
  %2558 = vmatprep.subr.mxu0 0.0
  %2559 = vmatpush2.msra.mxu0 0.0
  %2560 = vmatprep.subr.mxu0 0.0
  %2561 = vmatpush2.msra.mxu0 0.0
  %2562 = vmatprep.subr.mxu0 0.0
  %2563 = vmatpush2.msra.mxu0 0.0
  %2564 = vmatprep.subr.mxu0 0.0
  %2565 = vmatpush2.msra.mxu0 0.0
  %2566 = vmatprep.subr.mxu0 0.0
  %2567 = vmatpush2.msra.mxu0 0.0
  %2568 = vmatprep.subr.mxu0 0.0
  %2569 = vmatpush2.msra.mxu0 0.0
  %2570 = vmatprep.subr.mxu0 0.0
  %2571 = vmatpush2.msra.mxu0 0.0
  %2572 = vmatprep.subr.mxu0 0.0
  %2573 = vmatpush2.msra.mxu0 0.0
  %2574 = vmatprep.subr.mxu0 0.0
  %2575 = vmatpush2.msra.mxu0 0.0
  %2576 = vmatprep.subr.mxu0 0.0
  %2577 = vmatpush2.msra.mxu0 0.0
  %2578 = vmatprep.mubr.f32.mxu0 0.0
  %2579 = vmatmul.mubr.f32.gmra.mxu0 %v2512
  %v2580 = vpop.f32.mrf.mxu0
  %v2581 = vadd.f32 0.0, %v2580
  %v2582 = vpop.f32.mrf.mxu0
  %2583 = vmatprep.mubr.f32.mxu0 0.0
  %2584 = vmatmul.mubr.f32.gmra.mxu0 %v2512
  %v2585 = vpop.f32.mrf.mxu0
  %v2586 = vadd.f32 0.0, %v2585
  %v2587 = vpop.f32.mrf.mxu0
  %2588 = vdwg.mxu0
  %2589 = vmatprep.subr.mxu0 0.0
  %2590 = vmatpush1.msra.mxu0 0.0
  %2591 = vmatprep.subr.mxu0 0.0
  %2592 = vmatpush1.msra.mxu0 0.0
  %2593 = vmatprep.subr.mxu0 0.0
  %2594 = vmatpush1.msra.mxu0 0.0
  %2595 = vmatprep.subr.mxu0 0.0
  %2596 = vmatpush1.msra.mxu0 0.0
  %2597 = vmatprep.subr.mxu0 0.0
  %2598 = vmatpush1.msra.mxu0 0.0
  %2599 = vmatprep.subr.mxu0 0.0
  %2600 = vmatpush1.msra.mxu0 0.0
  %2601 = vmatprep.subr.mxu0 0.0
  %2602 = vmatpush1.msra.mxu0 0.0
  %2603 = vmatprep.subr.mxu0 0.0
  %2604 = vmatpush1.msra.mxu0 0.0
  %2605 = vmatprep.subr.mxu0 0.0
  %2606 = vmatpush1.msra.mxu0 0.0
  %2607 = vmatprep.subr.mxu0 0.0
  %2608 = vmatpush1.msra.mxu0 0.0
  %2609 = vmatprep.subr.mxu0 0.0
  %2610 = vmatpush1.msra.mxu0 0.0
  %2611 = vmatprep.subr.mxu0 0.0
  %2612 = vmatpush1.msra.mxu0 0.0
  %2613 = vmatprep.subr.mxu0 0.0
  %2614 = vmatpush1.msra.mxu0 %v2503
  %2615 = vmatprep.subr.mxu0 0.0
  %2616 = vmatpush1.msra.mxu0 %v2502
  %2617 = vmatprep.subr.mxu0 0.0
  %2618 = vmatpush1.msra.mxu0 %v2501
  %2619 = vmatprep.subr.mxu0 0.0
  %2620 = vmatpush1.msra.mxu0 %v2500
  %2621 = vmatprep.subr.mxu0 0.0
  %2622 = vmatpush2.msra.mxu0 0.0
  %2623 = vmatprep.subr.mxu0 0.0
  %2624 = vmatpush2.msra.mxu0 0.0
  %2625 = vmatprep.subr.mxu0 0.0
  %2626 = vmatpush2.msra.mxu0 0.0
  %2627 = vmatprep.subr.mxu0 0.0
  %2628 = vmatpush2.msra.mxu0 0.0
  %2629 = vmatprep.subr.mxu0 0.0
  %2630 = vmatpush2.msra.mxu0 0.0
  %2631 = vmatprep.subr.mxu0 0.0
  %2632 = vmatpush2.msra.mxu0 0.0
  %2633 = vmatprep.subr.mxu0 0.0
  %2634 = vmatpush2.msra.mxu0 0.0
  %2635 = vmatprep.subr.mxu0 0.0
  %2636 = vmatpush2.msra.mxu0 0.0
  %2637 = vmatprep.subr.mxu0 0.0
  %2638 = vmatpush2.msra.mxu0 0.0
  %2639 = vmatprep.subr.mxu0 0.0
  %2640 = vmatpush2.msra.mxu0 0.0
  %2641 = vmatprep.subr.mxu0 0.0
  %2642 = vmatpush2.msra.mxu0 0.0
  %2643 = vmatprep.subr.mxu0 0.0
  %2644 = vmatpush2.msra.mxu0 0.0
  %2645 = vmatprep.subr.mxu0 0.0
  %2646 = vmatpush2.msra.mxu0 0.0
  %2647 = vmatprep.subr.mxu0 0.0
  %2648 = vmatpush2.msra.mxu0 0.0
  %2649 = vmatprep.subr.mxu0 0.0
  %2650 = vmatpush2.msra.mxu0 0.0
  %2651 = vmatprep.subr.mxu0 0.0
  %2652 = vmatpush2.msra.mxu0 0.0
  %2653 = vmatprep.mubr.f32.mxu0 0.0
  %2654 = vmatmul.mubr.f32.gmra.mxu0 %v2512
  %v2655 = vpop.f32.mrf.mxu0
  %v2656 = vadd.f32 0.0, %v2655
  %v2657 = vpop.f32.mrf.mxu0
  %2658 = vmatprep.mubr.f32.mxu0 0.0
  %2659 = vmatmul.mubr.f32.gmra.mxu0 %v2512
  %v2660 = vpop.f32.mrf.mxu0
  %v2661 = vadd.f32 0.0, %v2660
  %v2662 = vpop.f32.mrf.mxu0
  %2663 = vdwg.mxu0
  %v2664 = vsel %vm2493, 1, 0
  %v2665 = vsel %vm2494, 1, 0
  %vm2666 = vcmp.eq.s32.totalorder %v2664, 1
  %vm2667 = vcmp.eq.s32.totalorder %v2665, 1
  %v2668 = vsel %vm2666, %v2581, %v2656
  %v2669 = vsel %vm2667, %v2586, %v2661
  %v2670 = vadd.f32 %v2668, %v2508
  %v2671 = vadd.f32 %v2669, %v2509
  %vm2672 = vcmp.gt.s32.totalorder %v2488, 0
  %vm2673 = vcmp.gt.s32.totalorder %v2489, 0
  %v2674 = vsel %vm2495, 1, 0
  %vm2675 = vcmp.eq.s32.totalorder %v2674, 1
  %v2676 = vsel %vm2672, 1, 0
  %v2677 = vsel %vm2673, 1, 0
  %2678 = vset.pattern.permute.xlu0 0
  %2679 = vperm.xlu0 %2678, %v2676
  %v2680 = vpop.permute.xlu0 %2679
  %2681 = vset.pattern.permute.xlu0 0
  %2682 = vperm.xlu0 %2681, %v2677
  %v2683 = vpop.permute.xlu0 %2682
  %vm2684 = vcmp.eq.s32.totalorder %v2680, 1
  %vm2685 = vcmp.eq.s32.totalorder %v2683, 1
  %vm2686 = vmand %vm2675, %vm2684
  %vm2687 = vmand %vm2675, %vm2685
  %vm2688 = vmxor %vm2495, 1
  %vm2689 = vcmp.gt.s32.totalorder %v2488, 5
  %vm2690 = vcmp.gt.s32.totalorder %v2489, 5
  %v2691 = vsel %vm2688, 1, 0
  %vm2692 = vcmp.eq.s32.totalorder %v2691, 1
  %v2693 = vsel %vm2689, 1, 0
  %v2694 = vsel %vm2690, 1, 0
  %2695 = vset.pattern.permute.xlu0 0
  %2696 = vperm.xlu0 %2695, %v2693
  %v2697 = vpop.permute.xlu0 %2696
  %2698 = vset.pattern.permute.xlu0 0
  %2699 = vperm.xlu0 %2698, %v2694
  %v2700 = vpop.permute.xlu0 %2699
  %vm2701 = vcmp.eq.s32.totalorder %v2697, 1
  %vm2702 = vcmp.eq.s32.totalorder %v2700, 1
  %vm2703 = vmand %vm2692, %vm2701
  %vm2704 = vmand %vm2692, %vm2702
  %vm2705 = vmor %vm2686, %vm2703
  %vm2706 = vmor %vm2687, %vm2704
  %v2707 = vxor.u32 %v2670, 2147483648
  %v2708 = vxor.u32 %v2671, 2147483648
  %v2709 = vmul.f32 %v2707, 1.442695
  %v2710 = vpow.pop %v2709
  %v2711 = vmul.f32 %v2708, 1.442695
  %v2712 = vpow.pop %v2711
  %v2713 = vadd.f32 %v2710, 1.0
  %v2714 = vadd.f32 %v2712, 1.0
  %v2715 = vrcp.pop %v2713
  %v2716 = vmul.f32 1.0, %v2715
  %v2717 = vrcp.pop %v2714
  %v2718 = vmul.f32 1.0, %v2717
  %v2719 = vtanh.pop %v2670
  %v2720 = vtanh.pop %v2671
  %v2721 = vmul.f32 %v2716, 0.0
  %v2722 = vmul.f32 %v2718, 0.0
  %2725 = vrot.lane.b32.xlu0 %v2719, 64
  %v2726 = vpop.permute.xlu0 %2725
  %2727 = vrot.lane.b32.xlu0 %v2720, 64
  %v2728 = vpop.permute.xlu0 %2727
  %v2731 = vmul.f32 %v2716, %v2726
  %v2732 = vmul.f32 %v2718, %v2728
  %2735 = vrot.lane.b32.xlu0 %v2731, 32
  %v2736 = vpop.permute.xlu0 %2735
  %2737 = vrot.lane.b32.xlu0 %v2732, 32
  %v2738 = vpop.permute.xlu0 %2737
  %v2741 = vadd.f32 %v2721, %v2736
  %v2742 = vadd.f32 %v2722, %v2738
  %v2743 = vtanh.pop %v2741
  %v2744 = vtanh.pop %v2742
  %2747 = vrot.lane.b32.xlu0 %v2743, 64
  %v2748 = vpop.permute.xlu0 %2747
  %2749 = vrot.lane.b32.xlu0 %v2744, 64
  %v2750 = vpop.permute.xlu0 %2749
  %v2753 = vmul.f32 %v2716, %v2748
  %v2754 = vmul.f32 %v2718, %v2750
  %2757 = vrot.lane.b32.xlu0 %v2753, 32
  %v2758 = vpop.permute.xlu0 %2757
  %2759 = vrot.lane.b32.xlu0 %v2754, 32
  %v2760 = vpop.permute.xlu0 %2759
  %v2763 = vsel %vm2705, %v2758, 0.0
  %v2764 = vsel %vm2706, %v2760, 0.0
  %2767 = vrot.lane.b32.xlu0 %v2741, 96
  %v2768 = vpop.permute.xlu0 %2767
  %2769 = vrot.lane.b32.xlu0 %v2742, 96
  %v2770 = vpop.permute.xlu0 %2769
  %v2773 = vsel %vm2705, %v2768, 0.0
  %v2774 = vsel %vm2706, %v2770, 0.0
  %v2775 = vld [vmem:[#allocation3] sm:$0xff]
  %v2776 = vld [vmem:[#allocation3 + $0x8] sm:$0xff]
  %2777 = vmatprep.subr.mxu0 0.0
  %2778 = vmatpush1.msra.mxu0 0.0
  %2779 = vmatprep.subr.mxu0 0.0
  %2780 = vmatpush1.msra.mxu0 0.0
  %2781 = vmatprep.subr.mxu0 0.0
  %2782 = vmatpush1.msra.mxu0 0.0
  %2783 = vmatprep.subr.mxu0 0.0
  %2784 = vmatpush1.msra.mxu0 0.0
  %2785 = vmatprep.subr.mxu0 0.0
  %2786 = vmatpush1.msra.mxu0 0.0
  %2787 = vmatprep.subr.mxu0 0.0
  %2788 = vmatpush1.msra.mxu0 0.0
  %2789 = vmatprep.subr.mxu0 0.0
  %2790 = vmatpush1.msra.mxu0 0.0
  %2791 = vmatprep.subr.mxu0 0.0
  %2792 = vmatpush1.msra.mxu0 0.0
  %2793 = vmatprep.subr.mxu0 0.0
  %2794 = vmatpush1.msra.mxu0 0.0
  %2795 = vmatprep.subr.mxu0 0.0
  %2796 = vmatpush1.msra.mxu0 0.0
  %2797 = vmatprep.subr.mxu0 0.0
  %2798 = vmatpush1.msra.mxu0 0.0
  %2799 = vmatprep.subr.mxu0 0.0
  %2800 = vmatpush1.msra.mxu0 0.0
  %2801 = vmatprep.subr.mxu0 0.0
  %2802 = vmatpush1.msra.mxu0 %v2507
  %2803 = vmatprep.subr.mxu0 0.0
  %2804 = vmatpush1.msra.mxu0 %v2506
  %2805 = vmatprep.subr.mxu0 0.0
  %2806 = vmatpush1.msra.mxu0 %v2505
  %2807 = vmatprep.subr.mxu0 0.0
  %2808 = vmatpush1.msra.mxu0 %v2504
  %2809 = vmatprep.subr.mxu0 0.0
  %2810 = vmatpush2.msra.mxu0 0.0
  %2811 = vmatprep.subr.mxu0 0.0
  %2812 = vmatpush2.msra.mxu0 0.0
  %2813 = vmatprep.subr.mxu0 0.0
  %2814 = vmatpush2.msra.mxu0 0.0
  %2815 = vmatprep.subr.mxu0 0.0
  %2816 = vmatpush2.msra.mxu0 0.0
  %2817 = vmatprep.subr.mxu0 0.0
  %2818 = vmatpush2.msra.mxu0 0.0
  %2819 = vmatprep.subr.mxu0 0.0
  %2820 = vmatpush2.msra.mxu0 0.0
  %2821 = vmatprep.subr.mxu0 0.0
  %2822 = vmatpush2.msra.mxu0 0.0
  %2823 = vmatprep.subr.mxu0 0.0
  %2824 = vmatpush2.msra.mxu0 0.0
  %2825 = vmatprep.subr.mxu0 0.0
  %2826 = vmatpush2.msra.mxu0 0.0
  %2827 = vmatprep.subr.mxu0 0.0
  %2828 = vmatpush2.msra.mxu0 0.0
  %2829 = vmatprep.subr.mxu0 0.0
  %2830 = vmatpush2.msra.mxu0 0.0
  %2831 = vmatprep.subr.mxu0 0.0
  %2832 = vmatpush2.msra.mxu0 0.0
  %2833 = vmatprep.subr.mxu0 0.0
  %2834 = vmatpush2.msra.mxu0 0.0
  %2835 = vmatprep.subr.mxu0 0.0
  %2836 = vmatpush2.msra.mxu0 0.0
  %2837 = vmatprep.subr.mxu0 0.0
  %2838 = vmatpush2.msra.mxu0 0.0
  %2839 = vmatprep.subr.mxu0 0.0
  %2840 = vmatpush2.msra.mxu0 0.0
  %2841 = vmatprep.mubr.f32.mxu0 0.0
  %2842 = vmatmul.mubr.f32.gmra.mxu0 %v2512
  %v2843 = vpop.f32.mrf.mxu0
  %v2844 = vadd.f32 %v2775, %v2843
  %v2845 = vpop.f32.mrf.mxu0
  %2846 = vmatprep.mubr.f32.mxu0 0.0
  %2847 = vmatmul.mubr.f32.gmra.mxu0 %v2512
  %v2848 = vpop.f32.mrf.mxu0
  %v2849 = vadd.f32 %v2776, %v2848
  %v2850 = vpop.f32.mrf.mxu0
  %2851 = vdwg.mxu0
  %2852 = vset.pattern.permute.xlu0 1
  %2853 = vperm.xlu0 %2852, %v2676
  %v2854 = vpop.permute.xlu0 %2853
  %2855 = vset.pattern.permute.xlu0 1
  %2856 = vperm.xlu0 %2855, %v2677
  %v2857 = vpop.permute.xlu0 %2856
  %vm2858 = vcmp.eq.s32.totalorder %v2854, 1
  %vm2859 = vcmp.eq.s32.totalorder %v2857, 1
  %vm2860 = vmand %vm2675, %vm2858
  %vm2861 = vmand %vm2675, %vm2859
  %vm2862 = vcmp.gt.s32.totalorder %v2488, 4
  %vm2863 = vcmp.gt.s32.totalorder %v2489, 4
  %v2864 = vsel %vm2862, 1, 0
  %v2865 = vsel %vm2863, 1, 0
  %2866 = vset.pattern.permute.xlu0 1
  %2867 = vperm.xlu0 %2866, %v2864
  %v2868 = vpop.permute.xlu0 %2867
  %2869 = vset.pattern.permute.xlu0 1
  %2870 = vperm.xlu0 %2869, %v2865
  %v2871 = vpop.permute.xlu0 %2870
  %vm2872 = vcmp.eq.s32.totalorder %v2868, 1
  %vm2873 = vcmp.eq.s32.totalorder %v2871, 1
  %vm2874 = vmand %vm2692, %vm2872
  %vm2875 = vmand %vm2692, %vm2873
  %vm2876 = vmor %vm2860, %vm2874
  %vm2877 = vmor %vm2861, %vm2875
  %v2878 = vxor.u32 %v2844, 2147483648
  %v2879 = vxor.u32 %v2849, 2147483648
  %v2880 = vmul.f32 %v2878, 1.442695
  %v2881 = vpow.pop %v2880
  %v2882 = vmul.f32 %v2879, 1.442695
  %v2883 = vpow.pop %v2882
  %v2884 = vadd.f32 %v2881, 1.0
  %v2885 = vadd.f32 %v2883, 1.0
  %v2886 = vrcp.pop %v2884
  %v2887 = vmul.f32 1.0, %v2886
  %v2888 = vrcp.pop %v2885
  %v2889 = vmul.f32 1.0, %v2888
  %v2890 = vtanh.pop %v2844
  %v2891 = vtanh.pop %v2849
  %v2892 = vmul.f32 %v2887, 0.0
  %v2893 = vmul.f32 %v2889, 0.0
  %2896 = vrot.lane.b32.xlu0 %v2890, 64
  %v2897 = vpop.permute.xlu0 %2896
  %2898 = vrot.lane.b32.xlu0 %v2891, 64
  %v2899 = vpop.permute.xlu0 %2898
  %v2902 = vmul.f32 %v2887, %v2897
  %v2903 = vmul.f32 %v2889, %v2899
  %2906 = vrot.lane.b32.xlu0 %v2902, 32
  %v2907 = vpop.permute.xlu0 %2906
  %2908 = vrot.lane.b32.xlu0 %v2903, 32
  %v2909 = vpop.permute.xlu0 %2908
  %v2912 = vadd.f32 %v2892, %v2907
  %v2913 = vadd.f32 %v2893, %v2909
  %v2914 = vtanh.pop %v2912
  %v2915 = vtanh.pop %v2913
  %2918 = vrot.lane.b32.xlu0 %v2914, 64
  %v2919 = vpop.permute.xlu0 %2918
  %2920 = vrot.lane.b32.xlu0 %v2915, 64
  %v2921 = vpop.permute.xlu0 %2920
  %v2924 = vmul.f32 %v2887, %v2919
  %v2925 = vmul.f32 %v2889, %v2921
  %2928 = vrot.lane.b32.xlu0 %v2924, 32
  %v2929 = vpop.permute.xlu0 %2928
  %2930 = vrot.lane.b32.xlu0 %v2925, 32
  %v2931 = vpop.permute.xlu0 %2930
  %v2934 = vsel %vm2876, %v2929, 0.0
  %v2935 = vsel %vm2877, %v2931, 0.0
  %2938 = vrot.lane.b32.xlu0 %v2912, 96
  %v2939 = vpop.permute.xlu0 %2938
  %2940 = vrot.lane.b32.xlu0 %v2913, 96
  %v2941 = vpop.permute.xlu0 %2940
  %v2944 = vsel %vm2876, %v2939, 0.0
  %v2945 = vsel %vm2877, %v2941, 0.0
  %s2946 = scalar_lea.vmem [#allocation2], 16
  %v2947 = vld [vmem:[%s2946] sm:$0xff]
  %v2948 = vld [vmem:[%s2946 + $0x8] sm:$0xff]
  %v2950 = vsel %vm2510, %v2763, 0
  %v2953 = vsel %vm2510, %v2764, 0
  %2955 = vmatprep.subr.mxu0 0.0
  %2956 = vmatpush1.msra.mxu0 0.0
  %2957 = vmatprep.subr.mxu0 0.0
  %2958 = vmatpush1.msra.mxu0 0.0
  %2959 = vmatprep.subr.mxu0 0.0
  %2960 = vmatpush1.msra.mxu0 0.0
  %2961 = vmatprep.subr.mxu0 0.0
  %2962 = vmatpush1.msra.mxu0 0.0
  %2963 = vmatprep.subr.mxu0 0.0
  %2964 = vmatpush1.msra.mxu0 0.0
  %2965 = vmatprep.subr.mxu0 0.0
  %2966 = vmatpush1.msra.mxu0 0.0
  %2967 = vmatprep.subr.mxu0 0.0
  %2968 = vmatpush1.msra.mxu0 0.0
  %2969 = vmatprep.subr.mxu0 0.0
  %2970 = vmatpush1.msra.mxu0 0.0
  %2971 = vmatprep.subr.mxu0 0.0
  %2972 = vmatpush1.msra.mxu0 0.0
  %2973 = vmatprep.subr.mxu0 0.0
  %2974 = vmatpush1.msra.mxu0 0.0
  %2975 = vmatprep.subr.mxu0 0.0
  %2976 = vmatpush1.msra.mxu0 0.0
  %2977 = vmatprep.subr.mxu0 0.0
  %2978 = vmatpush1.msra.mxu0 0.0
  %2979 = vmatprep.subr.mxu0 0.0
  %2980 = vmatpush1.msra.mxu0 %v2499
  %2981 = vmatprep.subr.mxu0 0.0
  %2982 = vmatpush1.msra.mxu0 %v2498
  %2983 = vmatprep.subr.mxu0 0.0
  %2984 = vmatpush1.msra.mxu0 %v2497
  %2985 = vmatprep.subr.mxu0 0.0
  %2986 = vmatpush1.msra.mxu0 %v2496
  %2987 = vmatprep.subr.mxu0 0.0
  %2988 = vmatpush2.msra.mxu0 0.0
  %2989 = vmatprep.subr.mxu0 0.0
  %2990 = vmatpush2.msra.mxu0 0.0
  %2991 = vmatprep.subr.mxu0 0.0
  %2992 = vmatpush2.msra.mxu0 0.0
  %2993 = vmatprep.subr.mxu0 0.0
  %2994 = vmatpush2.msra.mxu0 0.0
  %2995 = vmatprep.subr.mxu0 0.0
  %2996 = vmatpush2.msra.mxu0 0.0
  %2997 = vmatprep.subr.mxu0 0.0
  %2998 = vmatpush2.msra.mxu0 0.0
  %2999 = vmatprep.subr.mxu0 0.0
  %3000 = vmatpush2.msra.mxu0 0.0
  %3001 = vmatprep.subr.mxu0 0.0
  %3002 = vmatpush2.msra.mxu0 0.0
  %3003 = vmatprep.subr.mxu0 0.0
  %3004 = vmatpush2.msra.mxu0 0.0
  %3005 = vmatprep.subr.mxu0 0.0
  %3006 = vmatpush2.msra.mxu0 0.0
  %3007 = vmatprep.subr.mxu0 0.0
  %3008 = vmatpush2.msra.mxu0 0.0
  %3009 = vmatprep.subr.mxu0 0.0
  %3010 = vmatpush2.msra.mxu0 0.0
  %3011 = vmatprep.subr.mxu0 0.0
  %3012 = vmatpush2.msra.mxu0 0.0
  %3013 = vmatprep.subr.mxu0 0.0
  %3014 = vmatpush2.msra.mxu0 0.0
  %3015 = vmatprep.subr.mxu0 0.0
  %3016 = vmatpush2.msra.mxu0 0.0
  %3017 = vmatprep.subr.mxu0 0.0
  %3018 = vmatpush2.msra.mxu0 0.0
  %3019 = vmatprep.mubr.f32.mxu0 0.0
  %3020 = vmatmul.mubr.f32.gmra.mxu0 %v2950
  %v3021 = vpop.f32.mrf.mxu0
  %v3022 = vadd.f32 0.0, %v3021
  %v3023 = vpop.f32.mrf.mxu0
  %3024 = vmatprep.mubr.f32.mxu0 0.0
  %3025 = vmatmul.mubr.f32.gmra.mxu0 %v2953
  %v3026 = vpop.f32.mrf.mxu0
  %v3027 = vadd.f32 0.0, %v3026
  %v3028 = vpop.f32.mrf.mxu0
  %3029 = vdwg.mxu0
  %3030 = vmatprep.subr.mxu0 0.0
  %3031 = vmatpush1.msra.mxu0 0.0
  %3032 = vmatprep.subr.mxu0 0.0
  %3033 = vmatpush1.msra.mxu0 0.0
  %3034 = vmatprep.subr.mxu0 0.0
  %3035 = vmatpush1.msra.mxu0 0.0
  %3036 = vmatprep.subr.mxu0 0.0
  %3037 = vmatpush1.msra.mxu0 0.0
  %3038 = vmatprep.subr.mxu0 0.0
  %3039 = vmatpush1.msra.mxu0 0.0
  %3040 = vmatprep.subr.mxu0 0.0
  %3041 = vmatpush1.msra.mxu0 0.0
  %3042 = vmatprep.subr.mxu0 0.0
  %3043 = vmatpush1.msra.mxu0 0.0
  %3044 = vmatprep.subr.mxu0 0.0
  %3045 = vmatpush1.msra.mxu0 0.0
  %3046 = vmatprep.subr.mxu0 0.0
  %3047 = vmatpush1.msra.mxu0 0.0
  %3048 = vmatprep.subr.mxu0 0.0
  %3049 = vmatpush1.msra.mxu0 0.0
  %3050 = vmatprep.subr.mxu0 0.0
  %3051 = vmatpush1.msra.mxu0 0.0
  %3052 = vmatprep.subr.mxu0 0.0
  %3053 = vmatpush1.msra.mxu0 0.0
  %3054 = vmatprep.subr.mxu0 0.0
  %3055 = vmatpush1.msra.mxu0 %v2503
  %3056 = vmatprep.subr.mxu0 0.0
  %3057 = vmatpush1.msra.mxu0 %v2502
  %3058 = vmatprep.subr.mxu0 0.0
  %3059 = vmatpush1.msra.mxu0 %v2501
  %3060 = vmatprep.subr.mxu0 0.0
  %3061 = vmatpush1.msra.mxu0 %v2500
  %3062 = vmatprep.subr.mxu0 0.0
  %3063 = vmatpush2.msra.mxu0 0.0
  %3064 = vmatprep.subr.mxu0 0.0
  %3065 = vmatpush2.msra.mxu0 0.0
  %3066 = vmatprep.subr.mxu0 0.0
  %3067 = vmatpush2.msra.mxu0 0.0
  %3068 = vmatprep.subr.mxu0 0.0
  %3069 = vmatpush2.msra.mxu0 0.0
  %3070 = vmatprep.subr.mxu0 0.0
  %3071 = vmatpush2.msra.mxu0 0.0
  %3072 = vmatprep.subr.mxu0 0.0
  %3073 = vmatpush2.msra.mxu0 0.0
  %3074 = vmatprep.subr.mxu0 0.0
  %3075 = vmatpush2.msra.mxu0 0.0
  %3076 = vmatprep.subr.mxu0 0.0
  %3077 = vmatpush2.msra.mxu0 0.0
  %3078 = vmatprep.subr.mxu0 0.0
  %3079 = vmatpush2.msra.mxu0 0.0
  %3080 = vmatprep.subr.mxu0 0.0
  %3081 = vmatpush2.msra.mxu0 0.0
  %3082 = vmatprep.subr.mxu0 0.0
  %3083 = vmatpush2.msra.mxu0 0.0
  %3084 = vmatprep.subr.mxu0 0.0
  %3085 = vmatpush2.msra.mxu0 0.0
  %3086 = vmatprep.subr.mxu0 0.0
  %3087 = vmatpush2.msra.mxu0 0.0
  %3088 = vmatprep.subr.mxu0 0.0
  %3089 = vmatpush2.msra.mxu0 0.0
  %3090 = vmatprep.subr.mxu0 0.0
  %3091 = vmatpush2.msra.mxu0 0.0
  %3092 = vmatprep.subr.mxu0 0.0
  %3093 = vmatpush2.msra.mxu0 0.0
  %3094 = vmatprep.mubr.f32.mxu0 0.0
  %3095 = vmatmul.mubr.f32.gmra.mxu0 %v2950
  %v3096 = vpop.f32.mrf.mxu0
  %v3097 = vadd.f32 0.0, %v3096
  %v3098 = vpop.f32.mrf.mxu0
  %3099 = vmatprep.mubr.f32.mxu0 0.0
  %3100 = vmatmul.mubr.f32.gmra.mxu0 %v2953
  %v3101 = vpop.f32.mrf.mxu0
  %v3102 = vadd.f32 0.0, %v3101
  %v3103 = vpop.f32.mrf.mxu0
  %3104 = vdwg.mxu0
  %v3105 = vsel %vm2666, %v3022, %v3097
  %v3106 = vsel %vm2667, %v3027, %v3102
  %v3107 = vadd.f32 %v3105, %v2947
  %v3108 = vadd.f32 %v3106, %v2948
  %vm3109 = vcmp.gt.s32.totalorder %v2488, 1
  %vm3110 = vcmp.gt.s32.totalorder %v2489, 1
  %v3111 = vsel %vm3109, 1, 0
  %v3112 = vsel %vm3110, 1, 0
  %3113 = vset.pattern.permute.xlu0 0
  %3114 = vperm.xlu0 %3113, %v3111
  %v3115 = vpop.permute.xlu0 %3114
  %3116 = vset.pattern.permute.xlu0 0
  %3117 = vperm.xlu0 %3116, %v3112
  %v3118 = vpop.permute.xlu0 %3117
  %vm3119 = vcmp.eq.s32.totalorder %v3115, 1
  %vm3120 = vcmp.eq.s32.totalorder %v3118, 1
  %vm3121 = vmand %vm2675, %vm3119
  %vm3122 = vmand %vm2675, %vm3120
  %3123 = vset.pattern.permute.xlu0 0
  %3124 = vperm.xlu0 %3123, %v2864
  %v3125 = vpop.permute.xlu0 %3124
  %3126 = vset.pattern.permute.xlu0 0
  %3127 = vperm.xlu0 %3126, %v2865
  %v3128 = vpop.permute.xlu0 %3127
  %vm3129 = vcmp.eq.s32.totalorder %v3125, 1
  %vm3130 = vcmp.eq.s32.totalorder %v3128, 1
  %vm3131 = vmand %vm2692, %vm3129
  %vm3132 = vmand %vm2692, %vm3130
  %vm3133 = vmor %vm3121, %vm3131
  %vm3134 = vmor %vm3122, %vm3132
  %v3135 = vxor.u32 %v3107, 2147483648
  %v3136 = vxor.u32 %v3108, 2147483648
  %v3137 = vmul.f32 %v3135, 1.442695
  %v3138 = vpow.pop %v3137
  %v3139 = vmul.f32 %v3136, 1.442695
  %v3140 = vpow.pop %v3139
  %v3141 = vadd.f32 %v3138, 1.0
  %v3142 = vadd.f32 %v3140, 1.0
  %v3143 = vrcp.pop %v3141
  %v3144 = vmul.f32 1.0, %v3143
  %v3145 = vrcp.pop %v3142
  %v3146 = vmul.f32 1.0, %v3145
  %v3147 = vtanh.pop %v3107
  %v3148 = vtanh.pop %v3108
  %3151 = vrot.lane.b32.xlu0 %v2773, 32
  %v3152 = vpop.permute.xlu0 %3151
  %3153 = vrot.lane.b32.xlu0 %v2774, 32
  %v3154 = vpop.permute.xlu0 %3153
  %v3157 = vmul.f32 %v3144, %v3152
  %v3158 = vmul.f32 %v3146, %v3154
  %3161 = vrot.lane.b32.xlu0 %v3147, 64
  %v3162 = vpop.permute.xlu0 %3161
  %3163 = vrot.lane.b32.xlu0 %v3148, 64
  %v3164 = vpop.permute.xlu0 %3163
  %v3167 = vmul.f32 %v3144, %v3162
  %v3168 = vmul.f32 %v3146, %v3164
  %3171 = vrot.lane.b32.xlu0 %v3167, 32
  %v3172 = vpop.permute.xlu0 %3171
  %3173 = vrot.lane.b32.xlu0 %v3168, 32
  %v3174 = vpop.permute.xlu0 %3173
  %v3177 = vadd.f32 %v3157, %v3172
  %v3178 = vadd.f32 %v3158, %v3174
  %v3179 = vtanh.pop %v3177
  %v3180 = vtanh.pop %v3178
  %3183 = vrot.lane.b32.xlu0 %v3179, 64
  %v3184 = vpop.permute.xlu0 %3183
  %3185 = vrot.lane.b32.xlu0 %v3180, 64
  %v3186 = vpop.permute.xlu0 %3185
  %v3189 = vmul.f32 %v3144, %v3184
  %v3190 = vmul.f32 %v3146, %v3186
  %3193 = vrot.lane.b32.xlu0 %v3189, 32
  %v3194 = vpop.permute.xlu0 %3193
  %3195 = vrot.lane.b32.xlu0 %v3190, 32
  %v3196 = vpop.permute.xlu0 %3195
  %v3199 = vsel %vm3133, %v3194, %v2763
  %v3200 = vsel %vm3134, %v3196, %v2764
  %3203 = vrot.lane.b32.xlu0 %v3177, 96
  %v3204 = vpop.permute.xlu0 %3203
  %3205 = vrot.lane.b32.xlu0 %v3178, 96
  %v3206 = vpop.permute.xlu0 %3205
  %v3209 = vsel %vm3133, %v3204, %v2773
  %v3210 = vsel %vm3134, %v3206, %v2774
  %s3211 = scalar_lea.vmem [#allocation3], 16
  %v3212 = vld [vmem:[%s3211] sm:$0xff]
  %v3213 = vld [vmem:[%s3211 + $0x8] sm:$0xff]
  %v3215 = vsel %vm2510, %v2934, 0
  %v3218 = vsel %vm2510, %v2935, 0
  %3220 = vmatprep.subr.mxu0 0.0
  %3221 = vmatpush1.msra.mxu0 0.0
  %3222 = vmatprep.subr.mxu0 0.0
  %3223 = vmatpush1.msra.mxu0 0.0
  %3224 = vmatprep.subr.mxu0 0.0
  %3225 = vmatpush1.msra.mxu0 0.0
  %3226 = vmatprep.subr.mxu0 0.0
  %3227 = vmatpush1.msra.mxu0 0.0
  %3228 = vmatprep.subr.mxu0 0.0
  %3229 = vmatpush1.msra.mxu0 0.0
  %3230 = vmatprep.subr.mxu0 0.0
  %3231 = vmatpush1.msra.mxu0 0.0
  %3232 = vmatprep.subr.mxu0 0.0
  %3233 = vmatpush1.msra.mxu0 0.0
  %3234 = vmatprep.subr.mxu0 0.0
  %3235 = vmatpush1.msra.mxu0 0.0
  %3236 = vmatprep.subr.mxu0 0.0
  %3237 = vmatpush1.msra.mxu0 0.0
  %3238 = vmatprep.subr.mxu0 0.0
  %3239 = vmatpush1.msra.mxu0 0.0
  %3240 = vmatprep.subr.mxu0 0.0
  %3241 = vmatpush1.msra.mxu0 0.0
  %3242 = vmatprep.subr.mxu0 0.0
  %3243 = vmatpush1.msra.mxu0 0.0
  %3244 = vmatprep.subr.mxu0 0.0
  %3245 = vmatpush1.msra.mxu0 %v2507
  %3246 = vmatprep.subr.mxu0 0.0
  %3247 = vmatpush1.msra.mxu0 %v2506
  %3248 = vmatprep.subr.mxu0 0.0
  %3249 = vmatpush1.msra.mxu0 %v2505
  %3250 = vmatprep.subr.mxu0 0.0
  %3251 = vmatpush1.msra.mxu0 %v2504
  %3252 = vmatprep.subr.mxu0 0.0
  %3253 = vmatpush2.msra.mxu0 0.0
  %3254 = vmatprep.subr.mxu0 0.0
  %3255 = vmatpush2.msra.mxu0 0.0
  %3256 = vmatprep.subr.mxu0 0.0
  %3257 = vmatpush2.msra.mxu0 0.0
  %3258 = vmatprep.subr.mxu0 0.0
  %3259 = vmatpush2.msra.mxu0 0.0
  %3260 = vmatprep.subr.mxu0 0.0
  %3261 = vmatpush2.msra.mxu0 0.0
  %3262 = vmatprep.subr.mxu0 0.0
  %3263 = vmatpush2.msra.mxu0 0.0
  %3264 = vmatprep.subr.mxu0 0.0
  %3265 = vmatpush2.msra.mxu0 0.0
  %3266 = vmatprep.subr.mxu0 0.0
  %3267 = vmatpush2.msra.mxu0 0.0
  %3268 = vmatprep.subr.mxu0 0.0
  %3269 = vmatpush2.msra.mxu0 0.0
  %3270 = vmatprep.subr.mxu0 0.0
  %3271 = vmatpush2.msra.mxu0 0.0
  %3272 = vmatprep.subr.mxu0 0.0
  %3273 = vmatpush2.msra.mxu0 0.0
  %3274 = vmatprep.subr.mxu0 0.0
  %3275 = vmatpush2.msra.mxu0 0.0
  %3276 = vmatprep.subr.mxu0 0.0
  %3277 = vmatpush2.msra.mxu0 0.0
  %3278 = vmatprep.subr.mxu0 0.0
  %3279 = vmatpush2.msra.mxu0 0.0
  %3280 = vmatprep.subr.mxu0 0.0
  %3281 = vmatpush2.msra.mxu0 0.0
  %3282 = vmatprep.subr.mxu0 0.0
  %3283 = vmatpush2.msra.mxu0 0.0
  %3284 = vmatprep.mubr.f32.mxu0 0.0
  %3285 = vmatmul.mubr.f32.gmra.mxu0 %v3215
  %v3286 = vpop.f32.mrf.mxu0
  %v3287 = vadd.f32 %v3212, %v3286
  %v3288 = vpop.f32.mrf.mxu0
  %3289 = vmatprep.mubr.f32.mxu0 0.0
  %3290 = vmatmul.mubr.f32.gmra.mxu0 %v3218
  %v3291 = vpop.f32.mrf.mxu0
  %v3292 = vadd.f32 %v3213, %v3291
  %v3293 = vpop.f32.mrf.mxu0
  %3294 = vdwg.mxu0
  %3295 = vset.pattern.permute.xlu0 1
  %3296 = vperm.xlu0 %3295, %v3111
  %v3297 = vpop.permute.xlu0 %3296
  %3298 = vset.pattern.permute.xlu0 1
  %3299 = vperm.xlu0 %3298, %v3112
  %v3300 = vpop.permute.xlu0 %3299
  %vm3301 = vcmp.eq.s32.totalorder %v3297, 1
  %vm3302 = vcmp.eq.s32.totalorder %v3300, 1
  %vm3303 = vmand %vm2675, %vm3301
  %vm3304 = vmand %vm2675, %vm3302
  %vm3305 = vcmp.gt.s32.totalorder %v2488, 3
  %vm3306 = vcmp.gt.s32.totalorder %v2489, 3
  %v3307 = vsel %vm3305, 1, 0
  %v3308 = vsel %vm3306, 1, 0
  %3309 = vset.pattern.permute.xlu0 1
  %3310 = vperm.xlu0 %3309, %v3307
  %v3311 = vpop.permute.xlu0 %3310
  %3312 = vset.pattern.permute.xlu0 1
  %3313 = vperm.xlu0 %3312, %v3308
  %v3314 = vpop.permute.xlu0 %3313
  %vm3315 = vcmp.eq.s32.totalorder %v3311, 1
  %vm3316 = vcmp.eq.s32.totalorder %v3314, 1
  %vm3317 = vmand %vm2692, %vm3315
  %vm3318 = vmand %vm2692, %vm3316
  %vm3319 = vmor %vm3303, %vm3317
  %vm3320 = vmor %vm3304, %vm3318
  %v3321 = vxor.u32 %v3287, 2147483648
  %v3322 = vxor.u32 %v3292, 2147483648
  %v3323 = vmul.f32 %v3321, 1.442695
  %v3324 = vpow.pop %v3323
  %v3325 = vmul.f32 %v3322, 1.442695
  %v3326 = vpow.pop %v3325
  %v3327 = vadd.f32 %v3324, 1.0
  %v3328 = vadd.f32 %v3326, 1.0
  %v3329 = vrcp.pop %v3327
  %v3330 = vmul.f32 1.0, %v3329
  %v3331 = vrcp.pop %v3328
  %v3332 = vmul.f32 1.0, %v3331
  %v3333 = vtanh.pop %v3287
  %v3334 = vtanh.pop %v3292
  %3337 = vrot.lane.b32.xlu0 %v2944, 32
  %v3338 = vpop.permute.xlu0 %3337
  %3339 = vrot.lane.b32.xlu0 %v2945, 32
  %v3340 = vpop.permute.xlu0 %3339
  %v3343 = vmul.f32 %v3330, %v3338
  %v3344 = vmul.f32 %v3332, %v3340
  %3347 = vrot.lane.b32.xlu0 %v3333, 64
  %v3348 = vpop.permute.xlu0 %3347
  %3349 = vrot.lane.b32.xlu0 %v3334, 64
  %v3350 = vpop.permute.xlu0 %3349
  %v3353 = vmul.f32 %v3330, %v3348
  %v3354 = vmul.f32 %v3332, %v3350
  %3357 = vrot.lane.b32.xlu0 %v3353, 32
  %v3358 = vpop.permute.xlu0 %3357
  %3359 = vrot.lane.b32.xlu0 %v3354, 32
  %v3360 = vpop.permute.xlu0 %3359
  %v3363 = vadd.f32 %v3343, %v3358
  %v3364 = vadd.f32 %v3344, %v3360
  %v3365 = vtanh.pop %v3363
  %v3366 = vtanh.pop %v3364
  %3369 = vrot.lane.b32.xlu0 %v3365, 64
  %v3370 = vpop.permute.xlu0 %3369
  %3371 = vrot.lane.b32.xlu0 %v3366, 64
  %v3372 = vpop.permute.xlu0 %3371
  %v3375 = vmul.f32 %v3330, %v3370
  %v3376 = vmul.f32 %v3332, %v3372
  %3379 = vrot.lane.b32.xlu0 %v3375, 32
  %v3380 = vpop.permute.xlu0 %3379
  %3381 = vrot.lane.b32.xlu0 %v3376, 32
  %v3382 = vpop.permute.xlu0 %3381
  %v3385 = vsel %vm3319, %v3380, %v2934
  %v3386 = vsel %vm3320, %v3382, %v2935
  %3389 = vrot.lane.b32.xlu0 %v3363, 96
  %v3390 = vpop.permute.xlu0 %3389
  %3391 = vrot.lane.b32.xlu0 %v3364, 96
  %v3392 = vpop.permute.xlu0 %3391
  %v3395 = vsel %vm3319, %v3390, %v2944
  %v3396 = vsel %vm3320, %v3392, %v2945
  %s3397 = scalar_lea.vmem [#allocation2], 32
  %v3398 = vld [vmem:[%s3397] sm:$0xff]
  %v3399 = vld [vmem:[%s3397 + $0x8] sm:$0xff]
  %v3401 = vsel %vm2510, %v3199, 0
  %v3404 = vsel %vm2510, %v3200, 0
  %3406 = vmatprep.subr.mxu0 0.0
  %3407 = vmatpush1.msra.mxu0 0.0
  %3408 = vmatprep.subr.mxu0 0.0
  %3409 = vmatpush1.msra.mxu0 0.0
  %3410 = vmatprep.subr.mxu0 0.0
  %3411 = vmatpush1.msra.mxu0 0.0
  %3412 = vmatprep.subr.mxu0 0.0
  %3413 = vmatpush1.msra.mxu0 0.0
  %3414 = vmatprep.subr.mxu0 0.0
  %3415 = vmatpush1.msra.mxu0 0.0
  %3416 = vmatprep.subr.mxu0 0.0
  %3417 = vmatpush1.msra.mxu0 0.0
  %3418 = vmatprep.subr.mxu0 0.0
  %3419 = vmatpush1.msra.mxu0 0.0
  %3420 = vmatprep.subr.mxu0 0.0
  %3421 = vmatpush1.msra.mxu0 0.0
  %3422 = vmatprep.subr.mxu0 0.0
  %3423 = vmatpush1.msra.mxu0 0.0
  %3424 = vmatprep.subr.mxu0 0.0
  %3425 = vmatpush1.msra.mxu0 0.0
  %3426 = vmatprep.subr.mxu0 0.0
  %3427 = vmatpush1.msra.mxu0 0.0
  %3428 = vmatprep.subr.mxu0 0.0
  %3429 = vmatpush1.msra.mxu0 0.0
  %3430 = vmatprep.subr.mxu0 0.0
  %3431 = vmatpush1.msra.mxu0 %v2499
  %3432 = vmatprep.subr.mxu0 0.0
  %3433 = vmatpush1.msra.mxu0 %v2498
  %3434 = vmatprep.subr.mxu0 0.0
  %3435 = vmatpush1.msra.mxu0 %v2497
  %3436 = vmatprep.subr.mxu0 0.0
  %3437 = vmatpush1.msra.mxu0 %v2496
  %3438 = vmatprep.subr.mxu0 0.0
  %3439 = vmatpush2.msra.mxu0 0.0
  %3440 = vmatprep.subr.mxu0 0.0
  %3441 = vmatpush2.msra.mxu0 0.0
  %3442 = vmatprep.subr.mxu0 0.0
  %3443 = vmatpush2.msra.mxu0 0.0
  %3444 = vmatprep.subr.mxu0 0.0
  %3445 = vmatpush2.msra.mxu0 0.0
  %3446 = vmatprep.subr.mxu0 0.0
  %3447 = vmatpush2.msra.mxu0 0.0
  %3448 = vmatprep.subr.mxu0 0.0
  %3449 = vmatpush2.msra.mxu0 0.0
  %3450 = vmatprep.subr.mxu0 0.0
  %3451 = vmatpush2.msra.mxu0 0.0
  %3452 = vmatprep.subr.mxu0 0.0
  %3453 = vmatpush2.msra.mxu0 0.0
  %3454 = vmatprep.subr.mxu0 0.0
  %3455 = vmatpush2.msra.mxu0 0.0
  %3456 = vmatprep.subr.mxu0 0.0
  %3457 = vmatpush2.msra.mxu0 0.0
  %3458 = vmatprep.subr.mxu0 0.0
  %3459 = vmatpush2.msra.mxu0 0.0
  %3460 = vmatprep.subr.mxu0 0.0
  %3461 = vmatpush2.msra.mxu0 0.0
  %3462 = vmatprep.subr.mxu0 0.0
  %3463 = vmatpush2.msra.mxu0 0.0
  %3464 = vmatprep.subr.mxu0 0.0
  %3465 = vmatpush2.msra.mxu0 0.0
  %3466 = vmatprep.subr.mxu0 0.0
  %3467 = vmatpush2.msra.mxu0 0.0
  %3468 = vmatprep.subr.mxu0 0.0
  %3469 = vmatpush2.msra.mxu0 0.0
  %3470 = vmatprep.mubr.f32.mxu0 0.0
  %3471 = vmatmul.mubr.f32.gmra.mxu0 %v3401
  %v3472 = vpop.f32.mrf.mxu0
  %v3473 = vadd.f32 0.0, %v3472
  %v3474 = vpop.f32.mrf.mxu0
  %3475 = vmatprep.mubr.f32.mxu0 0.0
  %3476 = vmatmul.mubr.f32.gmra.mxu0 %v3404
  %v3477 = vpop.f32.mrf.mxu0
  %v3478 = vadd.f32 0.0, %v3477
  %v3479 = vpop.f32.mrf.mxu0
  %3480 = vdwg.mxu0
  %3481 = vmatprep.subr.mxu0 0.0
  %3482 = vmatpush1.msra.mxu0 0.0
  %3483 = vmatprep.subr.mxu0 0.0
  %3484 = vmatpush1.msra.mxu0 0.0
  %3485 = vmatprep.subr.mxu0 0.0
  %3486 = vmatpush1.msra.mxu0 0.0
  %3487 = vmatprep.subr.mxu0 0.0
  %3488 = vmatpush1.msra.mxu0 0.0
  %3489 = vmatprep.subr.mxu0 0.0
  %3490 = vmatpush1.msra.mxu0 0.0
  %3491 = vmatprep.subr.mxu0 0.0
  %3492 = vmatpush1.msra.mxu0 0.0
  %3493 = vmatprep.subr.mxu0 0.0
  %3494 = vmatpush1.msra.mxu0 0.0
  %3495 = vmatprep.subr.mxu0 0.0
  %3496 = vmatpush1.msra.mxu0 0.0
  %3497 = vmatprep.subr.mxu0 0.0
  %3498 = vmatpush1.msra.mxu0 0.0
  %3499 = vmatprep.subr.mxu0 0.0
  %3500 = vmatpush1.msra.mxu0 0.0
  %3501 = vmatprep.subr.mxu0 0.0
  %3502 = vmatpush1.msra.mxu0 0.0
  %3503 = vmatprep.subr.mxu0 0.0
  %3504 = vmatpush1.msra.mxu0 0.0
  %3505 = vmatprep.subr.mxu0 0.0
  %3506 = vmatpush1.msra.mxu0 %v2503
  %3507 = vmatprep.subr.mxu0 0.0
  %3508 = vmatpush1.msra.mxu0 %v2502
  %3509 = vmatprep.subr.mxu0 0.0
  %3510 = vmatpush1.msra.mxu0 %v2501
  %3511 = vmatprep.subr.mxu0 0.0
  %3512 = vmatpush1.msra.mxu0 %v2500
  %3513 = vmatprep.subr.mxu0 0.0
  %3514 = vmatpush2.msra.mxu0 0.0
  %3515 = vmatprep.subr.mxu0 0.0
  %3516 = vmatpush2.msra.mxu0 0.0
  %3517 = vmatprep.subr.mxu0 0.0
  %3518 = vmatpush2.msra.mxu0 0.0
  %3519 = vmatprep.subr.mxu0 0.0
  %3520 = vmatpush2.msra.mxu0 0.0
  %3521 = vmatprep.subr.mxu0 0.0
  %3522 = vmatpush2.msra.mxu0 0.0
  %3523 = vmatprep.subr.mxu0 0.0
  %3524 = vmatpush2.msra.mxu0 0.0
  %3525 = vmatprep.subr.mxu0 0.0
  %3526 = vmatpush2.msra.mxu0 0.0
  %3527 = vmatprep.subr.mxu0 0.0
  %3528 = vmatpush2.msra.mxu0 0.0
  %3529 = vmatprep.subr.mxu0 0.0
  %3530 = vmatpush2.msra.mxu0 0.0
  %3531 = vmatprep.subr.mxu0 0.0
  %3532 = vmatpush2.msra.mxu0 0.0
  %3533 = vmatprep.subr.mxu0 0.0
  %3534 = vmatpush2.msra.mxu0 0.0
  %3535 = vmatprep.subr.mxu0 0.0
  %3536 = vmatpush2.msra.mxu0 0.0
  %3537 = vmatprep.subr.mxu0 0.0
  %3538 = vmatpush2.msra.mxu0 0.0
  %3539 = vmatprep.subr.mxu0 0.0
  %3540 = vmatpush2.msra.mxu0 0.0
  %3541 = vmatprep.subr.mxu0 0.0
  %3542 = vmatpush2.msra.mxu0 0.0
  %3543 = vmatprep.subr.mxu0 0.0
  %3544 = vmatpush2.msra.mxu0 0.0
  %3545 = vmatprep.mubr.f32.mxu0 0.0
  %3546 = vmatmul.mubr.f32.gmra.mxu0 %v3401
  %v3547 = vpop.f32.mrf.mxu0
  %v3548 = vadd.f32 0.0, %v3547
  %v3549 = vpop.f32.mrf.mxu0
  %3550 = vmatprep.mubr.f32.mxu0 0.0
  %3551 = vmatmul.mubr.f32.gmra.mxu0 %v3404
  %v3552 = vpop.f32.mrf.mxu0
  %v3553 = vadd.f32 0.0, %v3552
  %v3554 = vpop.f32.mrf.mxu0
  %3555 = vdwg.mxu0
  %v3556 = vsel %vm2666, %v3473, %v3548
  %v3557 = vsel %vm2667, %v3478, %v3553
  %v3558 = vadd.f32 %v3556, %v3398
  %v3559 = vadd.f32 %v3557, %v3399
  %vm3560 = vcmp.gt.s32.totalorder %v2488, 2
  %vm3561 = vcmp.gt.s32.totalorder %v2489, 2
  %v3562 = vsel %vm3560, 1, 0
  %v3563 = vsel %vm3561, 1, 0
  %3564 = vset.pattern.permute.xlu0 0
  %3565 = vperm.xlu0 %3564, %v3562
  %v3566 = vpop.permute.xlu0 %3565
  %3567 = vset.pattern.permute.xlu0 0
  %3568 = vperm.xlu0 %3567, %v3563
  %v3569 = vpop.permute.xlu0 %3568
  %vm3570 = vcmp.eq.s32.totalorder %v3566, 1
  %vm3571 = vcmp.eq.s32.totalorder %v3569, 1
  %vm3572 = vmand %vm2675, %vm3570
  %vm3573 = vmand %vm2675, %vm3571
  %3574 = vset.pattern.permute.xlu0 0
  %3575 = vperm.xlu0 %3574, %v3307
  %v3576 = vpop.permute.xlu0 %3575
  %3577 = vset.pattern.permute.xlu0 0
  %3578 = vperm.xlu0 %3577, %v3308
  %v3579 = vpop.permute.xlu0 %3578
  %vm3580 = vcmp.eq.s32.totalorder %v3576, 1
  %vm3581 = vcmp.eq.s32.totalorder %v3579, 1
  %vm3582 = vmand %vm2692, %vm3580
  %vm3583 = vmand %vm2692, %vm3581
  %vm3584 = vmor %vm3572, %vm3582
  %vm3585 = vmor %vm3573, %vm3583
  %v3586 = vxor.u32 %v3558, 2147483648
  %v3587 = vxor.u32 %v3559, 2147483648
  %v3588 = vmul.f32 %v3586, 1.442695
  %v3589 = vpow.pop %v3588
  %v3590 = vmul.f32 %v3587, 1.442695
  %v3591 = vpow.pop %v3590
  %v3592 = vadd.f32 %v3589, 1.0
  %v3593 = vadd.f32 %v3591, 1.0
  %v3594 = vrcp.pop %v3592
  %v3595 = vmul.f32 1.0, %v3594
  %v3596 = vrcp.pop %v3593
  %v3597 = vmul.f32 1.0, %v3596
  %v3598 = vtanh.pop %v3558
  %v3599 = vtanh.pop %v3559
  %3602 = vrot.lane.b32.xlu0 %v3209, 32
  %v3603 = vpop.permute.xlu0 %3602
  %3604 = vrot.lane.b32.xlu0 %v3210, 32
  %v3605 = vpop.permute.xlu0 %3604
  %v3608 = vmul.f32 %v3595, %v3603
  %v3609 = vmul.f32 %v3597, %v3605
  %3612 = vrot.lane.b32.xlu0 %v3598, 64
  %v3613 = vpop.permute.xlu0 %3612
  %3614 = vrot.lane.b32.xlu0 %v3599, 64
  %v3615 = vpop.permute.xlu0 %3614
  %v3618 = vmul.f32 %v3595, %v3613
  %v3619 = vmul.f32 %v3597, %v3615
  %3622 = vrot.lane.b32.xlu0 %v3618, 32
  %v3623 = vpop.permute.xlu0 %3622
  %3624 = vrot.lane.b32.xlu0 %v3619, 32
  %v3625 = vpop.permute.xlu0 %3624
  %v3628 = vadd.f32 %v3608, %v3623
  %v3629 = vadd.f32 %v3609, %v3625
  %v3630 = vtanh.pop %v3628
  %v3631 = vtanh.pop %v3629
  %3634 = vrot.lane.b32.xlu0 %v3630, 64
  %v3635 = vpop.permute.xlu0 %3634
  %3636 = vrot.lane.b32.xlu0 %v3631, 64
  %v3637 = vpop.permute.xlu0 %3636
  %v3640 = vmul.f32 %v3595, %v3635
  %v3641 = vmul.f32 %v3597, %v3637
  %3644 = vrot.lane.b32.xlu0 %v3640, 32
  %v3645 = vpop.permute.xlu0 %3644
  %3646 = vrot.lane.b32.xlu0 %v3641, 32
  %v3647 = vpop.permute.xlu0 %3646
  %v3650 = vsel %vm3584, %v3645, %v3199
  %v3651 = vsel %vm3585, %v3647, %v3200
  %3654 = vrot.lane.b32.xlu0 %v3628, 96
  %v3655 = vpop.permute.xlu0 %3654
  %3656 = vrot.lane.b32.xlu0 %v3629, 96
  %v3657 = vpop.permute.xlu0 %3656
  %v3660 = vsel %vm3584, %v3655, %v3209
  %v3661 = vsel %vm3585, %v3657, %v3210
  %s3662 = scalar_lea.vmem [#allocation3], 32
  %v3663 = vld [vmem:[%s3662] sm:$0xff]
  %v3664 = vld [vmem:[%s3662 + $0x8] sm:$0xff]
  %v3666 = vsel %vm2510, %v3385, 0
  %v3669 = vsel %vm2510, %v3386, 0
  %3671 = vmatprep.subr.mxu0 0.0
  %3672 = vmatpush1.msra.mxu0 0.0
  %3673 = vmatprep.subr.mxu0 0.0
  %3674 = vmatpush1.msra.mxu0 0.0
  %3675 = vmatprep.subr.mxu0 0.0
  %3676 = vmatpush1.msra.mxu0 0.0
  %3677 = vmatprep.subr.mxu0 0.0
  %3678 = vmatpush1.msra.mxu0 0.0
  %3679 = vmatprep.subr.mxu0 0.0
  %3680 = vmatpush1.msra.mxu0 0.0
  %3681 = vmatprep.subr.mxu0 0.0
  %3682 = vmatpush1.msra.mxu0 0.0
  %3683 = vmatprep.subr.mxu0 0.0
  %3684 = vmatpush1.msra.mxu0 0.0
  %3685 = vmatprep.subr.mxu0 0.0
  %3686 = vmatpush1.msra.mxu0 0.0
  %3687 = vmatprep.subr.mxu0 0.0
  %3688 = vmatpush1.msra.mxu0 0.0
  %3689 = vmatprep.subr.mxu0 0.0
  %3690 = vmatpush1.msra.mxu0 0.0
  %3691 = vmatprep.subr.mxu0 0.0
  %3692 = vmatpush1.msra.mxu0 0.0
  %3693 = vmatprep.subr.mxu0 0.0
  %3694 = vmatpush1.msra.mxu0 0.0
  %3695 = vmatprep.subr.mxu0 0.0
  %3696 = vmatpush1.msra.mxu0 %v2507
  %3697 = vmatprep.subr.mxu0 0.0
  %3698 = vmatpush1.msra.mxu0 %v2506
  %3699 = vmatprep.subr.mxu0 0.0
  %3700 = vmatpush1.msra.mxu0 %v2505
  %3701 = vmatprep.subr.mxu0 0.0
  %3702 = vmatpush1.msra.mxu0 %v2504
  %3703 = vmatprep.subr.mxu0 0.0
  %3704 = vmatpush2.msra.mxu0 0.0
  %3705 = vmatprep.subr.mxu0 0.0
  %3706 = vmatpush2.msra.mxu0 0.0
  %3707 = vmatprep.subr.mxu0 0.0
  %3708 = vmatpush2.msra.mxu0 0.0
  %3709 = vmatprep.subr.mxu0 0.0
  %3710 = vmatpush2.msra.mxu0 0.0
  %3711 = vmatprep.subr.mxu0 0.0
  %3712 = vmatpush2.msra.mxu0 0.0
  %3713 = vmatprep.subr.mxu0 0.0
  %3714 = vmatpush2.msra.mxu0 0.0
  %3715 = vmatprep.subr.mxu0 0.0
  %3716 = vmatpush2.msra.mxu0 0.0
  %3717 = vmatprep.subr.mxu0 0.0
  %3718 = vmatpush2.msra.mxu0 0.0
  %3719 = vmatprep.subr.mxu0 0.0
  %3720 = vmatpush2.msra.mxu0 0.0
  %3721 = vmatprep.subr.mxu0 0.0
  %3722 = vmatpush2.msra.mxu0 0.0
  %3723 = vmatprep.subr.mxu0 0.0
  %3724 = vmatpush2.msra.mxu0 0.0
  %3725 = vmatprep.subr.mxu0 0.0
  %3726 = vmatpush2.msra.mxu0 0.0
  %3727 = vmatprep.subr.mxu0 0.0
  %3728 = vmatpush2.msra.mxu0 0.0
  %3729 = vmatprep.subr.mxu0 0.0
  %3730 = vmatpush2.msra.mxu0 0.0
  %3731 = vmatprep.subr.mxu0 0.0
  %3732 = vmatpush2.msra.mxu0 0.0
  %3733 = vmatprep.subr.mxu0 0.0
  %3734 = vmatpush2.msra.mxu0 0.0
  %3735 = vmatprep.mubr.f32.mxu0 0.0
  %3736 = vmatmul.mubr.f32.gmra.mxu0 %v3666
  %v3737 = vpop.f32.mrf.mxu0
  %v3738 = vadd.f32 %v3663, %v3737
  %v3739 = vpop.f32.mrf.mxu0
  %3740 = vmatprep.mubr.f32.mxu0 0.0
  %3741 = vmatmul.mubr.f32.gmra.mxu0 %v3669
  %v3742 = vpop.f32.mrf.mxu0
  %v3743 = vadd.f32 %v3664, %v3742
  %v3744 = vpop.f32.mrf.mxu0
  %3745 = vdwg.mxu0
  %3746 = vset.pattern.permute.xlu0 1
  %3747 = vperm.xlu0 %3746, %v3562
  %v3748 = vpop.permute.xlu0 %3747
  %3749 = vset.pattern.permute.xlu0 1
  %3750 = vperm.xlu0 %3749, %v3563
  %v3751 = vpop.permute.xlu0 %3750
  %vm3752 = vcmp.eq.s32.totalorder %v3748, 1
  %vm3753 = vcmp.eq.s32.totalorder %v3751, 1
  %vm3754 = vmand %vm2675, %vm3752
  %vm3755 = vmand %vm2675, %vm3753
  %vm3756 = vmand %vm2692, %vm3752
  %vm3757 = vmand %vm2692, %vm3753
  %vm3758 = vmor %vm3754, %vm3756
  %vm3759 = vmor %vm3755, %vm3757
  %v3760 = vxor.u32 %v3738, 2147483648
  %v3761 = vxor.u32 %v3743, 2147483648
  %v3762 = vmul.f32 %v3760, 1.442695
  %v3763 = vpow.pop %v3762
  %v3764 = vmul.f32 %v3761, 1.442695
  %v3765 = vpow.pop %v3764
  %v3766 = vadd.f32 %v3763, 1.0
  %v3767 = vadd.f32 %v3765, 1.0
  %v3768 = vrcp.pop %v3766
  %v3769 = vmul.f32 1.0, %v3768
  %v3770 = vrcp.pop %v3767
  %v3771 = vmul.f32 1.0, %v3770
  %v3772 = vtanh.pop %v3738
  %v3773 = vtanh.pop %v3743
  %3776 = vrot.lane.b32.xlu0 %v3395, 32
  %v3777 = vpop.permute.xlu0 %3776
  %3778 = vrot.lane.b32.xlu0 %v3396, 32
  %v3779 = vpop.permute.xlu0 %3778
  %v3782 = vmul.f32 %v3769, %v3777
  %v3783 = vmul.f32 %v3771, %v3779
  %3786 = vrot.lane.b32.xlu0 %v3772, 64
  %v3787 = vpop.permute.xlu0 %3786
  %3788 = vrot.lane.b32.xlu0 %v3773, 64
  %v3789 = vpop.permute.xlu0 %3788
  %v3792 = vmul.f32 %v3769, %v3787
  %v3793 = vmul.f32 %v3771, %v3789
  %3796 = vrot.lane.b32.xlu0 %v3792, 32
  %v3797 = vpop.permute.xlu0 %3796
  %3798 = vrot.lane.b32.xlu0 %v3793, 32
  %v3799 = vpop.permute.xlu0 %3798
  %v3802 = vadd.f32 %v3782, %v3797
  %v3803 = vadd.f32 %v3783, %v3799
  %v3804 = vtanh.pop %v3802
  %v3805 = vtanh.pop %v3803
  %3808 = vrot.lane.b32.xlu0 %v3804, 64
  %v3809 = vpop.permute.xlu0 %3808
  %3810 = vrot.lane.b32.xlu0 %v3805, 64
  %v3811 = vpop.permute.xlu0 %3810
  %v3814 = vmul.f32 %v3769, %v3809
  %v3815 = vmul.f32 %v3771, %v3811
  %3818 = vrot.lane.b32.xlu0 %v3814, 32
  %v3819 = vpop.permute.xlu0 %3818
  %3820 = vrot.lane.b32.xlu0 %v3815, 32
  %v3821 = vpop.permute.xlu0 %3820
  %v3824 = vsel %vm3758, %v3819, %v3385
  %v3825 = vsel %vm3759, %v3821, %v3386
  %3828 = vrot.lane.b32.xlu0 %v3802, 96
  %v3829 = vpop.permute.xlu0 %3828
  %3830 = vrot.lane.b32.xlu0 %v3803, 96
  %v3831 = vpop.permute.xlu0 %3830
  %v3834 = vsel %vm3758, %v3829, %v3395
  %v3835 = vsel %vm3759, %v3831, %v3396
  %s3836 = scalar_lea.vmem [#allocation2], 48
  %v3837 = vld [vmem:[%s3836] sm:$0xff]
  %v3838 = vld [vmem:[%s3836 + $0x8] sm:$0xff]
  %v3840 = vsel %vm2510, %v3650, 0
  %v3843 = vsel %vm2510, %v3651, 0
  %3845 = vmatprep.subr.mxu0 0.0
  %3846 = vmatpush1.msra.mxu0 0.0
  %3847 = vmatprep.subr.mxu0 0.0
  %3848 = vmatpush1.msra.mxu0 0.0
  %3849 = vmatprep.subr.mxu0 0.0
  %3850 = vmatpush1.msra.mxu0 0.0
  %3851 = vmatprep.subr.mxu0 0.0
  %3852 = vmatpush1.msra.mxu0 0.0
  %3853 = vmatprep.subr.mxu0 0.0
  %3854 = vmatpush1.msra.mxu0 0.0
  %3855 = vmatprep.subr.mxu0 0.0
  %3856 = vmatpush1.msra.mxu0 0.0
  %3857 = vmatprep.subr.mxu0 0.0
  %3858 = vmatpush1.msra.mxu0 0.0
  %3859 = vmatprep.subr.mxu0 0.0
  %3860 = vmatpush1.msra.mxu0 0.0
  %3861 = vmatprep.subr.mxu0 0.0
  %3862 = vmatpush1.msra.mxu0 0.0
  %3863 = vmatprep.subr.mxu0 0.0
  %3864 = vmatpush1.msra.mxu0 0.0
  %3865 = vmatprep.subr.mxu0 0.0
  %3866 = vmatpush1.msra.mxu0 0.0
  %3867 = vmatprep.subr.mxu0 0.0
  %3868 = vmatpush1.msra.mxu0 0.0
  %3869 = vmatprep.subr.mxu0 0.0
  %3870 = vmatpush1.msra.mxu0 %v2499
  %3871 = vmatprep.subr.mxu0 0.0
  %3872 = vmatpush1.msra.mxu0 %v2498
  %3873 = vmatprep.subr.mxu0 0.0
  %3874 = vmatpush1.msra.mxu0 %v2497
  %3875 = vmatprep.subr.mxu0 0.0
  %3876 = vmatpush1.msra.mxu0 %v2496
  %3877 = vmatprep.subr.mxu0 0.0
  %3878 = vmatpush2.msra.mxu0 0.0
  %3879 = vmatprep.subr.mxu0 0.0
  %3880 = vmatpush2.msra.mxu0 0.0
  %3881 = vmatprep.subr.mxu0 0.0
  %3882 = vmatpush2.msra.mxu0 0.0
  %3883 = vmatprep.subr.mxu0 0.0
  %3884 = vmatpush2.msra.mxu0 0.0
  %3885 = vmatprep.subr.mxu0 0.0
  %3886 = vmatpush2.msra.mxu0 0.0
  %3887 = vmatprep.subr.mxu0 0.0
  %3888 = vmatpush2.msra.mxu0 0.0
  %3889 = vmatprep.subr.mxu0 0.0
  %3890 = vmatpush2.msra.mxu0 0.0
  %3891 = vmatprep.subr.mxu0 0.0
  %3892 = vmatpush2.msra.mxu0 0.0
  %3893 = vmatprep.subr.mxu0 0.0
  %3894 = vmatpush2.msra.mxu0 0.0
  %3895 = vmatprep.subr.mxu0 0.0
  %3896 = vmatpush2.msra.mxu0 0.0
  %3897 = vmatprep.subr.mxu0 0.0
  %3898 = vmatpush2.msra.mxu0 0.0
  %3899 = vmatprep.subr.mxu0 0.0
  %3900 = vmatpush2.msra.mxu0 0.0
  %3901 = vmatprep.subr.mxu0 0.0
  %3902 = vmatpush2.msra.mxu0 0.0
  %3903 = vmatprep.subr.mxu0 0.0
  %3904 = vmatpush2.msra.mxu0 0.0
  %3905 = vmatprep.subr.mxu0 0.0
  %3906 = vmatpush2.msra.mxu0 0.0
  %3907 = vmatprep.subr.mxu0 0.0
  %3908 = vmatpush2.msra.mxu0 0.0
  %3909 = vmatprep.mubr.f32.mxu0 0.0
  %3910 = vmatmul.mubr.f32.gmra.mxu0 %v3840
  %v3911 = vpop.f32.mrf.mxu0
  %v3912 = vadd.f32 0.0, %v3911
  %v3913 = vpop.f32.mrf.mxu0
  %3914 = vmatprep.mubr.f32.mxu0 0.0
  %3915 = vmatmul.mubr.f32.gmra.mxu0 %v3843
  %v3916 = vpop.f32.mrf.mxu0
  %v3917 = vadd.f32 0.0, %v3916
  %v3918 = vpop.f32.mrf.mxu0
  %3919 = vdwg.mxu0
  %3920 = vmatprep.subr.mxu0 0.0
  %3921 = vmatpush1.msra.mxu0 0.0
  %3922 = vmatprep.subr.mxu0 0.0
  %3923 = vmatpush1.msra.mxu0 0.0
  %3924 = vmatprep.subr.mxu0 0.0
  %3925 = vmatpush1.msra.mxu0 0.0
  %3926 = vmatprep.subr.mxu0 0.0
  %3927 = vmatpush1.msra.mxu0 0.0
  %3928 = vmatprep.subr.mxu0 0.0
  %3929 = vmatpush1.msra.mxu0 0.0
  %3930 = vmatprep.subr.mxu0 0.0
  %3931 = vmatpush1.msra.mxu0 0.0
  %3932 = vmatprep.subr.mxu0 0.0
  %3933 = vmatpush1.msra.mxu0 0.0
  %3934 = vmatprep.subr.mxu0 0.0
  %3935 = vmatpush1.msra.mxu0 0.0
  %3936 = vmatprep.subr.mxu0 0.0
  %3937 = vmatpush1.msra.mxu0 0.0
  %3938 = vmatprep.subr.mxu0 0.0
  %3939 = vmatpush1.msra.mxu0 0.0
  %3940 = vmatprep.subr.mxu0 0.0
  %3941 = vmatpush1.msra.mxu0 0.0
  %3942 = vmatprep.subr.mxu0 0.0
  %3943 = vmatpush1.msra.mxu0 0.0
  %3944 = vmatprep.subr.mxu0 0.0
  %3945 = vmatpush1.msra.mxu0 %v2503
  %3946 = vmatprep.subr.mxu0 0.0
  %3947 = vmatpush1.msra.mxu0 %v2502
  %3948 = vmatprep.subr.mxu0 0.0
  %3949 = vmatpush1.msra.mxu0 %v2501
  %3950 = vmatprep.subr.mxu0 0.0
  %3951 = vmatpush1.msra.mxu0 %v2500
  %3952 = vmatprep.subr.mxu0 0.0
  %3953 = vmatpush2.msra.mxu0 0.0
  %3954 = vmatprep.subr.mxu0 0.0
  %3955 = vmatpush2.msra.mxu0 0.0
  %3956 = vmatprep.subr.mxu0 0.0
  %3957 = vmatpush2.msra.mxu0 0.0
  %3958 = vmatprep.subr.mxu0 0.0
  %3959 = vmatpush2.msra.mxu0 0.0
  %3960 = vmatprep.subr.mxu0 0.0
  %3961 = vmatpush2.msra.mxu0 0.0
  %3962 = vmatprep.subr.mxu0 0.0
  %3963 = vmatpush2.msra.mxu0 0.0
  %3964 = vmatprep.subr.mxu0 0.0
  %3965 = vmatpush2.msra.mxu0 0.0
  %3966 = vmatprep.subr.mxu0 0.0
  %3967 = vmatpush2.msra.mxu0 0.0
  %3968 = vmatprep.subr.mxu0 0.0
  %3969 = vmatpush2.msra.mxu0 0.0
  %3970 = vmatprep.subr.mxu0 0.0
  %3971 = vmatpush2.msra.mxu0 0.0
  %3972 = vmatprep.subr.mxu0 0.0
  %3973 = vmatpush2.msra.mxu0 0.0
  %3974 = vmatprep.subr.mxu0 0.0
  %3975 = vmatpush2.msra.mxu0 0.0
  %3976 = vmatprep.subr.mxu0 0.0
  %3977 = vmatpush2.msra.mxu0 0.0
  %3978 = vmatprep.subr.mxu0 0.0
  %3979 = vmatpush2.msra.mxu0 0.0
  %3980 = vmatprep.subr.mxu0 0.0
  %3981 = vmatpush2.msra.mxu0 0.0
  %3982 = vmatprep.subr.mxu0 0.0
  %3983 = vmatpush2.msra.mxu0 0.0
  %3984 = vmatprep.mubr.f32.mxu0 0.0
  %3985 = vmatmul.mubr.f32.gmra.mxu0 %v3840
  %v3986 = vpop.f32.mrf.mxu0
  %v3987 = vadd.f32 0.0, %v3986
  %v3988 = vpop.f32.mrf.mxu0
  %3989 = vmatprep.mubr.f32.mxu0 0.0
  %3990 = vmatmul.mubr.f32.gmra.mxu0 %v3843
  %v3991 = vpop.f32.mrf.mxu0
  %v3992 = vadd.f32 0.0, %v3991
  %v3993 = vpop.f32.mrf.mxu0
  %3994 = vdwg.mxu0
  %v3995 = vsel %vm2666, %v3912, %v3987
  %v3996 = vsel %vm2667, %v3917, %v3992
  %v3997 = vadd.f32 %v3995, %v3837
  %v3998 = vadd.f32 %v3996, %v3838
  %vm3999 = vmand %vm2675, %vm3580
  %vm4000 = vmand %vm2675, %vm3581
  %vm4001 = vmand %vm2692, %vm3570
  %vm4002 = vmand %vm2692, %vm3571
  %vm4003 = vmor %vm3999, %vm4001
  %vm4004 = vmor %vm4000, %vm4002
  %v4005 = vxor.u32 %v3997, 2147483648
  %v4006 = vxor.u32 %v3998, 2147483648
  %v4007 = vmul.f32 %v4005, 1.442695
  %v4008 = vpow.pop %v4007
  %v4009 = vmul.f32 %v4006, 1.442695
  %v4010 = vpow.pop %v4009
  %v4011 = vadd.f32 %v4008, 1.0
  %v4012 = vadd.f32 %v4010, 1.0
  %v4013 = vrcp.pop %v4011
  %v4014 = vmul.f32 1.0, %v4013
  %v4015 = vrcp.pop %v4012
  %v4016 = vmul.f32 1.0, %v4015
  %v4017 = vtanh.pop %v3997
  %v4018 = vtanh.pop %v3998
  %4021 = vrot.lane.b32.xlu0 %v3660, 32
  %v4022 = vpop.permute.xlu0 %4021
  %4023 = vrot.lane.b32.xlu0 %v3661, 32
  %v4024 = vpop.permute.xlu0 %4023
  %v4027 = vmul.f32 %v4014, %v4022
  %v4028 = vmul.f32 %v4016, %v4024
  %4031 = vrot.lane.b32.xlu0 %v4017, 64
  %v4032 = vpop.permute.xlu0 %4031
  %4033 = vrot.lane.b32.xlu0 %v4018, 64
  %v4034 = vpop.permute.xlu0 %4033
  %v4037 = vmul.f32 %v4014, %v4032
  %v4038 = vmul.f32 %v4016, %v4034
  %4041 = vrot.lane.b32.xlu0 %v4037, 32
  %v4042 = vpop.permute.xlu0 %4041
  %4043 = vrot.lane.b32.xlu0 %v4038, 32
  %v4044 = vpop.permute.xlu0 %4043
  %v4047 = vadd.f32 %v4027, %v4042
  %v4048 = vadd.f32 %v4028, %v4044
  %v4049 = vtanh.pop %v4047
  %v4050 = vtanh.pop %v4048
  %4053 = vrot.lane.b32.xlu0 %v4049, 64
  %v4054 = vpop.permute.xlu0 %4053
  %4055 = vrot.lane.b32.xlu0 %v4050, 64
  %v4056 = vpop.permute.xlu0 %4055
  %v4059 = vmul.f32 %v4014, %v4054
  %v4060 = vmul.f32 %v4016, %v4056
  %4063 = vrot.lane.b32.xlu0 %v4059, 32
  %v4064 = vpop.permute.xlu0 %4063
  %4065 = vrot.lane.b32.xlu0 %v4060, 32
  %v4066 = vpop.permute.xlu0 %4065
  %v4069 = vsel %vm4003, %v4064, %v3650
  %v4070 = vsel %vm4004, %v4066, %v3651
  %4073 = vrot.lane.b32.xlu0 %v4047, 96
  %v4074 = vpop.permute.xlu0 %4073
  %4075 = vrot.lane.b32.xlu0 %v4048, 96
  %v4076 = vpop.permute.xlu0 %4075
  %v4079 = vsel %vm4003, %v4074, %v3660
  %v4080 = vsel %vm4004, %v4076, %v3661
  %s4081 = scalar_lea.vmem [#allocation3], 48
  %v4082 = vld [vmem:[%s4081] sm:$0xff]
  %v4083 = vld [vmem:[%s4081 + $0x8] sm:$0xff]
  %v4085 = vsel %vm2510, %v3824, 0
  %v4088 = vsel %vm2510, %v3825, 0
  %4090 = vmatprep.subr.mxu0 0.0
  %4091 = vmatpush1.msra.mxu0 0.0
  %4092 = vmatprep.subr.mxu0 0.0
  %4093 = vmatpush1.msra.mxu0 0.0
  %4094 = vmatprep.subr.mxu0 0.0
  %4095 = vmatpush1.msra.mxu0 0.0
  %4096 = vmatprep.subr.mxu0 0.0
  %4097 = vmatpush1.msra.mxu0 0.0
  %4098 = vmatprep.subr.mxu0 0.0
  %4099 = vmatpush1.msra.mxu0 0.0
  %4100 = vmatprep.subr.mxu0 0.0
  %4101 = vmatpush1.msra.mxu0 0.0
  %4102 = vmatprep.subr.mxu0 0.0
  %4103 = vmatpush1.msra.mxu0 0.0
  %4104 = vmatprep.subr.mxu0 0.0
  %4105 = vmatpush1.msra.mxu0 0.0
  %4106 = vmatprep.subr.mxu0 0.0
  %4107 = vmatpush1.msra.mxu0 0.0
  %4108 = vmatprep.subr.mxu0 0.0
  %4109 = vmatpush1.msra.mxu0 0.0
  %4110 = vmatprep.subr.mxu0 0.0
  %4111 = vmatpush1.msra.mxu0 0.0
  %4112 = vmatprep.subr.mxu0 0.0
  %4113 = vmatpush1.msra.mxu0 0.0
  %4114 = vmatprep.subr.mxu0 0.0
  %4115 = vmatpush1.msra.mxu0 %v2507
  %4116 = vmatprep.subr.mxu0 0.0
  %4117 = vmatpush1.msra.mxu0 %v2506
  %4118 = vmatprep.subr.mxu0 0.0
  %4119 = vmatpush1.msra.mxu0 %v2505
  %4120 = vmatprep.subr.mxu0 0.0
  %4121 = vmatpush1.msra.mxu0 %v2504
  %4122 = vmatprep.subr.mxu0 0.0
  %4123 = vmatpush2.msra.mxu0 0.0
  %4124 = vmatprep.subr.mxu0 0.0
  %4125 = vmatpush2.msra.mxu0 0.0
  %4126 = vmatprep.subr.mxu0 0.0
  %4127 = vmatpush2.msra.mxu0 0.0
  %4128 = vmatprep.subr.mxu0 0.0
  %4129 = vmatpush2.msra.mxu0 0.0
  %4130 = vmatprep.subr.mxu0 0.0
  %4131 = vmatpush2.msra.mxu0 0.0
  %4132 = vmatprep.subr.mxu0 0.0
  %4133 = vmatpush2.msra.mxu0 0.0
  %4134 = vmatprep.subr.mxu0 0.0
  %4135 = vmatpush2.msra.mxu0 0.0
  %4136 = vmatprep.subr.mxu0 0.0
  %4137 = vmatpush2.msra.mxu0 0.0
  %4138 = vmatprep.subr.mxu0 0.0
  %4139 = vmatpush2.msra.mxu0 0.0
  %4140 = vmatprep.subr.mxu0 0.0
  %4141 = vmatpush2.msra.mxu0 0.0
  %4142 = vmatprep.subr.mxu0 0.0
  %4143 = vmatpush2.msra.mxu0 0.0
  %4144 = vmatprep.subr.mxu0 0.0
  %4145 = vmatpush2.msra.mxu0 0.0
  %4146 = vmatprep.subr.mxu0 0.0
  %4147 = vmatpush2.msra.mxu0 0.0
  %4148 = vmatprep.subr.mxu0 0.0
  %4149 = vmatpush2.msra.mxu0 0.0
  %4150 = vmatprep.subr.mxu0 0.0
  %4151 = vmatpush2.msra.mxu0 0.0
  %4152 = vmatprep.subr.mxu0 0.0
  %4153 = vmatpush2.msra.mxu0 0.0
  %4154 = vmatprep.mubr.f32.mxu0 0.0
  %4155 = vmatmul.mubr.f32.gmra.mxu0 %v4085
  %v4156 = vpop.f32.mrf.mxu0
  %v4157 = vadd.f32 %v4082, %v4156
  %v4158 = vpop.f32.mrf.mxu0
  %4159 = vmatprep.mubr.f32.mxu0 0.0
  %4160 = vmatmul.mubr.f32.gmra.mxu0 %v4088
  %v4161 = vpop.f32.mrf.mxu0
  %v4162 = vadd.f32 %v4083, %v4161
  %v4163 = vpop.f32.mrf.mxu0
  %4164 = vdwg.mxu0
  %vm4165 = vmand %vm2675, %vm3315
  %vm4166 = vmand %vm2675, %vm3316
  %vm4167 = vmand %vm2692, %vm3301
  %vm4168 = vmand %vm2692, %vm3302
  %vm4169 = vmor %vm4165, %vm4167
  %vm4170 = vmor %vm4166, %vm4168
  %v4171 = vxor.u32 %v4157, 2147483648
  %v4172 = vxor.u32 %v4162, 2147483648
  %v4173 = vmul.f32 %v4171, 1.442695
  %v4174 = vpow.pop %v4173
  %v4175 = vmul.f32 %v4172, 1.442695
  %v4176 = vpow.pop %v4175
  %v4177 = vadd.f32 %v4174, 1.0
  %v4178 = vadd.f32 %v4176, 1.0
  %v4179 = vrcp.pop %v4177
  %v4180 = vmul.f32 1.0, %v4179
  %v4181 = vrcp.pop %v4178
  %v4182 = vmul.f32 1.0, %v4181
  %v4183 = vtanh.pop %v4157
  %v4184 = vtanh.pop %v4162
  %4187 = vrot.lane.b32.xlu0 %v3834, 32
  %v4188 = vpop.permute.xlu0 %4187
  %4189 = vrot.lane.b32.xlu0 %v3835, 32
  %v4190 = vpop.permute.xlu0 %4189
  %v4193 = vmul.f32 %v4180, %v4188
  %v4194 = vmul.f32 %v4182, %v4190
  %4197 = vrot.lane.b32.xlu0 %v4183, 64
  %v4198 = vpop.permute.xlu0 %4197
  %4199 = vrot.lane.b32.xlu0 %v4184, 64
  %v4200 = vpop.permute.xlu0 %4199
  %v4203 = vmul.f32 %v4180, %v4198
  %v4204 = vmul.f32 %v4182, %v4200
  %4207 = vrot.lane.b32.xlu0 %v4203, 32
  %v4208 = vpop.permute.xlu0 %4207
  %4209 = vrot.lane.b32.xlu0 %v4204, 32
  %v4210 = vpop.permute.xlu0 %4209
  %v4213 = vadd.f32 %v4193, %v4208
  %v4214 = vadd.f32 %v4194, %v4210
  %v4215 = vtanh.pop %v4213
  %v4216 = vtanh.pop %v4214
  %4219 = vrot.lane.b32.xlu0 %v4215, 64
  %v4220 = vpop.permute.xlu0 %4219
  %4221 = vrot.lane.b32.xlu0 %v4216, 64
  %v4222 = vpop.permute.xlu0 %4221
  %v4225 = vmul.f32 %v4180, %v4220
  %v4226 = vmul.f32 %v4182, %v4222
  %4229 = vrot.lane.b32.xlu0 %v4225, 32
  %v4230 = vpop.permute.xlu0 %4229
  %4231 = vrot.lane.b32.xlu0 %v4226, 32
  %v4232 = vpop.permute.xlu0 %4231
  %v4235 = vsel %vm4169, %v4230, %v3824
  %v4236 = vsel %vm4170, %v4232, %v3825
  %4239 = vrot.lane.b32.xlu0 %v4213, 96
  %v4240 = vpop.permute.xlu0 %4239
  %4241 = vrot.lane.b32.xlu0 %v4214, 96
  %v4242 = vpop.permute.xlu0 %4241
  %v4245 = vsel %vm4169, %v4240, %v3834
  %v4246 = vsel %vm4170, %v4242, %v3835
  %s4247 = scalar_lea.vmem [#allocation2], 64
  %v4248 = vld [vmem:[%s4247] sm:$0xff]
  %v4249 = vld [vmem:[%s4247 + $0x8] sm:$0xff]
  %v4251 = vsel %vm2510, %v4069, 0
  %v4254 = vsel %vm2510, %v4070, 0
  %4256 = vmatprep.subr.mxu0 0.0
  %4257 = vmatpush1.msra.mxu0 0.0
  %4258 = vmatprep.subr.mxu0 0.0
  %4259 = vmatpush1.msra.mxu0 0.0
  %4260 = vmatprep.subr.mxu0 0.0
  %4261 = vmatpush1.msra.mxu0 0.0
  %4262 = vmatprep.subr.mxu0 0.0
  %4263 = vmatpush1.msra.mxu0 0.0
  %4264 = vmatprep.subr.mxu0 0.0
  %4265 = vmatpush1.msra.mxu0 0.0
  %4266 = vmatprep.subr.mxu0 0.0
  %4267 = vmatpush1.msra.mxu0 0.0
  %4268 = vmatprep.subr.mxu0 0.0
  %4269 = vmatpush1.msra.mxu0 0.0
  %4270 = vmatprep.subr.mxu0 0.0
  %4271 = vmatpush1.msra.mxu0 0.0
  %4272 = vmatprep.subr.mxu0 0.0
  %4273 = vmatpush1.msra.mxu0 0.0
  %4274 = vmatprep.subr.mxu0 0.0
  %4275 = vmatpush1.msra.mxu0 0.0
  %4276 = vmatprep.subr.mxu0 0.0
  %4277 = vmatpush1.msra.mxu0 0.0
  %4278 = vmatprep.subr.mxu0 0.0
  %4279 = vmatpush1.msra.mxu0 0.0
  %4280 = vmatprep.subr.mxu0 0.0
  %4281 = vmatpush1.msra.mxu0 %v2499
  %4282 = vmatprep.subr.mxu0 0.0
  %4283 = vmatpush1.msra.mxu0 %v2498
  %4284 = vmatprep.subr.mxu0 0.0
  %4285 = vmatpush1.msra.mxu0 %v2497
  %4286 = vmatprep.subr.mxu0 0.0
  %4287 = vmatpush1.msra.mxu0 %v2496
  %4288 = vmatprep.subr.mxu0 0.0
  %4289 = vmatpush2.msra.mxu0 0.0
  %4290 = vmatprep.subr.mxu0 0.0
  %4291 = vmatpush2.msra.mxu0 0.0
  %4292 = vmatprep.subr.mxu0 0.0
  %4293 = vmatpush2.msra.mxu0 0.0
  %4294 = vmatprep.subr.mxu0 0.0
  %4295 = vmatpush2.msra.mxu0 0.0
  %4296 = vmatprep.subr.mxu0 0.0
  %4297 = vmatpush2.msra.mxu0 0.0
  %4298 = vmatprep.subr.mxu0 0.0
  %4299 = vmatpush2.msra.mxu0 0.0
  %4300 = vmatprep.subr.mxu0 0.0
  %4301 = vmatpush2.msra.mxu0 0.0
  %4302 = vmatprep.subr.mxu0 0.0
  %4303 = vmatpush2.msra.mxu0 0.0
  %4304 = vmatprep.subr.mxu0 0.0
  %4305 = vmatpush2.msra.mxu0 0.0
  %4306 = vmatprep.subr.mxu0 0.0
  %4307 = vmatpush2.msra.mxu0 0.0
  %4308 = vmatprep.subr.mxu0 0.0
  %4309 = vmatpush2.msra.mxu0 0.0
  %4310 = vmatprep.subr.mxu0 0.0
  %4311 = vmatpush2.msra.mxu0 0.0
  %4312 = vmatprep.subr.mxu0 0.0
  %4313 = vmatpush2.msra.mxu0 0.0
  %4314 = vmatprep.subr.mxu0 0.0
  %4315 = vmatpush2.msra.mxu0 0.0
  %4316 = vmatprep.subr.mxu0 0.0
  %4317 = vmatpush2.msra.mxu0 0.0
  %4318 = vmatprep.subr.mxu0 0.0
  %4319 = vmatpush2.msra.mxu0 0.0
  %4320 = vmatprep.mubr.f32.mxu0 0.0
  %4321 = vmatmul.mubr.f32.gmra.mxu0 %v4251
  %v4322 = vpop.f32.mrf.mxu0
  %v4323 = vadd.f32 0.0, %v4322
  %v4324 = vpop.f32.mrf.mxu0
  %4325 = vmatprep.mubr.f32.mxu0 0.0
  %4326 = vmatmul.mubr.f32.gmra.mxu0 %v4254
  %v4327 = vpop.f32.mrf.mxu0
  %v4328 = vadd.f32 0.0, %v4327
  %v4329 = vpop.f32.mrf.mxu0
  %4330 = vdwg.mxu0
  %4331 = vmatprep.subr.mxu0 0.0
  %4332 = vmatpush1.msra.mxu0 0.0
  %4333 = vmatprep.subr.mxu0 0.0
  %4334 = vmatpush1.msra.mxu0 0.0
  %4335 = vmatprep.subr.mxu0 0.0
  %4336 = vmatpush1.msra.mxu0 0.0
  %4337 = vmatprep.subr.mxu0 0.0
  %4338 = vmatpush1.msra.mxu0 0.0
  %4339 = vmatprep.subr.mxu0 0.0
  %4340 = vmatpush1.msra.mxu0 0.0
  %4341 = vmatprep.subr.mxu0 0.0
  %4342 = vmatpush1.msra.mxu0 0.0
  %4343 = vmatprep.subr.mxu0 0.0
  %4344 = vmatpush1.msra.mxu0 0.0
  %4345 = vmatprep.subr.mxu0 0.0
  %4346 = vmatpush1.msra.mxu0 0.0
  %4347 = vmatprep.subr.mxu0 0.0
  %4348 = vmatpush1.msra.mxu0 0.0
  %4349 = vmatprep.subr.mxu0 0.0
  %4350 = vmatpush1.msra.mxu0 0.0
  %4351 = vmatprep.subr.mxu0 0.0
  %4352 = vmatpush1.msra.mxu0 0.0
  %4353 = vmatprep.subr.mxu0 0.0
  %4354 = vmatpush1.msra.mxu0 0.0
  %4355 = vmatprep.subr.mxu0 0.0
  %4356 = vmatpush1.msra.mxu0 %v2503
  %4357 = vmatprep.subr.mxu0 0.0
  %4358 = vmatpush1.msra.mxu0 %v2502
  %4359 = vmatprep.subr.mxu0 0.0
  %4360 = vmatpush1.msra.mxu0 %v2501
  %4361 = vmatprep.subr.mxu0 0.0
  %4362 = vmatpush1.msra.mxu0 %v2500
  %4363 = vmatprep.subr.mxu0 0.0
  %4364 = vmatpush2.msra.mxu0 0.0
  %4365 = vmatprep.subr.mxu0 0.0
  %4366 = vmatpush2.msra.mxu0 0.0
  %4367 = vmatprep.subr.mxu0 0.0
  %4368 = vmatpush2.msra.mxu0 0.0
  %4369 = vmatprep.subr.mxu0 0.0
  %4370 = vmatpush2.msra.mxu0 0.0
  %4371 = vmatprep.subr.mxu0 0.0
  %4372 = vmatpush2.msra.mxu0 0.0
  %4373 = vmatprep.subr.mxu0 0.0
  %4374 = vmatpush2.msra.mxu0 0.0
  %4375 = vmatprep.subr.mxu0 0.0
  %4376 = vmatpush2.msra.mxu0 0.0
  %4377 = vmatprep.subr.mxu0 0.0
  %4378 = vmatpush2.msra.mxu0 0.0
  %4379 = vmatprep.subr.mxu0 0.0
  %4380 = vmatpush2.msra.mxu0 0.0
  %4381 = vmatprep.subr.mxu0 0.0
  %4382 = vmatpush2.msra.mxu0 0.0
  %4383 = vmatprep.subr.mxu0 0.0
  %4384 = vmatpush2.msra.mxu0 0.0
  %4385 = vmatprep.subr.mxu0 0.0
  %4386 = vmatpush2.msra.mxu0 0.0
  %4387 = vmatprep.subr.mxu0 0.0
  %4388 = vmatpush2.msra.mxu0 0.0
  %4389 = vmatprep.subr.mxu0 0.0
  %4390 = vmatpush2.msra.mxu0 0.0
  %4391 = vmatprep.subr.mxu0 0.0
  %4392 = vmatpush2.msra.mxu0 0.0
  %4393 = vmatprep.subr.mxu0 0.0
  %4394 = vmatpush2.msra.mxu0 0.0
  %4395 = vmatprep.mubr.f32.mxu0 0.0
  %4396 = vmatmul.mubr.f32.gmra.mxu0 %v4251
  %v4397 = vpop.f32.mrf.mxu0
  %v4398 = vadd.f32 0.0, %v4397
  %v4399 = vpop.f32.mrf.mxu0
  %4400 = vmatprep.mubr.f32.mxu0 0.0
  %4401 = vmatmul.mubr.f32.gmra.mxu0 %v4254
  %v4402 = vpop.f32.mrf.mxu0
  %v4403 = vadd.f32 0.0, %v4402
  %v4404 = vpop.f32.mrf.mxu0
  %4405 = vdwg.mxu0
  %v4406 = vsel %vm2666, %v4323, %v4398
  %v4407 = vsel %vm2667, %v4328, %v4403
  %v4408 = vadd.f32 %v4406, %v4248
  %v4409 = vadd.f32 %v4407, %v4249
  %vm4410 = vmand %vm2675, %vm3129
  %vm4411 = vmand %vm2675, %vm3130
  %vm4412 = vmand %vm2692, %vm3119
  %vm4413 = vmand %vm2692, %vm3120
  %vm4414 = vmor %vm4410, %vm4412
  %vm4415 = vmor %vm4411, %vm4413
  %v4416 = vxor.u32 %v4408, 2147483648
  %v4417 = vxor.u32 %v4409, 2147483648
  %v4418 = vmul.f32 %v4416, 1.442695
  %v4419 = vpow.pop %v4418
  %v4420 = vmul.f32 %v4417, 1.442695
  %v4421 = vpow.pop %v4420
  %v4422 = vadd.f32 %v4419, 1.0
  %v4423 = vadd.f32 %v4421, 1.0
  %v4424 = vrcp.pop %v4422
  %v4425 = vmul.f32 1.0, %v4424
  %v4426 = vrcp.pop %v4423
  %v4427 = vmul.f32 1.0, %v4426
  %v4428 = vtanh.pop %v4408
  %v4429 = vtanh.pop %v4409
  %4432 = vrot.lane.b32.xlu0 %v4079, 32
  %v4433 = vpop.permute.xlu0 %4432
  %4434 = vrot.lane.b32.xlu0 %v4080, 32
  %v4435 = vpop.permute.xlu0 %4434
  %v4438 = vmul.f32 %v4425, %v4433
  %v4439 = vmul.f32 %v4427, %v4435
  %4442 = vrot.lane.b32.xlu0 %v4428, 64
  %v4443 = vpop.permute.xlu0 %4442
  %4444 = vrot.lane.b32.xlu0 %v4429, 64
  %v4445 = vpop.permute.xlu0 %4444
  %v4448 = vmul.f32 %v4425, %v4443
  %v4449 = vmul.f32 %v4427, %v4445
  %4452 = vrot.lane.b32.xlu0 %v4448, 32
  %v4453 = vpop.permute.xlu0 %4452
  %4454 = vrot.lane.b32.xlu0 %v4449, 32
  %v4455 = vpop.permute.xlu0 %4454
  %v4458 = vadd.f32 %v4438, %v4453
  %v4459 = vadd.f32 %v4439, %v4455
  %v4460 = vtanh.pop %v4458
  %v4461 = vtanh.pop %v4459
  %4464 = vrot.lane.b32.xlu0 %v4460, 64
  %v4465 = vpop.permute.xlu0 %4464
  %4466 = vrot.lane.b32.xlu0 %v4461, 64
  %v4467 = vpop.permute.xlu0 %4466
  %v4470 = vmul.f32 %v4425, %v4465
  %v4471 = vmul.f32 %v4427, %v4467
  %4474 = vrot.lane.b32.xlu0 %v4470, 32
  %v4475 = vpop.permute.xlu0 %4474
  %4476 = vrot.lane.b32.xlu0 %v4471, 32
  %v4477 = vpop.permute.xlu0 %4476
  %v4480 = vsel %vm4414, %v4475, %v4069
  %v4481 = vsel %vm4415, %v4477, %v4070
  %4484 = vrot.lane.b32.xlu0 %v4458, 96
  %v4485 = vpop.permute.xlu0 %4484
  %4486 = vrot.lane.b32.xlu0 %v4459, 96
  %v4487 = vpop.permute.xlu0 %4486
  %v4490 = vsel %vm4414, %v4485, %v4079
  %v4491 = vsel %vm4415, %v4487, %v4080
  %s4492 = scalar_lea.vmem [#allocation3], 64
  %v4493 = vld [vmem:[%s4492] sm:$0xff]
  %v4494 = vld [vmem:[%s4492 + $0x8] sm:$0xff]
  %v4496 = vsel %vm2510, %v4235, 0
  %v4499 = vsel %vm2510, %v4236, 0
  %4501 = vmatprep.subr.mxu0 0.0
  %4502 = vmatpush1.msra.mxu0 0.0
  %4503 = vmatprep.subr.mxu0 0.0
  %4504 = vmatpush1.msra.mxu0 0.0
  %4505 = vmatprep.subr.mxu0 0.0
  %4506 = vmatpush1.msra.mxu0 0.0
  %4507 = vmatprep.subr.mxu0 0.0
  %4508 = vmatpush1.msra.mxu0 0.0
  %4509 = vmatprep.subr.mxu0 0.0
  %4510 = vmatpush1.msra.mxu0 0.0
  %4511 = vmatprep.subr.mxu0 0.0
  %4512 = vmatpush1.msra.mxu0 0.0
  %4513 = vmatprep.subr.mxu0 0.0
  %4514 = vmatpush1.msra.mxu0 0.0
  %4515 = vmatprep.subr.mxu0 0.0
  %4516 = vmatpush1.msra.mxu0 0.0
  %4517 = vmatprep.subr.mxu0 0.0
  %4518 = vmatpush1.msra.mxu0 0.0
  %4519 = vmatprep.subr.mxu0 0.0
  %4520 = vmatpush1.msra.mxu0 0.0
  %4521 = vmatprep.subr.mxu0 0.0
  %4522 = vmatpush1.msra.mxu0 0.0
  %4523 = vmatprep.subr.mxu0 0.0
  %4524 = vmatpush1.msra.mxu0 0.0
  %4525 = vmatprep.subr.mxu0 0.0
  %4526 = vmatpush1.msra.mxu0 %v2507
  %4527 = vmatprep.subr.mxu0 0.0
  %4528 = vmatpush1.msra.mxu0 %v2506
  %4529 = vmatprep.subr.mxu0 0.0
  %4530 = vmatpush1.msra.mxu0 %v2505
  %4531 = vmatprep.subr.mxu0 0.0
  %4532 = vmatpush1.msra.mxu0 %v2504
  %4533 = vmatprep.subr.mxu0 0.0
  %4534 = vmatpush2.msra.mxu0 0.0
  %4535 = vmatprep.subr.mxu0 0.0
  %4536 = vmatpush2.msra.mxu0 0.0
  %4537 = vmatprep.subr.mxu0 0.0
  %4538 = vmatpush2.msra.mxu0 0.0
  %4539 = vmatprep.subr.mxu0 0.0
  %4540 = vmatpush2.msra.mxu0 0.0
  %4541 = vmatprep.subr.mxu0 0.0
  %4542 = vmatpush2.msra.mxu0 0.0
  %4543 = vmatprep.subr.mxu0 0.0
  %4544 = vmatpush2.msra.mxu0 0.0
  %4545 = vmatprep.subr.mxu0 0.0
  %4546 = vmatpush2.msra.mxu0 0.0
  %4547 = vmatprep.subr.mxu0 0.0
  %4548 = vmatpush2.msra.mxu0 0.0
  %4549 = vmatprep.subr.mxu0 0.0
  %4550 = vmatpush2.msra.mxu0 0.0
  %4551 = vmatprep.subr.mxu0 0.0
  %4552 = vmatpush2.msra.mxu0 0.0
  %4553 = vmatprep.subr.mxu0 0.0
  %4554 = vmatpush2.msra.mxu0 0.0
  %4555 = vmatprep.subr.mxu0 0.0
  %4556 = vmatpush2.msra.mxu0 0.0
  %4557 = vmatprep.subr.mxu0 0.0
  %4558 = vmatpush2.msra.mxu0 0.0
  %4559 = vmatprep.subr.mxu0 0.0
  %4560 = vmatpush2.msra.mxu0 0.0
  %4561 = vmatprep.subr.mxu0 0.0
  %4562 = vmatpush2.msra.mxu0 0.0
  %4563 = vmatprep.subr.mxu0 0.0
  %4564 = vmatpush2.msra.mxu0 0.0
  %4565 = vmatprep.mubr.f32.mxu0 0.0
  %4566 = vmatmul.mubr.f32.gmra.mxu0 %v4496
  %v4567 = vpop.f32.mrf.mxu0
  %v4568 = vadd.f32 %v4493, %v4567
  %v4569 = vpop.f32.mrf.mxu0
  %4570 = vmatprep.mubr.f32.mxu0 0.0
  %4571 = vmatmul.mubr.f32.gmra.mxu0 %v4499
  %v4572 = vpop.f32.mrf.mxu0
  %v4573 = vadd.f32 %v4494, %v4572
  %v4574 = vpop.f32.mrf.mxu0
  %4575 = vdwg.mxu0
  %vm4576 = vmand %vm2675, %vm2872
  %vm4577 = vmand %vm2675, %vm2873
  %vm4578 = vmand %vm2692, %vm2858
  %vm4579 = vmand %vm2692, %vm2859
  %vm4580 = vmor %vm4576, %vm4578
  %vm4581 = vmor %vm4577, %vm4579
  %v4582 = vxor.u32 %v4568, 2147483648
  %v4583 = vxor.u32 %v4573, 2147483648
  %v4584 = vmul.f32 %v4582, 1.442695
  %v4585 = vpow.pop %v4584
  %v4586 = vmul.f32 %v4583, 1.442695
  %v4587 = vpow.pop %v4586
  %v4588 = vadd.f32 %v4585, 1.0
  %v4589 = vadd.f32 %v4587, 1.0
  %v4590 = vrcp.pop %v4588
  %v4591 = vmul.f32 1.0, %v4590
  %v4592 = vrcp.pop %v4589
  %v4593 = vmul.f32 1.0, %v4592
  %v4594 = vtanh.pop %v4568
  %v4595 = vtanh.pop %v4573
  %4598 = vrot.lane.b32.xlu0 %v4245, 32
  %v4599 = vpop.permute.xlu0 %4598
  %4600 = vrot.lane.b32.xlu0 %v4246, 32
  %v4601 = vpop.permute.xlu0 %4600
  %v4604 = vmul.f32 %v4591, %v4599
  %v4605 = vmul.f32 %v4593, %v4601
  %4608 = vrot.lane.b32.xlu0 %v4594, 64
  %v4609 = vpop.permute.xlu0 %4608
  %4610 = vrot.lane.b32.xlu0 %v4595, 64
  %v4611 = vpop.permute.xlu0 %4610
  %v4614 = vmul.f32 %v4591, %v4609
  %v4615 = vmul.f32 %v4593, %v4611
  %4618 = vrot.lane.b32.xlu0 %v4614, 32
  %v4619 = vpop.permute.xlu0 %4618
  %4620 = vrot.lane.b32.xlu0 %v4615, 32
  %v4621 = vpop.permute.xlu0 %4620
  %v4624 = vadd.f32 %v4604, %v4619
  %v4625 = vadd.f32 %v4605, %v4621
  %v4626 = vtanh.pop %v4624
  %v4627 = vtanh.pop %v4625
  %4630 = vrot.lane.b32.xlu0 %v4626, 64
  %v4631 = vpop.permute.xlu0 %4630
  %4632 = vrot.lane.b32.xlu0 %v4627, 64
  %v4633 = vpop.permute.xlu0 %4632
  %v4636 = vmul.f32 %v4591, %v4631
  %v4637 = vmul.f32 %v4593, %v4633
  %4640 = vrot.lane.b32.xlu0 %v4636, 32
  %v4641 = vpop.permute.xlu0 %4640
  %4642 = vrot.lane.b32.xlu0 %v4637, 32
  %v4643 = vpop.permute.xlu0 %4642
  %v4646 = vsel %vm4580, %v4641, %v4235
  %v4647 = vsel %vm4581, %v4643, %v4236
  %4650 = vrot.lane.b32.xlu0 %v4624, 96
  %v4651 = vpop.permute.xlu0 %4650
  %4652 = vrot.lane.b32.xlu0 %v4625, 96
  %v4653 = vpop.permute.xlu0 %4652
  %v4656 = vsel %vm4580, %v4651, %v4245
  %v4657 = vsel %vm4581, %v4653, %v4246
  %s4658 = scalar_lea.vmem [#allocation2], 80
  %v4659 = vld [vmem:[%s4658] sm:$0xff]
  %v4660 = vld [vmem:[%s4658 + $0x8] sm:$0xff]
  %v4662 = vsel %vm2510, %v4480, 0
  %v4665 = vsel %vm2510, %v4481, 0
  %4667 = vmatprep.subr.mxu0 0.0
  %4668 = vmatpush1.msra.mxu0 0.0
  %4669 = vmatprep.subr.mxu0 0.0
  %4670 = vmatpush1.msra.mxu0 0.0
  %4671 = vmatprep.subr.mxu0 0.0
  %4672 = vmatpush1.msra.mxu0 0.0
  %4673 = vmatprep.subr.mxu0 0.0
  %4674 = vmatpush1.msra.mxu0 0.0
  %4675 = vmatprep.subr.mxu0 0.0
  %4676 = vmatpush1.msra.mxu0 0.0
  %4677 = vmatprep.subr.mxu0 0.0
  %4678 = vmatpush1.msra.mxu0 0.0
  %4679 = vmatprep.subr.mxu0 0.0
  %4680 = vmatpush1.msra.mxu0 0.0
  %4681 = vmatprep.subr.mxu0 0.0
  %4682 = vmatpush1.msra.mxu0 0.0
  %4683 = vmatprep.subr.mxu0 0.0
  %4684 = vmatpush1.msra.mxu0 0.0
  %4685 = vmatprep.subr.mxu0 0.0
  %4686 = vmatpush1.msra.mxu0 0.0
  %4687 = vmatprep.subr.mxu0 0.0
  %4688 = vmatpush1.msra.mxu0 0.0
  %4689 = vmatprep.subr.mxu0 0.0
  %4690 = vmatpush1.msra.mxu0 0.0
  %4691 = vmatprep.subr.mxu0 0.0
  %4692 = vmatpush1.msra.mxu0 %v2499
  %4693 = vmatprep.subr.mxu0 0.0
  %4694 = vmatpush1.msra.mxu0 %v2498
  %4695 = vmatprep.subr.mxu0 0.0
  %4696 = vmatpush1.msra.mxu0 %v2497
  %4697 = vmatprep.subr.mxu0 0.0
  %4698 = vmatpush1.msra.mxu0 %v2496
  %4699 = vmatprep.subr.mxu0 0.0
  %4700 = vmatpush2.msra.mxu0 0.0
  %4701 = vmatprep.subr.mxu0 0.0
  %4702 = vmatpush2.msra.mxu0 0.0
  %4703 = vmatprep.subr.mxu0 0.0
  %4704 = vmatpush2.msra.mxu0 0.0
  %4705 = vmatprep.subr.mxu0 0.0
  %4706 = vmatpush2.msra.mxu0 0.0
  %4707 = vmatprep.subr.mxu0 0.0
  %4708 = vmatpush2.msra.mxu0 0.0
  %4709 = vmatprep.subr.mxu0 0.0
  %4710 = vmatpush2.msra.mxu0 0.0
  %4711 = vmatprep.subr.mxu0 0.0
  %4712 = vmatpush2.msra.mxu0 0.0
  %4713 = vmatprep.subr.mxu0 0.0
  %4714 = vmatpush2.msra.mxu0 0.0
  %4715 = vmatprep.subr.mxu0 0.0
  %4716 = vmatpush2.msra.mxu0 0.0
  %4717 = vmatprep.subr.mxu0 0.0
  %4718 = vmatpush2.msra.mxu0 0.0
  %4719 = vmatprep.subr.mxu0 0.0
  %4720 = vmatpush2.msra.mxu0 0.0
  %4721 = vmatprep.subr.mxu0 0.0
  %4722 = vmatpush2.msra.mxu0 0.0
  %4723 = vmatprep.subr.mxu0 0.0
  %4724 = vmatpush2.msra.mxu0 0.0
  %4725 = vmatprep.subr.mxu0 0.0
  %4726 = vmatpush2.msra.mxu0 0.0
  %4727 = vmatprep.subr.mxu0 0.0
  %4728 = vmatpush2.msra.mxu0 0.0
  %4729 = vmatprep.subr.mxu0 0.0
  %4730 = vmatpush2.msra.mxu0 0.0
  %4731 = vmatprep.mubr.f32.mxu0 0.0
  %4732 = vmatmul.mubr.f32.gmra.mxu0 %v4662
  %v4733 = vpop.f32.mrf.mxu0
  %v4734 = vadd.f32 0.0, %v4733
  %v4735 = vpop.f32.mrf.mxu0
  %4736 = vmatprep.mubr.f32.mxu0 0.0
  %4737 = vmatmul.mubr.f32.gmra.mxu0 %v4665
  %v4738 = vpop.f32.mrf.mxu0
  %v4739 = vadd.f32 0.0, %v4738
  %v4740 = vpop.f32.mrf.mxu0
  %4741 = vdwg.mxu0
  %4742 = vmatprep.subr.mxu0 0.0
  %4743 = vmatpush1.msra.mxu0 0.0
  %4744 = vmatprep.subr.mxu0 0.0
  %4745 = vmatpush1.msra.mxu0 0.0
  %4746 = vmatprep.subr.mxu0 0.0
  %4747 = vmatpush1.msra.mxu0 0.0
  %4748 = vmatprep.subr.mxu0 0.0
  %4749 = vmatpush1.msra.mxu0 0.0
  %4750 = vmatprep.subr.mxu0 0.0
  %4751 = vmatpush1.msra.mxu0 0.0
  %4752 = vmatprep.subr.mxu0 0.0
  %4753 = vmatpush1.msra.mxu0 0.0
  %4754 = vmatprep.subr.mxu0 0.0
  %4755 = vmatpush1.msra.mxu0 0.0
  %4756 = vmatprep.subr.mxu0 0.0
  %4757 = vmatpush1.msra.mxu0 0.0
  %4758 = vmatprep.subr.mxu0 0.0
  %4759 = vmatpush1.msra.mxu0 0.0
  %4760 = vmatprep.subr.mxu0 0.0
  %4761 = vmatpush1.msra.mxu0 0.0
  %4762 = vmatprep.subr.mxu0 0.0
  %4763 = vmatpush1.msra.mxu0 0.0
  %4764 = vmatprep.subr.mxu0 0.0
  %4765 = vmatpush1.msra.mxu0 0.0
  %4766 = vmatprep.subr.mxu0 0.0
  %4767 = vmatpush1.msra.mxu0 %v2503
  %4768 = vmatprep.subr.mxu0 0.0
  %4769 = vmatpush1.msra.mxu0 %v2502
  %4770 = vmatprep.subr.mxu0 0.0
  %4771 = vmatpush1.msra.mxu0 %v2501
  %4772 = vmatprep.subr.mxu0 0.0
  %4773 = vmatpush1.msra.mxu0 %v2500
  %4774 = vmatprep.subr.mxu0 0.0
  %4775 = vmatpush2.msra.mxu0 0.0
  %4776 = vmatprep.subr.mxu0 0.0
  %4777 = vmatpush2.msra.mxu0 0.0
  %4778 = vmatprep.subr.mxu0 0.0
  %4779 = vmatpush2.msra.mxu0 0.0
  %4780 = vmatprep.subr.mxu0 0.0
  %4781 = vmatpush2.msra.mxu0 0.0
  %4782 = vmatprep.subr.mxu0 0.0
  %4783 = vmatpush2.msra.mxu0 0.0
  %4784 = vmatprep.subr.mxu0 0.0
  %4785 = vmatpush2.msra.mxu0 0.0
  %4786 = vmatprep.subr.mxu0 0.0
  %4787 = vmatpush2.msra.mxu0 0.0
  %4788 = vmatprep.subr.mxu0 0.0
  %4789 = vmatpush2.msra.mxu0 0.0
  %4790 = vmatprep.subr.mxu0 0.0
  %4791 = vmatpush2.msra.mxu0 0.0
  %4792 = vmatprep.subr.mxu0 0.0
  %4793 = vmatpush2.msra.mxu0 0.0
  %4794 = vmatprep.subr.mxu0 0.0
  %4795 = vmatpush2.msra.mxu0 0.0
  %4796 = vmatprep.subr.mxu0 0.0
  %4797 = vmatpush2.msra.mxu0 0.0
  %4798 = vmatprep.subr.mxu0 0.0
  %4799 = vmatpush2.msra.mxu0 0.0
  %4800 = vmatprep.subr.mxu0 0.0
  %4801 = vmatpush2.msra.mxu0 0.0
  %4802 = vmatprep.subr.mxu0 0.0
  %4803 = vmatpush2.msra.mxu0 0.0
  %4804 = vmatprep.subr.mxu0 0.0
  %4805 = vmatpush2.msra.mxu0 0.0
  %4806 = vmatprep.mubr.f32.mxu0 0.0
  %4807 = vmatmul.mubr.f32.gmra.mxu0 %v4662
  %v4808 = vpop.f32.mrf.mxu0
  %v4809 = vadd.f32 0.0, %v4808
  %v4810 = vpop.f32.mrf.mxu0
  %4811 = vmatprep.mubr.f32.mxu0 0.0
  %4812 = vmatmul.mubr.f32.gmra.mxu0 %v4665
  %v4813 = vpop.f32.mrf.mxu0
  %v4814 = vadd.f32 0.0, %v4813
  %v4815 = vpop.f32.mrf.mxu0
  %4816 = vdwg.mxu0
  %v4817 = vsel %vm2666, %v4734, %v4809
  %v4818 = vsel %vm2667, %v4739, %v4814
  %v4819 = vadd.f32 %v4817, %v4659
  %v4820 = vadd.f32 %v4818, %v4660
  %vm4821 = vmand %vm2675, %vm2701
  %vm4822 = vmand %vm2675, %vm2702
  %vm4823 = vmand %vm2692, %vm2684
  %vm4824 = vmand %vm2692, %vm2685
  %vm4825 = vmor %vm4821, %vm4823
  %vm4826 = vmor %vm4822, %vm4824
  %v4827 = vxor.u32 %v4819, 2147483648
  %v4828 = vxor.u32 %v4820, 2147483648
  %v4829 = vmul.f32 %v4827, 1.442695
  %v4830 = vpow.pop %v4829
  %v4831 = vmul.f32 %v4828, 1.442695
  %v4832 = vpow.pop %v4831
  %v4833 = vadd.f32 %v4830, 1.0
  %v4834 = vadd.f32 %v4832, 1.0
  %v4835 = vrcp.pop %v4833
  %v4836 = vmul.f32 1.0, %v4835
  %v4837 = vrcp.pop %v4834
  %v4838 = vmul.f32 1.0, %v4837
  %v4839 = vtanh.pop %v4819
  %v4840 = vtanh.pop %v4820
  %4843 = vrot.lane.b32.xlu0 %v4490, 32
  %v4844 = vpop.permute.xlu0 %4843
  %4845 = vrot.lane.b32.xlu0 %v4491, 32
  %v4846 = vpop.permute.xlu0 %4845
  %v4849 = vmul.f32 %v4836, %v4844
  %v4850 = vmul.f32 %v4838, %v4846
  %4853 = vrot.lane.b32.xlu0 %v4839, 64
  %v4854 = vpop.permute.xlu0 %4853
  %4855 = vrot.lane.b32.xlu0 %v4840, 64
  %v4856 = vpop.permute.xlu0 %4855
  %v4859 = vmul.f32 %v4836, %v4854
  %v4860 = vmul.f32 %v4838, %v4856
  %4863 = vrot.lane.b32.xlu0 %v4859, 32
  %v4864 = vpop.permute.xlu0 %4863
  %4865 = vrot.lane.b32.xlu0 %v4860, 32
  %v4866 = vpop.permute.xlu0 %4865
  %v4869 = vadd.f32 %v4849, %v4864
  %v4870 = vadd.f32 %v4850, %v4866
  %v4871 = vtanh.pop %v4869
  %v4872 = vtanh.pop %v4870
  %4875 = vrot.lane.b32.xlu0 %v4871, 64
  %v4876 = vpop.permute.xlu0 %4875
  %4877 = vrot.lane.b32.xlu0 %v4872, 64
  %v4878 = vpop.permute.xlu0 %4877
  %v4881 = vmul.f32 %v4836, %v4876
  %v4882 = vmul.f32 %v4838, %v4878
  %4885 = vrot.lane.b32.xlu0 %v4881, 32
  %v4886 = vpop.permute.xlu0 %4885
  %4887 = vrot.lane.b32.xlu0 %v4882, 32
  %v4888 = vpop.permute.xlu0 %4887
  %v4891 = vsel %vm4825, %v4886, %v4480
  %v4892 = vsel %vm4826, %v4888, %v4481
  %v4894 = vsel %vm2510, %v4646, 0
  %v4897 = vsel %vm2510, %v4647, 0
  %4899 = vmatprep.subr.mxu0 0.0
  %4900 = vmatpush1.msra.mxu0 0.0
  %4901 = vmatprep.subr.mxu0 0.0
  %4902 = vmatpush1.msra.mxu0 0.0
  %4903 = vmatprep.subr.mxu0 0.0
  %4904 = vmatpush1.msra.mxu0 0.0
  %4905 = vmatprep.subr.mxu0 0.0
  %4906 = vmatpush1.msra.mxu0 0.0
  %4907 = vmatprep.subr.mxu0 0.0
  %4908 = vmatpush1.msra.mxu0 0.0
  %4909 = vmatprep.subr.mxu0 0.0
  %4910 = vmatpush1.msra.mxu0 0.0
  %4911 = vmatprep.subr.mxu0 0.0
  %4912 = vmatpush1.msra.mxu0 0.0
  %4913 = vmatprep.subr.mxu0 0.0
  %4914 = vmatpush1.msra.mxu0 0.0
  %4915 = vmatprep.subr.mxu0 0.0
  %4916 = vmatpush1.msra.mxu0 0.0
  %4917 = vmatprep.subr.mxu0 0.0
  %4918 = vmatpush1.msra.mxu0 0.0
  %4919 = vmatprep.subr.mxu0 0.0
  %4920 = vmatpush1.msra.mxu0 0.0
  %4921 = vmatprep.subr.mxu0 0.0
  %4922 = vmatpush1.msra.mxu0 0.0
  %4923 = vmatprep.subr.mxu0 0.0
  %4924 = vmatpush1.msra.mxu0 %v2507
  %4925 = vmatprep.subr.mxu0 0.0
  %4926 = vmatpush1.msra.mxu0 %v2506
  %4927 = vmatprep.subr.mxu0 0.0
  %4928 = vmatpush1.msra.mxu0 %v2505
  %4929 = vmatprep.subr.mxu0 0.0
  %4930 = vmatpush1.msra.mxu0 %v2504
  %4931 = vmatprep.subr.mxu0 0.0
  %4932 = vmatpush2.msra.mxu0 0.0
  %4933 = vmatprep.subr.mxu0 0.0
  %4934 = vmatpush2.msra.mxu0 0.0
  %4935 = vmatprep.subr.mxu0 0.0
  %4936 = vmatpush2.msra.mxu0 0.0
  %4937 = vmatprep.subr.mxu0 0.0
  %4938 = vmatpush2.msra.mxu0 0.0
  %4939 = vmatprep.subr.mxu0 0.0
  %4940 = vmatpush2.msra.mxu0 0.0
  %4941 = vmatprep.subr.mxu0 0.0
  %4942 = vmatpush2.msra.mxu0 0.0
  %4943 = vmatprep.subr.mxu0 0.0
  %4944 = vmatpush2.msra.mxu0 0.0
  %4945 = vmatprep.subr.mxu0 0.0
  %4946 = vmatpush2.msra.mxu0 0.0
  %4947 = vmatprep.subr.mxu0 0.0
  %4948 = vmatpush2.msra.mxu0 0.0
  %4949 = vmatprep.subr.mxu0 0.0
  %4950 = vmatpush2.msra.mxu0 0.0
  %4951 = vmatprep.subr.mxu0 0.0
  %4952 = vmatpush2.msra.mxu0 0.0
  %4953 = vmatprep.subr.mxu0 0.0
  %4954 = vmatpush2.msra.mxu0 0.0
  %4955 = vmatprep.subr.mxu0 0.0
  %4956 = vmatpush2.msra.mxu0 0.0
  %4957 = vmatprep.subr.mxu0 0.0
  %4958 = vmatpush2.msra.mxu0 0.0
  %4959 = vmatprep.subr.mxu0 0.0
  %4960 = vmatpush2.msra.mxu0 0.0
  %4961 = vmatprep.subr.mxu0 0.0
  %4962 = vmatpush2.msra.mxu0 0.0
  %4963 = vmatprep.mubr.f32.mxu0 0.0
  %4964 = vmatmul.mubr.f32.gmra.mxu0 %v4894
  %v4965 = vpop.f32.mrf.mxu0
  %v4966 = vadd.f32 %v4493, %v4965
  %v4967 = vpop.f32.mrf.mxu0
  %4968 = vmatprep.mubr.f32.mxu0 0.0
  %4969 = vmatmul.mubr.f32.gmra.mxu0 %v4897
  %v4970 = vpop.f32.mrf.mxu0
  %v4971 = vadd.f32 %v4494, %v4970
  %v4972 = vpop.f32.mrf.mxu0
  %4973 = vdwg.mxu0
  %4974 = vset.pattern.permute.xlu0 1
  %4975 = vperm.xlu0 %4974, %v2693
  %v4976 = vpop.permute.xlu0 %4975
  %4977 = vset.pattern.permute.xlu0 1
  %4978 = vperm.xlu0 %4977, %v2694
  %v4979 = vpop.permute.xlu0 %4978
  %vm4980 = vcmp.eq.s32.totalorder %v4976, 1
  %vm4981 = vcmp.eq.s32.totalorder %v4979, 1
  %vm4982 = vmand %vm2675, %vm4980
  %vm4983 = vmand %vm2675, %vm4981
  %v4984 = vxor.u32 %v4966, 2147483648
  %v4985 = vxor.u32 %v4971, 2147483648
  %v4986 = vmul.f32 %v4984, 1.442695
  %v4987 = vpow.pop %v4986
  %v4988 = vmul.f32 %v4985, 1.442695
  %v4989 = vpow.pop %v4988
  %v4990 = vadd.f32 %v4987, 1.0
  %v4991 = vadd.f32 %v4989, 1.0
  %v4992 = vrcp.pop %v4990
  %v4993 = vmul.f32 1.0, %v4992
  %v4994 = vrcp.pop %v4991
  %v4995 = vmul.f32 1.0, %v4994
  %v4996 = vtanh.pop %v4966
  %v4997 = vtanh.pop %v4971
  %5000 = vrot.lane.b32.xlu0 %v4656, 32
  %v5001 = vpop.permute.xlu0 %5000
  %5002 = vrot.lane.b32.xlu0 %v4657, 32
  %v5003 = vpop.permute.xlu0 %5002
  %v5006 = vmul.f32 %v4993, %v5001
  %v5007 = vmul.f32 %v4995, %v5003
  %5010 = vrot.lane.b32.xlu0 %v4996, 64
  %v5011 = vpop.permute.xlu0 %5010
  %5012 = vrot.lane.b32.xlu0 %v4997, 64
  %v5013 = vpop.permute.xlu0 %5012
  %v5016 = vmul.f32 %v4993, %v5011
  %v5017 = vmul.f32 %v4995, %v5013
  %5020 = vrot.lane.b32.xlu0 %v5016, 32
  %v5021 = vpop.permute.xlu0 %5020
  %5022 = vrot.lane.b32.xlu0 %v5017, 32
  %v5023 = vpop.permute.xlu0 %5022
  %v5026 = vadd.f32 %v5006, %v5021
  %v5027 = vadd.f32 %v5007, %v5023
  %v5028 = vtanh.pop %v5026
  %v5029 = vtanh.pop %v5027
  %5032 = vrot.lane.b32.xlu0 %v5028, 64
  %v5033 = vpop.permute.xlu0 %5032
  %5034 = vrot.lane.b32.xlu0 %v5029, 64
  %v5035 = vpop.permute.xlu0 %5034
  %v5038 = vmul.f32 %v4993, %v5033
  %v5039 = vmul.f32 %v4995, %v5035
  %5042 = vrot.lane.b32.xlu0 %v5038, 32
  %v5043 = vpop.permute.xlu0 %5042
  %5044 = vrot.lane.b32.xlu0 %v5039, 32
  %v5045 = vpop.permute.xlu0 %5044
  %v5048 = vsel %vm4982, %v5043, %v4646
  %v5049 = vsel %vm4983, %v5045, %v4647
  %v5050 = vld [vmem:[%s2] sm:$0xff]
  %5051 = vset.pattern.permute.xlu0 3
  %5052 = vperm.xlu0 %5051, %v5050
  %v5053 = vpop.permute.xlu0 %5052
  %vm5054 = vcmp.eq.s32.totalorder %v5053, %v39
  %v5055 = vsel %vm5054, 1, 0
  %v5056 = vcvt.s32.f32 %v5055
  %v5057 = vadd.f32 %v5056, 0.0
  %5058 = vset.pattern.permute.xlu0 4
  %5059 = vperm.xlu0 %5058, %v5050
  %v5060 = vpop.permute.xlu0 %5059
  %vm5061 = vcmp.eq.s32.totalorder %v5060, %v39
  %v5062 = vsel %vm5061, 1, 0
  %v5063 = vcvt.s32.f32 %v5062
  %v5064 = vadd.f32 %v5057, %v5063
  %5065 = vset.pattern.permute.xlu0 5
  %5066 = vperm.xlu0 %5065, %v5050
  %v5067 = vpop.permute.xlu0 %5066
  %vm5068 = vcmp.eq.s32.totalorder %v5067, %v39
  %v5069 = vsel %vm5068, 1, 0
  %v5070 = vcvt.s32.f32 %v5069
  %v5071 = vadd.f32 %v5064, %v5070
  %v5072 = vmul.f32 %v5071, 0.33333334
  %vm5073 = vcmp.gt.s32.totalorder %v5050, 0
  %v5074 = vsel %vm5073, 1, 0
  %5075 = vset.pattern.permute.xlu0 2
  %5076 = vperm.xlu0 %5075, %v5074
  %v5077 = vpop.permute.xlu0 %5076
  %vm5078 = vcmp.eq.s32.totalorder %v5077, 1
  %v5079 = vsel %vm5078, %v5048, 0.0
  %v5080 = vadd.f32 %v5079, 0.0
  %vm5081 = vcmp.gt.s32.totalorder %v5050, 1
  %v5082 = vsel %vm5081, 1, 0
  %5083 = vset.pattern.permute.xlu0 2
  %5084 = vperm.xlu0 %5083, %v5082
  %v5085 = vpop.permute.xlu0 %5084
  %vm5086 = vcmp.eq.s32.totalorder %v5085, 1
  %v5087 = vsel %vm5086, %v5049, 0.0
  %v5088 = vadd.f32 %v5080, %v5087
  %v5089 = vcvt.s32.f32 %v5050
  %v5090 = vmax.f32 %v5089, 1e-10
  %5092 = vset.pattern.permute.xlu0 2
  %5093 = vperm.xlu0 %5092, %v5090
  %v5094 = vpop.permute.xlu0 %5093
  %v5096 = vrcp.pop %v5094
  %v5097 = vmul.f32 %v5088, %v5096
  %5099 = vrot.lane.b32.xlu0 %v4892, 32
  %v5100 = vpop.permute.xlu0 %5099
  %5103 = vrot.lane.b32.xlu0 %v5097, 64
  %v5104 = vpop.permute.xlu0 %5103
  %5107 = vrot.lane.b32.xlu0 %v5072, 96
  %v5108 = vpop.permute.xlu0 %5107
  %v5110 = vsel %vm2510, %v4891, %v5100
  %v5111 = vsel %vm1523, %v5110, %v5104
  %v5112 = vsel %vm184, %v5111, %v5108
  %v5113 = vld [vmem:[%s6] sm:$0xff]
  %v5114 = vld [vmem:[%s6 + $0x8] sm:$0xff]
  %v5115 = vld [vmem:[%s6 + $0x10] sm:$0xff]
  %v5116 = vld [vmem:[%s6 + $0x18] sm:$0xff]
  %v5117 = vld [vmem:[%s6 + $0x20] sm:$0xff]
  %v5118 = vld [vmem:[%s6 + $0x28] sm:$0xff]
  %v5119 = vld [vmem:[%s6 + $0x30] sm:$0xff]
  %v5120 = vld [vmem:[%s6 + $0x38] sm:$0xff]
  %v5121 = vld [vmem:[%s6 + $0x40] sm:$0xff]
  %v5122 = vld [vmem:[%s6 + $0x48] sm:$0xff]
  %v5123 = vld [vmem:[%s6 + $0x50] sm:$0xff]
  %v5124 = vld [vmem:[%s6 + $0x58] sm:$0xff]
  %v5125 = vld [vmem:[%s6 + $0x60] sm:$0xff]
  %v5126 = vld [vmem:[%s6 + $0x68] sm:$0xff]
  %v5127 = vld [vmem:[%s6 + $0x70] sm:$0xff]
  %v5128 = vld [vmem:[%s6 + $0x78] sm:$0xff]
  %v5129 = vld [vmem:[%s6 + $0x80] sm:$0xff]
  %v5130 = vld [vmem:[%s6 + $0x88] sm:$0xff]
  %v5131 = vld [vmem:[%s6 + $0x90] sm:$0xff]
  %v5132 = vld [vmem:[%s6 + $0x98] sm:$0xff]
  %v5133 = vld [vmem:[%s6 + $0xa0] sm:$0xff]
  %v5134 = vld [vmem:[%s6 + $0xa8] sm:$0xff]
  %v5135 = vld [vmem:[%s6 + $0xb0] sm:$0xff]
  %v5136 = vld [vmem:[%s6 + $0xb8] sm:$0xff]
  %v5137 = vld [vmem:[%s6 + $0xc0] sm:$0xff]
  %v5138 = vld [vmem:[%s6 + $0xc8] sm:$0xff]
  %v5139 = vld [vmem:[%s6 + $0xd0] sm:$0xff]
  %v5140 = vld [vmem:[%s6 + $0xd8] sm:$0xff]
  %vm5141 = vcmask 916480
  %v5143 = vsel %vm5141, %v5112, 0
  %5145 = vmatprep.subr.mxu0 0.0
  %5146 = vmatpush1.msra.mxu0 0.0
  %5147 = vmatprep.subr.mxu0 0.0
  %5148 = vmatpush1.msra.mxu0 0.0
  %v5149 = vand.u32 %v5140, 4294901760
  %5150 = vmatprep.subr.mxu0 %v5149
  %v5151 = vand.u32 %v5139, 4294901760
  %5152 = vmatpush1.msra.mxu0 %v5151
  %v5153 = vand.u32 %v5138, 4294901760
  %5154 = vmatprep.subr.mxu0 %v5153
  %v5155 = vand.u32 %v5137, 4294901760
  %5156 = vmatpush1.msra.mxu0 %v5155
  %v5157 = vand.u32 %v5136, 4294901760
  %5158 = vmatprep.subr.mxu0 %v5157
  %v5159 = vand.u32 %v5135, 4294901760
  %5160 = vmatpush1.msra.mxu0 %v5159
  %v5161 = vand.u32 %v5134, 4294901760
  %5162 = vmatprep.subr.mxu0 %v5161
  %v5163 = vand.u32 %v5133, 4294901760
  %5164 = vmatpush1.msra.mxu0 %v5163
  %v5165 = vand.u32 %v5132, 4294901760
  %5166 = vmatprep.subr.mxu0 %v5165
  %v5167 = vand.u32 %v5131, 4294901760
  %5168 = vmatpush1.msra.mxu0 %v5167
  %v5169 = vand.u32 %v5130, 4294901760
  %5170 = vmatprep.subr.mxu0 %v5169
  %v5171 = vand.u32 %v5129, 4294901760
  %5172 = vmatpush1.msra.mxu0 %v5171
  %v5173 = vand.u32 %v5128, 4294901760
  %5174 = vmatprep.subr.mxu0 %v5173
  %v5175 = vand.u32 %v5127, 4294901760
  %5176 = vmatpush1.msra.mxu0 %v5175
  %v5177 = vand.u32 %v5126, 4294901760
  %5178 = vmatprep.subr.mxu0 %v5177
  %v5179 = vand.u32 %v5125, 4294901760
  %5180 = vmatpush1.msra.mxu0 %v5179
  %v5181 = vand.u32 %v5124, 4294901760
  %5182 = vmatprep.subr.mxu0 %v5181
  %v5183 = vand.u32 %v5123, 4294901760
  %5184 = vmatpush1.msra.mxu0 %v5183
  %v5185 = vand.u32 %v5122, 4294901760
  %5186 = vmatprep.subr.mxu0 %v5185
  %v5187 = vand.u32 %v5121, 4294901760
  %5188 = vmatpush1.msra.mxu0 %v5187
  %v5189 = vand.u32 %v5120, 4294901760
  %5190 = vmatprep.subr.mxu0 %v5189
  %v5191 = vand.u32 %v5119, 4294901760
  %5192 = vmatpush1.msra.mxu0 %v5191
  %v5193 = vand.u32 %v5118, 4294901760
  %5194 = vmatprep.subr.mxu0 %v5193
  %v5195 = vand.u32 %v5117, 4294901760
  %5196 = vmatpush1.msra.mxu0 %v5195
  %v5197 = vand.u32 %v5116, 4294901760
  %5198 = vmatprep.subr.mxu0 %v5197
  %v5199 = vand.u32 %v5115, 4294901760
  %5200 = vmatpush1.msra.mxu0 %v5199
  %v5201 = vand.u32 %v5114, 4294901760
  %5202 = vmatprep.subr.mxu0 %v5201
  %v5203 = vand.u32 %v5113, 4294901760
  %5204 = vmatpush1.msra.mxu0 %v5203
  %5205 = vmatprep.subr.mxu0 0.0
  %5206 = vmatpush2.msra.mxu0 0.0
  %5207 = vmatprep.subr.mxu0 0.0
  %5208 = vmatpush2.msra.mxu0 0.0
  %5209 = vmatprep.subr.mxu0 0.0
  %5210 = vmatpush2.msra.mxu0 0.0
  %5211 = vmatprep.subr.mxu0 0.0
  %5212 = vmatpush2.msra.mxu0 0.0
  %5213 = vmatprep.subr.mxu0 0.0
  %5214 = vmatpush2.msra.mxu0 0.0
  %5215 = vmatprep.subr.mxu0 0.0
  %5216 = vmatpush2.msra.mxu0 0.0
  %5217 = vmatprep.subr.mxu0 0.0
  %5218 = vmatpush2.msra.mxu0 0.0
  %5219 = vmatprep.subr.mxu0 0.0
  %5220 = vmatpush2.msra.mxu0 0.0
  %5221 = vmatprep.subr.mxu0 0.0
  %5222 = vmatpush2.msra.mxu0 0.0
  %5223 = vmatprep.subr.mxu0 0.0
  %5224 = vmatpush2.msra.mxu0 0.0
  %5225 = vmatprep.subr.mxu0 0.0
  %5226 = vmatpush2.msra.mxu0 0.0
  %5227 = vmatprep.subr.mxu0 0.0
  %5228 = vmatpush2.msra.mxu0 0.0
  %5229 = vmatprep.subr.mxu0 0.0
  %5230 = vmatpush2.msra.mxu0 0.0
  %5231 = vmatprep.subr.mxu0 0.0
  %5232 = vmatpush2.msra.mxu0 0.0
  %5233 = vmatprep.subr.mxu0 0.0
  %5234 = vmatpush2.msra.mxu0 0.0
  %5235 = vmatprep.subr.mxu0 0.0
  %5236 = vmatpush2.msra.mxu0 0.0
  %5237 = vmatprep.mubr.f32.mxu0 0.0
  %v5238 = vand.u32 %v5143, 4294901760
  %v5239 = vsub.f32 %v5143, %v5238
  %v5240 = vand.u32 %v5239, 4294901760
  %v5241 = vsub.f32 %v5239, %v5240
  %v5242 = vand.u32 %v5241, 4294901760
  %5243 = vmatmul.mubr.f32.gmra.mxu0 %v5242
  %v5244 = vpop.f32.mrf.mxu0
  %v5245 = vadd.f32 0.0, %v5244
  %v5246 = vpop.f32.mrf.mxu0
  %v5247 = vadd.f32 0.0, %v5246
  %5248 = vdwg.mxu0
  %5249 = vmatprep.subr.mxu0 0.0
  %5250 = vmatpush1.msra.mxu0 0.0
  %5251 = vmatprep.subr.mxu0 0.0
  %5252 = vmatpush1.msra.mxu0 0.0
  %v5253 = vand.u32 %v5140, 4294901760
  %v5254 = vsub.f32 %v5140, %v5253
  %v5255 = vand.u32 %v5254, 4294901760
  %v5256 = vsub.f32 %v5254, %v5255
  %v5257 = vand.u32 %v5256, 4294901760
  %5258 = vmatprep.subr.mxu0 %v5257
  %v5259 = vand.u32 %v5139, 4294901760
  %v5260 = vsub.f32 %v5139, %v5259
  %v5261 = vand.u32 %v5260, 4294901760
  %v5262 = vsub.f32 %v5260, %v5261
  %v5263 = vand.u32 %v5262, 4294901760
  %5264 = vmatpush1.msra.mxu0 %v5263
  %v5265 = vand.u32 %v5138, 4294901760
  %v5266 = vsub.f32 %v5138, %v5265
  %v5267 = vand.u32 %v5266, 4294901760
  %v5268 = vsub.f32 %v5266, %v5267
  %v5269 = vand.u32 %v5268, 4294901760
  %5270 = vmatprep.subr.mxu0 %v5269
  %v5271 = vand.u32 %v5137, 4294901760
  %v5272 = vsub.f32 %v5137, %v5271
  %v5273 = vand.u32 %v5272, 4294901760
  %v5274 = vsub.f32 %v5272, %v5273
  %v5275 = vand.u32 %v5274, 4294901760
  %5276 = vmatpush1.msra.mxu0 %v5275
  %v5277 = vand.u32 %v5136, 4294901760
  %v5278 = vsub.f32 %v5136, %v5277
  %v5279 = vand.u32 %v5278, 4294901760
  %v5280 = vsub.f32 %v5278, %v5279
  %v5281 = vand.u32 %v5280, 4294901760
  %5282 = vmatprep.subr.mxu0 %v5281
  %v5283 = vand.u32 %v5135, 4294901760
  %v5284 = vsub.f32 %v5135, %v5283
  %v5285 = vand.u32 %v5284, 4294901760
  %v5286 = vsub.f32 %v5284, %v5285
  %v5287 = vand.u32 %v5286, 4294901760
  %5288 = vmatpush1.msra.mxu0 %v5287
  %v5289 = vand.u32 %v5134, 4294901760
  %v5290 = vsub.f32 %v5134, %v5289
  %v5291 = vand.u32 %v5290, 4294901760
  %v5292 = vsub.f32 %v5290, %v5291
  %v5293 = vand.u32 %v5292, 4294901760
  %5294 = vmatprep.subr.mxu0 %v5293
  %v5295 = vand.u32 %v5133, 4294901760
  %v5296 = vsub.f32 %v5133, %v5295
  %v5297 = vand.u32 %v5296, 4294901760
  %v5298 = vsub.f32 %v5296, %v5297
  %v5299 = vand.u32 %v5298, 4294901760
  %5300 = vmatpush1.msra.mxu0 %v5299
  %v5301 = vand.u32 %v5132, 4294901760
  %v5302 = vsub.f32 %v5132, %v5301
  %v5303 = vand.u32 %v5302, 4294901760
  %v5304 = vsub.f32 %v5302, %v5303
  %v5305 = vand.u32 %v5304, 4294901760
  %5306 = vmatprep.subr.mxu0 %v5305
  %v5307 = vand.u32 %v5131, 4294901760
  %v5308 = vsub.f32 %v5131, %v5307
  %v5309 = vand.u32 %v5308, 4294901760
  %v5310 = vsub.f32 %v5308, %v5309
  %v5311 = vand.u32 %v5310, 4294901760
  %5312 = vmatpush1.msra.mxu0 %v5311
  %v5313 = vand.u32 %v5130, 4294901760
  %v5314 = vsub.f32 %v5130, %v5313
  %v5315 = vand.u32 %v5314, 4294901760
  %v5316 = vsub.f32 %v5314, %v5315
  %v5317 = vand.u32 %v5316, 4294901760
  %5318 = vmatprep.subr.mxu0 %v5317
  %v5319 = vand.u32 %v5129, 4294901760
  %v5320 = vsub.f32 %v5129, %v5319
  %v5321 = vand.u32 %v5320, 4294901760
  %v5322 = vsub.f32 %v5320, %v5321
  %v5323 = vand.u32 %v5322, 4294901760
  %5324 = vmatpush1.msra.mxu0 %v5323
  %v5325 = vand.u32 %v5128, 4294901760
  %v5326 = vsub.f32 %v5128, %v5325
  %v5327 = vand.u32 %v5326, 4294901760
  %v5328 = vsub.f32 %v5326, %v5327
  %v5329 = vand.u32 %v5328, 4294901760
  %5330 = vmatprep.subr.mxu0 %v5329
  %v5331 = vand.u32 %v5127, 4294901760
  %v5332 = vsub.f32 %v5127, %v5331
  %v5333 = vand.u32 %v5332, 4294901760
  %v5334 = vsub.f32 %v5332, %v5333
  %v5335 = vand.u32 %v5334, 4294901760
  %5336 = vmatpush1.msra.mxu0 %v5335
  %v5337 = vand.u32 %v5126, 4294901760
  %v5338 = vsub.f32 %v5126, %v5337
  %v5339 = vand.u32 %v5338, 4294901760
  %v5340 = vsub.f32 %v5338, %v5339
  %v5341 = vand.u32 %v5340, 4294901760
  %5342 = vmatprep.subr.mxu0 %v5341
  %v5343 = vand.u32 %v5125, 4294901760
  %v5344 = vsub.f32 %v5125, %v5343
  %v5345 = vand.u32 %v5344, 4294901760
  %v5346 = vsub.f32 %v5344, %v5345
  %v5347 = vand.u32 %v5346, 4294901760
  %5348 = vmatpush1.msra.mxu0 %v5347
  %v5349 = vand.u32 %v5124, 4294901760
  %v5350 = vsub.f32 %v5124, %v5349
  %v5351 = vand.u32 %v5350, 4294901760
  %v5352 = vsub.f32 %v5350, %v5351
  %v5353 = vand.u32 %v5352, 4294901760
  %5354 = vmatprep.subr.mxu0 %v5353
  %v5355 = vand.u32 %v5123, 4294901760
  %v5356 = vsub.f32 %v5123, %v5355
  %v5357 = vand.u32 %v5356, 4294901760
  %v5358 = vsub.f32 %v5356, %v5357
  %v5359 = vand.u32 %v5358, 4294901760
  %5360 = vmatpush1.msra.mxu0 %v5359
  %v5361 = vand.u32 %v5122, 4294901760
  %v5362 = vsub.f32 %v5122, %v5361
  %v5363 = vand.u32 %v5362, 4294901760
  %v5364 = vsub.f32 %v5362, %v5363
  %v5365 = vand.u32 %v5364, 4294901760
  %5366 = vmatprep.subr.mxu0 %v5365
  %v5367 = vand.u32 %v5121, 4294901760
  %v5368 = vsub.f32 %v5121, %v5367
  %v5369 = vand.u32 %v5368, 4294901760
  %v5370 = vsub.f32 %v5368, %v5369
  %v5371 = vand.u32 %v5370, 4294901760
  %5372 = vmatpush1.msra.mxu0 %v5371
  %v5373 = vand.u32 %v5120, 4294901760
  %v5374 = vsub.f32 %v5120, %v5373
  %v5375 = vand.u32 %v5374, 4294901760
  %v5376 = vsub.f32 %v5374, %v5375
  %v5377 = vand.u32 %v5376, 4294901760
  %5378 = vmatprep.subr.mxu0 %v5377
  %v5379 = vand.u32 %v5119, 4294901760
  %v5380 = vsub.f32 %v5119, %v5379
  %v5381 = vand.u32 %v5380, 4294901760
  %v5382 = vsub.f32 %v5380, %v5381
  %v5383 = vand.u32 %v5382, 4294901760
  %5384 = vmatpush1.msra.mxu0 %v5383
  %v5385 = vand.u32 %v5118, 4294901760
  %v5386 = vsub.f32 %v5118, %v5385
  %v5387 = vand.u32 %v5386, 4294901760
  %v5388 = vsub.f32 %v5386, %v5387
  %v5389 = vand.u32 %v5388, 4294901760
  %5390 = vmatprep.subr.mxu0 %v5389
  %v5391 = vand.u32 %v5117, 4294901760
  %v5392 = vsub.f32 %v5117, %v5391
  %v5393 = vand.u32 %v5392, 4294901760
  %v5394 = vsub.f32 %v5392, %v5393
  %v5395 = vand.u32 %v5394, 4294901760
  %5396 = vmatpush1.msra.mxu0 %v5395
  %v5397 = vand.u32 %v5116, 4294901760
  %v5398 = vsub.f32 %v5116, %v5397
  %v5399 = vand.u32 %v5398, 4294901760
  %v5400 = vsub.f32 %v5398, %v5399
  %v5401 = vand.u32 %v5400, 4294901760
  %5402 = vmatprep.subr.mxu0 %v5401
  %v5403 = vand.u32 %v5115, 4294901760
  %v5404 = vsub.f32 %v5115, %v5403
  %v5405 = vand.u32 %v5404, 4294901760
  %v5406 = vsub.f32 %v5404, %v5405
  %v5407 = vand.u32 %v5406, 4294901760
  %5408 = vmatpush1.msra.mxu0 %v5407
  %v5409 = vand.u32 %v5114, 4294901760
  %v5410 = vsub.f32 %v5114, %v5409
  %v5411 = vand.u32 %v5410, 4294901760
  %v5412 = vsub.f32 %v5410, %v5411
  %v5413 = vand.u32 %v5412, 4294901760
  %5414 = vmatprep.subr.mxu0 %v5413
  %v5415 = vand.u32 %v5113, 4294901760
  %v5416 = vsub.f32 %v5113, %v5415
  %v5417 = vand.u32 %v5416, 4294901760
  %v5418 = vsub.f32 %v5416, %v5417
  %v5419 = vand.u32 %v5418, 4294901760
  %5420 = vmatpush1.msra.mxu0 %v5419
  %5421 = vmatprep.subr.mxu0 0.0
  %5422 = vmatpush2.msra.mxu0 0.0
  %5423 = vmatprep.subr.mxu0 0.0
  %5424 = vmatpush2.msra.mxu0 0.0
  %5425 = vmatprep.subr.mxu0 0.0
  %5426 = vmatpush2.msra.mxu0 0.0
  %5427 = vmatprep.subr.mxu0 0.0
  %5428 = vmatpush2.msra.mxu0 0.0
  %5429 = vmatprep.subr.mxu0 0.0
  %5430 = vmatpush2.msra.mxu0 0.0
  %5431 = vmatprep.subr.mxu0 0.0
  %5432 = vmatpush2.msra.mxu0 0.0
  %5433 = vmatprep.subr.mxu0 0.0
  %5434 = vmatpush2.msra.mxu0 0.0
  %5435 = vmatprep.subr.mxu0 0.0
  %5436 = vmatpush2.msra.mxu0 0.0
  %5437 = vmatprep.subr.mxu0 0.0
  %5438 = vmatpush2.msra.mxu0 0.0
  %5439 = vmatprep.subr.mxu0 0.0
  %5440 = vmatpush2.msra.mxu0 0.0
  %5441 = vmatprep.subr.mxu0 0.0
  %5442 = vmatpush2.msra.mxu0 0.0
  %5443 = vmatprep.subr.mxu0 0.0
  %5444 = vmatpush2.msra.mxu0 0.0
  %5445 = vmatprep.subr.mxu0 0.0
  %5446 = vmatpush2.msra.mxu0 0.0
  %5447 = vmatprep.subr.mxu0 0.0
  %5448 = vmatpush2.msra.mxu0 0.0
  %5449 = vmatprep.subr.mxu0 0.0
  %5450 = vmatpush2.msra.mxu0 0.0
  %5451 = vmatprep.subr.mxu0 0.0
  %5452 = vmatpush2.msra.mxu0 0.0
  %5453 = vmatprep.mubr.f32.mxu0 0.0
  %v5454 = vand.u32 %v5143, 4294901760
  %5455 = vmatmul.mubr.f32.gmra.mxu0 %v5454
  %v5456 = vpop.f32.mrf.mxu0
  %v5457 = vadd.f32 %v5245, %v5456
  %v5458 = vpop.f32.mrf.mxu0
  %v5459 = vadd.f32 %v5247, %v5458
  %5460 = vdwg.mxu0
  %5461 = vmatprep.subr.mxu0 0.0
  %5462 = vmatpush1.msra.mxu0 0.0
  %5463 = vmatprep.subr.mxu0 0.0
  %5464 = vmatpush1.msra.mxu0 0.0
  %v5465 = vand.u32 %v5140, 4294901760
  %v5466 = vsub.f32 %v5140, %v5465
  %5467 = vmatprep.subr.mxu0 %v5466
  %v5468 = vand.u32 %v5139, 4294901760
  %v5469 = vsub.f32 %v5139, %v5468
  %5470 = vmatpush1.msra.mxu0 %v5469
  %v5471 = vand.u32 %v5138, 4294901760
  %v5472 = vsub.f32 %v5138, %v5471
  %5473 = vmatprep.subr.mxu0 %v5472
  %v5474 = vand.u32 %v5137, 4294901760
  %v5475 = vsub.f32 %v5137, %v5474
  %5476 = vmatpush1.msra.mxu0 %v5475
  %v5477 = vand.u32 %v5136, 4294901760
  %v5478 = vsub.f32 %v5136, %v5477
  %5479 = vmatprep.subr.mxu0 %v5478
  %v5480 = vand.u32 %v5135, 4294901760
  %v5481 = vsub.f32 %v5135, %v5480
  %5482 = vmatpush1.msra.mxu0 %v5481
  %v5483 = vand.u32 %v5134, 4294901760
  %v5484 = vsub.f32 %v5134, %v5483
  %5485 = vmatprep.subr.mxu0 %v5484
  %v5486 = vand.u32 %v5133, 4294901760
  %v5487 = vsub.f32 %v5133, %v5486
  %5488 = vmatpush1.msra.mxu0 %v5487
  %v5489 = vand.u32 %v5132, 4294901760
  %v5490 = vsub.f32 %v5132, %v5489
  %5491 = vmatprep.subr.mxu0 %v5490
  %v5492 = vand.u32 %v5131, 4294901760
  %v5493 = vsub.f32 %v5131, %v5492
  %5494 = vmatpush1.msra.mxu0 %v5493
  %v5495 = vand.u32 %v5130, 4294901760
  %v5496 = vsub.f32 %v5130, %v5495
  %5497 = vmatprep.subr.mxu0 %v5496
  %v5498 = vand.u32 %v5129, 4294901760
  %v5499 = vsub.f32 %v5129, %v5498
  %5500 = vmatpush1.msra.mxu0 %v5499
  %v5501 = vand.u32 %v5128, 4294901760
  %v5502 = vsub.f32 %v5128, %v5501
  %5503 = vmatprep.subr.mxu0 %v5502
  %v5504 = vand.u32 %v5127, 4294901760
  %v5505 = vsub.f32 %v5127, %v5504
  %5506 = vmatpush1.msra.mxu0 %v5505
  %v5507 = vand.u32 %v5126, 4294901760
  %v5508 = vsub.f32 %v5126, %v5507
  %5509 = vmatprep.subr.mxu0 %v5508
  %v5510 = vand.u32 %v5125, 4294901760
  %v5511 = vsub.f32 %v5125, %v5510
  %5512 = vmatpush1.msra.mxu0 %v5511
  %v5513 = vand.u32 %v5124, 4294901760
  %v5514 = vsub.f32 %v5124, %v5513
  %5515 = vmatprep.subr.mxu0 %v5514
  %v5516 = vand.u32 %v5123, 4294901760
  %v5517 = vsub.f32 %v5123, %v5516
  %5518 = vmatpush1.msra.mxu0 %v5517
  %v5519 = vand.u32 %v5122, 4294901760
  %v5520 = vsub.f32 %v5122, %v5519
  %5521 = vmatprep.subr.mxu0 %v5520
  %v5522 = vand.u32 %v5121, 4294901760
  %v5523 = vsub.f32 %v5121, %v5522
  %5524 = vmatpush1.msra.mxu0 %v5523
  %v5525 = vand.u32 %v5120, 4294901760
  %v5526 = vsub.f32 %v5120, %v5525
  %5527 = vmatprep.subr.mxu0 %v5526
  %v5528 = vand.u32 %v5119, 4294901760
  %v5529 = vsub.f32 %v5119, %v5528
  %5530 = vmatpush1.msra.mxu0 %v5529
  %v5531 = vand.u32 %v5118, 4294901760
  %v5532 = vsub.f32 %v5118, %v5531
  %5533 = vmatprep.subr.mxu0 %v5532
  %v5534 = vand.u32 %v5117, 4294901760
  %v5535 = vsub.f32 %v5117, %v5534
  %5536 = vmatpush1.msra.mxu0 %v5535
  %v5537 = vand.u32 %v5116, 4294901760
  %v5538 = vsub.f32 %v5116, %v5537
  %5539 = vmatprep.subr.mxu0 %v5538
  %v5540 = vand.u32 %v5115, 4294901760
  %v5541 = vsub.f32 %v5115, %v5540
  %5542 = vmatpush1.msra.mxu0 %v5541
  %v5543 = vand.u32 %v5114, 4294901760
  %v5544 = vsub.f32 %v5114, %v5543
  %5545 = vmatprep.subr.mxu0 %v5544
  %v5546 = vand.u32 %v5113, 4294901760
  %v5547 = vsub.f32 %v5113, %v5546
  %5548 = vmatpush1.msra.mxu0 %v5547
  %5549 = vmatprep.subr.mxu0 0.0
  %5550 = vmatpush2.msra.mxu0 0.0
  %5551 = vmatprep.subr.mxu0 0.0
  %5552 = vmatpush2.msra.mxu0 0.0
  %5553 = vmatprep.subr.mxu0 0.0
  %5554 = vmatpush2.msra.mxu0 0.0
  %5555 = vmatprep.subr.mxu0 0.0
  %5556 = vmatpush2.msra.mxu0 0.0
  %5557 = vmatprep.subr.mxu0 0.0
  %5558 = vmatpush2.msra.mxu0 0.0
  %5559 = vmatprep.subr.mxu0 0.0
  %5560 = vmatpush2.msra.mxu0 0.0
  %5561 = vmatprep.subr.mxu0 0.0
  %5562 = vmatpush2.msra.mxu0 0.0
  %5563 = vmatprep.subr.mxu0 0.0
  %5564 = vmatpush2.msra.mxu0 0.0
  %5565 = vmatprep.subr.mxu0 0.0
  %5566 = vmatpush2.msra.mxu0 0.0
  %5567 = vmatprep.subr.mxu0 0.0
  %5568 = vmatpush2.msra.mxu0 0.0
  %5569 = vmatprep.subr.mxu0 0.0
  %5570 = vmatpush2.msra.mxu0 0.0
  %5571 = vmatprep.subr.mxu0 0.0
  %5572 = vmatpush2.msra.mxu0 0.0
  %5573 = vmatprep.subr.mxu0 0.0
  %5574 = vmatpush2.msra.mxu0 0.0
  %5575 = vmatprep.subr.mxu0 0.0
  %5576 = vmatpush2.msra.mxu0 0.0
  %5577 = vmatprep.subr.mxu0 0.0
  %5578 = vmatpush2.msra.mxu0 0.0
  %5579 = vmatprep.subr.mxu0 0.0
  %5580 = vmatpush2.msra.mxu0 0.0
  %5581 = vmatprep.mubr.f32.mxu0 0.0
  %v5582 = vand.u32 %v5143, 4294901760
  %v5583 = vsub.f32 %v5143, %v5582
  %5584 = vmatmul.mubr.f32.gmra.mxu0 %v5583
  %v5585 = vpop.f32.mrf.mxu0
  %v5586 = vadd.f32 %v5457, %v5585
  %v5587 = vpop.f32.mrf.mxu0
  %v5588 = vadd.f32 %v5459, %v5587
  %5589 = vdwg.mxu0
  %5590 = vmatprep.subr.mxu0 0.0
  %5591 = vmatpush1.msra.mxu0 0.0
  %5592 = vmatprep.subr.mxu0 0.0
  %5593 = vmatpush1.msra.mxu0 0.0
  %v5594 = vand.u32 %v5140, 4294901760
  %5595 = vmatprep.subr.mxu0 %v5594
  %v5596 = vand.u32 %v5139, 4294901760
  %5597 = vmatpush1.msra.mxu0 %v5596
  %v5598 = vand.u32 %v5138, 4294901760
  %5599 = vmatprep.subr.mxu0 %v5598
  %v5600 = vand.u32 %v5137, 4294901760
  %5601 = vmatpush1.msra.mxu0 %v5600
  %v5602 = vand.u32 %v5136, 4294901760
  %5603 = vmatprep.subr.mxu0 %v5602
  %v5604 = vand.u32 %v5135, 4294901760
  %5605 = vmatpush1.msra.mxu0 %v5604
  %v5606 = vand.u32 %v5134, 4294901760
  %5607 = vmatprep.subr.mxu0 %v5606
  %v5608 = vand.u32 %v5133, 4294901760
  %5609 = vmatpush1.msra.mxu0 %v5608
  %v5610 = vand.u32 %v5132, 4294901760
  %5611 = vmatprep.subr.mxu0 %v5610
  %v5612 = vand.u32 %v5131, 4294901760
  %5613 = vmatpush1.msra.mxu0 %v5612
  %v5614 = vand.u32 %v5130, 4294901760
  %5615 = vmatprep.subr.mxu0 %v5614
  %v5616 = vand.u32 %v5129, 4294901760
  %5617 = vmatpush1.msra.mxu0 %v5616
  %v5618 = vand.u32 %v5128, 4294901760
  %5619 = vmatprep.subr.mxu0 %v5618
  %v5620 = vand.u32 %v5127, 4294901760
  %5621 = vmatpush1.msra.mxu0 %v5620
  %v5622 = vand.u32 %v5126, 4294901760
  %5623 = vmatprep.subr.mxu0 %v5622
  %v5624 = vand.u32 %v5125, 4294901760
  %5625 = vmatpush1.msra.mxu0 %v5624
  %v5626 = vand.u32 %v5124, 4294901760
  %5627 = vmatprep.subr.mxu0 %v5626
  %v5628 = vand.u32 %v5123, 4294901760
  %5629 = vmatpush1.msra.mxu0 %v5628
  %v5630 = vand.u32 %v5122, 4294901760
  %5631 = vmatprep.subr.mxu0 %v5630
  %v5632 = vand.u32 %v5121, 4294901760
  %5633 = vmatpush1.msra.mxu0 %v5632
  %v5634 = vand.u32 %v5120, 4294901760
  %5635 = vmatprep.subr.mxu0 %v5634
  %v5636 = vand.u32 %v5119, 4294901760
  %5637 = vmatpush1.msra.mxu0 %v5636
  %v5638 = vand.u32 %v5118, 4294901760
  %5639 = vmatprep.subr.mxu0 %v5638
  %v5640 = vand.u32 %v5117, 4294901760
  %5641 = vmatpush1.msra.mxu0 %v5640
  %v5642 = vand.u32 %v5116, 4294901760
  %5643 = vmatprep.subr.mxu0 %v5642
  %v5644 = vand.u32 %v5115, 4294901760
  %5645 = vmatpush1.msra.mxu0 %v5644
  %v5646 = vand.u32 %v5114, 4294901760
  %5647 = vmatprep.subr.mxu0 %v5646
  %v5648 = vand.u32 %v5113, 4294901760
  %5649 = vmatpush1.msra.mxu0 %v5648
  %5650 = vmatprep.subr.mxu0 0.0
  %5651 = vmatpush2.msra.mxu0 0.0
  %5652 = vmatprep.subr.mxu0 0.0
  %5653 = vmatpush2.msra.mxu0 0.0
  %5654 = vmatprep.subr.mxu0 0.0
  %5655 = vmatpush2.msra.mxu0 0.0
  %5656 = vmatprep.subr.mxu0 0.0
  %5657 = vmatpush2.msra.mxu0 0.0
  %5658 = vmatprep.subr.mxu0 0.0
  %5659 = vmatpush2.msra.mxu0 0.0
  %5660 = vmatprep.subr.mxu0 0.0
  %5661 = vmatpush2.msra.mxu0 0.0
  %5662 = vmatprep.subr.mxu0 0.0
  %5663 = vmatpush2.msra.mxu0 0.0
  %5664 = vmatprep.subr.mxu0 0.0
  %5665 = vmatpush2.msra.mxu0 0.0
  %5666 = vmatprep.subr.mxu0 0.0
  %5667 = vmatpush2.msra.mxu0 0.0
  %5668 = vmatprep.subr.mxu0 0.0
  %5669 = vmatpush2.msra.mxu0 0.0
  %5670 = vmatprep.subr.mxu0 0.0
  %5671 = vmatpush2.msra.mxu0 0.0
  %5672 = vmatprep.subr.mxu0 0.0
  %5673 = vmatpush2.msra.mxu0 0.0
  %5674 = vmatprep.subr.mxu0 0.0
  %5675 = vmatpush2.msra.mxu0 0.0
  %5676 = vmatprep.subr.mxu0 0.0
  %5677 = vmatpush2.msra.mxu0 0.0
  %5678 = vmatprep.subr.mxu0 0.0
  %5679 = vmatpush2.msra.mxu0 0.0
  %5680 = vmatprep.subr.mxu0 0.0
  %5681 = vmatpush2.msra.mxu0 0.0
  %5682 = vmatprep.mubr.f32.mxu0 0.0
  %v5683 = vand.u32 %v5143, 4294901760
  %v5684 = vsub.f32 %v5143, %v5683
  %v5685 = vand.u32 %v5684, 4294901760
  %5686 = vmatmul.mubr.f32.gmra.mxu0 %v5685
  %v5687 = vpop.f32.mrf.mxu0
  %v5688 = vadd.f32 %v5586, %v5687
  %v5689 = vpop.f32.mrf.mxu0
  %v5690 = vadd.f32 %v5588, %v5689
  %5691 = vdwg.mxu0
  %5692 = vmatprep.subr.mxu0 0.0
  %5693 = vmatpush1.msra.mxu0 0.0
  %5694 = vmatprep.subr.mxu0 0.0
  %5695 = vmatpush1.msra.mxu0 0.0
  %v5696 = vand.u32 %v5140, 4294901760
  %v5697 = vsub.f32 %v5140, %v5696
  %v5698 = vand.u32 %v5697, 4294901760
  %5699 = vmatprep.subr.mxu0 %v5698
  %v5700 = vand.u32 %v5139, 4294901760
  %v5701 = vsub.f32 %v5139, %v5700
  %v5702 = vand.u32 %v5701, 4294901760
  %5703 = vmatpush1.msra.mxu0 %v5702
  %v5704 = vand.u32 %v5138, 4294901760
  %v5705 = vsub.f32 %v5138, %v5704
  %v5706 = vand.u32 %v5705, 4294901760
  %5707 = vmatprep.subr.mxu0 %v5706
  %v5708 = vand.u32 %v5137, 4294901760
  %v5709 = vsub.f32 %v5137, %v5708
  %v5710 = vand.u32 %v5709, 4294901760
  %5711 = vmatpush1.msra.mxu0 %v5710
  %v5712 = vand.u32 %v5136, 4294901760
  %v5713 = vsub.f32 %v5136, %v5712
  %v5714 = vand.u32 %v5713, 4294901760
  %5715 = vmatprep.subr.mxu0 %v5714
  %v5716 = vand.u32 %v5135, 4294901760
  %v5717 = vsub.f32 %v5135, %v5716
  %v5718 = vand.u32 %v5717, 4294901760
  %5719 = vmatpush1.msra.mxu0 %v5718
  %v5720 = vand.u32 %v5134, 4294901760
  %v5721 = vsub.f32 %v5134, %v5720
  %v5722 = vand.u32 %v5721, 4294901760
  %5723 = vmatprep.subr.mxu0 %v5722
  %v5724 = vand.u32 %v5133, 4294901760
  %v5725 = vsub.f32 %v5133, %v5724
  %v5726 = vand.u32 %v5725, 4294901760
  %5727 = vmatpush1.msra.mxu0 %v5726
  %v5728 = vand.u32 %v5132, 4294901760
  %v5729 = vsub.f32 %v5132, %v5728
  %v5730 = vand.u32 %v5729, 4294901760
  %5731 = vmatprep.subr.mxu0 %v5730
  %v5732 = vand.u32 %v5131, 4294901760
  %v5733 = vsub.f32 %v5131, %v5732
  %v5734 = vand.u32 %v5733, 4294901760
  %5735 = vmatpush1.msra.mxu0 %v5734
  %v5736 = vand.u32 %v5130, 4294901760
  %v5737 = vsub.f32 %v5130, %v5736
  %v5738 = vand.u32 %v5737, 4294901760
  %5739 = vmatprep.subr.mxu0 %v5738
  %v5740 = vand.u32 %v5129, 4294901760
  %v5741 = vsub.f32 %v5129, %v5740
  %v5742 = vand.u32 %v5741, 4294901760
  %5743 = vmatpush1.msra.mxu0 %v5742
  %v5744 = vand.u32 %v5128, 4294901760
  %v5745 = vsub.f32 %v5128, %v5744
  %v5746 = vand.u32 %v5745, 4294901760
  %5747 = vmatprep.subr.mxu0 %v5746
  %v5748 = vand.u32 %v5127, 4294901760
  %v5749 = vsub.f32 %v5127, %v5748
  %v5750 = vand.u32 %v5749, 4294901760
  %5751 = vmatpush1.msra.mxu0 %v5750
  %v5752 = vand.u32 %v5126, 4294901760
  %v5753 = vsub.f32 %v5126, %v5752
  %v5754 = vand.u32 %v5753, 4294901760
  %5755 = vmatprep.subr.mxu0 %v5754
  %v5756 = vand.u32 %v5125, 4294901760
  %v5757 = vsub.f32 %v5125, %v5756
  %v5758 = vand.u32 %v5757, 4294901760
  %5759 = vmatpush1.msra.mxu0 %v5758
  %v5760 = vand.u32 %v5124, 4294901760
  %v5761 = vsub.f32 %v5124, %v5760
  %v5762 = vand.u32 %v5761, 4294901760
  %5763 = vmatprep.subr.mxu0 %v5762
  %v5764 = vand.u32 %v5123, 4294901760
  %v5765 = vsub.f32 %v5123, %v5764
  %v5766 = vand.u32 %v5765, 4294901760
  %5767 = vmatpush1.msra.mxu0 %v5766
  %v5768 = vand.u32 %v5122, 4294901760
  %v5769 = vsub.f32 %v5122, %v5768
  %v5770 = vand.u32 %v5769, 4294901760
  %5771 = vmatprep.subr.mxu0 %v5770
  %v5772 = vand.u32 %v5121, 4294901760
  %v5773 = vsub.f32 %v5121, %v5772
  %v5774 = vand.u32 %v5773, 4294901760
  %5775 = vmatpush1.msra.mxu0 %v5774
  %v5776 = vand.u32 %v5120, 4294901760
  %v5777 = vsub.f32 %v5120, %v5776
  %v5778 = vand.u32 %v5777, 4294901760
  %5779 = vmatprep.subr.mxu0 %v5778
  %v5780 = vand.u32 %v5119, 4294901760
  %v5781 = vsub.f32 %v5119, %v5780
  %v5782 = vand.u32 %v5781, 4294901760
  %5783 = vmatpush1.msra.mxu0 %v5782
  %v5784 = vand.u32 %v5118, 4294901760
  %v5785 = vsub.f32 %v5118, %v5784
  %v5786 = vand.u32 %v5785, 4294901760
  %5787 = vmatprep.subr.mxu0 %v5786
  %v5788 = vand.u32 %v5117, 4294901760
  %v5789 = vsub.f32 %v5117, %v5788
  %v5790 = vand.u32 %v5789, 4294901760
  %5791 = vmatpush1.msra.mxu0 %v5790
  %v5792 = vand.u32 %v5116, 4294901760
  %v5793 = vsub.f32 %v5116, %v5792
  %v5794 = vand.u32 %v5793, 4294901760
  %5795 = vmatprep.subr.mxu0 %v5794
  %v5796 = vand.u32 %v5115, 4294901760
  %v5797 = vsub.f32 %v5115, %v5796
  %v5798 = vand.u32 %v5797, 4294901760
  %5799 = vmatpush1.msra.mxu0 %v5798
  %v5800 = vand.u32 %v5114, 4294901760
  %v5801 = vsub.f32 %v5114, %v5800
  %v5802 = vand.u32 %v5801, 4294901760
  %5803 = vmatprep.subr.mxu0 %v5802
  %v5804 = vand.u32 %v5113, 4294901760
  %v5805 = vsub.f32 %v5113, %v5804
  %v5806 = vand.u32 %v5805, 4294901760
  %5807 = vmatpush1.msra.mxu0 %v5806
  %5808 = vmatprep.subr.mxu0 0.0
  %5809 = vmatpush2.msra.mxu0 0.0
  %5810 = vmatprep.subr.mxu0 0.0
  %5811 = vmatpush2.msra.mxu0 0.0
  %5812 = vmatprep.subr.mxu0 0.0
  %5813 = vmatpush2.msra.mxu0 0.0
  %5814 = vmatprep.subr.mxu0 0.0
  %5815 = vmatpush2.msra.mxu0 0.0
  %5816 = vmatprep.subr.mxu0 0.0
  %5817 = vmatpush2.msra.mxu0 0.0
  %5818 = vmatprep.subr.mxu0 0.0
  %5819 = vmatpush2.msra.mxu0 0.0
  %5820 = vmatprep.subr.mxu0 0.0
  %5821 = vmatpush2.msra.mxu0 0.0
  %5822 = vmatprep.subr.mxu0 0.0
  %5823 = vmatpush2.msra.mxu0 0.0
  %5824 = vmatprep.subr.mxu0 0.0
  %5825 = vmatpush2.msra.mxu0 0.0
  %5826 = vmatprep.subr.mxu0 0.0
  %5827 = vmatpush2.msra.mxu0 0.0
  %5828 = vmatprep.subr.mxu0 0.0
  %5829 = vmatpush2.msra.mxu0 0.0
  %5830 = vmatprep.subr.mxu0 0.0
  %5831 = vmatpush2.msra.mxu0 0.0
  %5832 = vmatprep.subr.mxu0 0.0
  %5833 = vmatpush2.msra.mxu0 0.0
  %5834 = vmatprep.subr.mxu0 0.0
  %5835 = vmatpush2.msra.mxu0 0.0
  %5836 = vmatprep.subr.mxu0 0.0
  %5837 = vmatpush2.msra.mxu0 0.0
  %5838 = vmatprep.subr.mxu0 0.0
  %5839 = vmatpush2.msra.mxu0 0.0
  %5840 = vmatprep.mubr.f32.mxu0 0.0
  %v5841 = vand.u32 %v5143, 4294901760
  %5842 = vmatmul.mubr.f32.gmra.mxu0 %v5841
  %v5843 = vpop.f32.mrf.mxu0
  %v5844 = vadd.f32 %v5688, %v5843
  %v5845 = vpop.f32.mrf.mxu0
  %v5846 = vadd.f32 %v5690, %v5845
  %5847 = vdwg.mxu0
  %5848 = vmatprep.subr.mxu0 0.0
  %5849 = vmatpush1.msra.mxu0 0.0
  %5850 = vmatprep.subr.mxu0 0.0
  %5851 = vmatpush1.msra.mxu0 0.0
  %v5852 = vand.u32 %v5140, 4294901760
  %5853 = vmatprep.subr.mxu0 %v5852
  %v5854 = vand.u32 %v5139, 4294901760
  %5855 = vmatpush1.msra.mxu0 %v5854
  %v5856 = vand.u32 %v5138, 4294901760
  %5857 = vmatprep.subr.mxu0 %v5856
  %v5858 = vand.u32 %v5137, 4294901760
  %5859 = vmatpush1.msra.mxu0 %v5858
  %v5860 = vand.u32 %v5136, 4294901760
  %5861 = vmatprep.subr.mxu0 %v5860
  %v5862 = vand.u32 %v5135, 4294901760
  %5863 = vmatpush1.msra.mxu0 %v5862
  %v5864 = vand.u32 %v5134, 4294901760
  %5865 = vmatprep.subr.mxu0 %v5864
  %v5866 = vand.u32 %v5133, 4294901760
  %5867 = vmatpush1.msra.mxu0 %v5866
  %v5868 = vand.u32 %v5132, 4294901760
  %5869 = vmatprep.subr.mxu0 %v5868
  %v5870 = vand.u32 %v5131, 4294901760
  %5871 = vmatpush1.msra.mxu0 %v5870
  %v5872 = vand.u32 %v5130, 4294901760
  %5873 = vmatprep.subr.mxu0 %v5872
  %v5874 = vand.u32 %v5129, 4294901760
  %5875 = vmatpush1.msra.mxu0 %v5874
  %v5876 = vand.u32 %v5128, 4294901760
  %5877 = vmatprep.subr.mxu0 %v5876
  %v5878 = vand.u32 %v5127, 4294901760
  %5879 = vmatpush1.msra.mxu0 %v5878
  %v5880 = vand.u32 %v5126, 4294901760
  %5881 = vmatprep.subr.mxu0 %v5880
  %v5882 = vand.u32 %v5125, 4294901760
  %5883 = vmatpush1.msra.mxu0 %v5882
  %v5884 = vand.u32 %v5124, 4294901760
  %5885 = vmatprep.subr.mxu0 %v5884
  %v5886 = vand.u32 %v5123, 4294901760
  %5887 = vmatpush1.msra.mxu0 %v5886
  %v5888 = vand.u32 %v5122, 4294901760
  %5889 = vmatprep.subr.mxu0 %v5888
  %v5890 = vand.u32 %v5121, 4294901760
  %5891 = vmatpush1.msra.mxu0 %v5890
  %v5892 = vand.u32 %v5120, 4294901760
  %5893 = vmatprep.subr.mxu0 %v5892
  %v5894 = vand.u32 %v5119, 4294901760
  %5895 = vmatpush1.msra.mxu0 %v5894
  %v5896 = vand.u32 %v5118, 4294901760
  %5897 = vmatprep.subr.mxu0 %v5896
  %v5898 = vand.u32 %v5117, 4294901760
  %5899 = vmatpush1.msra.mxu0 %v5898
  %v5900 = vand.u32 %v5116, 4294901760
  %5901 = vmatprep.subr.mxu0 %v5900
  %v5902 = vand.u32 %v5115, 4294901760
  %5903 = vmatpush1.msra.mxu0 %v5902
  %v5904 = vand.u32 %v5114, 4294901760
  %5905 = vmatprep.subr.mxu0 %v5904
  %v5906 = vand.u32 %v5113, 4294901760
  %5907 = vmatpush1.msra.mxu0 %v5906
  %5908 = vmatprep.subr.mxu0 0.0
  %5909 = vmatpush2.msra.mxu0 0.0
  %5910 = vmatprep.subr.mxu0 0.0
  %5911 = vmatpush2.msra.mxu0 0.0
  %5912 = vmatprep.subr.mxu0 0.0
  %5913 = vmatpush2.msra.mxu0 0.0
  %5914 = vmatprep.subr.mxu0 0.0
  %5915 = vmatpush2.msra.mxu0 0.0
  %5916 = vmatprep.subr.mxu0 0.0
  %5917 = vmatpush2.msra.mxu0 0.0
  %5918 = vmatprep.subr.mxu0 0.0
  %5919 = vmatpush2.msra.mxu0 0.0
  %5920 = vmatprep.subr.mxu0 0.0
  %5921 = vmatpush2.msra.mxu0 0.0
  %5922 = vmatprep.subr.mxu0 0.0
  %5923 = vmatpush2.msra.mxu0 0.0
  %5924 = vmatprep.subr.mxu0 0.0
  %5925 = vmatpush2.msra.mxu0 0.0
  %5926 = vmatprep.subr.mxu0 0.0
  %5927 = vmatpush2.msra.mxu0 0.0
  %5928 = vmatprep.subr.mxu0 0.0
  %5929 = vmatpush2.msra.mxu0 0.0
  %5930 = vmatprep.subr.mxu0 0.0
  %5931 = vmatpush2.msra.mxu0 0.0
  %5932 = vmatprep.subr.mxu0 0.0
  %5933 = vmatpush2.msra.mxu0 0.0
  %5934 = vmatprep.subr.mxu0 0.0
  %5935 = vmatpush2.msra.mxu0 0.0
  %5936 = vmatprep.subr.mxu0 0.0
  %5937 = vmatpush2.msra.mxu0 0.0
  %5938 = vmatprep.subr.mxu0 0.0
  %5939 = vmatpush2.msra.mxu0 0.0
  %5940 = vmatprep.mubr.f32.mxu0 0.0
  %v5941 = vand.u32 %v5143, 4294901760
  %5942 = vmatmul.mubr.f32.gmra.mxu0 %v5941
  %v5943 = vpop.f32.mrf.mxu0
  %v5944 = vadd.f32 %v5844, %v5943
  %v5945 = vpop.f32.mrf.mxu0
  %v5946 = vadd.f32 %v5846, %v5945
  %5947 = vdwg.mxu0
  %5948 = vst [vmem:[%s7] sm:$0xff] %v5944
  %5949 = vst [vmem:[%s7 + $0x8] sm:$0xff] %v5946
  // Predicated region
  $region30: #{ans_encoder_forward.1} parent=0 // pred_check
    _
  $region31: #{ans_encoder_forward.1} parent=0 // pred_check_branch
    %5951 = sbr.rel (0) target = $region33
  $region32: #{ans_encoder_forward.1} parent=0 // pred_region
    _
  $region33: #{ans_encoder_forward.1} parent=0 // pred_fallthru
    _
  // Predicated region
  $region34: #{ans_encoder_forward.1} parent=0 // pred_check
    _
  $region35: #{ans_encoder_forward.1} parent=0 // pred_check_branch
    %5953 = sbr.rel (0) target = $region37
  $region36: #{ans_encoder_forward.1} parent=0 // pred_region
    _
  $region37: #{ans_encoder_forward.1} parent=0 // pred_fallthru
    _

</llo_original>
